<compile_context>
chip_gen: v5e
topology: v5e:2x2
jax: 0.10.0
libtpu: 0.0.40
codegen_flags: <defaults>
</compile_context>

<pallas_src>
import functools

import jax
import jax.numpy as jnp
from jax import lax
from jax.experimental import pallas as pl
from jax.experimental.pallas import tpu as pltpu

LN_EPS = 1e-5
_NEG_INF = -1e30
_F32 = jnp.float32
_BF16 = jnp.bfloat16


def _round_up(x, m):
    return (x + m - 1) // m * m


def _layer_norm(x, w, b):
    """LayerNorm over the last axis in f32. x: (..., D); w, b: (1, D)."""
    mu = jnp.mean(x, axis=-1, keepdims=True)
    var = jnp.mean((x - mu) ** 2, axis=-1, keepdims=True)
    return (x - mu) * lax.rsqrt(var + LN_EPS) * w + b


def _vmem_budget_bytes():
    """~75% of physical VMEM (compiler headroom); conservative fallback."""
    try:
        info = pltpu.get_tpu_info()
        for name in ("vmem_capacity_bytes", "vmem_bytes", "vmem_size_bytes"):
            cap = getattr(info, name, None)
            if cap:
                return min(int(cap) * 3 // 4, 100 * 1024 * 1024)
    except Exception:
        pass
    return 48 * 1024 * 1024  # safe on v7x (64 MiB) and below the v5e/v6e cap


def _pick_mlp_chunks(d4, target=2048):
    """Number of MLP hidden-dim chunks: divisor of d4, chunk <= target, lane aligned."""
    if d4 <= target:
        return 1
    for req_lane in (True, False):
        nc = 2
        while nc <= d4:
            if d4 % nc == 0:
                ch = d4 // nc
                if ch <= target and (ch % 128 == 0 or not req_lane):
                    return nc
            nc += 1
    return 1


def _step_vmem_bytes(bt, *, sp, d, heads, d4, ch, n_patch, k_in, out_dim):
    """Rough per-grid-step VMEM footprint (bytes) used to size the batch tile."""
    per_layer_w = (3 * d * d + d * d + 2 * d * d4) * 2      # bf16 weights of one layer
    weights = 2 * per_layer_w                               # double-buffered on layer axis
    consts = (k_in * d + d * out_dim) * 2 + (sp * d + 8 * d) * 4
    m = bt * sp
    act = m * d * 4                                         # f32 residual carry scratch
    act += m * 3 * d * 4                                    # f32 qkv
    act += 2 * bt * heads * sp * sp * 4                     # f32 scores + probs
    act += 2 * m * ch * 4                                   # f32 MLP hidden chunk
    act += 3 * m * d * 4                                    # f32 ln / ctx / attn temporaries
    io = 2 * bt * n_patch * k_in * 2 + 2 * bt * out_dim * 4
    return weights + consts + act + io


def _pick_block_b(batch, est_fn, budget):
    """Largest batch tile that fits VMEM and keeps >= 2 grid steps (v7x megacore)."""
    cands = [c for c in (8, 4, 2, 1) if batch % c == 0]
    fitting = [c for c in cands if est_fn(c) <= budget] or [min(cands)]
    multi = [c for c in fitting if batch // c >= 2]
    return max(multi) if multi else max(fitting)


# ---------------------------------------------------------------------------
# Fused ViT kernel: one (batch-tile, layer) grid step.
# ---------------------------------------------------------------------------
def vit_fused_kernel(
    patch_ref, wconv_ref, cls_ref, pos_ref, lnpre_w, lnpre_b,
    ln1_w, ln1_b, wqkv_ref, bqkv_ref, wo_ref, bo_ref,
    ln2_w, ln2_b, wfc_ref, bfc_ref, wpr_ref, bpr_ref,
    lnpost_w, lnpost_b, proj_ref,
    out_ref, carry_ref,
    *, n_head, seq_len,
):
    """grid = (B // Bt, L); axis 0 'parallel' (batch tiles), axis 1 'arbitrary' (layers).

    The f32 residual stream lives in carry_ref (VMEM scratch) for the whole layer
    loop: built at l == 0 (patch matmul + CLS + pos + ln_pre), updated in place
    every layer, reduced to ln_post(CLS) @ proj at l == L-1.
    """
    l = pl.program_id(1)
    n_layers = pl.num_programs(1)

    bt, n_patch, _ = patch_ref.shape
    sp, d = pos_ref.shape
    nh = n_head
    dh = d // nh
    m = bt * sp

    # -------- layer-0 prologue: patch embed + CLS + pos + ln_pre --------
    @pl.when(l == 0)
    def _():
        tok = jnp.einsum("bnk,kd->bnd", patch_ref[...], wconv_ref[...],
                         preferred_element_type=_F32)                    # (bt, Np, d)
        cls = jnp.broadcast_to(cls_ref[...].astype(_F32)[None, :, :], (bt, 1, d))
        pieces = [cls, tok]
        n_pad = sp - n_patch - 1
        if n_pad > 0:  # padded rows: zeros (+ zero pos rows); their keys are masked below
            pieces.append(jnp.zeros((bt, n_pad, d), _F32))
        full = jnp.concatenate(pieces, axis=1) + pos_ref[...].astype(_F32)[None]
        carry_ref[...] = _layer_norm(full.reshape(m, d),
                                     lnpre_w[...].astype(_F32),
                                     lnpre_b[...].astype(_F32))

    x = carry_ref[...]                                                    # (m, d) f32

    # -------- x = x + attn(ln_1(x)) --------
    h1 = _layer_norm(x, ln1_w[...].astype(_F32), ln1_b[...].astype(_F32))
    qkv = jnp.dot(h1.astype(_BF16), wqkv_ref[...],
                  preferred_element_type=_F32) + bqkv_ref[...].astype(_F32)  # (m, 3d)

    def to_heads(z):  # (m, d) -> (bt*nh, sp, dh) bf16: single relayout, no per-head slices
        z = z.astype(_BF16).reshape(bt, sp, nh, dh).transpose(0, 2, 1, 3)
        return z.reshape(bt * nh, sp, dh)

    q = to_heads(qkv[:, :d])              # query scale pre-folded into wqkv / bqkv
    k = to_heads(qkv[:, d:2 * d])
    v = to_heads(qkv[:, 2 * d:])

    s = jnp.einsum("nqd,nkd->nqk", q, k, preferred_element_type=_F32)     # (bt*nh, sp, sp)
    if sp != seq_len:                     # mask padded key rows
        kmask = lax.broadcasted_iota(jnp.int32, (1, 1, sp), 2) < seq_len
        s = jnp.where(kmask, s, _NEG_INF)
    s = s - jnp.max(s, axis=-1, keepdims=True)
    p = jnp.exp(s)
    p = p * pl.reciprocal(jnp.sum(p, axis=-1, keepdims=True), approx=True)

    ctx = jnp.einsum("nqk,nkd->nqd", p.astype(_BF16), v,
                     preferred_element_type=_F32)                         # (bt*nh, sp, dh)
    ctx = (ctx.astype(_BF16).reshape(bt, nh, sp, dh)
           .transpose(0, 2, 1, 3).reshape(m, d))
    attn = jnp.dot(ctx, wo_ref[...],
                   preferred_element_type=_F32) + bo_ref[...].astype(_F32)
    x = x + attn

    # -------- x = x + mlp(ln_2(x))  (QuickGELU), hidden dim chunked --------
    h2 = _layer_norm(x, ln2_w[...].astype(_F32), ln2_b[...].astype(_F32)).astype(_BF16)
    carry_ref[...] = x + bpr_ref[...].astype(_F32)   # residual + c_proj bias; MLP accumulates

    n_chunks = wfc_ref.shape[0]           # weights pre-chunked along the 4*d hidden dim

    def mlp_chunk(c, dummy):
        hf = jnp.dot(h2, wfc_ref[c], preferred_element_type=_F32) + bfc_ref[c].astype(_F32)
        hf = hf * jax.nn.sigmoid(1.702 * hf)          # QuickGELU in f32
        carry_ref[...] = carry_ref[...] + jnp.dot(
            hf.astype(_BF16), wpr_ref[c], preferred_element_type=_F32)
        return dummy

    lax.fori_loop(0, n_chunks, mlp_chunk, 0)

    # -------- last layer: ln_post(CLS) @ proj --------
    @pl.when(l == n_layers - 1)
    def _():
        cls_tok = carry_ref[...].reshape(bt, sp, d)[:, 0, :]              # (bt, d)
        hp = _layer_norm(cls_tok, lnpost_w[...].astype(_F32), lnpost_b[...].astype(_F32))
        res = jnp.dot(hp.astype(_BF16), proj_ref[...], preferred_element_type=_F32)
        out_ref[...] = res[:, None, :].astype(out_ref.dtype)


# ---------------------------------------------------------------------------
# Wrapper
# ---------------------------------------------------------------------------
def vision_transformer_forward(x, params, *, patch_size, n_head):
    B, C, Himg, Wimg = x.shape
    P = patch_size
    assert Himg % P == 0 and Wimg % P == 0, "H/W must be multiples of patch_size"
    hp_, wp_ = Himg // P, Wimg // P
    n_patch = hp_ * wp_
    k_in = C * P * P

    w_patch = params["w_patch"]                  # (K, D) bf16
    d = w_patch.shape[1]
    assert d % n_head == 0
    pos = params["pos"]                          # (Sp, D) f32, zero-padded rows
    sp = pos.shape[0]
    s_len = n_patch + 1
    assert sp >= s_len and sp % 8 == 0
    out_dim = params["proj"].shape[1]
    n_layers = params["wqkv"].shape[0]
    n_chunks = params["wfc"].shape[1]
    ch = params["wfc"].shape[-1]
    d4 = n_chunks * ch

    # conv1 (stride == kernel == patch_size, no bias) == patchify (layout glue)
    # + in-kernel matmul at layer 0.
    xp = x.reshape(B, C, hp_, P, wp_, P).transpose(0, 2, 4, 1, 3, 5)
    xp = xp.reshape(B, n_patch, k_in).astype(_BF16)

    budget = _vmem_budget_bytes()
    est = functools.partial(_step_vmem_bytes, sp=sp, d=d, heads=n_head, d4=d4,
                            ch=ch, n_patch=n_patch, k_in=k_in, out_dim=out_dim)
    bt = _pick_block_b(B, est, budget)
    nb = B // bt

    kernel = functools.partial(vit_fused_kernel, n_head=n_head, seq_len=s_len)

    def const_spec(a):  # resident constants (fetched once per batch tile)
        return pl.BlockSpec(a.shape, lambda b, l, nd=a.ndim: (0,) * nd)

    def layer_spec(a):  # stacked (L, ...) weights indexed along the layer grid axis
        return pl.BlockSpec((None,) + a.shape[1:],
                            lambda b, l, nd=a.ndim: (l,) + (0,) * (nd - 1))

    in_specs = [
        pl.BlockSpec((bt, n_patch, k_in), lambda b, l: (b, 0, 0)),        # patches
        const_spec(w_patch), const_spec(params["cls"]), const_spec(pos),
        const_spec(params["ln_pre_w"]), const_spec(params["ln_pre_b"]),
        layer_spec(params["ln1_w"]), layer_spec(params["ln1_b"]),
        layer_spec(params["wqkv"]), layer_spec(params["bqkv"]),
        layer_spec(params["wo"]), layer_spec(params["bo"]),
        layer_spec(params["ln2_w"]), layer_spec(params["ln2_b"]),
        layer_spec(params["wfc"]), layer_spec(params["bfc"]),
        layer_spec(params["wpr"]), layer_spec(params["bpr"]),
        const_spec(params["ln_post_w"]), const_spec(params["ln_post_b"]),
        const_spec(params["proj"]),
    ]

    out = pl.pallas_call(
        kernel,
        out_shape=jax.ShapeDtypeStruct((B, 1, out_dim), jnp.float32),
        grid=(nb, n_layers),
        in_specs=in_specs,
        out_specs=pl.BlockSpec((bt, 1, out_dim), lambda b, l: (b, 0, 0)),
        scratch_shapes=[pltpu.VMEM((bt * sp, d), jnp.float32)],            # f32 residual carry
        compiler_params=pltpu.CompilerParams(
            dimension_semantics=("parallel", "arbitrary"),
            vmem_limit_bytes=int(budget),
        ),
    )(xp, w_patch, params["cls"], pos,
      params["ln_pre_w"], params["ln_pre_b"],
      params["ln1_w"], params["ln1_b"], params["wqkv"], params["bqkv"],
      params["wo"], params["bo"], params["ln2_w"], params["ln2_b"],
      params["wfc"], params["bfc"], params["wpr"], params["bpr"],
      params["ln_post_w"], params["ln_post_b"], params["proj"])

    return out[:, 0, :]


# ---------------------------------------------------------------------------
# Deterministic, kernel-ready parameters (shapes follow the PyTorch __init__).
# One-time transforms done HERE (not per forward call):
#   conv1 weight -> (K, D) bf16 patch matrix; pos embedding zero-padded to the
#   16-aligned sequence; Dh**-0.5 folded into the Q slice of the in-projection;
#   per-layer weights stacked with a leading layer axis; MLP weights
#   pre-chunked along the 4*D hidden dim.  Matmul weights are bf16 (f32
#   accumulation in-kernel); LN params and biases stay f32.
# ---------------------------------------------------------------------------
def init_params(key, *, input_resolution, patch_size, width, layers, heads, output_dim):
    D, P, L = width, patch_size, layers
    K = 3 * P * P
    Np = (input_resolution // P) ** 2
    S = Np + 1
    Sp = _round_up(S, 16)
    Dh = D // heads
    scale = D ** -0.5
    keys = jax.random.split(key, 4 + L)

    conv_w = 0.02 * jax.random.normal(keys[0], (D, 3, P, P), jnp.float32)
    w_patch = jnp.transpose(conv_w.reshape(D, K)).astype(_BF16)            # (K, D)

    pos = scale * jax.random.normal(keys[2], (S, D), jnp.float32)
    pos = jnp.pad(pos, ((0, Sp - S), (0, 0)))                              # (Sp, D)

    q_scale = jnp.concatenate([jnp.full((D,), Dh ** -0.5, jnp.float32),
                               jnp.ones((2 * D,), jnp.float32)])[None, :]

    D4 = 4 * D
    NC = _pick_mlp_chunks(D4)
    CH = D4 // NC

    def make_layer(k):
        ks = jax.random.split(k, 8)
        wqkv = 0.02 * jax.random.normal(ks[0], (D, 3 * D), jnp.float32) * q_scale
        bqkv = 0.02 * jax.random.normal(ks[1], (1, 3 * D), jnp.float32) * q_scale
        wfc = 0.02 * jax.random.normal(ks[4], (D, D4), jnp.float32)
        bfc = 0.02 * jax.random.normal(ks[5], (1, D4), jnp.float32)
        wpr = 0.02 * jax.random.normal(ks[6], (D4, D), jnp.float32)
        return dict(
            ln1_w=jnp.ones((1, D), jnp.float32), ln1_b=jnp.zeros((1, D), jnp.float32),
            wqkv=wqkv.astype(_BF16), bqkv=bqkv,
            wo=(0.02 * jax.random.normal(ks[2], (D, D), jnp.float32)).astype(_BF16),
            bo=0.02 * jax.random.normal(ks[3], (1, D), jnp.float32),
            ln2_w=jnp.ones((1, D), jnp.float32), ln2_b=jnp.zeros((1, D), jnp.float32),
            # pre-chunked MLP weights: (NC, D, CH), (NC, 1, CH), (NC, CH, D)
            wfc=wfc.reshape(D, NC, CH).transpose(1, 0, 2).astype(_BF16),
            bfc=bfc.reshape(NC, 1, CH),
            wpr=wpr.reshape(NC, CH, D).astype(_BF16),
            bpr=0.02 * jax.random.normal(ks[7], (1, D), jnp.float32),
        )

    per_layer = [make_layer(keys[4 + i]) for i in range(L)]
    stacked = {name: jnp.stack([lyr[name] for lyr in per_layer], axis=0)
               for name in per_layer[0]}

    params = dict(
        w_patch=w_patch,
        cls=scale * jax.random.normal(keys[1], (1, D), jnp.float32),
        pos=pos,
        ln_pre_w=jnp.ones((1, D), jnp.float32), ln_pre_b=jnp.zeros((1, D), jnp.float32),
        ln_post_w=jnp.ones((1, D), jnp.float32), ln_post_b=jnp.zeros((1, D), jnp.float32),
        proj=(scale * jax.random.normal(keys[3], (D, output_dim), jnp.float32)).astype(_BF16),
    )
    params.update(stacked)
    return params


if __name__ == "__main__":
    # Small config: 16x16 image, patch 4 -> 16 patches (+1 CLS = 17 tokens, padded to 32).
    # width=256, heads=2 -> head_dim=128 (lane aligned); 2 layers; output_dim=128.
    B = 2
    input_resolution = 16
    patch_size = 4
    width = 256
    layers = 2
    heads = 2
    output_dim = 128

    key = jax.random.PRNGKey(0)
    kp, kx = jax.random.split(key)
    params = init_params(
        kp,
        input_resolution=input_resolution,
        patch_size=patch_size,
        width=width,
        layers=layers,
        heads=heads,
        output_dim=output_dim,
    )
    x = jax.random.normal(kx, (B, 3, input_resolution, input_resolution), jnp.float32)

    fwd = jax.jit(functools.partial(vision_transformer_forward,
                                    patch_size=patch_size, n_head=heads))
    out = fwd(x, params)
    jax.block_until_ready(out)
    assert out.shape == (B, output_dim), out.shape
    assert out.dtype == jnp.float32
    assert bool(jnp.all(jnp.isfinite(out)))
    print("KERNEL_OK")
</pallas_src>

<mosaic_0001>
module attributes {stable_mosaic.version = 11 : i64} {
  func.func @vit_fused_kernel(%arg0: i32, %arg1: i32, %arg2: memref<1x16x48xbf16, #tpu.memory_space<vmem>>, %arg3: memref<48x256xbf16, #tpu.memory_space<vmem>>, %arg4: memref<1x256xf32, #tpu.memory_space<vmem>>, %arg5: memref<32x256xf32, #tpu.memory_space<vmem>>, %arg6: memref<1x256xf32, #tpu.memory_space<vmem>>, %arg7: memref<1x256xf32, #tpu.memory_space<vmem>>, %arg8: memref<1x1x256xf32, #tpu.memory_space<vmem>>, %arg9: memref<1x1x256xf32, #tpu.memory_space<vmem>>, %arg10: memref<1x256x768xbf16, #tpu.memory_space<vmem>>, %arg11: memref<1x1x768xf32, #tpu.memory_space<vmem>>, %arg12: memref<1x256x256xbf16, #tpu.memory_space<vmem>>, %arg13: memref<1x1x256xf32, #tpu.memory_space<vmem>>, %arg14: memref<1x1x256xf32, #tpu.memory_space<vmem>>, %arg15: memref<1x1x256xf32, #tpu.memory_space<vmem>>, %arg16: memref<1x1x256x1024xbf16, #tpu.memory_space<vmem>>, %arg17: memref<1x1x1x1024xf32, #tpu.memory_space<vmem>>, %arg18: memref<1x1x1024x256xbf16, #tpu.memory_space<vmem>>, %arg19: memref<1x1x256xf32, #tpu.memory_space<vmem>>, %arg20: memref<1x256xf32, #tpu.memory_space<vmem>>, %arg21: memref<1x256xf32, #tpu.memory_space<vmem>>, %arg22: memref<256x128xbf16, #tpu.memory_space<vmem>>, %arg23: memref<1x1x128xf32, #tpu.memory_space<vmem>>, %arg24: memref<32x256xf32, #tpu.memory_space<vmem>>) attributes {dimension_semantics = [#tpu.dimension_semantics<parallel>, #tpu.dimension_semantics<arbitrary>], iteration_bounds = array<i64: 2, 2>, scalar_prefetch = 0 : i64, scratch_operands = 1 : i64, tpu.core_type = #tpu.core_type<tc>, window_params = [{transform_indices = @transform_0, window_bounds = array<i64: 1, 16, 48>}, {pipeline_mode = #tpu.pipeline_mode<synchronous>, transform_indices = @transform_1, window_bounds = array<i64: 48, 256>}, {pipeline_mode = #tpu.pipeline_mode<synchronous>, transform_indices = @transform_2, window_bounds = array<i64: 1, 256>}, {pipeline_mode = #tpu.pipeline_mode<synchronous>, transform_indices = @transform_3, window_bounds = array<i64: 32, 256>}, {pipeline_mode = #tpu.pipeline_mode<synchronous>, transform_indices = @transform_4, window_bounds = array<i64: 1, 256>}, {pipeline_mode = #tpu.pipeline_mode<synchronous>, transform_indices = @transform_5, window_bounds = array<i64: 1, 256>}, {transform_indices = @transform_6, window_bounds = array<i64: 1, 1, 256>}, {transform_indices = @transform_7, window_bounds = array<i64: 1, 1, 256>}, {transform_indices = @transform_8, window_bounds = array<i64: 1, 256, 768>}, {transform_indices = @transform_9, window_bounds = array<i64: 1, 1, 768>}, {transform_indices = @transform_10, window_bounds = array<i64: 1, 256, 256>}, {transform_indices = @transform_11, window_bounds = array<i64: 1, 1, 256>}, {transform_indices = @transform_12, window_bounds = array<i64: 1, 1, 256>}, {transform_indices = @transform_13, window_bounds = array<i64: 1, 1, 256>}, {transform_indices = @transform_14, window_bounds = array<i64: 1, 1, 256, 1024>}, {transform_indices = @transform_15, window_bounds = array<i64: 1, 1, 1, 1024>}, {transform_indices = @transform_16, window_bounds = array<i64: 1, 1, 1024, 256>}, {transform_indices = @transform_17, window_bounds = array<i64: 1, 1, 256>}, {pipeline_mode = #tpu.pipeline_mode<synchronous>, transform_indices = @transform_18, window_bounds = array<i64: 1, 256>}, {pipeline_mode = #tpu.pipeline_mode<synchronous>, transform_indices = @transform_19, window_bounds = array<i64: 1, 256>}, {pipeline_mode = #tpu.pipeline_mode<synchronous>, transform_indices = @transform_20, window_bounds = array<i64: 256, 128>}, {transform_indices = @transform_21, window_bounds = array<i64: 1, 1, 128>}]} {
    %c0_i32 = arith.constant 0 : i32
    %0 = arith.cmpi eq, %arg1, %c0_i32 : i32
    %1 = arith.extui %0 : i1 to i32
    %c0_i32_0 = arith.constant 0 : i32
    %2 = arith.cmpi ne, %1, %c0_i32_0 : i32
    scf.if %2 {
      %c0_67 = arith.constant 0 : index
      %c0_68 = arith.constant 0 : index
      %c0_69 = arith.constant 0 : index
      %145 = vector.load %arg2[%c0_67, %c0_68, %c0_69] : memref<1x16x48xbf16, #tpu.memory_space<vmem>>, vector<1x16x48xbf16>
      %c0_70 = arith.constant 0 : index
      %c0_71 = arith.constant 0 : index
      %146 = vector.load %arg3[%c0_70, %c0_71] : memref<48x256xbf16, #tpu.memory_space<vmem>>, vector<48x256xbf16>
      "tpu.trace_start"() <{level = 10 : i32, message = "bnk,kd->bnd"}> : () -> ()
      %cst_72 = arith.constant dense<0.000000e+00> : vector<1x16x256xf32>
      %147 = tpu.matmul %145, %146, %cst_72 {dimension_numbers = #tpu.dot_dimension_numbers<[2], [0], [0, 1], [1], [0, 0, 0, 1, 1, 1], [], []>} : vector<1x16x48xbf16>, vector<48x256xbf16>, vector<1x16x256xf32> -> vector<1x16x256xf32>
      "tpu.trace_stop"() : () -> ()
      %c0_73 = arith.constant 0 : index
      %c0_74 = arith.constant 0 : index
      %148 = vector.load %arg4[%c0_73, %c0_74] : memref<1x256xf32, #tpu.memory_space<vmem>>, vector<1x256xf32>
      %149 = vector.shape_cast %148 : vector<1x256xf32> to vector<1x1x256xf32>
      %cst_75 = arith.constant 0.000000e+00 : f32
      %150 = vector.broadcast %cst_75 : f32 to vector<1x15x256xf32>
      %151 = tpu.concatenate %149, %147, %150 in 1 : vector<1x1x256xf32>, vector<1x16x256xf32>, vector<1x15x256xf32> -> vector<1x32x256xf32>
      %c0_76 = arith.constant 0 : index
      %c0_77 = arith.constant 0 : index
      %152 = vector.load %arg5[%c0_76, %c0_77] : memref<32x256xf32, #tpu.memory_space<vmem>>, vector<32x256xf32>
      %153 = vector.shape_cast %152 : vector<32x256xf32> to vector<1x32x256xf32>
      %154 = arith.addf %151, %153 : vector<1x32x256xf32>
      %155 = vector.shape_cast %154 : vector<1x32x256xf32> to vector<32x256xf32>
      %c0_78 = arith.constant 0 : index
      %c0_79 = arith.constant 0 : index
      %156 = vector.load %arg6[%c0_78, %c0_79] : memref<1x256xf32, #tpu.memory_space<vmem>>, vector<1x256xf32>
      %c0_80 = arith.constant 0 : index
      %c0_81 = arith.constant 0 : index
      %157 = vector.load %arg7[%c0_80, %c0_81] : memref<1x256xf32, #tpu.memory_space<vmem>>, vector<1x256xf32>
      %cst_82 = arith.constant dense<0.000000e+00> : vector<32xf32>
      %158 = vector.multi_reduction <add>, %155, %cst_82 [1] : vector<32x256xf32> to vector<32xf32>
      %159 = vector.shape_cast %158 : vector<32xf32> to vector<32x1xf32>
      %cst_83 = arith.constant 2.560000e+02 : f32
      %160 = vector.broadcast %cst_83 : f32 to vector<32x1xf32>
      %161 = arith.divf %159, %160 : vector<32x1xf32>
      %162 = vector.broadcast %161 : vector<32x1xf32> to vector<32x256xf32>
      %163 = arith.subf %155, %162 : vector<32x256xf32>
      %164 = arith.mulf %163, %163 : vector<32x256xf32>
      %cst_84 = arith.constant dense<0.000000e+00> : vector<32xf32>
      %165 = vector.multi_reduction <add>, %164, %cst_84 [1] : vector<32x256xf32> to vector<32xf32>
      %166 = vector.shape_cast %165 : vector<32xf32> to vector<32x1xf32>
      %cst_85 = arith.constant 2.560000e+02 : f32
      %167 = vector.broadcast %cst_85 : f32 to vector<32x1xf32>
      %168 = arith.divf %166, %167 : vector<32x1xf32>
      %169 = vector.broadcast %161 : vector<32x1xf32> to vector<32x256xf32>
      %170 = arith.subf %155, %169 : vector<32x256xf32>
      %cst_86 = arith.constant 9.99999974E-6 : f32
      %171 = vector.broadcast %cst_86 : f32 to vector<32x1xf32>
      %172 = arith.addf %168, %171 : vector<32x1xf32>
      %173 = math.rsqrt %172 : vector<32x1xf32>
      %174 = vector.broadcast %173 : vector<32x1xf32> to vector<32x256xf32>
      %175 = arith.mulf %170, %174 : vector<32x256xf32>
      %176 = vector.broadcast %156 : vector<1x256xf32> to vector<32x256xf32>
      %177 = arith.mulf %175, %176 : vector<32x256xf32>
      %178 = vector.broadcast %157 : vector<1x256xf32> to vector<32x256xf32>
      %179 = arith.addf %177, %178 : vector<32x256xf32>
      %c0_87 = arith.constant 0 : index
      %c0_88 = arith.constant 0 : index
      %180 = vector.load %arg24[%c0_87, %c0_88] : memref<32x256xf32, #tpu.memory_space<vmem>>, vector<32x256xf32>
      tpu.vector_store %arg24[%c0_87, %c0_88], %179 {strides = array<i32>} : memref<32x256xf32, #tpu.memory_space<vmem>>, vector<32x256xf32>,
    } else {
    }
    %c0 = arith.constant 0 : index
    %c0_1 = arith.constant 0 : index
    %3 = vector.load %arg24[%c0, %c0_1] : memref<32x256xf32, #tpu.memory_space<vmem>>, vector<32x256xf32>
    %c0_2 = arith.constant 0 : index
    %c0_3 = arith.constant 0 : index
    %c0_4 = arith.constant 0 : index
    %4 = vector.load %arg8[%c0_2, %c0_3, %c0_4] : memref<1x1x256xf32, #tpu.memory_space<vmem>>, vector<1x1x256xf32>
    %5 = vector.shape_cast %4 : vector<1x1x256xf32> to vector<1x256xf32>
    %c0_5 = arith.constant 0 : index
    %c0_6 = arith.constant 0 : index
    %c0_7 = arith.constant 0 : index
    %6 = vector.load %arg9[%c0_5, %c0_6, %c0_7] : memref<1x1x256xf32, #tpu.memory_space<vmem>>, vector<1x1x256xf32>
    %7 = vector.shape_cast %6 : vector<1x1x256xf32> to vector<1x256xf32>
    %cst = arith.constant dense<0.000000e+00> : vector<32xf32>
    %8 = vector.multi_reduction <add>, %3, %cst [1] : vector<32x256xf32> to vector<32xf32>
    %9 = vector.shape_cast %8 : vector<32xf32> to vector<32x1xf32>
    %cst_8 = arith.constant 2.560000e+02 : f32
    %10 = vector.broadcast %cst_8 : f32 to vector<32x1xf32>
    %11 = arith.divf %9, %10 : vector<32x1xf32>
    %12 = vector.broadcast %11 : vector<32x1xf32> to vector<32x256xf32>
    %13 = arith.subf %3, %12 : vector<32x256xf32>
    %14 = arith.mulf %13, %13 : vector<32x256xf32>
    %cst_9 = arith.constant dense<0.000000e+00> : vector<32xf32>
    %15 = vector.multi_reduction <add>, %14, %cst_9 [1] : vector<32x256xf32> to vector<32xf32>
    %16 = vector.shape_cast %15 : vector<32xf32> to vector<32x1xf32>
    %cst_10 = arith.constant 2.560000e+02 : f32
    %17 = vector.broadcast %cst_10 : f32 to vector<32x1xf32>
    %18 = arith.divf %16, %17 : vector<32x1xf32>
    %19 = vector.broadcast %11 : vector<32x1xf32> to vector<32x256xf32>
    %20 = arith.subf %3, %19 : vector<32x256xf32>
    %cst_11 = arith.constant 9.99999974E-6 : f32
    %21 = vector.broadcast %cst_11 : f32 to vector<32x1xf32>
    %22 = arith.addf %18, %21 : vector<32x1xf32>
    %23 = math.rsqrt %22 : vector<32x1xf32>
    %24 = vector.broadcast %23 : vector<32x1xf32> to vector<32x256xf32>
    %25 = arith.mulf %20, %24 : vector<32x256xf32>
    %26 = vector.broadcast %5 : vector<1x256xf32> to vector<32x256xf32>
    %27 = arith.mulf %25, %26 : vector<32x256xf32>
    %28 = vector.broadcast %7 : vector<1x256xf32> to vector<32x256xf32>
    %29 = arith.addf %27, %28 : vector<32x256xf32>
    %30 = arith.truncf %29 : vector<32x256xf32> to vector<32x256xbf16>
    %c0_12 = arith.constant 0 : index
    %c0_13 = arith.constant 0 : index
    %c0_14 = arith.constant 0 : index
    %31 = vector.load %arg10[%c0_12, %c0_13, %c0_14] : memref<1x256x768xbf16, #tpu.memory_space<vmem>>, vector<1x256x768xbf16>
    %32 = vector.shape_cast %31 : vector<1x256x768xbf16> to vector<256x768xbf16>
    %cst_15 = arith.constant dense<0.000000e+00> : vector<32x768xf32>
    %33 = tpu.matmul %30, %32, %cst_15 {dimension_numbers = #tpu.dot_dimension_numbers<[1], [0], [0], [1], [0, 0, 1, 1], [], []>} : vector<32x256xbf16>, vector<256x768xbf16>, vector<32x768xf32> -> vector<32x768xf32>
    %c0_16 = arith.constant 0 : index
    %c0_17 = arith.constant 0 : index
    %c0_18 = arith.constant 0 : index
    %34 = vector.load %arg11[%c0_16, %c0_17, %c0_18] : memref<1x1x768xf32, #tpu.memory_space<vmem>>, vector<1x1x768xf32>
    %35 = vector.shape_cast %34 : vector<1x1x768xf32> to vector<1x768xf32>
    %36 = vector.broadcast %35 : vector<1x768xf32> to vector<32x768xf32>
    %37 = arith.addf %33, %36 : vector<32x768xf32>
    %38 = vector.extract_strided_slice %37 {offsets = [0, 0], sizes = [32, 256], strides = [1, 1]} : vector<32x768xf32> to vector<32x256xf32>
    %39 = arith.truncf %38 : vector<32x256xf32> to vector<32x256xbf16>
    %40 = vector.shape_cast %39 : vector<32x256xbf16> to vector<1x32x2x128xbf16>
    %41 = tpu.transpose %40, [0, 2, 1, 3] : vector<1x32x2x128xbf16> -> vector<1x2x32x128xbf16>
    %42 = vector.shape_cast %41 : vector<1x2x32x128xbf16> to vector<2x32x128xbf16>
    %43 = vector.extract_strided_slice %37 {offsets = [0, 256], sizes = [32, 256], strides = [1, 1]} : vector<32x768xf32> to vector<32x256xf32>
    %44 = arith.truncf %43 : vector<32x256xf32> to vector<32x256xbf16>
    %45 = vector.shape_cast %44 : vector<32x256xbf16> to vector<1x32x2x128xbf16>
    %46 = tpu.transpose %45, [0, 2, 1, 3] : vector<1x32x2x128xbf16> -> vector<1x2x32x128xbf16>
    %47 = vector.shape_cast %46 : vector<1x2x32x128xbf16> to vector<2x32x128xbf16>
    %48 = vector.extract_strided_slice %37 {offsets = [0, 512], sizes = [32, 256], strides = [1, 1]} : vector<32x768xf32> to vector<32x256xf32>
    %49 = arith.truncf %48 : vector<32x256xf32> to vector<32x256xbf16>
    %50 = vector.shape_cast %49 : vector<32x256xbf16> to vector<1x32x2x128xbf16>
    %51 = tpu.transpose %50, [0, 2, 1, 3] : vector<1x32x2x128xbf16> -> vector<1x2x32x128xbf16>
    %52 = vector.shape_cast %51 : vector<1x2x32x128xbf16> to vector<2x32x128xbf16>
    "tpu.trace_start"() <{level = 10 : i32, message = "nqd,nkd->nqk"}> : () -> ()
    %cst_19 = arith.constant dense<0.000000e+00> : vector<2x32x32xf32>
    %53 = tpu.matmul %42, %47, %cst_19 {dimension_numbers = #tpu.dot_dimension_numbers<[2], [2], [1], [1], [0, 0, 0, 1, 1, 1], [0], [0]>} : vector<2x32x128xbf16>, vector<2x32x128xbf16>, vector<2x32x32xf32> -> vector<2x32x32xf32>
    "tpu.trace_stop"() : () -> ()
    %54 = tpu.iota {dimensions = array<i32: 2>} : vector<1x1x32xi32>
    %c17_i32 = arith.constant 17 : i32
    %55 = vector.broadcast %c17_i32 : i32 to vector<1x1x32xi32>
    %56 = arith.cmpi slt, %54, %55 : vector<1x1x32xi32>
    %cst_20 = arith.constant -1.000000e+30 : f32
    %57 = vector.shape_cast %56 : vector<1x1x32xi1> to vector<1x1x32xi1>
    %58 = vector.broadcast %57 : vector<1x1x32xi1> to vector<2x32x32xi1>
    %59 = vector.broadcast %cst_20 : f32 to vector<2x32x32xf32>
    %60 = arith.select %58, %53, %59 : vector<2x32x32xi1>, vector<2x32x32xf32>
    %cst_21 = arith.constant dense<0xFF800000> : vector<2x32xf32>
    %61 = vector.multi_reduction <maximumf>, %60, %cst_21 [2] : vector<2x32x32xf32> to vector<2x32xf32>
    %62 = vector.shape_cast %61 : vector<2x32xf32> to vector<2x32x1xf32>
    %63 = vector.broadcast %62 : vector<2x32x1xf32> to vector<2x32x32xf32>
    %64 = arith.subf %60, %63 : vector<2x32x32xf32>
    %65 = math.exp %64 : vector<2x32x32xf32>
    %cst_22 = arith.constant dense<0.000000e+00> : vector<2x32xf32>
    %66 = vector.multi_reduction <add>, %65, %cst_22 [2] : vector<2x32x32xf32> to vector<2x32xf32>
    %67 = vector.shape_cast %66 : vector<2x32xf32> to vector<2x32x1xf32>
    %68 = tpu.reciprocal %67 {approx = true} : vector<2x32x1xf32> -> vector<2x32x1xf32>
    %69 = vector.broadcast %68 : vector<2x32x1xf32> to vector<2x32x32xf32>
    %70 = arith.mulf %65, %69 : vector<2x32x32xf32>
    %71 = arith.truncf %70 : vector<2x32x32xf32> to vector<2x32x32xbf16>
    "tpu.trace_start"() <{level = 10 : i32, message = "nqk,nkd->nqd"}> : () -> ()
    %cst_23 = arith.constant dense<0.000000e+00> : vector<2x32x128xf32>
    %72 = tpu.matmul %71, %52, %cst_23 {dimension_numbers = #tpu.dot_dimension_numbers<[2], [1], [1], [2], [0, 0, 0, 1, 1, 2], [0], [0]>} : vector<2x32x32xbf16>, vector<2x32x128xbf16>, vector<2x32x128xf32> -> vector<2x32x128xf32>
    "tpu.trace_stop"() : () -> ()
    %73 = arith.truncf %72 : vector<2x32x128xf32> to vector<2x32x128xbf16>
    %74 = vector.shape_cast %73 : vector<2x32x128xbf16> to vector<1x2x32x128xbf16>
    %75 = tpu.transpose %74, [0, 2, 1, 3] : vector<1x2x32x128xbf16> -> vector<1x32x2x128xbf16>
    %76 = vector.shape_cast %75 : vector<1x32x2x128xbf16> to vector<32x256xbf16>
    %c0_24 = arith.constant 0 : index
    %c0_25 = arith.constant 0 : index
    %c0_26 = arith.constant 0 : index
    %77 = vector.load %arg12[%c0_24, %c0_25, %c0_26] : memref<1x256x256xbf16, #tpu.memory_space<vmem>>, vector<1x256x256xbf16>
    %78 = vector.shape_cast %77 : vector<1x256x256xbf16> to vector<256x256xbf16>
    %cst_27 = arith.constant dense<0.000000e+00> : vector<32x256xf32>
    %79 = tpu.matmul %76, %78, %cst_27 {dimension_numbers = #tpu.dot_dimension_numbers<[1], [0], [0], [1], [0, 0, 1, 1], [], []>} : vector<32x256xbf16>, vector<256x256xbf16>, vector<32x256xf32> -> vector<32x256xf32>
    %c0_28 = arith.constant 0 : index
    %c0_29 = arith.constant 0 : index
    %c0_30 = arith.constant 0 : index
    %80 = vector.load %arg13[%c0_28, %c0_29, %c0_30] : memref<1x1x256xf32, #tpu.memory_space<vmem>>, vector<1x1x256xf32>
    %81 = vector.shape_cast %80 : vector<1x1x256xf32> to vector<1x256xf32>
    %82 = vector.broadcast %81 : vector<1x256xf32> to vector<32x256xf32>
    %83 = arith.addf %79, %82 : vector<32x256xf32>
    %84 = arith.addf %3, %83 : vector<32x256xf32>
    %c0_31 = arith.constant 0 : index
    %c0_32 = arith.constant 0 : index
    %c0_33 = arith.constant 0 : index
    %85 = vector.load %arg14[%c0_31, %c0_32, %c0_33] : memref<1x1x256xf32, #tpu.memory_space<vmem>>, vector<1x1x256xf32>
    %86 = vector.shape_cast %85 : vector<1x1x256xf32> to vector<1x256xf32>
    %c0_34 = arith.constant 0 : index
    %c0_35 = arith.constant 0 : index
    %c0_36 = arith.constant 0 : index
    %87 = vector.load %arg15[%c0_34, %c0_35, %c0_36] : memref<1x1x256xf32, #tpu.memory_space<vmem>>, vector<1x1x256xf32>
    %88 = vector.shape_cast %87 : vector<1x1x256xf32> to vector<1x256xf32>
    %cst_37 = arith.constant dense<0.000000e+00> : vector<32xf32>
    %89 = vector.multi_reduction <add>, %84, %cst_37 [1] : vector<32x256xf32> to vector<32xf32>
    %90 = vector.shape_cast %89 : vector<32xf32> to vector<32x1xf32>
    %cst_38 = arith.constant 2.560000e+02 : f32
    %91 = vector.broadcast %cst_38 : f32 to vector<32x1xf32>
    %92 = arith.divf %90, %91 : vector<32x1xf32>
    %93 = vector.broadcast %92 : vector<32x1xf32> to vector<32x256xf32>
    %94 = arith.subf %84, %93 : vector<32x256xf32>
    %95 = arith.mulf %94, %94 : vector<32x256xf32>
    %cst_39 = arith.constant dense<0.000000e+00> : vector<32xf32>
    %96 = vector.multi_reduction <add>, %95, %cst_39 [1] : vector<32x256xf32> to vector<32xf32>
    %97 = vector.shape_cast %96 : vector<32xf32> to vector<32x1xf32>
    %cst_40 = arith.constant 2.560000e+02 : f32
    %98 = vector.broadcast %cst_40 : f32 to vector<32x1xf32>
    %99 = arith.divf %97, %98 : vector<32x1xf32>
    %100 = vector.broadcast %92 : vector<32x1xf32> to vector<32x256xf32>
    %101 = arith.subf %84, %100 : vector<32x256xf32>
    %cst_41 = arith.constant 9.99999974E-6 : f32
    %102 = vector.broadcast %cst_41 : f32 to vector<32x1xf32>
    %103 = arith.addf %99, %102 : vector<32x1xf32>
    %104 = math.rsqrt %103 : vector<32x1xf32>
    %105 = vector.broadcast %104 : vector<32x1xf32> to vector<32x256xf32>
    %106 = arith.mulf %101, %105 : vector<32x256xf32>
    %107 = vector.broadcast %86 : vector<1x256xf32> to vector<32x256xf32>
    %108 = arith.mulf %106, %107 : vector<32x256xf32>
    %109 = vector.broadcast %88 : vector<1x256xf32> to vector<32x256xf32>
    %110 = arith.addf %108, %109 : vector<32x256xf32>
    %111 = arith.truncf %110 : vector<32x256xf32> to vector<32x256xbf16>
    %c0_42 = arith.constant 0 : index
    %c0_43 = arith.constant 0 : index
    %c0_44 = arith.constant 0 : index
    %112 = vector.load %arg19[%c0_42, %c0_43, %c0_44] : memref<1x1x256xf32, #tpu.memory_space<vmem>>, vector<1x1x256xf32>
    %113 = vector.shape_cast %112 : vector<1x1x256xf32> to vector<1x256xf32>
    %114 = vector.broadcast %113 : vector<1x256xf32> to vector<32x256xf32>
    %115 = arith.addf %84, %114 : vector<32x256xf32>
    %c0_45 = arith.constant 0 : index
    %c0_46 = arith.constant 0 : index
    %116 = vector.load %arg24[%c0_45, %c0_46] : memref<32x256xf32, #tpu.memory_space<vmem>>, vector<32x256xf32>
    tpu.vector_store %arg24[%c0_45, %c0_46], %115 {strides = array<i32>} : memref<32x256xf32, #tpu.memory_space<vmem>>, vector<32x256xf32>,
    %c0_i32_47 = arith.constant 0 : i32
    %c0_48 = arith.constant 0 : index
    %117 = arith.index_cast %c0_i32_47 : i32 to index
    %c0_49 = arith.constant 0 : index
    %c0_50 = arith.constant 0 : index
    %118 = vector.load %arg16[%c0_48, %117, %c0_49, %c0_50] : memref<1x1x256x1024xbf16, #tpu.memory_space<vmem>>, vector<1x1x256x1024xbf16>
    %119 = vector.shape_cast %118 : vector<1x1x256x1024xbf16> to vector<256x1024xbf16>
    %cst_51 = arith.constant dense<0.000000e+00> : vector<32x1024xf32>
    %120 = tpu.matmul %111, %119, %cst_51 {dimension_numbers = #tpu.dot_dimension_numbers<[1], [0], [0], [1], [0, 0, 1, 1], [], []>} : vector<32x256xbf16>, vector<256x1024xbf16>, vector<32x1024xf32> -> vector<32x1024xf32>
    %c0_52 = arith.constant 0 : index
    %121 = arith.index_cast %c0_i32_47 : i32 to index
    %c0_53 = arith.constant 0 : index
    %c0_54 = arith.constant 0 : index
    %122 = vector.load %arg17[%c0_52, %121, %c0_53, %c0_54] : memref<1x1x1x1024xf32, #tpu.memory_space<vmem>>, vector<1x1x1x1024xf32>
    %123 = vector.shape_cast %122 : vector<1x1x1x1024xf32> to vector<1x1024xf32>
    %124 = vector.broadcast %123 : vector<1x1024xf32> to vector<32x1024xf32>
    %125 = arith.addf %120, %124 : vector<32x1024xf32>
    %cst_55 = arith.constant 1.702000e+00 : f32
    %126 = vector.broadcast %cst_55 : f32 to vector<32x1024xf32>
    %127 = arith.mulf %126, %125 : vector<32x1024xf32>
    %128 = arith.negf %127 : vector<32x1024xf32>
    %129 = math.exp %128 : vector<32x1024xf32>
    %cst_56 = arith.constant 1.000000e+00 : f32
    %130 = vector.broadcast %cst_56 : f32 to vector<32x1024xf32>
    %131 = arith.addf %130, %129 : vector<32x1024xf32>
    %132 = arith.divf %130, %131 : vector<32x1024xf32>
    %133 = arith.mulf %125, %132 : vector<32x1024xf32>
    %c0_57 = arith.constant 0 : index
    %c0_58 = arith.constant 0 : index
    %134 = vector.load %arg24[%c0_57, %c0_58] : memref<32x256xf32, #tpu.memory_space<vmem>>, vector<32x256xf32>
    %135 = arith.truncf %133 : vector<32x1024xf32> to vector<32x1024xbf16>
    %c0_59 = arith.constant 0 : index
    %136 = arith.index_cast %c0_i32_47 : i32 to index
    %c0_60 = arith.constant 0 : index
    %c0_61 = arith.constant 0 : index
    %137 = vector.load %arg18[%c0_59, %136, %c0_60, %c0_61] : memref<1x1x1024x256xbf16, #tpu.memory_space<vmem>>, vector<1x1x1024x256xbf16>
    %138 = vector.shape_cast %137 : vector<1x1x1024x256xbf16> to vector<1024x256xbf16>
    %cst_62 = arith.constant dense<0.000000e+00> : vector<32x256xf32>
    %139 = tpu.matmul %135, %138, %cst_62 {dimension_numbers = #tpu.dot_dimension_numbers<[1], [0], [0], [1], [0, 0, 1, 1], [], []>} : vector<32x1024xbf16>, vector<1024x256xbf16>, vector<32x256xf32> -> vector<32x256xf32>
    %140 = arith.addf %134, %139 : vector<32x256xf32>
    %c0_63 = arith.constant 0 : index
    %c0_64 = arith.constant 0 : index
    %141 = vector.load %arg24[%c0_63, %c0_64] : memref<32x256xf32, #tpu.memory_space<vmem>>, vector<32x256xf32>
    tpu.vector_store %arg24[%c0_63, %c0_64], %140 {strides = array<i32>} : memref<32x256xf32, #tpu.memory_space<vmem>>, vector<32x256xf32>,
    %c1_i32 = arith.constant 1 : i32
    %c1_i32_65 = arith.constant 1 : i32
    %142 = arith.cmpi eq, %arg1, %c1_i32_65 : i32
    %143 = arith.extui %142 : i1 to i32
    %c0_i32_66 = arith.constant 0 : i32
    %144 = arith.cmpi ne, %143, %c0_i32_66 : i32
    scf.if %144 {
      %c0_67 = arith.constant 0 : index
      %c0_68 = arith.constant 0 : index
      %145 = vector.load %arg24[%c0_67, %c0_68] : memref<32x256xf32, #tpu.memory_space<vmem>>, vector<32x256xf32>
      %146 = vector.shape_cast %145 : vector<32x256xf32> to vector<1x32x256xf32>
      %147 = vector.extract_strided_slice %146 {offsets = [0, 0, 0], sizes = [1, 1, 256], strides = [1, 1, 1]} : vector<1x32x256xf32> to vector<1x1x256xf32>
      %148 = vector.shape_cast %147 : vector<1x1x256xf32> to vector<1x256xf32>
      %c0_69 = arith.constant 0 : index
      %c0_70 = arith.constant 0 : index
      %149 = vector.load %arg20[%c0_69, %c0_70] : memref<1x256xf32, #tpu.memory_space<vmem>>, vector<1x256xf32>
      %c0_71 = arith.constant 0 : index
      %c0_72 = arith.constant 0 : index
      %150 = vector.load %arg21[%c0_71, %c0_72] : memref<1x256xf32, #tpu.memory_space<vmem>>, vector<1x256xf32>
      %cst_73 = arith.constant dense<0.000000e+00> : vector<1xf32>
      %151 = vector.multi_reduction <add>, %148, %cst_73 [1] : vector<1x256xf32> to vector<1xf32>
      %152 = vector.shape_cast %151 : vector<1xf32> to vector<1x1xf32>
      %cst_74 = arith.constant 2.560000e+02 : f32
      %153 = vector.broadcast %cst_74 : f32 to vector<1x1xf32>
      %154 = arith.divf %152, %153 : vector<1x1xf32>
      %155 = vector.broadcast %154 : vector<1x1xf32> to vector<1x256xf32>
      %156 = arith.subf %148, %155 : vector<1x256xf32>
      %157 = arith.mulf %156, %156 : vector<1x256xf32>
      %cst_75 = arith.constant dense<0.000000e+00> : vector<1xf32>
      %158 = vector.multi_reduction <add>, %157, %cst_75 [1] : vector<1x256xf32> to vector<1xf32>
      %159 = vector.shape_cast %158 : vector<1xf32> to vector<1x1xf32>
      %cst_76 = arith.constant 2.560000e+02 : f32
      %160 = vector.broadcast %cst_76 : f32 to vector<1x1xf32>
      %161 = arith.divf %159, %160 : vector<1x1xf32>
      %162 = vector.broadcast %154 : vector<1x1xf32> to vector<1x256xf32>
      %163 = arith.subf %148, %162 : vector<1x256xf32>
      %cst_77 = arith.constant 9.99999974E-6 : f32
      %164 = vector.broadcast %cst_77 : f32 to vector<1x1xf32>
      %165 = arith.addf %161, %164 : vector<1x1xf32>
      %166 = math.rsqrt %165 : vector<1x1xf32>
      %167 = vector.broadcast %166 : vector<1x1xf32> to vector<1x256xf32>
      %168 = arith.mulf %163, %167 : vector<1x256xf32>
      %169 = arith.mulf %168, %149 : vector<1x256xf32>
      %170 = arith.addf %169, %150 : vector<1x256xf32>
      %171 = arith.truncf %170 : vector<1x256xf32> to vector<1x256xbf16>
      %c0_78 = arith.constant 0 : index
      %c0_79 = arith.constant 0 : index
      %172 = vector.load %arg22[%c0_78, %c0_79] : memref<256x128xbf16, #tpu.memory_space<vmem>>, vector<256x128xbf16>
      %cst_80 = arith.constant dense<0.000000e+00> : vector<1x128xf32>
      %173 = tpu.matmul %171, %172, %cst_80 {dimension_numbers = #tpu.dot_dimension_numbers<[1], [0], [0], [1], [0, 0, 1, 1], [], []>} : vector<1x256xbf16>, vector<256x128xbf16>, vector<1x128xf32> -> vector<1x128xf32>
      %174 = vector.shape_cast %173 : vector<1x128xf32> to vector<1x1x128xf32>
      %c0_81 = arith.constant 0 : index
      %c0_82 = arith.constant 0 : index
      %c0_83 = arith.constant 0 : index
      %175 = vector.load %arg23[%c0_81, %c0_82, %c0_83] : memref<1x1x128xf32, #tpu.memory_space<vmem>>, vector<1x1x128xf32>
      tpu.vector_store %arg23[%c0_81, %c0_82, %c0_83], %174 {strides = array<i32>} : memref<1x1x128xf32, #tpu.memory_space<vmem>>, vector<1x1x128xf32>,
    } else {
    }
    return
  }
  func.func @transform_0(%arg0: i32, %arg1: i32) -> (i32, i32, i32) {
    %c0_i32 = arith.constant 0 : i32
    %c0_i32_0 = arith.constant 0 : i32
    %c0_i32_1 = arith.constant 0 : i32
    return %arg0, %c0_i32, %c0_i32_0 : i32, i32, i32
  }
  func.func @transform_1(%arg0: i32, %arg1: i32) -> (i32, i32) {
    %c0_i32 = arith.constant 0 : i32
    %c0_i32_0 = arith.constant 0 : i32
    %c0_i32_1 = arith.constant 0 : i32
    return %c0_i32, %c0_i32_0 : i32, i32
  }
  func.func @transform_2(%arg0: i32, %arg1: i32) -> (i32, i32) {
    %c0_i32 = arith.constant 0 : i32
    %c0_i32_0 = arith.constant 0 : i32
    %c0_i32_1 = arith.constant 0 : i32
    return %c0_i32, %c0_i32_0 : i32, i32
  }
  func.func @transform_3(%arg0: i32, %arg1: i32) -> (i32, i32) {
    %c0_i32 = arith.constant 0 : i32
    %c0_i32_0 = arith.constant 0 : i32
    %c0_i32_1 = arith.constant 0 : i32
    return %c0_i32, %c0_i32_0 : i32, i32
  }
  func.func @transform_4(%arg0: i32, %arg1: i32) -> (i32, i32) {
    %c0_i32 = arith.constant 0 : i32
    %c0_i32_0 = arith.constant 0 : i32
    %c0_i32_1 = arith.constant 0 : i32
    return %c0_i32, %c0_i32_0 : i32, i32
  }
  func.func @transform_5(%arg0: i32, %arg1: i32) -> (i32, i32) {
    %c0_i32 = arith.constant 0 : i32
    %c0_i32_0 = arith.constant 0 : i32
    %c0_i32_1 = arith.constant 0 : i32
    return %c0_i32, %c0_i32_0 : i32, i32
  }
  func.func @transform_6(%arg0: i32, %arg1: i32) -> (i32, i32, i32) {
    %c0_i32 = arith.constant 0 : i32
    %c0_i32_0 = arith.constant 0 : i32
    %c0_i32_1 = arith.constant 0 : i32
    return %arg1, %c0_i32, %c0_i32_0 : i32, i32, i32
  }
  func.func @transform_7(%arg0: i32, %arg1: i32) -> (i32, i32, i32) {
    %c0_i32 = arith.constant 0 : i32
    %c0_i32_0 = arith.constant 0 : i32
    %c0_i32_1 = arith.constant 0 : i32
    return %arg1, %c0_i32, %c0_i32_0 : i32, i32, i32
  }
  func.func @transform_8(%arg0: i32, %arg1: i32) -> (i32, i32, i32) {
    %c0_i32 = arith.constant 0 : i32
    %c0_i32_0 = arith.constant 0 : i32
    %c0_i32_1 = arith.constant 0 : i32
    return %arg1, %c0_i32, %c0_i32_0 : i32, i32, i32
  }
  func.func @transform_9(%arg0: i32, %arg1: i32) -> (i32, i32, i32) {
    %c0_i32 = arith.constant 0 : i32
    %c0_i32_0 = arith.constant 0 : i32
    %c0_i32_1 = arith.constant 0 : i32
    return %arg1, %c0_i32, %c0_i32_0 : i32, i32, i32
  }
  func.func @transform_10(%arg0: i32, %arg1: i32) -> (i32, i32, i32) {
    %c0_i32 = arith.constant 0 : i32
    %c0_i32_0 = arith.constant 0 : i32
    %c0_i32_1 = arith.constant 0 : i32
    return %arg1, %c0_i32, %c0_i32_0 : i32, i32, i32
  }
  func.func @transform_11(%arg0: i32, %arg1: i32) -> (i32, i32, i32) {
    %c0_i32 = arith.constant 0 : i32
    %c0_i32_0 = arith.constant 0 : i32
    %c0_i32_1 = arith.constant 0 : i32
    return %arg1, %c0_i32, %c0_i32_0 : i32, i32, i32
  }
  func.func @transform_12(%arg0: i32, %arg1: i32) -> (i32, i32, i32) {
    %c0_i32 = arith.constant 0 : i32
    %c0_i32_0 = arith.constant 0 : i32
    %c0_i32_1 = arith.constant 0 : i32
    return %arg1, %c0_i32, %c0_i32_0 : i32, i32, i32
  }
  func.func @transform_13(%arg0: i32, %arg1: i32) -> (i32, i32, i32) {
    %c0_i32 = arith.constant 0 : i32
    %c0_i32_0 = arith.constant 0 : i32
    %c0_i32_1 = arith.constant 0 : i32
    return %arg1, %c0_i32, %c0_i32_0 : i32, i32, i32
  }
  func.func @transform_14(%arg0: i32, %arg1: i32) -> (i32, i32, i32, i32) {
    %c0_i32 = arith.constant 0 : i32
    %c0_i32_0 = arith.constant 0 : i32
    %c0_i32_1 = arith.constant 0 : i32
    %c0_i32_2 = arith.constant 0 : i32
    return %arg1, %c0_i32, %c0_i32_0, %c0_i32_1 : i32, i32, i32, i32
  }
  func.func @transform_15(%arg0: i32, %arg1: i32) -> (i32, i32, i32, i32) {
    %c0_i32 = arith.constant 0 : i32
    %c0_i32_0 = arith.constant 0 : i32
    %c0_i32_1 = arith.constant 0 : i32
    %c0_i32_2 = arith.constant 0 : i32
    return %arg1, %c0_i32, %c0_i32_0, %c0_i32_1 : i32, i32, i32, i32
  }
  func.func @transform_16(%arg0: i32, %arg1: i32) -> (i32, i32, i32, i32) {
    %c0_i32 = arith.constant 0 : i32
    %c0_i32_0 = arith.constant 0 : i32
    %c0_i32_1 = arith.constant 0 : i32
    %c0_i32_2 = arith.constant 0 : i32
    return %arg1, %c0_i32, %c0_i32_0, %c0_i32_1 : i32, i32, i32, i32
  }
  func.func @transform_17(%arg0: i32, %arg1: i32) -> (i32, i32, i32) {
    %c0_i32 = arith.constant 0 : i32
    %c0_i32_0 = arith.constant 0 : i32
    %c0_i32_1 = arith.constant 0 : i32
    return %arg1, %c0_i32, %c0_i32_0 : i32, i32, i32
  }
  func.func @transform_18(%arg0: i32, %arg1: i32) -> (i32, i32) {
    %c0_i32 = arith.constant 0 : i32
    %c0_i32_0 = arith.constant 0 : i32
    %c0_i32_1 = arith.constant 0 : i32
    return %c0_i32, %c0_i32_0 : i32, i32
  }
  func.func @transform_19(%arg0: i32, %arg1: i32) -> (i32, i32) {
    %c0_i32 = arith.constant 0 : i32
    %c0_i32_0 = arith.constant 0 : i32
    %c0_i32_1 = arith.constant 0 : i32
    return %c0_i32, %c0_i32_0 : i32, i32
  }
  func.func @transform_20(%arg0: i32, %arg1: i32) -> (i32, i32) {
    %c0_i32 = arith.constant 0 : i32
    %c0_i32_0 = arith.constant 0 : i32
    %c0_i32_1 = arith.constant 0 : i32
    return %c0_i32, %c0_i32_0 : i32, i32
  }
  func.func @transform_21(%arg0: i32, %arg1: i32) -> (i32, i32, i32) {
    %c0_i32 = arith.constant 0 : i32
    %c0_i32_0 = arith.constant 0 : i32
    %c0_i32_1 = arith.constant 0 : i32
    return %arg0, %c0_i32, %c0_i32_0 : i32, i32, i32
  }
}

</mosaic_0001>

<llo_original>
// kernel: vision_transformer_forward.1
$region0: #{vision_transformer_forward.1}
  #allocation0 [shape = 'u32[]', space=smem, size = 0x4, offset = 0x4, fixed_abs, tag = 'smem constant byte address 0x4 - core index']
  #allocation1 [shape = 'u32[72,128]{1,0:T(1,128)}', space=vmem, size = 0x9000, scoped, tag = 'internal scratch']
  #allocation2 [shape = 'f32[32,256]{1,0:T(8,128)}', space=vmem, size = 0x8000, scoped, tag = 'scratch operand']
  %s0 = inlined_call_operand.vmem [shape: bf16[2,16,48], index: 0, kind: input, shape index: {}]
  %s1 = inlined_call_operand.vmem [shape: bf16[48,256], index: 1, kind: input, shape index: {}]
  %s2 = inlined_call_operand.vmem [shape: f32[1,256], index: 2, kind: input, shape index: {}]
  %s3 = inlined_call_operand.vmem [shape: f32[32,256], index: 3, kind: input, shape index: {}]
  %s4 = inlined_call_operand.vmem [shape: f32[1,256], index: 4, kind: input, shape index: {}]
  %s5 = inlined_call_operand.vmem [shape: f32[1,256], index: 5, kind: input, shape index: {}]
  %s6 = inlined_call_operand.vmem [shape: f32[2,1,256], index: 6, kind: input, shape index: {}]
  %s7 = inlined_call_operand.vmem [shape: f32[2,1,256], index: 7, kind: input, shape index: {}]
  %s8 = inlined_call_operand.hbm [shape: bf16[2,256,768], index: 8, kind: input, shape index: {}]
  %s9 = inlined_call_operand.vmem [shape: f32[2,1,768], index: 9, kind: input, shape index: {}]
  %s10 = inlined_call_operand.vmem [shape: bf16[2,256,256], index: 10, kind: input, shape index: {}]
  %s11 = inlined_call_operand.vmem [shape: f32[2,1,256], index: 11, kind: input, shape index: {}]
  %s12 = inlined_call_operand.vmem [shape: f32[2,1,256], index: 12, kind: input, shape index: {}]
  %s13 = inlined_call_operand.vmem [shape: f32[2,1,256], index: 13, kind: input, shape index: {}]
  %s14 = inlined_call_operand.hbm [shape: bf16[2,1,256,1024], index: 14, kind: input, shape index: {}]
  %s15 = inlined_call_operand.vmem [shape: f32[2,1,1,1024], index: 15, kind: input, shape index: {}]
  %s16 = inlined_call_operand.hbm [shape: bf16[2,1,1024,256], index: 16, kind: input, shape index: {}]
  %s17 = inlined_call_operand.vmem [shape: f32[2,1,256], index: 17, kind: input, shape index: {}]
  %s18 = inlined_call_operand.vmem [shape: f32[1,256], index: 18, kind: input, shape index: {}]
  %s19 = inlined_call_operand.vmem [shape: f32[1,256], index: 19, kind: input, shape index: {}]
  %s20 = inlined_call_operand.vmem [shape: bf16[256,128], index: 20, kind: input, shape index: {}]
  %s21 = inlined_call_operand.hbm [shape: f32[2,1,128], index: 21, kind: output, shape index: {}]
  %s22 = sld [smem:[#allocation0]]
  $region137: #{vision_transformer_forward.1} parent=0
    _
  %s24 = ssub.s32 1, %s22
  %s25 = scalar_select 0, %s24, %s22
  $region1: #{vision_transformer_forward.1} parent=0
    #allocation3 [shape = 'u8[786432]{0}', space=vmem, size = 0xc0000, scoped, tag = 'input window, operand 8']
    #allocation4 [shape = 's32[2]{0}', space=sflag, size = 0x8, scoped, tag = 'scoped memory for vision_transformer_forward.1']
    #allocation5 [shape = 's32[2]{0}', space=sflag, size = 0x8, scoped, tag = 'scoped memory for vision_transformer_forward.1']
    #allocation6 [shape = 'u8[1048576]{0}', space=vmem, size = 0x100000, scoped, tag = 'input window, operand 14']
    #allocation7 [shape = 's32[2]{0}', space=sflag, size = 0x8, scoped, tag = 'scoped memory for vision_transformer_forward.1']
    #allocation8 [shape = 'u8[1048576]{0}', space=vmem, size = 0x100000, scoped, tag = 'input window, operand 16']
    #allocation9 [shape = 'u8[1024]{0}', space=vmem, size = 0x400, scoped, tag = 'output window, operand 0']
    %26 = vsyncpa [#allocation4], 0
    %s27 = scalar_lea.sflag [#allocation4], 1
    %28 = vsyncpa %s27, 0
    %29 = vsyncpa [#allocation7], 0
    %s30 = scalar_lea.sflag [#allocation7], 1
    %31 = vsyncpa %s30, 0
    %32 = vsyncpa [#allocation5], 0
    %s33 = scalar_lea.sflag [#allocation5], 1
    %34 = vsyncpa %s33, 0
    loop: start=0, step=1, limit=6
    $region2: #{vision_transformer_forward.1} parent=1 // loop_pre_header
      _
    $region3: #{vision_transformer_forward.1} parent=1 // loop_header
      %s36 = sphi 0, %s40
      %p37 = scmp.ge.s32.totalorder %s36, 6
      %s43 = sphi 0, %s55
      %s44 = sphi 0, %s51
      %s45 = sphi 0, %s43
      %s46 = sphi 0, %s44
      %s47 = sphi 0, %s45
      %s48 = sphi 0, %s46
      %s58 = sphi 0, %s60
      %s61 = sphi 0, %s58
      %s62 = sphi 0, %s61
      %s78 = sphi 0, %s62
      %s82 = sphi 0, %s82
      %s84 = sphi 0, %s82
      %s85 = sphi 0, %s84
      %s99 = sphi 0, %s85
      %s103 = sphi 0, %s103
      %s105 = sphi 0, %s103
      %s106 = sphi 0, %s105
      %s120 = sphi 0, %s106
      %s124 = sphi 0, %s124
      %s126 = sphi 0, %s124
      %s127 = sphi 0, %s126
      %s141 = sphi 0, %s127
      %s145 = sphi 0, %s145
      %s147 = sphi 0, %s145
      %s148 = sphi 0, %s147
      %s162 = sphi 0, %s148
      %s166 = sphi 0, %s166
      %s168 = sphi 0, %s166
      %s169 = sphi 0, %s168
      %s183 = sphi 0, %s169
      %s189 = sphi 0, %s191
      %s192 = sphi 0, %s189
      %s193 = sphi 0, %s192
      %s209 = sphi 0, %s193
      %s215 = sphi 0, %s217
      %s218 = sphi 0, %s215
      %s219 = sphi 0, %s218
      %s235 = sphi 0, %s219
      %s241 = sphi 0, %s243
      %s244 = sphi 0, %s241
      %s245 = sphi 0, %s244
      %s261 = sphi 0, %s245
      %s267 = sphi 0, %s269
      %s270 = sphi 0, %s267
      %s271 = sphi 0, %s270
      %s287 = sphi 0, %s271
      %s293 = sphi 0, %s295
      %s296 = sphi 0, %s293
      %s297 = sphi 0, %s296
      %s313 = sphi 0, %s297
      %s319 = sphi 0, %s321
      %s322 = sphi 0, %s319
      %s323 = sphi 0, %s322
      %s339 = sphi 0, %s323
      %s345 = sphi 0, %s347
      %s348 = sphi 0, %s345
      %s349 = sphi 0, %s348
      %s365 = sphi 0, %s349
      %s371 = sphi 0, %s373
      %s374 = sphi 0, %s371
      %s375 = sphi 0, %s374
      %s391 = sphi 0, %s375
      %s397 = sphi 0, %s399
      %s400 = sphi 0, %s397
      %s401 = sphi 0, %s400
      %s417 = sphi 0, %s401
      %s423 = sphi 0, %s425
      %s426 = sphi 0, %s423
      %s427 = sphi 0, %s426
      %s443 = sphi 0, %s427
      %s449 = sphi 0, %s451
      %s452 = sphi 0, %s449
      %s453 = sphi 0, %s452
      %s469 = sphi 0, %s453
      %s475 = sphi 0, %s477
      %s478 = sphi 0, %s475
      %s479 = sphi 0, %s478
      %s495 = sphi 0, %s479
      %s499 = sphi 0, %s499
      %s501 = sphi 0, %s499
      %s502 = sphi 0, %s501
      %s516 = sphi 0, %s502
      %s520 = sphi 0, %s520
      %s522 = sphi 0, %s520
      %s523 = sphi 0, %s522
      %s537 = sphi 0, %s523
      %s541 = sphi 0, %s541
      %s543 = sphi 0, %s541
      %s544 = sphi 0, %s543
      %s558 = sphi 0, %s544
      %s564 = sphi 0, %s566
      %s567 = sphi 0, %s564
      %s568 = sphi 0, %s567
      %s584 = sphi 0, %s568
    $region4: #{vision_transformer_forward.1} parent=1 // loop_header_branch
      %39 = sbr.rel (%p37) target = $region8
    $region5: #{vision_transformer_forward.1} parent=1 // loop_body
      %s41 = ssub.s32 %s36, 1
      %s42 = ssub.s32 %s36, 2
      %s49 = sadd.s32 1, %s44
      %p50 = scmp.ge.s32.totalorder %s49, 2
      %s51 = scalar_select %p50, 0, %s49
      %s52 = sadd.s32 1, %s43
      %s53 = scalar_select %p50, %s52, %s43
      %p54 = scmp.ge.s32.totalorder %s53, 2
      %s55 = scalar_select %p54, 0, %s53
      %s56 = ssub.s32 %s43, %s55
      %p57 = scmp.eq.s32.totalorder %s56, 0
      %s59 = sadd.s32 %s58, 1
      %s60 = scalar_select %p57, %s58, %s59
      %p63 = pneg %p57
      %p64 = scmp.eq.s32.totalorder %s36, 3
      %p65 = por %p63, %p64
      %p66 = scmp.ne.s32.totalorder %s58, %s61
      %p67 = scmp.eq.s32.totalorder %s36, 0
      %p68 = por %p66, %p67
      %p69 = scmp.ne.s32.totalorder %s58, %s61
      %p70 = scmp.eq.s32.totalorder %s41, 3
      %p71 = por %p69, %p70
      %p72 = scmp.ne.s32.totalorder %s61, %s62
      %p73 = scmp.eq.s32.totalorder %s41, 0
      %p74 = por %p72, %p73
      %p75 = scmp.ne.s32.totalorder %s61, %s62
      %p76 = scmp.eq.s32.totalorder %s42, 3
      %p77 = por %p75, %p76
      %p79 = scmp.ne.s32.totalorder %s62, %s78
      %p80 = scmp.eq.s32.totalorder %s42, 0
      %p81 = por %p79, %p80
      %s83 = sadd.s32 %s82, 1
      %p86 = scmp.eq.s32.totalorder %s36, 3
      %p87 = scmp.ne.s32.totalorder %s82, %s84
      %p88 = scmp.eq.s32.totalorder %s36, 0
      %p89 = por %p87, %p88
      %p90 = scmp.ne.s32.totalorder %s82, %s84
      %p91 = scmp.eq.s32.totalorder %s41, 3
      %p92 = por %p90, %p91
      %p93 = scmp.ne.s32.totalorder %s84, %s85
      %p94 = scmp.eq.s32.totalorder %s41, 0
      %p95 = por %p93, %p94
      %p96 = scmp.ne.s32.totalorder %s84, %s85
      %p97 = scmp.eq.s32.totalorder %s42, 3
      %p98 = por %p96, %p97
      %p100 = scmp.ne.s32.totalorder %s85, %s99
      %p101 = scmp.eq.s32.totalorder %s42, 0
      %p102 = por %p100, %p101
      %s104 = sadd.s32 %s103, 1
      %p107 = scmp.eq.s32.totalorder %s36, 3
      %p108 = scmp.ne.s32.totalorder %s103, %s105
      %p109 = scmp.eq.s32.totalorder %s36, 0
      %p110 = por %p108, %p109
      %p111 = scmp.ne.s32.totalorder %s103, %s105
      %p112 = scmp.eq.s32.totalorder %s41, 3
      %p113 = por %p111, %p112
      %p114 = scmp.ne.s32.totalorder %s105, %s106
      %p115 = scmp.eq.s32.totalorder %s41, 0
      %p116 = por %p114, %p115
      %p117 = scmp.ne.s32.totalorder %s105, %s106
      %p118 = scmp.eq.s32.totalorder %s42, 3
      %p119 = por %p117, %p118
      %p121 = scmp.ne.s32.totalorder %s106, %s120
      %p122 = scmp.eq.s32.totalorder %s42, 0
      %p123 = por %p121, %p122
      %s125 = sadd.s32 %s124, 1
      %p128 = scmp.eq.s32.totalorder %s36, 3
      %p129 = scmp.ne.s32.totalorder %s124, %s126
      %p130 = scmp.eq.s32.totalorder %s36, 0
      %p131 = por %p129, %p130
      %p132 = scmp.ne.s32.totalorder %s124, %s126
      %p133 = scmp.eq.s32.totalorder %s41, 3
      %p134 = por %p132, %p133
      %p135 = scmp.ne.s32.totalorder %s126, %s127
      %p136 = scmp.eq.s32.totalorder %s41, 0
      %p137 = por %p135, %p136
      %p138 = scmp.ne.s32.totalorder %s126, %s127
      %p139 = scmp.eq.s32.totalorder %s42, 3
      %p140 = por %p138, %p139
      %p142 = scmp.ne.s32.totalorder %s127, %s141
      %p143 = scmp.eq.s32.totalorder %s42, 0
      %p144 = por %p142, %p143
      %s146 = sadd.s32 %s145, 1
      %p149 = scmp.eq.s32.totalorder %s36, 3
      %p150 = scmp.ne.s32.totalorder %s145, %s147
      %p151 = scmp.eq.s32.totalorder %s36, 0
      %p152 = por %p150, %p151
      %p153 = scmp.ne.s32.totalorder %s145, %s147
      %p154 = scmp.eq.s32.totalorder %s41, 3
      %p155 = por %p153, %p154
      %p156 = scmp.ne.s32.totalorder %s147, %s148
      %p157 = scmp.eq.s32.totalorder %s41, 0
      %p158 = por %p156, %p157
      %p159 = scmp.ne.s32.totalorder %s147, %s148
      %p160 = scmp.eq.s32.totalorder %s42, 3
      %p161 = por %p159, %p160
      %p163 = scmp.ne.s32.totalorder %s148, %s162
      %p164 = scmp.eq.s32.totalorder %s42, 0
      %p165 = por %p163, %p164
      %s167 = sadd.s32 %s166, 1
      %p170 = scmp.eq.s32.totalorder %s36, 3
      %p171 = scmp.ne.s32.totalorder %s166, %s168
      %p172 = scmp.eq.s32.totalorder %s36, 0
      %p173 = por %p171, %p172
      %p174 = scmp.ne.s32.totalorder %s166, %s168
      %p175 = scmp.eq.s32.totalorder %s41, 3
      %p176 = por %p174, %p175
      %p177 = scmp.ne.s32.totalorder %s168, %s169
      %p178 = scmp.eq.s32.totalorder %s41, 0
      %p179 = por %p177, %p178
      %p180 = scmp.ne.s32.totalorder %s168, %s169
      %p181 = scmp.eq.s32.totalorder %s42, 3
      %p182 = por %p180, %p181
      %p184 = scmp.ne.s32.totalorder %s169, %s183
      %p185 = scmp.eq.s32.totalorder %s42, 0
      %p186 = por %p184, %p185
      %s187 = ssub.s32 %s44, %s51
      %p188 = scmp.eq.s32.totalorder %s187, 0
      %s190 = sadd.s32 %s189, 1
      %s191 = scalar_select %p188, %s189, %s190
      %p194 = pneg %p188
      %p195 = scmp.eq.s32.totalorder %s36, 3
      %p196 = por %p194, %p195
      %p197 = scmp.ne.s32.totalorder %s189, %s192
      %p198 = scmp.eq.s32.totalorder %s36, 0
      %p199 = por %p197, %p198
      %p200 = scmp.ne.s32.totalorder %s189, %s192
      %p201 = scmp.eq.s32.totalorder %s41, 3
      %p202 = por %p200, %p201
      %p203 = scmp.ne.s32.totalorder %s192, %s193
      %p204 = scmp.eq.s32.totalorder %s41, 0
      %p205 = por %p203, %p204
      %p206 = scmp.ne.s32.totalorder %s192, %s193
      %p207 = scmp.eq.s32.totalorder %s42, 3
      %p208 = por %p206, %p207
      %p210 = scmp.ne.s32.totalorder %s193, %s209
      %p211 = scmp.eq.s32.totalorder %s42, 0
      %p212 = por %p210, %p211
      %s213 = ssub.s32 %s44, %s51
      %p214 = scmp.eq.s32.totalorder %s213, 0
      %s216 = sadd.s32 %s215, 1
      %s217 = scalar_select %p214, %s215, %s216
      %p220 = pneg %p214
      %p221 = scmp.eq.s32.totalorder %s36, 3
      %p222 = por %p220, %p221
      %p223 = scmp.ne.s32.totalorder %s215, %s218
      %p224 = scmp.eq.s32.totalorder %s36, 0
      %p225 = por %p223, %p224
      %p226 = scmp.ne.s32.totalorder %s215, %s218
      %p227 = scmp.eq.s32.totalorder %s41, 3
      %p228 = por %p226, %p227
      %p229 = scmp.ne.s32.totalorder %s218, %s219
      %p230 = scmp.eq.s32.totalorder %s41, 0
      %p231 = por %p229, %p230
      %p232 = scmp.ne.s32.totalorder %s218, %s219
      %p233 = scmp.eq.s32.totalorder %s42, 3
      %p234 = por %p232, %p233
      %p236 = scmp.ne.s32.totalorder %s219, %s235
      %p237 = scmp.eq.s32.totalorder %s42, 0
      %p238 = por %p236, %p237
      %s239 = ssub.s32 %s44, %s51
      %p240 = scmp.eq.s32.totalorder %s239, 0
      %s242 = sadd.s32 %s241, 1
      %s243 = scalar_select %p240, %s241, %s242
      %p246 = pneg %p240
      %p247 = scmp.eq.s32.totalorder %s36, 3
      %p248 = por %p246, %p247
      %p249 = scmp.ne.s32.totalorder %s241, %s244
      %p250 = scmp.eq.s32.totalorder %s36, 0
      %p251 = por %p249, %p250
      %p252 = scmp.ne.s32.totalorder %s241, %s244
      %p253 = scmp.eq.s32.totalorder %s41, 3
      %p254 = por %p252, %p253
      %p255 = scmp.ne.s32.totalorder %s244, %s245
      %p256 = scmp.eq.s32.totalorder %s41, 0
      %p257 = por %p255, %p256
      %p258 = scmp.ne.s32.totalorder %s244, %s245
      %p259 = scmp.eq.s32.totalorder %s42, 3
      %p260 = por %p258, %p259
      %p262 = scmp.ne.s32.totalorder %s245, %s261
      %p263 = scmp.eq.s32.totalorder %s42, 0
      %p264 = por %p262, %p263
      %s265 = ssub.s32 %s44, %s51
      %p266 = scmp.eq.s32.totalorder %s265, 0
      %s268 = sadd.s32 %s267, 1
      %s269 = scalar_select %p266, %s267, %s268
      %p272 = pneg %p266
      %p273 = scmp.eq.s32.totalorder %s36, 3
      %p274 = por %p272, %p273
      %p275 = scmp.ne.s32.totalorder %s267, %s270
      %p276 = scmp.eq.s32.totalorder %s36, 0
      %p277 = por %p275, %p276
      %p278 = scmp.ne.s32.totalorder %s267, %s270
      %p279 = scmp.eq.s32.totalorder %s41, 3
      %p280 = por %p278, %p279
      %p281 = scmp.ne.s32.totalorder %s270, %s271
      %p282 = scmp.eq.s32.totalorder %s41, 0
      %p283 = por %p281, %p282
      %p284 = scmp.ne.s32.totalorder %s270, %s271
      %p285 = scmp.eq.s32.totalorder %s42, 3
      %p286 = por %p284, %p285
      %p288 = scmp.ne.s32.totalorder %s271, %s287
      %p289 = scmp.eq.s32.totalorder %s42, 0
      %p290 = por %p288, %p289
      %s291 = ssub.s32 %s44, %s51
      %p292 = scmp.eq.s32.totalorder %s291, 0
      %s294 = sadd.s32 %s293, 1
      %s295 = scalar_select %p292, %s293, %s294
      %p298 = pneg %p292
      %p299 = scmp.eq.s32.totalorder %s36, 3
      %p300 = por %p298, %p299
      %p301 = scmp.ne.s32.totalorder %s293, %s296
      %p302 = scmp.eq.s32.totalorder %s36, 0
      %p303 = por %p301, %p302
      %p304 = scmp.ne.s32.totalorder %s293, %s296
      %p305 = scmp.eq.s32.totalorder %s41, 3
      %p306 = por %p304, %p305
      %p307 = scmp.ne.s32.totalorder %s296, %s297
      %p308 = scmp.eq.s32.totalorder %s41, 0
      %p309 = por %p307, %p308
      %p310 = scmp.ne.s32.totalorder %s296, %s297
      %p311 = scmp.eq.s32.totalorder %s42, 3
      %p312 = por %p310, %p311
      %p314 = scmp.ne.s32.totalorder %s297, %s313
      %p315 = scmp.eq.s32.totalorder %s42, 0
      %p316 = por %p314, %p315
      %s317 = ssub.s32 %s44, %s51
      %p318 = scmp.eq.s32.totalorder %s317, 0
      %s320 = sadd.s32 %s319, 1
      %s321 = scalar_select %p318, %s319, %s320
      %p324 = pneg %p318
      %p325 = scmp.eq.s32.totalorder %s36, 3
      %p326 = por %p324, %p325
      %p327 = scmp.ne.s32.totalorder %s319, %s322
      %p328 = scmp.eq.s32.totalorder %s36, 0
      %p329 = por %p327, %p328
      %p330 = scmp.ne.s32.totalorder %s319, %s322
      %p331 = scmp.eq.s32.totalorder %s41, 3
      %p332 = por %p330, %p331
      %p333 = scmp.ne.s32.totalorder %s322, %s323
      %p334 = scmp.eq.s32.totalorder %s41, 0
      %p335 = por %p333, %p334
      %p336 = scmp.ne.s32.totalorder %s322, %s323
      %p337 = scmp.eq.s32.totalorder %s42, 3
      %p338 = por %p336, %p337
      %p340 = scmp.ne.s32.totalorder %s323, %s339
      %p341 = scmp.eq.s32.totalorder %s42, 0
      %p342 = por %p340, %p341
      %s343 = ssub.s32 %s44, %s51
      %p344 = scmp.eq.s32.totalorder %s343, 0
      %s346 = sadd.s32 %s345, 1
      %s347 = scalar_select %p344, %s345, %s346
      %p350 = pneg %p344
      %p351 = scmp.eq.s32.totalorder %s36, 3
      %p352 = por %p350, %p351
      %p353 = scmp.ne.s32.totalorder %s345, %s348
      %p354 = scmp.eq.s32.totalorder %s36, 0
      %p355 = por %p353, %p354
      %p356 = scmp.ne.s32.totalorder %s345, %s348
      %p357 = scmp.eq.s32.totalorder %s41, 3
      %p358 = por %p356, %p357
      %p359 = scmp.ne.s32.totalorder %s348, %s349
      %p360 = scmp.eq.s32.totalorder %s41, 0
      %p361 = por %p359, %p360
      %p362 = scmp.ne.s32.totalorder %s348, %s349
      %p363 = scmp.eq.s32.totalorder %s42, 3
      %p364 = por %p362, %p363
      %p366 = scmp.ne.s32.totalorder %s349, %s365
      %p367 = scmp.eq.s32.totalorder %s42, 0
      %p368 = por %p366, %p367
      %s369 = ssub.s32 %s44, %s51
      %p370 = scmp.eq.s32.totalorder %s369, 0
      %s372 = sadd.s32 %s371, 1
      %s373 = scalar_select %p370, %s371, %s372
      %p376 = pneg %p370
      %p377 = scmp.eq.s32.totalorder %s36, 3
      %p378 = por %p376, %p377
      %p379 = scmp.ne.s32.totalorder %s371, %s374
      %p380 = scmp.eq.s32.totalorder %s36, 0
      %p381 = por %p379, %p380
      %p382 = scmp.ne.s32.totalorder %s371, %s374
      %p383 = scmp.eq.s32.totalorder %s41, 3
      %p384 = por %p382, %p383
      %p385 = scmp.ne.s32.totalorder %s374, %s375
      %p386 = scmp.eq.s32.totalorder %s41, 0
      %p387 = por %p385, %p386
      %p388 = scmp.ne.s32.totalorder %s374, %s375
      %p389 = scmp.eq.s32.totalorder %s42, 3
      %p390 = por %p388, %p389
      %p392 = scmp.ne.s32.totalorder %s375, %s391
      %p393 = scmp.eq.s32.totalorder %s42, 0
      %p394 = por %p392, %p393
      %s395 = ssub.s32 %s44, %s51
      %p396 = scmp.eq.s32.totalorder %s395, 0
      %s398 = sadd.s32 %s397, 1
      %s399 = scalar_select %p396, %s397, %s398
      %p402 = pneg %p396
      %p403 = scmp.eq.s32.totalorder %s36, 3
      %p404 = por %p402, %p403
      %p405 = scmp.ne.s32.totalorder %s397, %s400
      %p406 = scmp.eq.s32.totalorder %s36, 0
      %p407 = por %p405, %p406
      %p408 = scmp.ne.s32.totalorder %s397, %s400
      %p409 = scmp.eq.s32.totalorder %s41, 3
      %p410 = por %p408, %p409
      %p411 = scmp.ne.s32.totalorder %s400, %s401
      %p412 = scmp.eq.s32.totalorder %s41, 0
      %p413 = por %p411, %p412
      %p414 = scmp.ne.s32.totalorder %s400, %s401
      %p415 = scmp.eq.s32.totalorder %s42, 3
      %p416 = por %p414, %p415
      %p418 = scmp.ne.s32.totalorder %s401, %s417
      %p419 = scmp.eq.s32.totalorder %s42, 0
      %p420 = por %p418, %p419
      %s421 = ssub.s32 %s44, %s51
      %p422 = scmp.eq.s32.totalorder %s421, 0
      %s424 = sadd.s32 %s423, 1
      %s425 = scalar_select %p422, %s423, %s424
      %p428 = pneg %p422
      %p429 = scmp.eq.s32.totalorder %s36, 3
      %p430 = por %p428, %p429
      %p431 = scmp.ne.s32.totalorder %s423, %s426
      %p432 = scmp.eq.s32.totalorder %s36, 0
      %p433 = por %p431, %p432
      %p434 = scmp.ne.s32.totalorder %s423, %s426
      %p435 = scmp.eq.s32.totalorder %s41, 3
      %p436 = por %p434, %p435
      %p437 = scmp.ne.s32.totalorder %s426, %s427
      %p438 = scmp.eq.s32.totalorder %s41, 0
      %p439 = por %p437, %p438
      %p440 = scmp.ne.s32.totalorder %s426, %s427
      %p441 = scmp.eq.s32.totalorder %s42, 3
      %p442 = por %p440, %p441
      %p444 = scmp.ne.s32.totalorder %s427, %s443
      %p445 = scmp.eq.s32.totalorder %s42, 0
      %p446 = por %p444, %p445
      %s447 = ssub.s32 %s44, %s51
      %p448 = scmp.eq.s32.totalorder %s447, 0
      %s450 = sadd.s32 %s449, 1
      %s451 = scalar_select %p448, %s449, %s450
      %p454 = pneg %p448
      %p455 = scmp.eq.s32.totalorder %s36, 3
      %p456 = por %p454, %p455
      %p457 = scmp.ne.s32.totalorder %s449, %s452
      %p458 = scmp.eq.s32.totalorder %s36, 0
      %p459 = por %p457, %p458
      %p460 = scmp.ne.s32.totalorder %s449, %s452
      %p461 = scmp.eq.s32.totalorder %s41, 3
      %p462 = por %p460, %p461
      %p463 = scmp.ne.s32.totalorder %s452, %s453
      %p464 = scmp.eq.s32.totalorder %s41, 0
      %p465 = por %p463, %p464
      %p466 = scmp.ne.s32.totalorder %s452, %s453
      %p467 = scmp.eq.s32.totalorder %s42, 3
      %p468 = por %p466, %p467
      %p470 = scmp.ne.s32.totalorder %s453, %s469
      %p471 = scmp.eq.s32.totalorder %s42, 0
      %p472 = por %p470, %p471
      %s473 = ssub.s32 %s44, %s51
      %p474 = scmp.eq.s32.totalorder %s473, 0
      %s476 = sadd.s32 %s475, 1
      %s477 = scalar_select %p474, %s475, %s476
      %p480 = pneg %p474
      %p481 = scmp.eq.s32.totalorder %s36, 3
      %p482 = por %p480, %p481
      %p483 = scmp.ne.s32.totalorder %s475, %s478
      %p484 = scmp.eq.s32.totalorder %s36, 0
      %p485 = por %p483, %p484
      %p486 = scmp.ne.s32.totalorder %s475, %s478
      %p487 = scmp.eq.s32.totalorder %s41, 3
      %p488 = por %p486, %p487
      %p489 = scmp.ne.s32.totalorder %s478, %s479
      %p490 = scmp.eq.s32.totalorder %s41, 0
      %p491 = por %p489, %p490
      %p492 = scmp.ne.s32.totalorder %s478, %s479
      %p493 = scmp.eq.s32.totalorder %s42, 3
      %p494 = por %p492, %p493
      %p496 = scmp.ne.s32.totalorder %s479, %s495
      %p497 = scmp.eq.s32.totalorder %s42, 0
      %p498 = por %p496, %p497
      %s500 = sadd.s32 %s499, 1
      %p503 = scmp.eq.s32.totalorder %s36, 3
      %p504 = scmp.ne.s32.totalorder %s499, %s501
      %p505 = scmp.eq.s32.totalorder %s36, 0
      %p506 = por %p504, %p505
      %p507 = scmp.ne.s32.totalorder %s499, %s501
      %p508 = scmp.eq.s32.totalorder %s41, 3
      %p509 = por %p507, %p508
      %p510 = scmp.ne.s32.totalorder %s501, %s502
      %p511 = scmp.eq.s32.totalorder %s41, 0
      %p512 = por %p510, %p511
      %p513 = scmp.ne.s32.totalorder %s501, %s502
      %p514 = scmp.eq.s32.totalorder %s42, 3
      %p515 = por %p513, %p514
      %p517 = scmp.ne.s32.totalorder %s502, %s516
      %p518 = scmp.eq.s32.totalorder %s42, 0
      %p519 = por %p517, %p518
      %s521 = sadd.s32 %s520, 1
      %p524 = scmp.eq.s32.totalorder %s36, 3
      %p525 = scmp.ne.s32.totalorder %s520, %s522
      %p526 = scmp.eq.s32.totalorder %s36, 0
      %p527 = por %p525, %p526
      %p528 = scmp.ne.s32.totalorder %s520, %s522
      %p529 = scmp.eq.s32.totalorder %s41, 3
      %p530 = por %p528, %p529
      %p531 = scmp.ne.s32.totalorder %s522, %s523
      %p532 = scmp.eq.s32.totalorder %s41, 0
      %p533 = por %p531, %p532
      %p534 = scmp.ne.s32.totalorder %s522, %s523
      %p535 = scmp.eq.s32.totalorder %s42, 3
      %p536 = por %p534, %p535
      %p538 = scmp.ne.s32.totalorder %s523, %s537
      %p539 = scmp.eq.s32.totalorder %s42, 0
      %p540 = por %p538, %p539
      %s542 = sadd.s32 %s541, 1
      %p545 = scmp.eq.s32.totalorder %s36, 3
      %p546 = scmp.ne.s32.totalorder %s541, %s543
      %p547 = scmp.eq.s32.totalorder %s36, 0
      %p548 = por %p546, %p547
      %p549 = scmp.ne.s32.totalorder %s541, %s543
      %p550 = scmp.eq.s32.totalorder %s41, 3
      %p551 = por %p549, %p550
      %p552 = scmp.ne.s32.totalorder %s543, %s544
      %p553 = scmp.eq.s32.totalorder %s41, 0
      %p554 = por %p552, %p553
      %p555 = scmp.ne.s32.totalorder %s543, %s544
      %p556 = scmp.eq.s32.totalorder %s42, 3
      %p557 = por %p555, %p556
      %p559 = scmp.ne.s32.totalorder %s544, %s558
      %p560 = scmp.eq.s32.totalorder %s42, 0
      %p561 = por %p559, %p560
      %s562 = ssub.s32 %s43, %s55
      %p563 = scmp.eq.s32.totalorder %s562, 0
      %s565 = sadd.s32 %s564, 1
      %s566 = scalar_select %p563, %s564, %s565
      %p569 = pneg %p563
      %p570 = scmp.eq.s32.totalorder %s36, 3
      %p571 = por %p569, %p570
      %p572 = scmp.ne.s32.totalorder %s564, %s567
      %p573 = scmp.eq.s32.totalorder %s36, 0
      %p574 = por %p572, %p573
      %p575 = scmp.ne.s32.totalorder %s564, %s567
      %p576 = scmp.eq.s32.totalorder %s41, 3
      %p577 = por %p575, %p576
      %p578 = scmp.ne.s32.totalorder %s567, %s568
      %p579 = scmp.eq.s32.totalorder %s41, 0
      %p580 = por %p578, %p579
      %p581 = scmp.ne.s32.totalorder %s567, %s568
      %p582 = scmp.eq.s32.totalorder %s42, 3
      %p583 = por %p581, %p582
      %p585 = scmp.ne.s32.totalorder %s568, %s584
      %p586 = scmp.eq.s32.totalorder %s42, 0
      %p587 = por %p585, %p586
      %p588 = scmp.le.s32.totalorder 1, %s36
      %p589 = scmp.lt.s32.totalorder %s36, 5
      %p590 = pnand %p588, %p589
      %p591 = pneg %p590
      // Predicated region
      $region9: #{vision_transformer_forward.1} parent=5 // pred_check
        _
      $region10: #{vision_transformer_forward.1} parent=5 // pred_check_branch
        %593 = sbr.rel (%p590) target = $region12
      $region11: #{vision_transformer_forward.1} parent=5 // pred_region
        %s594 = ssub.s32 %s36, 1
        // Predicated region
        $region13: #{vision_transformer_forward.1} parent=11 // pred_check
          %p595 = pneg %p95
        $region14: #{vision_transformer_forward.1} parent=11 // pred_check_branch
          %597 = sbr.rel (%p595) target = $region16
        $region15: #{vision_transformer_forward.1} parent=11 // pred_region
          _
        $region16: #{vision_transformer_forward.1} parent=11 // pred_fallthru
          _
        // Predicated region
        $region17: #{vision_transformer_forward.1} parent=11 // pred_check
          %p598 = pneg %p116
        $region18: #{vision_transformer_forward.1} parent=11 // pred_check_branch
          %600 = sbr.rel (%p598) target = $region20
        $region19: #{vision_transformer_forward.1} parent=11 // pred_region
          _
        $region20: #{vision_transformer_forward.1} parent=11 // pred_fallthru
          _
        // Predicated region
        $region21: #{vision_transformer_forward.1} parent=11 // pred_check
          %p601 = pneg %p137
        $region22: #{vision_transformer_forward.1} parent=11 // pred_check_branch
          %603 = sbr.rel (%p601) target = $region24
        $region23: #{vision_transformer_forward.1} parent=11 // pred_region
          _
        $region24: #{vision_transformer_forward.1} parent=11 // pred_fallthru
          _
        // Predicated region
        $region25: #{vision_transformer_forward.1} parent=11 // pred_check
          %p604 = pneg %p158
        $region26: #{vision_transformer_forward.1} parent=11 // pred_check_branch
          %606 = sbr.rel (%p604) target = $region28
        $region27: #{vision_transformer_forward.1} parent=11 // pred_region
          _
        $region28: #{vision_transformer_forward.1} parent=11 // pred_fallthru
          _
        // Predicated region
        $region29: #{vision_transformer_forward.1} parent=11 // pred_check
          %p607 = pneg %p179
        $region30: #{vision_transformer_forward.1} parent=11 // pred_check_branch
          %609 = sbr.rel (%p607) target = $region32
        $region31: #{vision_transformer_forward.1} parent=11 // pred_region
          _
        $region32: #{vision_transformer_forward.1} parent=11 // pred_fallthru
          _
        // Predicated region
        $region33: #{vision_transformer_forward.1} parent=11 // pred_check
          %p610 = pneg %p512
        $region34: #{vision_transformer_forward.1} parent=11 // pred_check_branch
          %612 = sbr.rel (%p610) target = $region36
        $region35: #{vision_transformer_forward.1} parent=11 // pred_region
          _
        $region36: #{vision_transformer_forward.1} parent=11 // pred_fallthru
          _
        // Predicated region
        $region37: #{vision_transformer_forward.1} parent=11 // pred_check
          %p613 = pneg %p533
        $region38: #{vision_transformer_forward.1} parent=11 // pred_check_branch
          %615 = sbr.rel (%p613) target = $region40
        $region39: #{vision_transformer_forward.1} parent=11 // pred_region
          _
        $region40: #{vision_transformer_forward.1} parent=11 // pred_fallthru
          _
        // Predicated region
        $region41: #{vision_transformer_forward.1} parent=11 // pred_check
          %p616 = pneg %p554
        $region42: #{vision_transformer_forward.1} parent=11 // pred_check_branch
          %618 = sbr.rel (%p616) target = $region44
        $region43: #{vision_transformer_forward.1} parent=11 // pred_region
          _
        $region44: #{vision_transformer_forward.1} parent=11 // pred_fallthru
          _
      $region12: #{vision_transformer_forward.1} parent=5 // pred_fallthru
        _
      %p619 = scmp.lt.s32.totalorder %s36, 4
      // Predicated region
      $region45: #{vision_transformer_forward.1} parent=5 // pred_check
        %p620 = pneg %p619
      $region46: #{vision_transformer_forward.1} parent=5 // pred_check_branch
        %622 = sbr.rel (%p620) target = $region48
      $region47: #{vision_transformer_forward.1} parent=5 // pred_region
        // Predicated region
        $region49: #{vision_transformer_forward.1} parent=47 // pred_check
          %p623 = pneg %p68
        $region50: #{vision_transformer_forward.1} parent=47 // pred_check_branch
          %625 = sbr.rel (%p623) target = $region52
        $region51: #{vision_transformer_forward.1} parent=47 // pred_region
          %p626 = scmp.lt.s32.totalorder %s43, 1
          %s627 = scalar_select %p626, %s43, 1
          %s628 = smul.addr %s627, 2
          %s629 = smul.addr %s628, 4
          %s630 = scalar_lea.vmem %s0, %s629
        $region52: #{vision_transformer_forward.1} parent=47 // pred_fallthru
          _
        // Predicated region
        $region53: #{vision_transformer_forward.1} parent=47 // pred_check
          %p631 = pneg %p199
        $region54: #{vision_transformer_forward.1} parent=47 // pred_check_branch
          %633 = sbr.rel (%p631) target = $region56
        $region55: #{vision_transformer_forward.1} parent=47 // pred_region
          %p634 = scmp.lt.s32.totalorder %s44, 1
          %s635 = scalar_select %p634, %s44, 1
          %s636 = smul.addr %s635, 2
          %s637 = scalar_lea.vmem %s6, %s636
        $region56: #{vision_transformer_forward.1} parent=47 // pred_fallthru
          _
        // Predicated region
        $region57: #{vision_transformer_forward.1} parent=47 // pred_check
          %p638 = pneg %p225
        $region58: #{vision_transformer_forward.1} parent=47 // pred_check_branch
          %640 = sbr.rel (%p638) target = $region60
        $region59: #{vision_transformer_forward.1} parent=47 // pred_region
          %p641 = scmp.lt.s32.totalorder %s44, 1
          %s642 = scalar_select %p641, %s44, 1
          %s643 = smul.addr %s642, 2
          %s644 = scalar_lea.vmem %s7, %s643
        $region60: #{vision_transformer_forward.1} parent=47 // pred_fallthru
          _
        // Predicated region
        $region61: #{vision_transformer_forward.1} parent=47 // pred_check
          %p645 = pneg %p251
        $region62: #{vision_transformer_forward.1} parent=47 // pred_check_branch
          %647 = sbr.rel (%p645) target = $region64
        $region63: #{vision_transformer_forward.1} parent=47 // pred_region
          %s648 = sand.u32 %s241, 1
          %s649 = scalar_lea.sflag [#allocation4], %s648
          %s650 = sand.u32 %s241, 1
          %s651 = smul.addr %s650, 768
          %s652 = scalar_lea.vmem [#allocation3], %s651
          %654 = vsyncadd %s649, 0
          %s655 = smul.addr %s44, 192
          %s656 = smul.addr %s655, 4
          %s657 = scalar_lea.hbm %s8, %s656
          %s658 = sshll.u32 %s657, 4
          %s659 = int_to_ptr.hbm [resolvable:$true] %s658
          %s660 = sshll.u32 %s652, 4
          %s661 = int_to_ptr.vmem [resolvable:$true] %s660
          %666 = dma.hbm_to_vmem [thread:$0]  %s659, 12288, %s661, %s649, 384, 384, 24
        $region64: #{vision_transformer_forward.1} parent=47 // pred_fallthru
          _
        // Predicated region
        $region65: #{vision_transformer_forward.1} parent=47 // pred_check
          %p667 = pneg %p277
        $region66: #{vision_transformer_forward.1} parent=47 // pred_check_branch
          %669 = sbr.rel (%p667) target = $region68
        $region67: #{vision_transformer_forward.1} parent=47 // pred_region
          %p670 = scmp.lt.s32.totalorder %s44, 1
          %s671 = scalar_select %p670, %s44, 1
          %s672 = smul.addr %s671, 6
          %s673 = scalar_lea.vmem %s9, %s672
        $region68: #{vision_transformer_forward.1} parent=47 // pred_fallthru
          _
        // Predicated region
        $region69: #{vision_transformer_forward.1} parent=47 // pred_check
          %p674 = pneg %p303
        $region70: #{vision_transformer_forward.1} parent=47 // pred_check_branch
          %676 = sbr.rel (%p674) target = $region72
        $region71: #{vision_transformer_forward.1} parent=47 // pred_region
          %p677 = scmp.lt.s32.totalorder %s44, 1
          %s678 = scalar_select %p677, %s44, 1
          %s679 = smul.addr %s678, 64
          %s680 = smul.addr %s679, 4
          %s681 = scalar_lea.vmem %s10, %s680
        $region72: #{vision_transformer_forward.1} parent=47 // pred_fallthru
          _
        // Predicated region
        $region73: #{vision_transformer_forward.1} parent=47 // pred_check
          %p682 = pneg %p329
        $region74: #{vision_transformer_forward.1} parent=47 // pred_check_branch
          %684 = sbr.rel (%p682) target = $region76
        $region75: #{vision_transformer_forward.1} parent=47 // pred_region
          %p685 = scmp.lt.s32.totalorder %s44, 1
          %s686 = scalar_select %p685, %s44, 1
          %s687 = smul.addr %s686, 2
          %s688 = scalar_lea.vmem %s11, %s687
        $region76: #{vision_transformer_forward.1} parent=47 // pred_fallthru
          _
        // Predicated region
        $region77: #{vision_transformer_forward.1} parent=47 // pred_check
          %p689 = pneg %p355
        $region78: #{vision_transformer_forward.1} parent=47 // pred_check_branch
          %691 = sbr.rel (%p689) target = $region80
        $region79: #{vision_transformer_forward.1} parent=47 // pred_region
          %p692 = scmp.lt.s32.totalorder %s44, 1
          %s693 = scalar_select %p692, %s44, 1
          %s694 = smul.addr %s693, 2
          %s695 = scalar_lea.vmem %s12, %s694
        $region80: #{vision_transformer_forward.1} parent=47 // pred_fallthru
          _
        // Predicated region
        $region81: #{vision_transformer_forward.1} parent=47 // pred_check
          %p696 = pneg %p381
        $region82: #{vision_transformer_forward.1} parent=47 // pred_check_branch
          %698 = sbr.rel (%p696) target = $region84
        $region83: #{vision_transformer_forward.1} parent=47 // pred_region
          %p699 = scmp.lt.s32.totalorder %s44, 1
          %s700 = scalar_select %p699, %s44, 1
          %s701 = smul.addr %s700, 2
          %s702 = scalar_lea.vmem %s13, %s701
        $region84: #{vision_transformer_forward.1} parent=47 // pred_fallthru
          _
        // Predicated region
        $region85: #{vision_transformer_forward.1} parent=47 // pred_check
          %p703 = pneg %p407
        $region86: #{vision_transformer_forward.1} parent=47 // pred_check_branch
          %705 = sbr.rel (%p703) target = $region88
        $region87: #{vision_transformer_forward.1} parent=47 // pred_region
          %s706 = sand.u32 %s36, 1
          %s707 = scalar_lea.sflag [#allocation7], %s706
          %s708 = sand.u32 %s397, 1
          %s709 = smul.addr %s708, 1024
          %s710 = scalar_lea.vmem [#allocation6], %s709
          %712 = vsyncadd %s707, 0
          %s713 = smul.addr %s44, 256
          %s714 = smul.addr %s713, 4
          %s715 = scalar_lea.hbm %s14, %s714
          %s716 = sshll.u32 %s715, 4
          %s717 = int_to_ptr.hbm [resolvable:$true] %s716
          %s718 = sshll.u32 %s710, 4
          %s719 = int_to_ptr.vmem [resolvable:$true] %s718
          %724 = dma.hbm_to_vmem [thread:$0]  %s717, 16384, %s719, %s707, 512, 512, 32
        $region88: #{vision_transformer_forward.1} parent=47 // pred_fallthru
          _
        // Predicated region
        $region89: #{vision_transformer_forward.1} parent=47 // pred_check
          %p725 = pneg %p433
        $region90: #{vision_transformer_forward.1} parent=47 // pred_check_branch
          %727 = sbr.rel (%p725) target = $region92
        $region91: #{vision_transformer_forward.1} parent=47 // pred_region
          %p728 = scmp.lt.s32.totalorder %s44, 1
          %s729 = scalar_select %p728, %s44, 1
          %s730 = smul.addr %s729, 8
          %s731 = scalar_lea.vmem %s15, %s730
        $region92: #{vision_transformer_forward.1} parent=47 // pred_fallthru
          _
        // Predicated region
        $region93: #{vision_transformer_forward.1} parent=47 // pred_check
          %p732 = pneg %p459
        $region94: #{vision_transformer_forward.1} parent=47 // pred_check_branch
          %734 = sbr.rel (%p732) target = $region96
        $region95: #{vision_transformer_forward.1} parent=47 // pred_region
          %s735 = sand.u32 %s36, 1
          %s736 = scalar_lea.sflag [#allocation7], %s735
          %s737 = sand.u32 %s449, 1
          %s738 = smul.addr %s737, 1024
          %s739 = scalar_lea.vmem [#allocation8], %s738
          %741 = vsyncadd %s736, 0
          %s742 = smul.addr %s44, 256
          %s743 = smul.addr %s742, 4
          %s744 = scalar_lea.hbm %s16, %s743
          %s745 = sshll.u32 %s744, 4
          %s746 = int_to_ptr.hbm [resolvable:$true] %s745
          %s747 = sshll.u32 %s739, 4
          %s748 = int_to_ptr.vmem [resolvable:$true] %s747
          %753 = dma.hbm_to_vmem [thread:$0]  %s746, 16384, %s748, %s736, 128, 128, 8
        $region96: #{vision_transformer_forward.1} parent=47 // pred_fallthru
          _
        // Predicated region
        $region97: #{vision_transformer_forward.1} parent=47 // pred_check
          %p754 = pneg %p485
        $region98: #{vision_transformer_forward.1} parent=47 // pred_check_branch
          %756 = sbr.rel (%p754) target = $region100
        $region99: #{vision_transformer_forward.1} parent=47 // pred_region
          %p757 = scmp.lt.s32.totalorder %s44, 1
          %s758 = scalar_select %p757, %s44, 1
          %s759 = smul.addr %s758, 2
          %s760 = scalar_lea.vmem %s17, %s759
        $region100: #{vision_transformer_forward.1} parent=47 // pred_fallthru
          _
      $region48: #{vision_transformer_forward.1} parent=5 // pred_fallthru
        _
      %p761 = scmp.le.s32.totalorder 1, %s36
      %p762 = scmp.lt.s32.totalorder %s36, 5
      %p763 = pnand %p761, %p762
      %p764 = pneg %p763
      // Predicated region
      $region101: #{vision_transformer_forward.1} parent=5 // pred_check
        _
      $region102: #{vision_transformer_forward.1} parent=5 // pred_check_branch
        %766 = sbr.rel (%p763) target = $region104
      $region103: #{vision_transformer_forward.1} parent=5 // pred_region
        %s767 = ssub.s32 %s36, 1
        %s768 = sand.u32 %s244, 1
        %s769 = scalar_lea.sflag [#allocation4], %s768
        %s770 = sand.u32 %s244, 1
        %s771 = smul.addr %s770, 768
        %s772 = scalar_lea.vmem [#allocation3], %s771
        // Predicated region
        $region105: #{vision_transformer_forward.1} parent=103 // pred_check
          %p773 = pneg %p257
        $region106: #{vision_transformer_forward.1} parent=103 // pred_check_branch
          %775 = sbr.rel (%p773) target = $region108
        $region107: #{vision_transformer_forward.1} parent=103 // pred_region
          %777 = dma.done %s769, 12288
        $region108: #{vision_transformer_forward.1} parent=103 // pred_fallthru
          _
        %s778 = sand.u32 %s41, 1
        %s779 = scalar_lea.sflag [#allocation7], %s778
        %s780 = sand.u32 %s400, 1
        %s781 = smul.addr %s780, 1024
        %s782 = scalar_lea.vmem [#allocation6], %s781
        // Predicated region
        $region109: #{vision_transformer_forward.1} parent=103 // pred_check
          %p783 = pneg %p413
        $region110: #{vision_transformer_forward.1} parent=103 // pred_check_branch
          %785 = sbr.rel (%p783) target = $region112
        $region111: #{vision_transformer_forward.1} parent=103 // pred_region
          %787 = dma.done %s779, 16384
        $region112: #{vision_transformer_forward.1} parent=103 // pred_fallthru
          _
        %s788 = sand.u32 %s41, 1
        %s789 = scalar_lea.sflag [#allocation7], %s788
        %s790 = sand.u32 %s452, 1
        %s791 = smul.addr %s790, 1024
        %s792 = scalar_lea.vmem [#allocation8], %s791
        // Predicated region
        $region113: #{vision_transformer_forward.1} parent=103 // pred_check
          %p793 = pneg %p465
        $region114: #{vision_transformer_forward.1} parent=103 // pred_check_branch
          %795 = sbr.rel (%p793) target = $region116
        $region115: #{vision_transformer_forward.1} parent=103 // pred_region
          %797 = dma.done %s789, 16384
        $region116: #{vision_transformer_forward.1} parent=103 // pred_fallthru
          _
        %p798 = scmp.lt.s32.totalorder %s45, 1
        %s799 = scalar_select %p798, %s45, 1
        %s800 = smul.addr %s799, 2
        %s801 = smul.addr %s800, 4
        %s802 = scalar_lea.vmem %s0, %s801
        %p803 = pneg %p74
        %p804 = pneg %p71
        %p805 = pneg %p95
        %p806 = pneg %p92
        %p807 = pneg %p116
        %p808 = pneg %p113
        %p809 = pneg %p137
        %p810 = pneg %p134
        %p811 = pneg %p158
        %p812 = pneg %p155
        %p813 = pneg %p179
        %p814 = pneg %p176
        %p815 = scmp.lt.s32.totalorder %s46, 1
        %s816 = scalar_select %p815, %s46, 1
        %s817 = smul.addr %s816, 2
        %s818 = scalar_lea.vmem %s6, %s817
        %p819 = pneg %p205
        %p820 = pneg %p202
        %p821 = scmp.lt.s32.totalorder %s46, 1
        %s822 = scalar_select %p821, %s46, 1
        %s823 = smul.addr %s822, 2
        %s824 = scalar_lea.vmem %s7, %s823
        %p825 = pneg %p231
        %p826 = pneg %p228
        %s827 = sand.u32 %s244, 1
        %s828 = scalar_lea.sflag [#allocation4], %s827
        %s829 = sand.u32 %s244, 1
        %s830 = smul.addr %s829, 768
        %s831 = scalar_lea.vmem [#allocation3], %s830
        %p832 = pneg %p257
        %p833 = pneg %p254
        %p834 = scmp.lt.s32.totalorder %s46, 1
        %s835 = scalar_select %p834, %s46, 1
        %s836 = smul.addr %s835, 6
        %s837 = scalar_lea.vmem %s9, %s836
        %p838 = pneg %p283
        %p839 = pneg %p280
        %p840 = scmp.lt.s32.totalorder %s46, 1
        %s841 = scalar_select %p840, %s46, 1
        %s842 = smul.addr %s841, 64
        %s843 = smul.addr %s842, 4
        %s844 = scalar_lea.vmem %s10, %s843
        %p845 = pneg %p309
        %p846 = pneg %p306
        %p847 = scmp.lt.s32.totalorder %s46, 1
        %s848 = scalar_select %p847, %s46, 1
        %s849 = smul.addr %s848, 2
        %s850 = scalar_lea.vmem %s11, %s849
        %p851 = pneg %p335
        %p852 = pneg %p332
        %p853 = scmp.lt.s32.totalorder %s46, 1
        %s854 = scalar_select %p853, %s46, 1
        %s855 = smul.addr %s854, 2
        %s856 = scalar_lea.vmem %s12, %s855
        %p857 = pneg %p361
        %p858 = pneg %p358
        %p859 = scmp.lt.s32.totalorder %s46, 1
        %s860 = scalar_select %p859, %s46, 1
        %s861 = smul.addr %s860, 2
        %s862 = scalar_lea.vmem %s13, %s861
        %p863 = pneg %p387
        %p864 = pneg %p384
        %s865 = sand.u32 %s41, 1
        %s866 = scalar_lea.sflag [#allocation7], %s865
        %s867 = sand.u32 %s400, 1
        %s868 = smul.addr %s867, 1024
        %s869 = scalar_lea.vmem [#allocation6], %s868
        %p870 = pneg %p413
        %p871 = pneg %p410
        %p872 = scmp.lt.s32.totalorder %s46, 1
        %s873 = scalar_select %p872, %s46, 1
        %s874 = smul.addr %s873, 8
        %s875 = scalar_lea.vmem %s15, %s874
        %p876 = pneg %p439
        %p877 = pneg %p436
        %s878 = sand.u32 %s41, 1
        %s879 = scalar_lea.sflag [#allocation7], %s878
        %s880 = sand.u32 %s452, 1
        %s881 = smul.addr %s880, 1024
        %s882 = scalar_lea.vmem [#allocation8], %s881
        %p883 = pneg %p465
        %p884 = pneg %p462
        %p885 = scmp.lt.s32.totalorder %s46, 1
        %s886 = scalar_select %p885, %s46, 1
        %s887 = smul.addr %s886, 2
        %s888 = scalar_lea.vmem %s17, %s887
        %p889 = pneg %p491
        %p890 = pneg %p488
        %p891 = pneg %p512
        %p892 = pneg %p509
        %p893 = pneg %p533
        %p894 = pneg %p530
        %p895 = pneg %p554
        %p896 = pneg %p551
        %p897 = pneg %p580
        %p898 = pneg %p577
        %s899 = sand.u32 %s567, 1
        %s900 = scalar_lea.sflag [#allocation5], %s899
        %s901 = sand.u32 %s567, 1
        %s902 = scalar_lea.vmem [#allocation9], %s901
        %p903 = scmp.lt.s32.totalorder %s45, 1
        %s904 = scalar_select %p903, %s45, 1
        %s905 = smul.addr %s904, 2
        %s906 = smul.addr %s905, 4
        %s907 = scalar_lea.vmem %s0, %s906
        %p908 = scmp.lt.s32.totalorder %s46, 1
        %s909 = scalar_select %p908, %s46, 1
        %s910 = smul.addr %s909, 2
        %s911 = scalar_lea.vmem %s6, %s910
        %p912 = scmp.lt.s32.totalorder %s46, 1
        %s913 = scalar_select %p912, %s46, 1
        %s914 = smul.addr %s913, 2
        %s915 = scalar_lea.vmem %s7, %s914
        %p916 = scmp.lt.s32.totalorder %s46, 1
        %s917 = scalar_select %p916, %s46, 1
        %s918 = smul.addr %s917, 6
        %s919 = scalar_lea.vmem %s9, %s918
        %p920 = scmp.lt.s32.totalorder %s46, 1
        %s921 = scalar_select %p920, %s46, 1
        %s922 = smul.addr %s921, 64
        %s923 = smul.addr %s922, 4
        %s924 = scalar_lea.vmem %s10, %s923
        %p925 = scmp.lt.s32.totalorder %s46, 1
        %s926 = scalar_select %p925, %s46, 1
        %s927 = smul.addr %s926, 2
        %s928 = scalar_lea.vmem %s11, %s927
        %p929 = scmp.lt.s32.totalorder %s46, 1
        %s930 = scalar_select %p929, %s46, 1
        %s931 = smul.addr %s930, 2
        %s932 = scalar_lea.vmem %s12, %s931
        %p933 = scmp.lt.s32.totalorder %s46, 1
        %s934 = scalar_select %p933, %s46, 1
        %s935 = smul.addr %s934, 2
        %s936 = scalar_lea.vmem %s13, %s935
        %p937 = scmp.lt.s32.totalorder %s46, 1
        %s938 = scalar_select %p937, %s46, 1
        %s939 = smul.addr %s938, 8
        %s940 = scalar_lea.vmem %s15, %s939
        %p941 = scmp.lt.s32.totalorder %s46, 1
        %s942 = scalar_select %p941, %s46, 1
        %s943 = smul.addr %s942, 2
        %s944 = scalar_lea.vmem %s17, %s943
        %p946 = scmp.eq.s32.totalorder %s46, 0
        // Predicated region
        $region117: #{vision_transformer_forward.1} parent=103 // pred_check
          %p947 = pneg %p946
        $region118: #{vision_transformer_forward.1} parent=103 // pred_check_branch
          %949 = sbr.rel (%p947) target = $region120
        $region119: #{vision_transformer_forward.1} parent=103 // pred_region
          %v950 = vld [vmem:[%s907] sm:$0xf]
          %v951 = vld [vmem:[%s907 + $0x4] sm:$0xf]
          %v952 = vld [vmem:[%s1] sm:$0xff]
          %v953 = vld [vmem:[%s1 + $0x8] sm:$0xff]
          %v954 = vld [vmem:[%s1 + $0x10] sm:$0xff]
          %v955 = vld [vmem:[%s1 + $0x18] sm:$0xff]
          %v956 = vld [vmem:[%s1 + $0x20] sm:$0xff]
          %v957 = vld [vmem:[%s1 + $0x28] sm:$0xff]
          %v960 = vunpack.c.l.b16 %v950
          %v961 = vunpack.c.l.b16 %v951
          %v962 = vpack.c.b16 %v961, %v960
          %v969 = vunpack.c.l.b16 %v952
          %v970 = vunpack.c.h.b16 %v952
          %v971 = vunpack.c.l.b16 %v953
          %v972 = vunpack.c.h.b16 %v953
          %v973 = vunpack.c.l.b16 %v954
          %v974 = vunpack.c.h.b16 %v954
          %v975 = vunpack.c.l.b16 %v955
          %v976 = vunpack.c.h.b16 %v955
          %v977 = vunpack.c.l.b16 %v956
          %v978 = vunpack.c.h.b16 %v956
          %v979 = vunpack.c.l.b16 %v957
          %v980 = vunpack.c.h.b16 %v957
          %v981 = vpack.c.b16 %v971, %v969
          %v982 = vpack.c.b16 %v972, %v970
          %v983 = vpack.c.b16 %v975, %v973
          %v984 = vpack.c.b16 %v976, %v974
          %v985 = vpack.c.b16 %v979, %v977
          %v986 = vpack.c.b16 %v980, %v978
          %vm993 = vcmask 392192
          %v995 = vsel %vm993, %v962, 0
          %997 = vmatpush.bf16.msra.mxu0 0
          %998 = vmatpush.bf16.msra.mxu0 0
          %999 = vmatpush.bf16.msra.mxu0 0
          %1000 = vmatpush.bf16.msra.mxu0 0
          %1001 = vmatpush.bf16.msra.mxu0 0
          %1002 = vmatpush.bf16.msra.mxu0 %v985
          %1003 = vmatpush.bf16.msra.mxu0 %v983
          %1004 = vmatpush.bf16.msra.mxu0 %v981
          %1005 = vmatmul.bf16.gmra.mxu0 %v995
          %v1006 = vpop.f32.mrf.mxu0
          %v1007 = vadd.f32 0.0, %v1006
          %v1008 = vpop.f32.mrf.mxu0
          %v1009 = vadd.f32 0.0, %v1008
          %1010 = vdwg.mxu0
          %1011 = vmatpush.bf16.msra.mxu0 0
          %1012 = vmatpush.bf16.msra.mxu0 0
          %1013 = vmatpush.bf16.msra.mxu0 0
          %1014 = vmatpush.bf16.msra.mxu0 0
          %1015 = vmatpush.bf16.msra.mxu0 0
          %1016 = vmatpush.bf16.msra.mxu0 %v986
          %1017 = vmatpush.bf16.msra.mxu0 %v984
          %1018 = vmatpush.bf16.msra.mxu0 %v982
          %1019 = vmatmul.bf16.gmra.mxu0 %v995
          %v1020 = vpop.f32.mrf.mxu0
          %v1021 = vadd.f32 0.0, %v1020
          %v1022 = vpop.f32.mrf.mxu0
          %v1023 = vadd.f32 0.0, %v1022
          %1024 = vdwg.mxu0
          %v1025 = vld [vmem:[%s2] sm:$0x3]
          %v1027 = vperm.slane %v1025, 0
          %v1028 = vperm.slane %v1025, 1
          %vm1035 = vcmask 1040384
          %v1036 = vrot.slane %v1007, 7
          %v1037 = vrot.slane %v1021, 7
          %v1038 = vrot.slane %v1009, 7
          %v1039 = vsel %vm1035, %v1036, %v1038
          %v1040 = vrot.slane %v1023, 7
          %v1041 = vsel %vm1035, %v1037, %v1040
          %v1048 = vsel %vm1035, %v1027, %v1036
          %v1049 = vsel %vm1035, %v1028, %v1037
          %v1050 = vsel %vm1035, %v1038, 0.0
          %v1051 = vsel %vm1035, %v1040, 0.0
          %v1052 = vld [vmem:[%s3] sm:$0xff]
          %v1053 = vld [vmem:[%s3 + $0x8] sm:$0xff]
          %v1054 = vld [vmem:[%s3 + $0x10] sm:$0xff]
          %v1055 = vld [vmem:[%s3 + $0x18] sm:$0xff]
          %v1056 = vld [vmem:[%s3 + $0x20] sm:$0xff]
          %v1057 = vld [vmem:[%s3 + $0x28] sm:$0xff]
          %v1058 = vld [vmem:[%s3 + $0x30] sm:$0xff]
          %v1059 = vld [vmem:[%s3 + $0x38] sm:$0xff]
          %v1060 = vadd.f32 %v1048, %v1052
          %v1061 = vadd.f32 %v1049, %v1053
          %v1062 = vadd.f32 %v1039, %v1054
          %v1063 = vadd.f32 %v1041, %v1055
          %v1064 = vadd.f32 %v1050, %v1056
          %v1065 = vadd.f32 %v1051, %v1057
          %v1066 = vadd.f32 %v1058, 0.0
          %v1067 = vadd.f32 %v1059, 0.0
          %v1068 = vld [vmem:[%s4] sm:$0x3]
          %v1069 = vld [vmem:[%s5] sm:$0x3]
          %v1070 = vadd.f32 %v1060, %v1061
          %1071 = vadd.xlane.f32.xlu0 %v1070
          %v1072 = vpop.xlane.xlu0 %1071
          %v1073 = vadd.f32 %v1062, %v1063
          %1074 = vadd.xlane.f32.xlu0 %v1073
          %v1075 = vpop.xlane.xlu0 %1074
          %v1076 = vadd.f32 %v1064, %v1065
          %1077 = vadd.xlane.f32.xlu0 %v1076
          %v1078 = vpop.xlane.xlu0 %1077
          %v1079 = vadd.f32 %v1066, %v1067
          %1080 = vadd.xlane.f32.xlu0 %v1079
          %v1081 = vpop.xlane.xlu0 %1080
          %v1082 = vrcp.pop 256.0
          %v1083 = vmul.f32 256.0, %v1082
          %v1084 = vsub.f32 1.0, %v1083
          %v1085 = vmul.f32 %v1082, %v1084
          %v1086 = vadd.f32 %v1082, %v1085
          %vm1087 = vweird.f32 %v1082
          %v1088 = vsel %vm1087, %v1082, %v1086
          %v1089 = vmul.f32 %v1072, %v1088
          %v1090 = vmul.f32 %v1075, %v1088
          %v1091 = vmul.f32 %v1078, %v1088
          %v1092 = vmul.f32 %v1081, %v1088
          %v1093 = vsub.f32 %v1060, %v1089
          %v1094 = vsub.f32 %v1061, %v1089
          %v1095 = vsub.f32 %v1062, %v1090
          %v1096 = vsub.f32 %v1063, %v1090
          %v1097 = vsub.f32 %v1064, %v1091
          %v1098 = vsub.f32 %v1065, %v1091
          %v1099 = vsub.f32 %v1066, %v1092
          %v1100 = vsub.f32 %v1067, %v1092
          %v1101 = vmul.f32 %v1093, %v1093
          %v1102 = vmul.f32 %v1094, %v1094
          %v1103 = vmul.f32 %v1095, %v1095
          %v1104 = vmul.f32 %v1096, %v1096
          %v1105 = vmul.f32 %v1097, %v1097
          %v1106 = vmul.f32 %v1098, %v1098
          %v1107 = vmul.f32 %v1099, %v1099
          %v1108 = vmul.f32 %v1100, %v1100
          %v1109 = vadd.f32 %v1101, %v1102
          %1110 = vadd.xlane.f32.xlu0 %v1109
          %v1111 = vpop.xlane.xlu0 %1110
          %v1112 = vadd.f32 %v1103, %v1104
          %1113 = vadd.xlane.f32.xlu0 %v1112
          %v1114 = vpop.xlane.xlu0 %1113
          %v1115 = vadd.f32 %v1105, %v1106
          %1116 = vadd.xlane.f32.xlu0 %v1115
          %v1117 = vpop.xlane.xlu0 %1116
          %v1118 = vadd.f32 %v1107, %v1108
          %1119 = vadd.xlane.f32.xlu0 %v1118
          %v1120 = vpop.xlane.xlu0 %1119
          %v1121 = vmul.f32 %v1111, %v1088
          %v1122 = vmul.f32 %v1114, %v1088
          %v1123 = vmul.f32 %v1117, %v1088
          %v1124 = vmul.f32 %v1120, %v1088
          %v1125 = vadd.f32 %v1121, 1e-05
          %v1126 = vadd.f32 %v1122, 1e-05
          %v1127 = vadd.f32 %v1123, 1e-05
          %v1128 = vadd.f32 %v1124, 1e-05
          %v1129 = vrsqrt.pop %v1125
          %v1130 = vmul.f32 %v1129, %v1125
          %v1131 = vmul.f32 %v1130, %v1129
          %v1132 = vmul.f32 0.5, %v1131
          %v1133 = vsub.f32 1.5, %v1132
          %v1134 = vmul.f32 %v1129, %v1133
          %vm1135 = vweird.f32 %v1125
          %vm1136 = vweird.f32 %v1129
          %vm1137 = vmor %vm1135, %vm1136
          %v1138 = vsel %vm1137, %v1129, %v1134
          %v1139 = vrsqrt.pop %v1126
          %v1140 = vmul.f32 %v1139, %v1126
          %v1141 = vmul.f32 %v1140, %v1139
          %v1142 = vmul.f32 0.5, %v1141
          %v1143 = vsub.f32 1.5, %v1142
          %v1144 = vmul.f32 %v1139, %v1143
          %vm1145 = vweird.f32 %v1126
          %vm1146 = vweird.f32 %v1139
          %vm1147 = vmor %vm1145, %vm1146
          %v1148 = vsel %vm1147, %v1139, %v1144
          %v1149 = vrsqrt.pop %v1127
          %v1150 = vmul.f32 %v1149, %v1127
          %v1151 = vmul.f32 %v1150, %v1149
          %v1152 = vmul.f32 0.5, %v1151
          %v1153 = vsub.f32 1.5, %v1152
          %v1154 = vmul.f32 %v1149, %v1153
          %vm1155 = vweird.f32 %v1127
          %vm1156 = vweird.f32 %v1149
          %vm1157 = vmor %vm1155, %vm1156
          %v1158 = vsel %vm1157, %v1149, %v1154
          %v1159 = vrsqrt.pop %v1128
          %v1160 = vmul.f32 %v1159, %v1128
          %v1161 = vmul.f32 %v1160, %v1159
          %v1162 = vmul.f32 0.5, %v1161
          %v1163 = vsub.f32 1.5, %v1162
          %v1164 = vmul.f32 %v1159, %v1163
          %vm1165 = vweird.f32 %v1128
          %vm1166 = vweird.f32 %v1159
          %vm1167 = vmor %vm1165, %vm1166
          %v1168 = vsel %vm1167, %v1159, %v1164
          %v1169 = vmul.f32 %v1093, %v1138
          %v1170 = vmul.f32 %v1094, %v1138
          %v1171 = vmul.f32 %v1095, %v1148
          %v1172 = vmul.f32 %v1096, %v1148
          %v1173 = vmul.f32 %v1097, %v1158
          %v1174 = vmul.f32 %v1098, %v1158
          %v1175 = vmul.f32 %v1099, %v1168
          %v1176 = vmul.f32 %v1100, %v1168
          %v1178 = vperm.slane %v1068, 0
          %v1179 = vperm.slane %v1068, 1
          %v1182 = vmul.f32 %v1169, %v1178
          %v1183 = vmul.f32 %v1170, %v1179
          %v1184 = vmul.f32 %v1171, %v1178
          %v1185 = vmul.f32 %v1172, %v1179
          %v1186 = vmul.f32 %v1173, %v1178
          %v1187 = vmul.f32 %v1174, %v1179
          %v1188 = vmul.f32 %v1175, %v1178
          %v1189 = vmul.f32 %v1176, %v1179
          %v1191 = vperm.slane %v1069, 0
          %v1192 = vperm.slane %v1069, 1
          %v1195 = vadd.f32 %v1182, %v1191
          %v1196 = vadd.f32 %v1183, %v1192
          %v1197 = vadd.f32 %v1184, %v1191
          %v1198 = vadd.f32 %v1185, %v1192
          %v1199 = vadd.f32 %v1186, %v1191
          %v1200 = vadd.f32 %v1187, %v1192
          %v1201 = vadd.f32 %v1188, %v1191
          %v1202 = vadd.f32 %v1189, %v1192
          %1203 = vst [vmem:[#allocation2] sm:$0xff] %v1195
          %1204 = vst [vmem:[#allocation2 + $0x8] sm:$0xff] %v1196
          %1205 = vst [vmem:[#allocation2 + $0x10] sm:$0xff] %v1197
          %1206 = vst [vmem:[#allocation2 + $0x18] sm:$0xff] %v1198
          %1207 = vst [vmem:[#allocation2 + $0x20] sm:$0xff] %v1199
          %1208 = vst [vmem:[#allocation2 + $0x28] sm:$0xff] %v1200
          %1209 = vst [vmem:[#allocation2 + $0x30] sm:$0xff] %v1201
          %1210 = vst [vmem:[#allocation2 + $0x38] sm:$0xff] %v1202
        $region120: #{vision_transformer_forward.1} parent=103 // pred_fallthru
          _
        %v1211 = vld [vmem:[#allocation2] sm:$0xff]
        %v1212 = vld [vmem:[#allocation2 + $0x8] sm:$0xff]
        %v1213 = vld [vmem:[#allocation2 + $0x10] sm:$0xff]
        %v1214 = vld [vmem:[#allocation2 + $0x18] sm:$0xff]
        %v1215 = vld [vmem:[#allocation2 + $0x20] sm:$0xff]
        %v1216 = vld [vmem:[#allocation2 + $0x28] sm:$0xff]
        %v1217 = vld [vmem:[#allocation2 + $0x30] sm:$0xff]
        %v1218 = vld [vmem:[#allocation2 + $0x38] sm:$0xff]
        %v1219 = vld [vmem:[%s911] sm:$0x3]
        %v1220 = vld [vmem:[%s915] sm:$0x3]
        %v1221 = vadd.f32 %v1211, %v1212
        %1222 = vadd.xlane.f32.xlu0 %v1221
        %v1223 = vpop.xlane.xlu0 %1222
        %v1224 = vadd.f32 %v1213, %v1214
        %1225 = vadd.xlane.f32.xlu0 %v1224
        %v1226 = vpop.xlane.xlu0 %1225
        %v1227 = vadd.f32 %v1215, %v1216
        %1228 = vadd.xlane.f32.xlu0 %v1227
        %v1229 = vpop.xlane.xlu0 %1228
        %v1230 = vadd.f32 %v1217, %v1218
        %1231 = vadd.xlane.f32.xlu0 %v1230
        %v1232 = vpop.xlane.xlu0 %1231
        %v1233 = vrcp.pop 256.0
        %v1234 = vmul.f32 256.0, %v1233
        %v1235 = vsub.f32 1.0, %v1234
        %v1236 = vmul.f32 %v1233, %v1235
        %v1237 = vadd.f32 %v1233, %v1236
        %vm1238 = vweird.f32 %v1233
        %v1239 = vsel %vm1238, %v1233, %v1237
        %v1240 = vmul.f32 %v1223, %v1239
        %v1241 = vmul.f32 %v1226, %v1239
        %v1242 = vmul.f32 %v1229, %v1239
        %v1243 = vmul.f32 %v1232, %v1239
        %v1244 = vsub.f32 %v1211, %v1240
        %v1245 = vsub.f32 %v1212, %v1240
        %v1246 = vsub.f32 %v1213, %v1241
        %v1247 = vsub.f32 %v1214, %v1241
        %v1248 = vsub.f32 %v1215, %v1242
        %v1249 = vsub.f32 %v1216, %v1242
        %v1250 = vsub.f32 %v1217, %v1243
        %v1251 = vsub.f32 %v1218, %v1243
        %v1252 = vmul.f32 %v1244, %v1244
        %v1253 = vmul.f32 %v1245, %v1245
        %v1254 = vmul.f32 %v1246, %v1246
        %v1255 = vmul.f32 %v1247, %v1247
        %v1256 = vmul.f32 %v1248, %v1248
        %v1257 = vmul.f32 %v1249, %v1249
        %v1258 = vmul.f32 %v1250, %v1250
        %v1259 = vmul.f32 %v1251, %v1251
        %v1260 = vadd.f32 %v1252, %v1253
        %1261 = vadd.xlane.f32.xlu0 %v1260
        %v1262 = vpop.xlane.xlu0 %1261
        %v1263 = vadd.f32 %v1254, %v1255
        %1264 = vadd.xlane.f32.xlu0 %v1263
        %v1265 = vpop.xlane.xlu0 %1264
        %v1266 = vadd.f32 %v1256, %v1257
        %1267 = vadd.xlane.f32.xlu0 %v1266
        %v1268 = vpop.xlane.xlu0 %1267
        %v1269 = vadd.f32 %v1258, %v1259
        %1270 = vadd.xlane.f32.xlu0 %v1269
        %v1271 = vpop.xlane.xlu0 %1270
        %v1272 = vmul.f32 %v1262, %v1239
        %v1273 = vmul.f32 %v1265, %v1239
        %v1274 = vmul.f32 %v1268, %v1239
        %v1275 = vmul.f32 %v1271, %v1239
        %v1276 = vadd.f32 %v1272, 1e-05
        %v1277 = vadd.f32 %v1273, 1e-05
        %v1278 = vadd.f32 %v1274, 1e-05
        %v1279 = vadd.f32 %v1275, 1e-05
        %v1280 = vrsqrt.pop %v1276
        %v1281 = vmul.f32 %v1280, %v1276
        %v1282 = vmul.f32 %v1281, %v1280
        %v1283 = vmul.f32 0.5, %v1282
        %v1284 = vsub.f32 1.5, %v1283
        %v1285 = vmul.f32 %v1280, %v1284
        %vm1286 = vweird.f32 %v1276
        %vm1287 = vweird.f32 %v1280
        %vm1288 = vmor %vm1286, %vm1287
        %v1289 = vsel %vm1288, %v1280, %v1285
        %v1290 = vrsqrt.pop %v1277
        %v1291 = vmul.f32 %v1290, %v1277
        %v1292 = vmul.f32 %v1291, %v1290
        %v1293 = vmul.f32 0.5, %v1292
        %v1294 = vsub.f32 1.5, %v1293
        %v1295 = vmul.f32 %v1290, %v1294
        %vm1296 = vweird.f32 %v1277
        %vm1297 = vweird.f32 %v1290
        %vm1298 = vmor %vm1296, %vm1297
        %v1299 = vsel %vm1298, %v1290, %v1295
        %v1300 = vrsqrt.pop %v1278
        %v1301 = vmul.f32 %v1300, %v1278
        %v1302 = vmul.f32 %v1301, %v1300
        %v1303 = vmul.f32 0.5, %v1302
        %v1304 = vsub.f32 1.5, %v1303
        %v1305 = vmul.f32 %v1300, %v1304
        %vm1306 = vweird.f32 %v1278
        %vm1307 = vweird.f32 %v1300
        %vm1308 = vmor %vm1306, %vm1307
        %v1309 = vsel %vm1308, %v1300, %v1305
        %v1310 = vrsqrt.pop %v1279
        %v1311 = vmul.f32 %v1310, %v1279
        %v1312 = vmul.f32 %v1311, %v1310
        %v1313 = vmul.f32 0.5, %v1312
        %v1314 = vsub.f32 1.5, %v1313
        %v1315 = vmul.f32 %v1310, %v1314
        %vm1316 = vweird.f32 %v1279
        %vm1317 = vweird.f32 %v1310
        %vm1318 = vmor %vm1316, %vm1317
        %v1319 = vsel %vm1318, %v1310, %v1315
        %v1320 = vmul.f32 %v1244, %v1289
        %v1321 = vmul.f32 %v1245, %v1289
        %v1322 = vmul.f32 %v1246, %v1299
        %v1323 = vmul.f32 %v1247, %v1299
        %v1324 = vmul.f32 %v1248, %v1309
        %v1325 = vmul.f32 %v1249, %v1309
        %v1326 = vmul.f32 %v1250, %v1319
        %v1327 = vmul.f32 %v1251, %v1319
        %v1329 = vperm.slane %v1219, 0
        %v1330 = vperm.slane %v1219, 1
        %v1333 = vmul.f32 %v1320, %v1329
        %v1334 = vmul.f32 %v1321, %v1330
        %v1335 = vmul.f32 %v1322, %v1329
        %v1336 = vmul.f32 %v1323, %v1330
        %v1337 = vmul.f32 %v1324, %v1329
        %v1338 = vmul.f32 %v1325, %v1330
        %v1339 = vmul.f32 %v1326, %v1329
        %v1340 = vmul.f32 %v1327, %v1330
        %v1342 = vperm.slane %v1220, 0
        %v1343 = vperm.slane %v1220, 1
        %v1346 = vadd.f32 %v1333, %v1342
        %v1347 = vadd.f32 %v1334, %v1343
        %v1348 = vadd.f32 %v1335, %v1342
        %v1349 = vadd.f32 %v1336, %v1343
        %v1350 = vadd.f32 %v1337, %v1342
        %v1351 = vadd.f32 %v1338, %v1343
        %v1352 = vadd.f32 %v1339, %v1342
        %v1353 = vadd.f32 %v1340, %v1343
        %v1354 = vpack.c.bf16 %v1348, %v1346
        %v1355 = vpack.c.bf16 %v1349, %v1347
        %v1356 = vpack.c.bf16 %v1352, %v1350
        %v1357 = vpack.c.bf16 %v1353, %v1351
        %v1358 = vld [vmem:[%s772] sm:$0xff]
        %v1359 = vld [vmem:[%s772 + $0x8] sm:$0xff]
        %v1360 = vld [vmem:[%s772 + $0x10] sm:$0xff]
        %v1361 = vld [vmem:[%s772 + $0x18] sm:$0xff]
        %v1362 = vld [vmem:[%s772 + $0x20] sm:$0xff]
        %v1363 = vld [vmem:[%s772 + $0x28] sm:$0xff]
        %v1364 = vld [vmem:[%s772 + $0x30] sm:$0xff]
        %v1365 = vld [vmem:[%s772 + $0x38] sm:$0xff]
        %v1366 = vld [vmem:[%s772 + $0x40] sm:$0xff]
        %v1367 = vld [vmem:[%s772 + $0x48] sm:$0xff]
        %v1368 = vld [vmem:[%s772 + $0x50] sm:$0xff]
        %v1369 = vld [vmem:[%s772 + $0x58] sm:$0xff]
        %v1370 = vld [vmem:[%s772 + $0x60] sm:$0xff]
        %v1371 = vld [vmem:[%s772 + $0x68] sm:$0xff]
        %v1372 = vld [vmem:[%s772 + $0x70] sm:$0xff]
        %v1373 = vld [vmem:[%s772 + $0x78] sm:$0xff]
        %v1374 = vld [vmem:[%s772 + $0x80] sm:$0xff]
        %v1375 = vld [vmem:[%s772 + $0x88] sm:$0xff]
        %v1376 = vld [vmem:[%s772 + $0x90] sm:$0xff]
        %v1377 = vld [vmem:[%s772 + $0x98] sm:$0xff]
        %v1378 = vld [vmem:[%s772 + $0xa0] sm:$0xff]
        %v1379 = vld [vmem:[%s772 + $0xa8] sm:$0xff]
        %v1380 = vld [vmem:[%s772 + $0xb0] sm:$0xff]
        %v1381 = vld [vmem:[%s772 + $0xb8] sm:$0xff]
        %v1382 = vld [vmem:[%s772 + $0xc0] sm:$0xff]
        %v1383 = vld [vmem:[%s772 + $0xc8] sm:$0xff]
        %v1384 = vld [vmem:[%s772 + $0xd0] sm:$0xff]
        %v1385 = vld [vmem:[%s772 + $0xd8] sm:$0xff]
        %v1386 = vld [vmem:[%s772 + $0xe0] sm:$0xff]
        %v1387 = vld [vmem:[%s772 + $0xe8] sm:$0xff]
        %v1388 = vld [vmem:[%s772 + $0xf0] sm:$0xff]
        %v1389 = vld [vmem:[%s772 + $0xf8] sm:$0xff]
        %v1390 = vld [vmem:[%s772 + $0x100] sm:$0xff]
        %v1391 = vld [vmem:[%s772 + $0x108] sm:$0xff]
        %v1392 = vld [vmem:[%s772 + $0x110] sm:$0xff]
        %v1393 = vld [vmem:[%s772 + $0x118] sm:$0xff]
        %v1394 = vld [vmem:[%s772 + $0x120] sm:$0xff]
        %v1395 = vld [vmem:[%s772 + $0x128] sm:$0xff]
        %v1396 = vld [vmem:[%s772 + $0x130] sm:$0xff]
        %v1397 = vld [vmem:[%s772 + $0x138] sm:$0xff]
        %v1398 = vld [vmem:[%s772 + $0x140] sm:$0xff]
        %v1399 = vld [vmem:[%s772 + $0x148] sm:$0xff]
        %v1400 = vld [vmem:[%s772 + $0x150] sm:$0xff]
        %v1401 = vld [vmem:[%s772 + $0x158] sm:$0xff]
        %v1402 = vld [vmem:[%s772 + $0x160] sm:$0xff]
        %v1403 = vld [vmem:[%s772 + $0x168] sm:$0xff]
        %v1404 = vld [vmem:[%s772 + $0x170] sm:$0xff]
        %v1405 = vld [vmem:[%s772 + $0x178] sm:$0xff]
        %v1406 = vld [vmem:[%s772 + $0x180] sm:$0xff]
        %v1407 = vld [vmem:[%s772 + $0x188] sm:$0xff]
        %v1408 = vld [vmem:[%s772 + $0x190] sm:$0xff]
        %v1409 = vld [vmem:[%s772 + $0x198] sm:$0xff]
        %v1410 = vld [vmem:[%s772 + $0x1a0] sm:$0xff]
        %v1411 = vld [vmem:[%s772 + $0x1a8] sm:$0xff]
        %v1412 = vld [vmem:[%s772 + $0x1b0] sm:$0xff]
        %v1413 = vld [vmem:[%s772 + $0x1b8] sm:$0xff]
        %v1414 = vld [vmem:[%s772 + $0x1c0] sm:$0xff]
        %v1415 = vld [vmem:[%s772 + $0x1c8] sm:$0xff]
        %v1416 = vld [vmem:[%s772 + $0x1d0] sm:$0xff]
        %v1417 = vld [vmem:[%s772 + $0x1d8] sm:$0xff]
        %v1418 = vld [vmem:[%s772 + $0x1e0] sm:$0xff]
        %v1419 = vld [vmem:[%s772 + $0x1e8] sm:$0xff]
        %v1420 = vld [vmem:[%s772 + $0x1f0] sm:$0xff]
        %v1421 = vld [vmem:[%s772 + $0x1f8] sm:$0xff]
        %v1422 = vld [vmem:[%s772 + $0x200] sm:$0xff]
        %v1423 = vld [vmem:[%s772 + $0x208] sm:$0xff]
        %v1424 = vld [vmem:[%s772 + $0x210] sm:$0xff]
        %v1425 = vld [vmem:[%s772 + $0x218] sm:$0xff]
        %v1426 = vld [vmem:[%s772 + $0x220] sm:$0xff]
        %v1427 = vld [vmem:[%s772 + $0x228] sm:$0xff]
        %v1428 = vld [vmem:[%s772 + $0x230] sm:$0xff]
        %v1429 = vld [vmem:[%s772 + $0x238] sm:$0xff]
        %v1430 = vld [vmem:[%s772 + $0x240] sm:$0xff]
        %v1431 = vld [vmem:[%s772 + $0x248] sm:$0xff]
        %v1432 = vld [vmem:[%s772 + $0x250] sm:$0xff]
        %v1433 = vld [vmem:[%s772 + $0x258] sm:$0xff]
        %v1434 = vld [vmem:[%s772 + $0x260] sm:$0xff]
        %v1435 = vld [vmem:[%s772 + $0x268] sm:$0xff]
        %v1436 = vld [vmem:[%s772 + $0x270] sm:$0xff]
        %v1437 = vld [vmem:[%s772 + $0x278] sm:$0xff]
        %v1438 = vld [vmem:[%s772 + $0x280] sm:$0xff]
        %v1439 = vld [vmem:[%s772 + $0x288] sm:$0xff]
        %v1440 = vld [vmem:[%s772 + $0x290] sm:$0xff]
        %v1441 = vld [vmem:[%s772 + $0x298] sm:$0xff]
        %v1442 = vld [vmem:[%s772 + $0x2a0] sm:$0xff]
        %v1443 = vld [vmem:[%s772 + $0x2a8] sm:$0xff]
        %v1444 = vld [vmem:[%s772 + $0x2b0] sm:$0xff]
        %v1445 = vld [vmem:[%s772 + $0x2b8] sm:$0xff]
        %v1446 = vld [vmem:[%s772 + $0x2c0] sm:$0xff]
        %v1447 = vld [vmem:[%s772 + $0x2c8] sm:$0xff]
        %v1448 = vld [vmem:[%s772 + $0x2d0] sm:$0xff]
        %v1449 = vld [vmem:[%s772 + $0x2d8] sm:$0xff]
        %v1450 = vld [vmem:[%s772 + $0x2e0] sm:$0xff]
        %v1451 = vld [vmem:[%s772 + $0x2e8] sm:$0xff]
        %v1452 = vld [vmem:[%s772 + $0x2f0] sm:$0xff]
        %v1453 = vld [vmem:[%s772 + $0x2f8] sm:$0xff]
        %v1454 = vld [vmem:[%s919] sm:$0x3f]
        %v1456 = vperm.slane %v1454, 0
        %v1457 = vperm.slane %v1454, 1
        %v1458 = vperm.slane %v1454, 2
        %v1459 = vperm.slane %v1454, 3
        %v1460 = vperm.slane %v1454, 4
        %v1461 = vperm.slane %v1454, 5
        %v1564 = vunpack.c.l.b16 %v1358
        %v1565 = vunpack.c.h.b16 %v1358
        %v1566 = vunpack.c.l.b16 %v1359
        %v1567 = vunpack.c.h.b16 %v1359
        %v1568 = vunpack.c.l.b16 %v1360
        %v1569 = vunpack.c.h.b16 %v1360
        %v1570 = vunpack.c.l.b16 %v1361
        %v1571 = vunpack.c.h.b16 %v1361
        %v1572 = vunpack.c.l.b16 %v1362
        %v1573 = vunpack.c.h.b16 %v1362
        %v1574 = vunpack.c.l.b16 %v1363
        %v1575 = vunpack.c.h.b16 %v1363
        %v1576 = vunpack.c.l.b16 %v1364
        %v1577 = vunpack.c.h.b16 %v1364
        %v1578 = vunpack.c.l.b16 %v1365
        %v1579 = vunpack.c.h.b16 %v1365
        %v1580 = vunpack.c.l.b16 %v1366
        %v1581 = vunpack.c.h.b16 %v1366
        %v1582 = vunpack.c.l.b16 %v1367
        %v1583 = vunpack.c.h.b16 %v1367
        %v1584 = vunpack.c.l.b16 %v1368
        %v1585 = vunpack.c.h.b16 %v1368
        %v1586 = vunpack.c.l.b16 %v1369
        %v1587 = vunpack.c.h.b16 %v1369
        %v1588 = vunpack.c.l.b16 %v1370
        %v1589 = vunpack.c.h.b16 %v1370
        %v1590 = vunpack.c.l.b16 %v1371
        %v1591 = vunpack.c.h.b16 %v1371
        %v1592 = vunpack.c.l.b16 %v1372
        %v1593 = vunpack.c.h.b16 %v1372
        %v1594 = vunpack.c.l.b16 %v1373
        %v1595 = vunpack.c.h.b16 %v1373
        %v1596 = vunpack.c.l.b16 %v1374
        %v1597 = vunpack.c.h.b16 %v1374
        %v1598 = vunpack.c.l.b16 %v1375
        %v1599 = vunpack.c.h.b16 %v1375
        %v1600 = vunpack.c.l.b16 %v1376
        %v1601 = vunpack.c.h.b16 %v1376
        %v1602 = vunpack.c.l.b16 %v1377
        %v1603 = vunpack.c.h.b16 %v1377
        %v1604 = vunpack.c.l.b16 %v1378
        %v1605 = vunpack.c.h.b16 %v1378
        %v1606 = vunpack.c.l.b16 %v1379
        %v1607 = vunpack.c.h.b16 %v1379
        %v1608 = vunpack.c.l.b16 %v1380
        %v1609 = vunpack.c.h.b16 %v1380
        %v1610 = vunpack.c.l.b16 %v1381
        %v1611 = vunpack.c.h.b16 %v1381
        %v1612 = vunpack.c.l.b16 %v1382
        %v1613 = vunpack.c.h.b16 %v1382
        %v1614 = vunpack.c.l.b16 %v1383
        %v1615 = vunpack.c.h.b16 %v1383
        %v1616 = vunpack.c.l.b16 %v1384
        %v1617 = vunpack.c.h.b16 %v1384
        %v1618 = vunpack.c.l.b16 %v1385
        %v1619 = vunpack.c.h.b16 %v1385
        %v1620 = vunpack.c.l.b16 %v1386
        %v1621 = vunpack.c.h.b16 %v1386
        %v1622 = vunpack.c.l.b16 %v1387
        %v1623 = vunpack.c.h.b16 %v1387
        %v1624 = vunpack.c.l.b16 %v1388
        %v1625 = vunpack.c.h.b16 %v1388
        %v1626 = vunpack.c.l.b16 %v1389
        %v1627 = vunpack.c.h.b16 %v1389
        %v1628 = vunpack.c.l.b16 %v1390
        %v1629 = vunpack.c.h.b16 %v1390
        %v1630 = vunpack.c.l.b16 %v1391
        %v1631 = vunpack.c.h.b16 %v1391
        %v1632 = vunpack.c.l.b16 %v1392
        %v1633 = vunpack.c.h.b16 %v1392
        %v1634 = vunpack.c.l.b16 %v1393
        %v1635 = vunpack.c.h.b16 %v1393
        %v1636 = vunpack.c.l.b16 %v1394
        %v1637 = vunpack.c.h.b16 %v1394
        %v1638 = vunpack.c.l.b16 %v1395
        %v1639 = vunpack.c.h.b16 %v1395
        %v1640 = vunpack.c.l.b16 %v1396
        %v1641 = vunpack.c.h.b16 %v1396
        %v1642 = vunpack.c.l.b16 %v1397
        %v1643 = vunpack.c.h.b16 %v1397
        %v1644 = vunpack.c.l.b16 %v1398
        %v1645 = vunpack.c.h.b16 %v1398
        %v1646 = vunpack.c.l.b16 %v1399
        %v1647 = vunpack.c.h.b16 %v1399
        %v1648 = vunpack.c.l.b16 %v1400
        %v1649 = vunpack.c.h.b16 %v1400
        %v1650 = vunpack.c.l.b16 %v1401
        %v1651 = vunpack.c.h.b16 %v1401
        %v1652 = vunpack.c.l.b16 %v1402
        %v1653 = vunpack.c.h.b16 %v1402
        %v1654 = vunpack.c.l.b16 %v1403
        %v1655 = vunpack.c.h.b16 %v1403
        %v1656 = vunpack.c.l.b16 %v1404
        %v1657 = vunpack.c.h.b16 %v1404
        %v1658 = vunpack.c.l.b16 %v1405
        %v1659 = vunpack.c.h.b16 %v1405
        %v1660 = vunpack.c.l.b16 %v1406
        %v1661 = vunpack.c.h.b16 %v1406
        %v1662 = vunpack.c.l.b16 %v1407
        %v1663 = vunpack.c.h.b16 %v1407
        %v1664 = vunpack.c.l.b16 %v1408
        %v1665 = vunpack.c.h.b16 %v1408
        %v1666 = vunpack.c.l.b16 %v1409
        %v1667 = vunpack.c.h.b16 %v1409
        %v1668 = vunpack.c.l.b16 %v1410
        %v1669 = vunpack.c.h.b16 %v1410
        %v1670 = vunpack.c.l.b16 %v1411
        %v1671 = vunpack.c.h.b16 %v1411
        %v1672 = vunpack.c.l.b16 %v1412
        %v1673 = vunpack.c.h.b16 %v1412
        %v1674 = vunpack.c.l.b16 %v1413
        %v1675 = vunpack.c.h.b16 %v1413
        %v1676 = vunpack.c.l.b16 %v1414
        %v1677 = vunpack.c.h.b16 %v1414
        %v1678 = vunpack.c.l.b16 %v1415
        %v1679 = vunpack.c.h.b16 %v1415
        %v1680 = vunpack.c.l.b16 %v1416
        %v1681 = vunpack.c.h.b16 %v1416
        %v1682 = vunpack.c.l.b16 %v1417
        %v1683 = vunpack.c.h.b16 %v1417
        %v1684 = vunpack.c.l.b16 %v1418
        %v1685 = vunpack.c.h.b16 %v1418
        %v1686 = vunpack.c.l.b16 %v1419
        %v1687 = vunpack.c.h.b16 %v1419
        %v1688 = vunpack.c.l.b16 %v1420
        %v1689 = vunpack.c.h.b16 %v1420
        %v1690 = vunpack.c.l.b16 %v1421
        %v1691 = vunpack.c.h.b16 %v1421
        %v1692 = vunpack.c.l.b16 %v1422
        %v1693 = vunpack.c.h.b16 %v1422
        %v1694 = vunpack.c.l.b16 %v1423
        %v1695 = vunpack.c.h.b16 %v1423
        %v1696 = vunpack.c.l.b16 %v1424
        %v1697 = vunpack.c.h.b16 %v1424
        %v1698 = vunpack.c.l.b16 %v1425
        %v1699 = vunpack.c.h.b16 %v1425
        %v1700 = vunpack.c.l.b16 %v1426
        %v1701 = vunpack.c.h.b16 %v1426
        %v1702 = vunpack.c.l.b16 %v1427
        %v1703 = vunpack.c.h.b16 %v1427
        %v1704 = vunpack.c.l.b16 %v1428
        %v1705 = vunpack.c.h.b16 %v1428
        %v1706 = vunpack.c.l.b16 %v1429
        %v1707 = vunpack.c.h.b16 %v1429
        %v1708 = vunpack.c.l.b16 %v1430
        %v1709 = vunpack.c.h.b16 %v1430
        %v1710 = vunpack.c.l.b16 %v1431
        %v1711 = vunpack.c.h.b16 %v1431
        %v1712 = vunpack.c.l.b16 %v1432
        %v1713 = vunpack.c.h.b16 %v1432
        %v1714 = vunpack.c.l.b16 %v1433
        %v1715 = vunpack.c.h.b16 %v1433
        %v1716 = vunpack.c.l.b16 %v1434
        %v1717 = vunpack.c.h.b16 %v1434
        %v1718 = vunpack.c.l.b16 %v1435
        %v1719 = vunpack.c.h.b16 %v1435
        %v1720 = vunpack.c.l.b16 %v1436
        %v1721 = vunpack.c.h.b16 %v1436
        %v1722 = vunpack.c.l.b16 %v1437
        %v1723 = vunpack.c.h.b16 %v1437
        %v1724 = vunpack.c.l.b16 %v1438
        %v1725 = vunpack.c.h.b16 %v1438
        %v1726 = vunpack.c.l.b16 %v1439
        %v1727 = vunpack.c.h.b16 %v1439
        %v1728 = vunpack.c.l.b16 %v1440
        %v1729 = vunpack.c.h.b16 %v1440
        %v1730 = vunpack.c.l.b16 %v1441
        %v1731 = vunpack.c.h.b16 %v1441
        %v1732 = vunpack.c.l.b16 %v1442
        %v1733 = vunpack.c.h.b16 %v1442
        %v1734 = vunpack.c.l.b16 %v1443
        %v1735 = vunpack.c.h.b16 %v1443
        %v1736 = vunpack.c.l.b16 %v1444
        %v1737 = vunpack.c.h.b16 %v1444
        %v1738 = vunpack.c.l.b16 %v1445
        %v1739 = vunpack.c.h.b16 %v1445
        %v1740 = vunpack.c.l.b16 %v1446
        %v1741 = vunpack.c.h.b16 %v1446
        %v1742 = vunpack.c.l.b16 %v1447
        %v1743 = vunpack.c.h.b16 %v1447
        %v1744 = vunpack.c.l.b16 %v1448
        %v1745 = vunpack.c.h.b16 %v1448
        %v1746 = vunpack.c.l.b16 %v1449
        %v1747 = vunpack.c.h.b16 %v1449
        %v1748 = vunpack.c.l.b16 %v1450
        %v1749 = vunpack.c.h.b16 %v1450
        %v1750 = vunpack.c.l.b16 %v1451
        %v1751 = vunpack.c.h.b16 %v1451
        %v1752 = vunpack.c.l.b16 %v1452
        %v1753 = vunpack.c.h.b16 %v1452
        %v1754 = vunpack.c.l.b16 %v1453
        %v1755 = vunpack.c.h.b16 %v1453
        %v1756 = vpack.c.b16 %v1570, %v1564
        %v1757 = vpack.c.b16 %v1571, %v1565
        %v1758 = vpack.c.b16 %v1572, %v1566
        %v1759 = vpack.c.b16 %v1573, %v1567
        %v1760 = vpack.c.b16 %v1574, %v1568
        %v1761 = vpack.c.b16 %v1575, %v1569
        %v1762 = vpack.c.b16 %v1582, %v1576
        %v1763 = vpack.c.b16 %v1583, %v1577
        %v1764 = vpack.c.b16 %v1584, %v1578
        %v1765 = vpack.c.b16 %v1585, %v1579
        %v1766 = vpack.c.b16 %v1586, %v1580
        %v1767 = vpack.c.b16 %v1587, %v1581
        %v1768 = vpack.c.b16 %v1594, %v1588
        %v1769 = vpack.c.b16 %v1595, %v1589
        %v1770 = vpack.c.b16 %v1596, %v1590
        %v1771 = vpack.c.b16 %v1597, %v1591
        %v1772 = vpack.c.b16 %v1598, %v1592
        %v1773 = vpack.c.b16 %v1599, %v1593
        %v1774 = vpack.c.b16 %v1606, %v1600
        %v1775 = vpack.c.b16 %v1607, %v1601
        %v1776 = vpack.c.b16 %v1608, %v1602
        %v1777 = vpack.c.b16 %v1609, %v1603
        %v1778 = vpack.c.b16 %v1610, %v1604
        %v1779 = vpack.c.b16 %v1611, %v1605
        %v1780 = vpack.c.b16 %v1618, %v1612
        %v1781 = vpack.c.b16 %v1619, %v1613
        %v1782 = vpack.c.b16 %v1620, %v1614
        %v1783 = vpack.c.b16 %v1621, %v1615
        %v1784 = vpack.c.b16 %v1622, %v1616
        %v1785 = vpack.c.b16 %v1623, %v1617
        %v1786 = vpack.c.b16 %v1630, %v1624
        %v1787 = vpack.c.b16 %v1631, %v1625
        %v1788 = vpack.c.b16 %v1632, %v1626
        %v1789 = vpack.c.b16 %v1633, %v1627
        %v1790 = vpack.c.b16 %v1634, %v1628
        %v1791 = vpack.c.b16 %v1635, %v1629
        %v1792 = vpack.c.b16 %v1642, %v1636
        %v1793 = vpack.c.b16 %v1643, %v1637
        %v1794 = vpack.c.b16 %v1644, %v1638
        %v1795 = vpack.c.b16 %v1645, %v1639
        %v1796 = vpack.c.b16 %v1646, %v1640
        %v1797 = vpack.c.b16 %v1647, %v1641
        %v1798 = vpack.c.b16 %v1654, %v1648
        %v1799 = vpack.c.b16 %v1655, %v1649
        %v1800 = vpack.c.b16 %v1656, %v1650
        %v1801 = vpack.c.b16 %v1657, %v1651
        %v1802 = vpack.c.b16 %v1658, %v1652
        %v1803 = vpack.c.b16 %v1659, %v1653
        %v1804 = vpack.c.b16 %v1666, %v1660
        %v1805 = vpack.c.b16 %v1667, %v1661
        %v1806 = vpack.c.b16 %v1668, %v1662
        %v1807 = vpack.c.b16 %v1669, %v1663
        %v1808 = vpack.c.b16 %v1670, %v1664
        %v1809 = vpack.c.b16 %v1671, %v1665
        %v1810 = vpack.c.b16 %v1678, %v1672
        %v1811 = vpack.c.b16 %v1679, %v1673
        %v1812 = vpack.c.b16 %v1680, %v1674
        %v1813 = vpack.c.b16 %v1681, %v1675
        %v1814 = vpack.c.b16 %v1682, %v1676
        %v1815 = vpack.c.b16 %v1683, %v1677
        %v1816 = vpack.c.b16 %v1690, %v1684
        %v1817 = vpack.c.b16 %v1691, %v1685
        %v1818 = vpack.c.b16 %v1692, %v1686
        %v1819 = vpack.c.b16 %v1693, %v1687
        %v1820 = vpack.c.b16 %v1694, %v1688
        %v1821 = vpack.c.b16 %v1695, %v1689
        %v1822 = vpack.c.b16 %v1702, %v1696
        %v1823 = vpack.c.b16 %v1703, %v1697
        %v1824 = vpack.c.b16 %v1704, %v1698
        %v1825 = vpack.c.b16 %v1705, %v1699
        %v1826 = vpack.c.b16 %v1706, %v1700
        %v1827 = vpack.c.b16 %v1707, %v1701
        %v1828 = vpack.c.b16 %v1714, %v1708
        %v1829 = vpack.c.b16 %v1715, %v1709
        %v1830 = vpack.c.b16 %v1716, %v1710
        %v1831 = vpack.c.b16 %v1717, %v1711
        %v1832 = vpack.c.b16 %v1718, %v1712
        %v1833 = vpack.c.b16 %v1719, %v1713
        %v1834 = vpack.c.b16 %v1726, %v1720
        %v1835 = vpack.c.b16 %v1727, %v1721
        %v1836 = vpack.c.b16 %v1728, %v1722
        %v1837 = vpack.c.b16 %v1729, %v1723
        %v1838 = vpack.c.b16 %v1730, %v1724
        %v1839 = vpack.c.b16 %v1731, %v1725
        %v1840 = vpack.c.b16 %v1738, %v1732
        %v1841 = vpack.c.b16 %v1739, %v1733
        %v1842 = vpack.c.b16 %v1740, %v1734
        %v1843 = vpack.c.b16 %v1741, %v1735
        %v1844 = vpack.c.b16 %v1742, %v1736
        %v1845 = vpack.c.b16 %v1743, %v1737
        %v1846 = vpack.c.b16 %v1750, %v1744
        %v1847 = vpack.c.b16 %v1751, %v1745
        %v1848 = vpack.c.b16 %v1752, %v1746
        %v1849 = vpack.c.b16 %v1753, %v1747
        %v1850 = vpack.c.b16 %v1754, %v1748
        %v1851 = vpack.c.b16 %v1755, %v1749
        %1948 = vmatpush.bf16.msra.mxu0 %v1798
        %1949 = vmatpush.bf16.msra.mxu0 %v1792
        %1950 = vmatpush.bf16.msra.mxu0 %v1786
        %1951 = vmatpush.bf16.msra.mxu0 %v1780
        %1952 = vmatpush.bf16.msra.mxu0 %v1774
        %1953 = vmatpush.bf16.msra.mxu0 %v1768
        %1954 = vmatpush.bf16.msra.mxu0 %v1762
        %1955 = vmatpush.bf16.msra.mxu0 %v1756
        %1956 = vmatmul.bf16.gmra.mxu0 %v1354
        %v1957 = vpop.f32.mrf.mxu0
        %v1958 = vadd.f32 %v1456, %v1957
        %v1959 = vpop.f32.mrf.mxu0
        %v1960 = vadd.f32 %v1456, %v1959
        %1961 = vmatmul.bf16.gmra.mxu0 %v1356
        %v1962 = vpop.f32.mrf.mxu0
        %v1963 = vadd.f32 %v1456, %v1962
        %v1964 = vpop.f32.mrf.mxu0
        %v1965 = vadd.f32 %v1456, %v1964
        %1966 = vdwg.mxu0
        %1967 = vmatpush.bf16.msra.mxu0 %v1846
        %1968 = vmatpush.bf16.msra.mxu0 %v1840
        %1969 = vmatpush.bf16.msra.mxu0 %v1834
        %1970 = vmatpush.bf16.msra.mxu0 %v1828
        %1971 = vmatpush.bf16.msra.mxu0 %v1822
        %1972 = vmatpush.bf16.msra.mxu0 %v1816
        %1973 = vmatpush.bf16.msra.mxu0 %v1810
        %1974 = vmatpush.bf16.msra.mxu0 %v1804
        %1975 = vmatmul.bf16.gmra.mxu0 %v1355
        %v1976 = vpop.f32.mrf.mxu0
        %v1977 = vadd.f32 %v1958, %v1976
        %v1978 = vpop.f32.mrf.mxu0
        %v1979 = vadd.f32 %v1960, %v1978
        %1980 = vmatmul.bf16.gmra.mxu0 %v1357
        %v1981 = vpop.f32.mrf.mxu0
        %v1982 = vadd.f32 %v1963, %v1981
        %v1983 = vpop.f32.mrf.mxu0
        %v1984 = vadd.f32 %v1965, %v1983
        %1985 = vdwg.mxu0
        %1986 = vmatpush.bf16.msra.mxu0 %v1799
        %1987 = vmatpush.bf16.msra.mxu0 %v1793
        %1988 = vmatpush.bf16.msra.mxu0 %v1787
        %1989 = vmatpush.bf16.msra.mxu0 %v1781
        %1990 = vmatpush.bf16.msra.mxu0 %v1775
        %1991 = vmatpush.bf16.msra.mxu0 %v1769
        %1992 = vmatpush.bf16.msra.mxu0 %v1763
        %1993 = vmatpush.bf16.msra.mxu0 %v1757
        %1994 = vmatmul.bf16.gmra.mxu0 %v1354
        %v1995 = vpop.f32.mrf.mxu0
        %v1996 = vadd.f32 %v1457, %v1995
        %v1997 = vpop.f32.mrf.mxu0
        %v1998 = vadd.f32 %v1457, %v1997
        %1999 = vmatmul.bf16.gmra.mxu0 %v1356
        %v2000 = vpop.f32.mrf.mxu0
        %v2001 = vadd.f32 %v1457, %v2000
        %v2002 = vpop.f32.mrf.mxu0
        %v2003 = vadd.f32 %v1457, %v2002
        %2004 = vdwg.mxu0
        %2005 = vmatpush.bf16.msra.mxu0 %v1847
        %2006 = vmatpush.bf16.msra.mxu0 %v1841
        %2007 = vmatpush.bf16.msra.mxu0 %v1835
        %2008 = vmatpush.bf16.msra.mxu0 %v1829
        %2009 = vmatpush.bf16.msra.mxu0 %v1823
        %2010 = vmatpush.bf16.msra.mxu0 %v1817
        %2011 = vmatpush.bf16.msra.mxu0 %v1811
        %2012 = vmatpush.bf16.msra.mxu0 %v1805
        %2013 = vmatmul.bf16.gmra.mxu0 %v1355
        %v2014 = vpop.f32.mrf.mxu0
        %v2015 = vadd.f32 %v1996, %v2014
        %v2016 = vpop.f32.mrf.mxu0
        %v2017 = vadd.f32 %v1998, %v2016
        %2018 = vmatmul.bf16.gmra.mxu0 %v1357
        %v2019 = vpop.f32.mrf.mxu0
        %v2020 = vadd.f32 %v2001, %v2019
        %v2021 = vpop.f32.mrf.mxu0
        %v2022 = vadd.f32 %v2003, %v2021
        %2023 = vdwg.mxu0
        %2024 = vmatpush.bf16.msra.mxu0 %v1800
        %2025 = vmatpush.bf16.msra.mxu0 %v1794
        %2026 = vmatpush.bf16.msra.mxu0 %v1788
        %2027 = vmatpush.bf16.msra.mxu0 %v1782
        %2028 = vmatpush.bf16.msra.mxu0 %v1776
        %2029 = vmatpush.bf16.msra.mxu0 %v1770
        %2030 = vmatpush.bf16.msra.mxu0 %v1764
        %2031 = vmatpush.bf16.msra.mxu0 %v1758
        %2032 = vmatmul.bf16.gmra.mxu0 %v1354
        %v2033 = vpop.f32.mrf.mxu0
        %v2034 = vadd.f32 %v1458, %v2033
        %v2035 = vpop.f32.mrf.mxu0
        %v2036 = vadd.f32 %v1458, %v2035
        %2037 = vmatmul.bf16.gmra.mxu0 %v1356
        %v2038 = vpop.f32.mrf.mxu0
        %v2039 = vadd.f32 %v1458, %v2038
        %v2040 = vpop.f32.mrf.mxu0
        %v2041 = vadd.f32 %v1458, %v2040
        %2042 = vdwg.mxu0
        %2043 = vmatpush.bf16.msra.mxu0 %v1848
        %2044 = vmatpush.bf16.msra.mxu0 %v1842
        %2045 = vmatpush.bf16.msra.mxu0 %v1836
        %2046 = vmatpush.bf16.msra.mxu0 %v1830
        %2047 = vmatpush.bf16.msra.mxu0 %v1824
        %2048 = vmatpush.bf16.msra.mxu0 %v1818
        %2049 = vmatpush.bf16.msra.mxu0 %v1812
        %2050 = vmatpush.bf16.msra.mxu0 %v1806
        %2051 = vmatmul.bf16.gmra.mxu0 %v1355
        %v2052 = vpop.f32.mrf.mxu0
        %v2053 = vadd.f32 %v2034, %v2052
        %v2054 = vpop.f32.mrf.mxu0
        %v2055 = vadd.f32 %v2036, %v2054
        %2056 = vmatmul.bf16.gmra.mxu0 %v1357
        %v2057 = vpop.f32.mrf.mxu0
        %v2058 = vadd.f32 %v2039, %v2057
        %v2059 = vpop.f32.mrf.mxu0
        %v2060 = vadd.f32 %v2041, %v2059
        %2061 = vdwg.mxu0
        %2062 = vmatpush.bf16.msra.mxu0 %v1801
        %2063 = vmatpush.bf16.msra.mxu0 %v1795
        %2064 = vmatpush.bf16.msra.mxu0 %v1789
        %2065 = vmatpush.bf16.msra.mxu0 %v1783
        %2066 = vmatpush.bf16.msra.mxu0 %v1777
        %2067 = vmatpush.bf16.msra.mxu0 %v1771
        %2068 = vmatpush.bf16.msra.mxu0 %v1765
        %2069 = vmatpush.bf16.msra.mxu0 %v1759
        %2070 = vmatmul.bf16.gmra.mxu0 %v1354
        %v2071 = vpop.f32.mrf.mxu0
        %v2072 = vadd.f32 %v1459, %v2071
        %v2073 = vpop.f32.mrf.mxu0
        %v2074 = vadd.f32 %v1459, %v2073
        %2075 = vmatmul.bf16.gmra.mxu0 %v1356
        %v2076 = vpop.f32.mrf.mxu0
        %v2077 = vadd.f32 %v1459, %v2076
        %v2078 = vpop.f32.mrf.mxu0
        %v2079 = vadd.f32 %v1459, %v2078
        %2080 = vdwg.mxu0
        %2081 = vmatpush.bf16.msra.mxu0 %v1849
        %2082 = vmatpush.bf16.msra.mxu0 %v1843
        %2083 = vmatpush.bf16.msra.mxu0 %v1837
        %2084 = vmatpush.bf16.msra.mxu0 %v1831
        %2085 = vmatpush.bf16.msra.mxu0 %v1825
        %2086 = vmatpush.bf16.msra.mxu0 %v1819
        %2087 = vmatpush.bf16.msra.mxu0 %v1813
        %2088 = vmatpush.bf16.msra.mxu0 %v1807
        %2089 = vmatmul.bf16.gmra.mxu0 %v1355
        %v2090 = vpop.f32.mrf.mxu0
        %v2091 = vadd.f32 %v2072, %v2090
        %v2092 = vpop.f32.mrf.mxu0
        %v2093 = vadd.f32 %v2074, %v2092
        %2094 = vmatmul.bf16.gmra.mxu0 %v1357
        %v2095 = vpop.f32.mrf.mxu0
        %v2096 = vadd.f32 %v2077, %v2095
        %v2097 = vpop.f32.mrf.mxu0
        %v2098 = vadd.f32 %v2079, %v2097
        %2099 = vdwg.mxu0
        %2100 = vmatpush.bf16.msra.mxu0 %v1802
        %2101 = vmatpush.bf16.msra.mxu0 %v1796
        %2102 = vmatpush.bf16.msra.mxu0 %v1790
        %2103 = vmatpush.bf16.msra.mxu0 %v1784
        %2104 = vmatpush.bf16.msra.mxu0 %v1778
        %2105 = vmatpush.bf16.msra.mxu0 %v1772
        %2106 = vmatpush.bf16.msra.mxu0 %v1766
        %2107 = vmatpush.bf16.msra.mxu0 %v1760
        %2108 = vmatmul.bf16.gmra.mxu0 %v1354
        %v2109 = vpop.f32.mrf.mxu0
        %v2110 = vadd.f32 %v1460, %v2109
        %v2111 = vpop.f32.mrf.mxu0
        %v2112 = vadd.f32 %v1460, %v2111
        %2113 = vmatmul.bf16.gmra.mxu0 %v1356
        %v2114 = vpop.f32.mrf.mxu0
        %v2115 = vadd.f32 %v1460, %v2114
        %v2116 = vpop.f32.mrf.mxu0
        %v2117 = vadd.f32 %v1460, %v2116
        %2118 = vdwg.mxu0
        %2119 = vmatpush.bf16.msra.mxu0 %v1850
        %2120 = vmatpush.bf16.msra.mxu0 %v1844
        %2121 = vmatpush.bf16.msra.mxu0 %v1838
        %2122 = vmatpush.bf16.msra.mxu0 %v1832
        %2123 = vmatpush.bf16.msra.mxu0 %v1826
        %2124 = vmatpush.bf16.msra.mxu0 %v1820
        %2125 = vmatpush.bf16.msra.mxu0 %v1814
        %2126 = vmatpush.bf16.msra.mxu0 %v1808
        %2127 = vmatmul.bf16.gmra.mxu0 %v1355
        %v2128 = vpop.f32.mrf.mxu0
        %v2129 = vadd.f32 %v2110, %v2128
        %v2130 = vpop.f32.mrf.mxu0
        %v2131 = vadd.f32 %v2112, %v2130
        %2132 = vmatmul.bf16.gmra.mxu0 %v1357
        %v2133 = vpop.f32.mrf.mxu0
        %v2134 = vadd.f32 %v2115, %v2133
        %v2135 = vpop.f32.mrf.mxu0
        %v2136 = vadd.f32 %v2117, %v2135
        %2137 = vdwg.mxu0
        %2138 = vmatpush.bf16.msra.mxu0 %v1803
        %2139 = vmatpush.bf16.msra.mxu0 %v1797
        %2140 = vmatpush.bf16.msra.mxu0 %v1791
        %2141 = vmatpush.bf16.msra.mxu0 %v1785
        %2142 = vmatpush.bf16.msra.mxu0 %v1779
        %2143 = vmatpush.bf16.msra.mxu0 %v1773
        %2144 = vmatpush.bf16.msra.mxu0 %v1767
        %2145 = vmatpush.bf16.msra.mxu0 %v1761
        %2146 = vmatmul.bf16.gmra.mxu0 %v1354
        %v2147 = vpop.f32.mrf.mxu0
        %v2148 = vadd.f32 %v1461, %v2147
        %v2149 = vpop.f32.mrf.mxu0
        %v2150 = vadd.f32 %v1461, %v2149
        %2151 = vmatmul.bf16.gmra.mxu0 %v1356
        %v2152 = vpop.f32.mrf.mxu0
        %v2153 = vadd.f32 %v1461, %v2152
        %v2154 = vpop.f32.mrf.mxu0
        %v2155 = vadd.f32 %v1461, %v2154
        %2156 = vdwg.mxu0
        %2157 = vmatpush.bf16.msra.mxu0 %v1851
        %2158 = vmatpush.bf16.msra.mxu0 %v1845
        %2159 = vmatpush.bf16.msra.mxu0 %v1839
        %2160 = vmatpush.bf16.msra.mxu0 %v1833
        %2161 = vmatpush.bf16.msra.mxu0 %v1827
        %2162 = vmatpush.bf16.msra.mxu0 %v1821
        %2163 = vmatpush.bf16.msra.mxu0 %v1815
        %2164 = vmatpush.bf16.msra.mxu0 %v1809
        %2165 = vmatmul.bf16.gmra.mxu0 %v1355
        %v2166 = vpop.f32.mrf.mxu0
        %v2167 = vadd.f32 %v2148, %v2166
        %v2168 = vpop.f32.mrf.mxu0
        %v2169 = vadd.f32 %v2150, %v2168
        %2170 = vmatmul.bf16.gmra.mxu0 %v1357
        %v2171 = vpop.f32.mrf.mxu0
        %v2172 = vadd.f32 %v2153, %v2171
        %v2173 = vpop.f32.mrf.mxu0
        %v2174 = vadd.f32 %v2155, %v2173
        %2175 = vdwg.mxu0
        %v2176 = vpack.c.bf16 %v2015, %v1977
        %v2177 = vpack.c.bf16 %v2017, %v1979
        %v2178 = vpack.c.bf16 %v2020, %v1982
        %v2179 = vpack.c.bf16 %v2022, %v1984
        %v2184 = vrot.slane %v2176, 4
        %v2185 = vrot.slane %v2177, 4
        %v2186 = vrot.slane %v2178, 4
        %v2187 = vrot.slane %v2179, 4
        %v2190 = vpack.i.b16 %v2184, %v2176
        %v2191 = vshrl.u32 %v2176, 16
        %v2192 = vshrl.u32 %v2184, 16
        %v2193 = vpack.i.b16 %v2192, %v2191
        %v2196 = vpack.i.b16 %v2185, %v2177
        %v2197 = vshrl.u32 %v2177, 16
        %v2198 = vshrl.u32 %v2185, 16
        %v2199 = vpack.i.b16 %v2198, %v2197
        %v2202 = vpack.i.b16 %v2186, %v2178
        %v2203 = vshrl.u32 %v2178, 16
        %v2204 = vshrl.u32 %v2186, 16
        %v2205 = vpack.i.b16 %v2204, %v2203
        %v2208 = vpack.i.b16 %v2187, %v2179
        %v2209 = vshrl.u32 %v2179, 16
        %v2210 = vshrl.u32 %v2187, 16
        %v2211 = vpack.i.b16 %v2210, %v2209
        %v2214 = vunpack.c.l.s4 1983009808
        %v2215 = vunpack.c.0.s8 %v2214
        %v2216 = vperm.slane %v2190, %v2215
        %v2217 = vrot.slane %v2216, 4
        %vm2218 = vcmask 1047556
        %v2219 = vsel %vm2218, 0, %v2217
        %v2221 = vunpack.c.l.s4 1934713408
        %v2222 = vunpack.c.0.s8 %v2221
        %v2223 = vperm.slane %v2216, %v2222
        %v2225 = vunpack.c.l.s4 1934713408
        %v2226 = vunpack.c.0.s8 %v2225
        %v2227 = vperm.slane %v2219, %v2226
        %v2228 = vrot.slane %v2223, 4
        %v2229 = vsel %vm2218, 0, %v2228
        %v2230 = vrot.slane %v2227, 4
        %v2231 = vsel %vm2218, 0, %v2230
        %v2234 = vunpack.c.l.s4 1983009808
        %v2235 = vunpack.c.0.s8 %v2234
        %v2236 = vperm.slane %v2193, %v2235
        %v2237 = vrot.slane %v2236, 4
        %v2238 = vsel %vm2218, 0, %v2237
        %v2240 = vunpack.c.l.s4 1934713408
        %v2241 = vunpack.c.0.s8 %v2240
        %v2242 = vperm.slane %v2236, %v2241
        %v2244 = vunpack.c.l.s4 1934713408
        %v2245 = vunpack.c.0.s8 %v2244
        %v2246 = vperm.slane %v2238, %v2245
        %v2247 = vrot.slane %v2242, 4
        %v2248 = vsel %vm2218, 0, %v2247
        %v2249 = vrot.slane %v2246, 4
        %v2250 = vsel %vm2218, 0, %v2249
        %v2253 = vunpack.c.l.s4 1983009808
        %v2254 = vunpack.c.0.s8 %v2253
        %v2255 = vperm.slane %v2196, %v2254
        %v2256 = vrot.slane %v2255, 4
        %v2257 = vsel %vm2218, 0, %v2256
        %v2259 = vunpack.c.l.s4 1934713408
        %v2260 = vunpack.c.0.s8 %v2259
        %v2261 = vperm.slane %v2255, %v2260
        %v2263 = vunpack.c.l.s4 1934713408
        %v2264 = vunpack.c.0.s8 %v2263
        %v2265 = vperm.slane %v2257, %v2264
        %v2266 = vrot.slane %v2261, 4
        %v2267 = vsel %vm2218, 0, %v2266
        %v2268 = vrot.slane %v2265, 4
        %v2269 = vsel %vm2218, 0, %v2268
        %v2272 = vunpack.c.l.s4 1983009808
        %v2273 = vunpack.c.0.s8 %v2272
        %v2274 = vperm.slane %v2199, %v2273
        %v2275 = vrot.slane %v2274, 4
        %v2276 = vsel %vm2218, 0, %v2275
        %v2278 = vunpack.c.l.s4 1934713408
        %v2279 = vunpack.c.0.s8 %v2278
        %v2280 = vperm.slane %v2274, %v2279
        %v2282 = vunpack.c.l.s4 1934713408
        %v2283 = vunpack.c.0.s8 %v2282
        %v2284 = vperm.slane %v2276, %v2283
        %v2285 = vrot.slane %v2280, 4
        %v2286 = vsel %vm2218, 0, %v2285
        %v2287 = vrot.slane %v2284, 4
        %v2288 = vsel %vm2218, 0, %v2287
        %v2291 = vunpack.c.l.s4 1983009808
        %v2292 = vunpack.c.0.s8 %v2291
        %v2293 = vperm.slane %v2202, %v2292
        %v2294 = vrot.slane %v2293, 4
        %v2295 = vsel %vm2218, 0, %v2294
        %v2297 = vunpack.c.l.s4 1934713408
        %v2298 = vunpack.c.0.s8 %v2297
        %v2299 = vperm.slane %v2293, %v2298
        %v2301 = vunpack.c.l.s4 1934713408
        %v2302 = vunpack.c.0.s8 %v2301
        %v2303 = vperm.slane %v2295, %v2302
        %v2304 = vrot.slane %v2299, 4
        %v2305 = vsel %vm2218, 0, %v2304
        %v2306 = vrot.slane %v2303, 4
        %v2307 = vsel %vm2218, 0, %v2306
        %v2310 = vunpack.c.l.s4 1983009808
        %v2311 = vunpack.c.0.s8 %v2310
        %v2312 = vperm.slane %v2205, %v2311
        %v2313 = vrot.slane %v2312, 4
        %v2314 = vsel %vm2218, 0, %v2313
        %v2316 = vunpack.c.l.s4 1934713408
        %v2317 = vunpack.c.0.s8 %v2316
        %v2318 = vperm.slane %v2312, %v2317
        %v2320 = vunpack.c.l.s4 1934713408
        %v2321 = vunpack.c.0.s8 %v2320
        %v2322 = vperm.slane %v2314, %v2321
        %v2323 = vrot.slane %v2318, 4
        %v2324 = vsel %vm2218, 0, %v2323
        %v2325 = vrot.slane %v2322, 4
        %v2326 = vsel %vm2218, 0, %v2325
        %v2329 = vunpack.c.l.s4 1983009808
        %v2330 = vunpack.c.0.s8 %v2329
        %v2331 = vperm.slane %v2208, %v2330
        %v2332 = vrot.slane %v2331, 4
        %v2333 = vsel %vm2218, 0, %v2332
        %v2335 = vunpack.c.l.s4 1934713408
        %v2336 = vunpack.c.0.s8 %v2335
        %v2337 = vperm.slane %v2331, %v2336
        %v2339 = vunpack.c.l.s4 1934713408
        %v2340 = vunpack.c.0.s8 %v2339
        %v2341 = vperm.slane %v2333, %v2340
        %v2342 = vrot.slane %v2337, 4
        %v2343 = vsel %vm2218, 0, %v2342
        %v2344 = vrot.slane %v2341, 4
        %v2345 = vsel %vm2218, 0, %v2344
        %v2348 = vunpack.c.l.s4 1983009808
        %v2349 = vunpack.c.0.s8 %v2348
        %v2350 = vperm.slane %v2211, %v2349
        %v2351 = vrot.slane %v2350, 4
        %v2352 = vsel %vm2218, 0, %v2351
        %v2354 = vunpack.c.l.s4 1934713408
        %v2355 = vunpack.c.0.s8 %v2354
        %v2356 = vperm.slane %v2350, %v2355
        %v2358 = vunpack.c.l.s4 1934713408
        %v2359 = vunpack.c.0.s8 %v2358
        %v2360 = vperm.slane %v2352, %v2359
        %v2361 = vrot.slane %v2356, 4
        %v2362 = vsel %vm2218, 0, %v2361
        %v2363 = vrot.slane %v2360, 4
        %v2364 = vsel %vm2218, 0, %v2363
        %v2365 = vsel %vm2218, %v2230, %v2223
        %v2367 = vunpack.c.l.s4 1983009808
        %v2368 = vunpack.c.0.s8 %v2367
        %v2369 = vperm.slane %v2365, %v2368
        %v2370 = vrot.slane %v2231, 4
        %v2371 = vsel %vm2218, %v2370, %v2229
        %v2373 = vunpack.c.l.s4 1983009808
        %v2374 = vunpack.c.0.s8 %v2373
        %v2375 = vperm.slane %v2371, %v2374
        %v2376 = vrot.slane %v2375, 4
        %v2377 = vsel %vm2218, %v2376, %v2369
        %v2379 = vunpack.c.l.s4 1934713408
        %v2380 = vunpack.c.0.s8 %v2379
        %v2381 = vperm.slane %v2377, %v2380
        %v2382 = vsel %vm2218, %v2249, %v2242
        %v2384 = vunpack.c.l.s4 1983009808
        %v2385 = vunpack.c.0.s8 %v2384
        %v2386 = vperm.slane %v2382, %v2385
        %v2387 = vrot.slane %v2250, 4
        %v2388 = vsel %vm2218, %v2387, %v2248
        %v2390 = vunpack.c.l.s4 1983009808
        %v2391 = vunpack.c.0.s8 %v2390
        %v2392 = vperm.slane %v2388, %v2391
        %v2393 = vrot.slane %v2392, 4
        %v2394 = vsel %vm2218, %v2393, %v2386
        %v2396 = vunpack.c.l.s4 1934713408
        %v2397 = vunpack.c.0.s8 %v2396
        %v2398 = vperm.slane %v2394, %v2397
        %v2399 = vsel %vm2218, %v2268, %v2261
        %v2401 = vunpack.c.l.s4 1983009808
        %v2402 = vunpack.c.0.s8 %v2401
        %v2403 = vperm.slane %v2399, %v2402
        %v2404 = vrot.slane %v2269, 4
        %v2405 = vsel %vm2218, %v2404, %v2267
        %v2407 = vunpack.c.l.s4 1983009808
        %v2408 = vunpack.c.0.s8 %v2407
        %v2409 = vperm.slane %v2405, %v2408
        %v2410 = vrot.slane %v2409, 4
        %v2411 = vsel %vm2218, %v2410, %v2403
        %v2413 = vunpack.c.l.s4 1934713408
        %v2414 = vunpack.c.0.s8 %v2413
        %v2415 = vperm.slane %v2411, %v2414
        %v2416 = vsel %vm2218, %v2287, %v2280
        %v2418 = vunpack.c.l.s4 1983009808
        %v2419 = vunpack.c.0.s8 %v2418
        %v2420 = vperm.slane %v2416, %v2419
        %v2421 = vrot.slane %v2288, 4
        %v2422 = vsel %vm2218, %v2421, %v2286
        %v2424 = vunpack.c.l.s4 1983009808
        %v2425 = vunpack.c.0.s8 %v2424
        %v2426 = vperm.slane %v2422, %v2425
        %v2427 = vrot.slane %v2426, 4
        %v2428 = vsel %vm2218, %v2427, %v2420
        %v2430 = vunpack.c.l.s4 1934713408
        %v2431 = vunpack.c.0.s8 %v2430
        %v2432 = vperm.slane %v2428, %v2431
        %v2433 = vsel %vm2218, %v2306, %v2299
        %v2435 = vunpack.c.l.s4 1983009808
        %v2436 = vunpack.c.0.s8 %v2435
        %v2437 = vperm.slane %v2433, %v2436
        %v2438 = vrot.slane %v2307, 4
        %v2439 = vsel %vm2218, %v2438, %v2305
        %v2441 = vunpack.c.l.s4 1983009808
        %v2442 = vunpack.c.0.s8 %v2441
        %v2443 = vperm.slane %v2439, %v2442
        %v2444 = vrot.slane %v2443, 4
        %v2445 = vsel %vm2218, %v2444, %v2437
        %v2447 = vunpack.c.l.s4 1934713408
        %v2448 = vunpack.c.0.s8 %v2447
        %v2449 = vperm.slane %v2445, %v2448
        %v2450 = vsel %vm2218, %v2325, %v2318
        %v2452 = vunpack.c.l.s4 1983009808
        %v2453 = vunpack.c.0.s8 %v2452
        %v2454 = vperm.slane %v2450, %v2453
        %v2455 = vrot.slane %v2326, 4
        %v2456 = vsel %vm2218, %v2455, %v2324
        %v2458 = vunpack.c.l.s4 1983009808
        %v2459 = vunpack.c.0.s8 %v2458
        %v2460 = vperm.slane %v2456, %v2459
        %v2461 = vrot.slane %v2460, 4
        %v2462 = vsel %vm2218, %v2461, %v2454
        %v2464 = vunpack.c.l.s4 1934713408
        %v2465 = vunpack.c.0.s8 %v2464
        %v2466 = vperm.slane %v2462, %v2465
        %v2467 = vsel %vm2218, %v2344, %v2337
        %v2469 = vunpack.c.l.s4 1983009808
        %v2470 = vunpack.c.0.s8 %v2469
        %v2471 = vperm.slane %v2467, %v2470
        %v2472 = vrot.slane %v2345, 4
        %v2473 = vsel %vm2218, %v2472, %v2343
        %v2475 = vunpack.c.l.s4 1983009808
        %v2476 = vunpack.c.0.s8 %v2475
        %v2477 = vperm.slane %v2473, %v2476
        %v2478 = vrot.slane %v2477, 4
        %v2479 = vsel %vm2218, %v2478, %v2471
        %v2481 = vunpack.c.l.s4 1934713408
        %v2482 = vunpack.c.0.s8 %v2481
        %v2483 = vperm.slane %v2479, %v2482
        %v2484 = vsel %vm2218, %v2363, %v2356
        %v2486 = vunpack.c.l.s4 1983009808
        %v2487 = vunpack.c.0.s8 %v2486
        %v2488 = vperm.slane %v2484, %v2487
        %v2489 = vrot.slane %v2364, 4
        %v2490 = vsel %vm2218, %v2489, %v2362
        %v2492 = vunpack.c.l.s4 1983009808
        %v2493 = vunpack.c.0.s8 %v2492
        %v2494 = vperm.slane %v2490, %v2493
        %v2495 = vrot.slane %v2494, 4
        %v2496 = vsel %vm2218, %v2495, %v2488
        %v2498 = vunpack.c.l.s4 1934713408
        %v2499 = vunpack.c.0.s8 %v2498
        %v2500 = vperm.slane %v2496, %v2499
        %v2503 = vpack.i.b16 %v2398, %v2381
        %v2504 = vshrl.u32 %v2381, 16
        %v2505 = vshrl.u32 %v2398, 16
        %v2506 = vpack.i.b16 %v2505, %v2504
        %v2509 = vpack.i.b16 %v2432, %v2415
        %v2510 = vshrl.u32 %v2415, 16
        %v2511 = vshrl.u32 %v2432, 16
        %v2512 = vpack.i.b16 %v2511, %v2510
        %v2515 = vpack.i.b16 %v2466, %v2449
        %v2516 = vshrl.u32 %v2449, 16
        %v2517 = vshrl.u32 %v2466, 16
        %v2518 = vpack.i.b16 %v2517, %v2516
        %v2521 = vpack.i.b16 %v2500, %v2483
        %v2522 = vshrl.u32 %v2483, 16
        %v2523 = vshrl.u32 %v2500, 16
        %v2524 = vpack.i.b16 %v2523, %v2522
        %v2525 = vpack.c.bf16 %v2091, %v2053
        %v2526 = vpack.c.bf16 %v2093, %v2055
        %v2527 = vpack.c.bf16 %v2096, %v2058
        %v2528 = vpack.c.bf16 %v2098, %v2060
        %v2533 = vrot.slane %v2525, 4
        %v2534 = vrot.slane %v2526, 4
        %v2535 = vrot.slane %v2527, 4
        %v2536 = vrot.slane %v2528, 4
        %v2539 = vpack.i.b16 %v2533, %v2525
        %v2540 = vshrl.u32 %v2525, 16
        %v2541 = vshrl.u32 %v2533, 16
        %v2542 = vpack.i.b16 %v2541, %v2540
        %v2545 = vpack.i.b16 %v2534, %v2526
        %v2546 = vshrl.u32 %v2526, 16
        %v2547 = vshrl.u32 %v2534, 16
        %v2548 = vpack.i.b16 %v2547, %v2546
        %v2551 = vpack.i.b16 %v2535, %v2527
        %v2552 = vshrl.u32 %v2527, 16
        %v2553 = vshrl.u32 %v2535, 16
        %v2554 = vpack.i.b16 %v2553, %v2552
        %v2557 = vpack.i.b16 %v2536, %v2528
        %v2558 = vshrl.u32 %v2528, 16
        %v2559 = vshrl.u32 %v2536, 16
        %v2560 = vpack.i.b16 %v2559, %v2558
        %v2563 = vunpack.c.l.s4 1983009808
        %v2564 = vunpack.c.0.s8 %v2563
        %v2565 = vperm.slane %v2539, %v2564
        %v2566 = vrot.slane %v2565, 4
        %v2567 = vsel %vm2218, 0, %v2566
        %v2569 = vunpack.c.l.s4 1934713408
        %v2570 = vunpack.c.0.s8 %v2569
        %v2571 = vperm.slane %v2565, %v2570
        %v2573 = vunpack.c.l.s4 1934713408
        %v2574 = vunpack.c.0.s8 %v2573
        %v2575 = vperm.slane %v2567, %v2574
        %v2576 = vrot.slane %v2571, 4
        %v2577 = vsel %vm2218, 0, %v2576
        %v2578 = vrot.slane %v2575, 4
        %v2579 = vsel %vm2218, 0, %v2578
        %v2582 = vunpack.c.l.s4 1983009808
        %v2583 = vunpack.c.0.s8 %v2582
        %v2584 = vperm.slane %v2542, %v2583
        %v2585 = vrot.slane %v2584, 4
        %v2586 = vsel %vm2218, 0, %v2585
        %v2588 = vunpack.c.l.s4 1934713408
        %v2589 = vunpack.c.0.s8 %v2588
        %v2590 = vperm.slane %v2584, %v2589
        %v2592 = vunpack.c.l.s4 1934713408
        %v2593 = vunpack.c.0.s8 %v2592
        %v2594 = vperm.slane %v2586, %v2593
        %v2595 = vrot.slane %v2590, 4
        %v2596 = vsel %vm2218, 0, %v2595
        %v2597 = vrot.slane %v2594, 4
        %v2598 = vsel %vm2218, 0, %v2597
        %v2601 = vunpack.c.l.s4 1983009808
        %v2602 = vunpack.c.0.s8 %v2601
        %v2603 = vperm.slane %v2545, %v2602
        %v2604 = vrot.slane %v2603, 4
        %v2605 = vsel %vm2218, 0, %v2604
        %v2607 = vunpack.c.l.s4 1934713408
        %v2608 = vunpack.c.0.s8 %v2607
        %v2609 = vperm.slane %v2603, %v2608
        %v2611 = vunpack.c.l.s4 1934713408
        %v2612 = vunpack.c.0.s8 %v2611
        %v2613 = vperm.slane %v2605, %v2612
        %v2614 = vrot.slane %v2609, 4
        %v2615 = vsel %vm2218, 0, %v2614
        %v2616 = vrot.slane %v2613, 4
        %v2617 = vsel %vm2218, 0, %v2616
        %v2620 = vunpack.c.l.s4 1983009808
        %v2621 = vunpack.c.0.s8 %v2620
        %v2622 = vperm.slane %v2548, %v2621
        %v2623 = vrot.slane %v2622, 4
        %v2624 = vsel %vm2218, 0, %v2623
        %v2626 = vunpack.c.l.s4 1934713408
        %v2627 = vunpack.c.0.s8 %v2626
        %v2628 = vperm.slane %v2622, %v2627
        %v2630 = vunpack.c.l.s4 1934713408
        %v2631 = vunpack.c.0.s8 %v2630
        %v2632 = vperm.slane %v2624, %v2631
        %v2633 = vrot.slane %v2628, 4
        %v2634 = vsel %vm2218, 0, %v2633
        %v2635 = vrot.slane %v2632, 4
        %v2636 = vsel %vm2218, 0, %v2635
        %v2639 = vunpack.c.l.s4 1983009808
        %v2640 = vunpack.c.0.s8 %v2639
        %v2641 = vperm.slane %v2551, %v2640
        %v2642 = vrot.slane %v2641, 4
        %v2643 = vsel %vm2218, 0, %v2642
        %v2645 = vunpack.c.l.s4 1934713408
        %v2646 = vunpack.c.0.s8 %v2645
        %v2647 = vperm.slane %v2641, %v2646
        %v2649 = vunpack.c.l.s4 1934713408
        %v2650 = vunpack.c.0.s8 %v2649
        %v2651 = vperm.slane %v2643, %v2650
        %v2652 = vrot.slane %v2647, 4
        %v2653 = vsel %vm2218, 0, %v2652
        %v2654 = vrot.slane %v2651, 4
        %v2655 = vsel %vm2218, 0, %v2654
        %v2658 = vunpack.c.l.s4 1983009808
        %v2659 = vunpack.c.0.s8 %v2658
        %v2660 = vperm.slane %v2554, %v2659
        %v2661 = vrot.slane %v2660, 4
        %v2662 = vsel %vm2218, 0, %v2661
        %v2664 = vunpack.c.l.s4 1934713408
        %v2665 = vunpack.c.0.s8 %v2664
        %v2666 = vperm.slane %v2660, %v2665
        %v2668 = vunpack.c.l.s4 1934713408
        %v2669 = vunpack.c.0.s8 %v2668
        %v2670 = vperm.slane %v2662, %v2669
        %v2671 = vrot.slane %v2666, 4
        %v2672 = vsel %vm2218, 0, %v2671
        %v2673 = vrot.slane %v2670, 4
        %v2674 = vsel %vm2218, 0, %v2673
        %v2677 = vunpack.c.l.s4 1983009808
        %v2678 = vunpack.c.0.s8 %v2677
        %v2679 = vperm.slane %v2557, %v2678
        %v2680 = vrot.slane %v2679, 4
        %v2681 = vsel %vm2218, 0, %v2680
        %v2683 = vunpack.c.l.s4 1934713408
        %v2684 = vunpack.c.0.s8 %v2683
        %v2685 = vperm.slane %v2679, %v2684
        %v2687 = vunpack.c.l.s4 1934713408
        %v2688 = vunpack.c.0.s8 %v2687
        %v2689 = vperm.slane %v2681, %v2688
        %v2690 = vrot.slane %v2685, 4
        %v2691 = vsel %vm2218, 0, %v2690
        %v2692 = vrot.slane %v2689, 4
        %v2693 = vsel %vm2218, 0, %v2692
        %v2696 = vunpack.c.l.s4 1983009808
        %v2697 = vunpack.c.0.s8 %v2696
        %v2698 = vperm.slane %v2560, %v2697
        %v2699 = vrot.slane %v2698, 4
        %v2700 = vsel %vm2218, 0, %v2699
        %v2702 = vunpack.c.l.s4 1934713408
        %v2703 = vunpack.c.0.s8 %v2702
        %v2704 = vperm.slane %v2698, %v2703
        %v2706 = vunpack.c.l.s4 1934713408
        %v2707 = vunpack.c.0.s8 %v2706
        %v2708 = vperm.slane %v2700, %v2707
        %v2709 = vrot.slane %v2704, 4
        %v2710 = vsel %vm2218, 0, %v2709
        %v2711 = vrot.slane %v2708, 4
        %v2712 = vsel %vm2218, 0, %v2711
        %v2713 = vsel %vm2218, %v2578, %v2571
        %v2715 = vunpack.c.l.s4 1983009808
        %v2716 = vunpack.c.0.s8 %v2715
        %v2717 = vperm.slane %v2713, %v2716
        %v2718 = vrot.slane %v2579, 4
        %v2719 = vsel %vm2218, %v2718, %v2577
        %v2721 = vunpack.c.l.s4 1983009808
        %v2722 = vunpack.c.0.s8 %v2721
        %v2723 = vperm.slane %v2719, %v2722
        %v2724 = vrot.slane %v2723, 4
        %v2725 = vsel %vm2218, %v2724, %v2717
        %v2727 = vunpack.c.l.s4 1934713408
        %v2728 = vunpack.c.0.s8 %v2727
        %v2729 = vperm.slane %v2725, %v2728
        %v2730 = vsel %vm2218, %v2597, %v2590
        %v2732 = vunpack.c.l.s4 1983009808
        %v2733 = vunpack.c.0.s8 %v2732
        %v2734 = vperm.slane %v2730, %v2733
        %v2735 = vrot.slane %v2598, 4
        %v2736 = vsel %vm2218, %v2735, %v2596
        %v2738 = vunpack.c.l.s4 1983009808
        %v2739 = vunpack.c.0.s8 %v2738
        %v2740 = vperm.slane %v2736, %v2739
        %v2741 = vrot.slane %v2740, 4
        %v2742 = vsel %vm2218, %v2741, %v2734
        %v2744 = vunpack.c.l.s4 1934713408
        %v2745 = vunpack.c.0.s8 %v2744
        %v2746 = vperm.slane %v2742, %v2745
        %v2747 = vsel %vm2218, %v2616, %v2609
        %v2749 = vunpack.c.l.s4 1983009808
        %v2750 = vunpack.c.0.s8 %v2749
        %v2751 = vperm.slane %v2747, %v2750
        %v2752 = vrot.slane %v2617, 4
        %v2753 = vsel %vm2218, %v2752, %v2615
        %v2755 = vunpack.c.l.s4 1983009808
        %v2756 = vunpack.c.0.s8 %v2755
        %v2757 = vperm.slane %v2753, %v2756
        %v2758 = vrot.slane %v2757, 4
        %v2759 = vsel %vm2218, %v2758, %v2751
        %v2761 = vunpack.c.l.s4 1934713408
        %v2762 = vunpack.c.0.s8 %v2761
        %v2763 = vperm.slane %v2759, %v2762
        %v2764 = vsel %vm2218, %v2635, %v2628
        %v2766 = vunpack.c.l.s4 1983009808
        %v2767 = vunpack.c.0.s8 %v2766
        %v2768 = vperm.slane %v2764, %v2767
        %v2769 = vrot.slane %v2636, 4
        %v2770 = vsel %vm2218, %v2769, %v2634
        %v2772 = vunpack.c.l.s4 1983009808
        %v2773 = vunpack.c.0.s8 %v2772
        %v2774 = vperm.slane %v2770, %v2773
        %v2775 = vrot.slane %v2774, 4
        %v2776 = vsel %vm2218, %v2775, %v2768
        %v2778 = vunpack.c.l.s4 1934713408
        %v2779 = vunpack.c.0.s8 %v2778
        %v2780 = vperm.slane %v2776, %v2779
        %v2781 = vsel %vm2218, %v2654, %v2647
        %v2783 = vunpack.c.l.s4 1983009808
        %v2784 = vunpack.c.0.s8 %v2783
        %v2785 = vperm.slane %v2781, %v2784
        %v2786 = vrot.slane %v2655, 4
        %v2787 = vsel %vm2218, %v2786, %v2653
        %v2789 = vunpack.c.l.s4 1983009808
        %v2790 = vunpack.c.0.s8 %v2789
        %v2791 = vperm.slane %v2787, %v2790
        %v2792 = vrot.slane %v2791, 4
        %v2793 = vsel %vm2218, %v2792, %v2785
        %v2795 = vunpack.c.l.s4 1934713408
        %v2796 = vunpack.c.0.s8 %v2795
        %v2797 = vperm.slane %v2793, %v2796
        %v2798 = vsel %vm2218, %v2673, %v2666
        %v2800 = vunpack.c.l.s4 1983009808
        %v2801 = vunpack.c.0.s8 %v2800
        %v2802 = vperm.slane %v2798, %v2801
        %v2803 = vrot.slane %v2674, 4
        %v2804 = vsel %vm2218, %v2803, %v2672
        %v2806 = vunpack.c.l.s4 1983009808
        %v2807 = vunpack.c.0.s8 %v2806
        %v2808 = vperm.slane %v2804, %v2807
        %v2809 = vrot.slane %v2808, 4
        %v2810 = vsel %vm2218, %v2809, %v2802
        %v2812 = vunpack.c.l.s4 1934713408
        %v2813 = vunpack.c.0.s8 %v2812
        %v2814 = vperm.slane %v2810, %v2813
        %v2815 = vsel %vm2218, %v2692, %v2685
        %v2817 = vunpack.c.l.s4 1983009808
        %v2818 = vunpack.c.0.s8 %v2817
        %v2819 = vperm.slane %v2815, %v2818
        %v2820 = vrot.slane %v2693, 4
        %v2821 = vsel %vm2218, %v2820, %v2691
        %v2823 = vunpack.c.l.s4 1983009808
        %v2824 = vunpack.c.0.s8 %v2823
        %v2825 = vperm.slane %v2821, %v2824
        %v2826 = vrot.slane %v2825, 4
        %v2827 = vsel %vm2218, %v2826, %v2819
        %v2829 = vunpack.c.l.s4 1934713408
        %v2830 = vunpack.c.0.s8 %v2829
        %v2831 = vperm.slane %v2827, %v2830
        %v2832 = vsel %vm2218, %v2711, %v2704
        %v2834 = vunpack.c.l.s4 1983009808
        %v2835 = vunpack.c.0.s8 %v2834
        %v2836 = vperm.slane %v2832, %v2835
        %v2837 = vrot.slane %v2712, 4
        %v2838 = vsel %vm2218, %v2837, %v2710
        %v2840 = vunpack.c.l.s4 1983009808
        %v2841 = vunpack.c.0.s8 %v2840
        %v2842 = vperm.slane %v2838, %v2841
        %v2843 = vrot.slane %v2842, 4
        %v2844 = vsel %vm2218, %v2843, %v2836
        %v2846 = vunpack.c.l.s4 1934713408
        %v2847 = vunpack.c.0.s8 %v2846
        %v2848 = vperm.slane %v2844, %v2847
        %v2851 = vpack.i.b16 %v2746, %v2729
        %v2852 = vshrl.u32 %v2729, 16
        %v2853 = vshrl.u32 %v2746, 16
        %v2854 = vpack.i.b16 %v2853, %v2852
        %v2857 = vpack.i.b16 %v2780, %v2763
        %v2858 = vshrl.u32 %v2763, 16
        %v2859 = vshrl.u32 %v2780, 16
        %v2860 = vpack.i.b16 %v2859, %v2858
        %v2863 = vpack.i.b16 %v2814, %v2797
        %v2864 = vshrl.u32 %v2797, 16
        %v2865 = vshrl.u32 %v2814, 16
        %v2866 = vpack.i.b16 %v2865, %v2864
        %v2869 = vpack.i.b16 %v2848, %v2831
        %v2870 = vshrl.u32 %v2831, 16
        %v2871 = vshrl.u32 %v2848, 16
        %v2872 = vpack.i.b16 %v2871, %v2870
        %v2873 = vpack.c.bf16 %v2167, %v2129
        %v2874 = vpack.c.bf16 %v2169, %v2131
        %v2875 = vpack.c.bf16 %v2172, %v2134
        %v2876 = vpack.c.bf16 %v2174, %v2136
        %v2881 = vrot.slane %v2873, 4
        %v2882 = vrot.slane %v2874, 4
        %v2883 = vrot.slane %v2875, 4
        %v2884 = vrot.slane %v2876, 4
        %v2887 = vpack.i.b16 %v2881, %v2873
        %v2888 = vshrl.u32 %v2873, 16
        %v2889 = vshrl.u32 %v2881, 16
        %v2890 = vpack.i.b16 %v2889, %v2888
        %v2893 = vpack.i.b16 %v2882, %v2874
        %v2894 = vshrl.u32 %v2874, 16
        %v2895 = vshrl.u32 %v2882, 16
        %v2896 = vpack.i.b16 %v2895, %v2894
        %v2899 = vpack.i.b16 %v2883, %v2875
        %v2900 = vshrl.u32 %v2875, 16
        %v2901 = vshrl.u32 %v2883, 16
        %v2902 = vpack.i.b16 %v2901, %v2900
        %v2905 = vpack.i.b16 %v2884, %v2876
        %v2906 = vshrl.u32 %v2876, 16
        %v2907 = vshrl.u32 %v2884, 16
        %v2908 = vpack.i.b16 %v2907, %v2906
        %v2911 = vunpack.c.l.s4 1983009808
        %v2912 = vunpack.c.0.s8 %v2911
        %v2913 = vperm.slane %v2887, %v2912
        %v2914 = vrot.slane %v2913, 4
        %v2915 = vsel %vm2218, 0, %v2914
        %v2917 = vunpack.c.l.s4 1934713408
        %v2918 = vunpack.c.0.s8 %v2917
        %v2919 = vperm.slane %v2913, %v2918
        %v2921 = vunpack.c.l.s4 1934713408
        %v2922 = vunpack.c.0.s8 %v2921
        %v2923 = vperm.slane %v2915, %v2922
        %v2924 = vrot.slane %v2919, 4
        %v2925 = vsel %vm2218, 0, %v2924
        %v2926 = vrot.slane %v2923, 4
        %v2927 = vsel %vm2218, 0, %v2926
        %v2930 = vunpack.c.l.s4 1983009808
        %v2931 = vunpack.c.0.s8 %v2930
        %v2932 = vperm.slane %v2890, %v2931
        %v2933 = vrot.slane %v2932, 4
        %v2934 = vsel %vm2218, 0, %v2933
        %v2936 = vunpack.c.l.s4 1934713408
        %v2937 = vunpack.c.0.s8 %v2936
        %v2938 = vperm.slane %v2932, %v2937
        %v2940 = vunpack.c.l.s4 1934713408
        %v2941 = vunpack.c.0.s8 %v2940
        %v2942 = vperm.slane %v2934, %v2941
        %v2943 = vrot.slane %v2938, 4
        %v2944 = vsel %vm2218, 0, %v2943
        %v2945 = vrot.slane %v2942, 4
        %v2946 = vsel %vm2218, 0, %v2945
        %v2949 = vunpack.c.l.s4 1983009808
        %v2950 = vunpack.c.0.s8 %v2949
        %v2951 = vperm.slane %v2893, %v2950
        %v2952 = vrot.slane %v2951, 4
        %v2953 = vsel %vm2218, 0, %v2952
        %v2955 = vunpack.c.l.s4 1934713408
        %v2956 = vunpack.c.0.s8 %v2955
        %v2957 = vperm.slane %v2951, %v2956
        %v2959 = vunpack.c.l.s4 1934713408
        %v2960 = vunpack.c.0.s8 %v2959
        %v2961 = vperm.slane %v2953, %v2960
        %v2962 = vrot.slane %v2957, 4
        %v2963 = vsel %vm2218, 0, %v2962
        %v2964 = vrot.slane %v2961, 4
        %v2965 = vsel %vm2218, 0, %v2964
        %v2968 = vunpack.c.l.s4 1983009808
        %v2969 = vunpack.c.0.s8 %v2968
        %v2970 = vperm.slane %v2896, %v2969
        %v2971 = vrot.slane %v2970, 4
        %v2972 = vsel %vm2218, 0, %v2971
        %v2974 = vunpack.c.l.s4 1934713408
        %v2975 = vunpack.c.0.s8 %v2974
        %v2976 = vperm.slane %v2970, %v2975
        %v2978 = vunpack.c.l.s4 1934713408
        %v2979 = vunpack.c.0.s8 %v2978
        %v2980 = vperm.slane %v2972, %v2979
        %v2981 = vrot.slane %v2976, 4
        %v2982 = vsel %vm2218, 0, %v2981
        %v2983 = vrot.slane %v2980, 4
        %v2984 = vsel %vm2218, 0, %v2983
        %v2987 = vunpack.c.l.s4 1983009808
        %v2988 = vunpack.c.0.s8 %v2987
        %v2989 = vperm.slane %v2899, %v2988
        %v2990 = vrot.slane %v2989, 4
        %v2991 = vsel %vm2218, 0, %v2990
        %v2993 = vunpack.c.l.s4 1934713408
        %v2994 = vunpack.c.0.s8 %v2993
        %v2995 = vperm.slane %v2989, %v2994
        %v2997 = vunpack.c.l.s4 1934713408
        %v2998 = vunpack.c.0.s8 %v2997
        %v2999 = vperm.slane %v2991, %v2998
        %v3000 = vrot.slane %v2995, 4
        %v3001 = vsel %vm2218, 0, %v3000
        %v3002 = vrot.slane %v2999, 4
        %v3003 = vsel %vm2218, 0, %v3002
        %v3006 = vunpack.c.l.s4 1983009808
        %v3007 = vunpack.c.0.s8 %v3006
        %v3008 = vperm.slane %v2902, %v3007
        %v3009 = vrot.slane %v3008, 4
        %v3010 = vsel %vm2218, 0, %v3009
        %v3012 = vunpack.c.l.s4 1934713408
        %v3013 = vunpack.c.0.s8 %v3012
        %v3014 = vperm.slane %v3008, %v3013
        %v3016 = vunpack.c.l.s4 1934713408
        %v3017 = vunpack.c.0.s8 %v3016
        %v3018 = vperm.slane %v3010, %v3017
        %v3019 = vrot.slane %v3014, 4
        %v3020 = vsel %vm2218, 0, %v3019
        %v3021 = vrot.slane %v3018, 4
        %v3022 = vsel %vm2218, 0, %v3021
        %v3025 = vunpack.c.l.s4 1983009808
        %v3026 = vunpack.c.0.s8 %v3025
        %v3027 = vperm.slane %v2905, %v3026
        %v3028 = vrot.slane %v3027, 4
        %v3029 = vsel %vm2218, 0, %v3028
        %v3031 = vunpack.c.l.s4 1934713408
        %v3032 = vunpack.c.0.s8 %v3031
        %v3033 = vperm.slane %v3027, %v3032
        %v3035 = vunpack.c.l.s4 1934713408
        %v3036 = vunpack.c.0.s8 %v3035
        %v3037 = vperm.slane %v3029, %v3036
        %v3038 = vrot.slane %v3033, 4
        %v3039 = vsel %vm2218, 0, %v3038
        %v3040 = vrot.slane %v3037, 4
        %v3041 = vsel %vm2218, 0, %v3040
        %v3044 = vunpack.c.l.s4 1983009808
        %v3045 = vunpack.c.0.s8 %v3044
        %v3046 = vperm.slane %v2908, %v3045
        %v3047 = vrot.slane %v3046, 4
        %v3048 = vsel %vm2218, 0, %v3047
        %v3050 = vunpack.c.l.s4 1934713408
        %v3051 = vunpack.c.0.s8 %v3050
        %v3052 = vperm.slane %v3046, %v3051
        %v3054 = vunpack.c.l.s4 1934713408
        %v3055 = vunpack.c.0.s8 %v3054
        %v3056 = vperm.slane %v3048, %v3055
        %v3057 = vrot.slane %v3052, 4
        %v3058 = vsel %vm2218, 0, %v3057
        %v3059 = vrot.slane %v3056, 4
        %v3060 = vsel %vm2218, 0, %v3059
        %v3061 = vsel %vm2218, %v2926, %v2919
        %v3063 = vunpack.c.l.s4 1983009808
        %v3064 = vunpack.c.0.s8 %v3063
        %v3065 = vperm.slane %v3061, %v3064
        %v3066 = vrot.slane %v2927, 4
        %v3067 = vsel %vm2218, %v3066, %v2925
        %v3069 = vunpack.c.l.s4 1983009808
        %v3070 = vunpack.c.0.s8 %v3069
        %v3071 = vperm.slane %v3067, %v3070
        %v3072 = vrot.slane %v3071, 4
        %v3073 = vsel %vm2218, %v3072, %v3065
        %v3075 = vunpack.c.l.s4 1934713408
        %v3076 = vunpack.c.0.s8 %v3075
        %v3077 = vperm.slane %v3073, %v3076
        %v3078 = vsel %vm2218, %v2945, %v2938
        %v3080 = vunpack.c.l.s4 1983009808
        %v3081 = vunpack.c.0.s8 %v3080
        %v3082 = vperm.slane %v3078, %v3081
        %v3083 = vrot.slane %v2946, 4
        %v3084 = vsel %vm2218, %v3083, %v2944
        %v3086 = vunpack.c.l.s4 1983009808
        %v3087 = vunpack.c.0.s8 %v3086
        %v3088 = vperm.slane %v3084, %v3087
        %v3089 = vrot.slane %v3088, 4
        %v3090 = vsel %vm2218, %v3089, %v3082
        %v3092 = vunpack.c.l.s4 1934713408
        %v3093 = vunpack.c.0.s8 %v3092
        %v3094 = vperm.slane %v3090, %v3093
        %v3095 = vsel %vm2218, %v2964, %v2957
        %v3097 = vunpack.c.l.s4 1983009808
        %v3098 = vunpack.c.0.s8 %v3097
        %v3099 = vperm.slane %v3095, %v3098
        %v3100 = vrot.slane %v2965, 4
        %v3101 = vsel %vm2218, %v3100, %v2963
        %v3103 = vunpack.c.l.s4 1983009808
        %v3104 = vunpack.c.0.s8 %v3103
        %v3105 = vperm.slane %v3101, %v3104
        %v3106 = vrot.slane %v3105, 4
        %v3107 = vsel %vm2218, %v3106, %v3099
        %v3109 = vunpack.c.l.s4 1934713408
        %v3110 = vunpack.c.0.s8 %v3109
        %v3111 = vperm.slane %v3107, %v3110
        %v3112 = vsel %vm2218, %v2983, %v2976
        %v3114 = vunpack.c.l.s4 1983009808
        %v3115 = vunpack.c.0.s8 %v3114
        %v3116 = vperm.slane %v3112, %v3115
        %v3117 = vrot.slane %v2984, 4
        %v3118 = vsel %vm2218, %v3117, %v2982
        %v3120 = vunpack.c.l.s4 1983009808
        %v3121 = vunpack.c.0.s8 %v3120
        %v3122 = vperm.slane %v3118, %v3121
        %v3123 = vrot.slane %v3122, 4
        %v3124 = vsel %vm2218, %v3123, %v3116
        %v3126 = vunpack.c.l.s4 1934713408
        %v3127 = vunpack.c.0.s8 %v3126
        %v3128 = vperm.slane %v3124, %v3127
        %v3129 = vsel %vm2218, %v3002, %v2995
        %v3131 = vunpack.c.l.s4 1983009808
        %v3132 = vunpack.c.0.s8 %v3131
        %v3133 = vperm.slane %v3129, %v3132
        %v3134 = vrot.slane %v3003, 4
        %v3135 = vsel %vm2218, %v3134, %v3001
        %v3137 = vunpack.c.l.s4 1983009808
        %v3138 = vunpack.c.0.s8 %v3137
        %v3139 = vperm.slane %v3135, %v3138
        %v3140 = vrot.slane %v3139, 4
        %v3141 = vsel %vm2218, %v3140, %v3133
        %v3143 = vunpack.c.l.s4 1934713408
        %v3144 = vunpack.c.0.s8 %v3143
        %v3145 = vperm.slane %v3141, %v3144
        %v3146 = vsel %vm2218, %v3021, %v3014
        %v3148 = vunpack.c.l.s4 1983009808
        %v3149 = vunpack.c.0.s8 %v3148
        %v3150 = vperm.slane %v3146, %v3149
        %v3151 = vrot.slane %v3022, 4
        %v3152 = vsel %vm2218, %v3151, %v3020
        %v3154 = vunpack.c.l.s4 1983009808
        %v3155 = vunpack.c.0.s8 %v3154
        %v3156 = vperm.slane %v3152, %v3155
        %v3157 = vrot.slane %v3156, 4
        %v3158 = vsel %vm2218, %v3157, %v3150
        %v3160 = vunpack.c.l.s4 1934713408
        %v3161 = vunpack.c.0.s8 %v3160
        %v3162 = vperm.slane %v3158, %v3161
        %v3163 = vsel %vm2218, %v3040, %v3033
        %v3165 = vunpack.c.l.s4 1983009808
        %v3166 = vunpack.c.0.s8 %v3165
        %v3167 = vperm.slane %v3163, %v3166
        %v3168 = vrot.slane %v3041, 4
        %v3169 = vsel %vm2218, %v3168, %v3039
        %v3171 = vunpack.c.l.s4 1983009808
        %v3172 = vunpack.c.0.s8 %v3171
        %v3173 = vperm.slane %v3169, %v3172
        %v3174 = vrot.slane %v3173, 4
        %v3175 = vsel %vm2218, %v3174, %v3167
        %v3177 = vunpack.c.l.s4 1934713408
        %v3178 = vunpack.c.0.s8 %v3177
        %v3179 = vperm.slane %v3175, %v3178
        %v3180 = vsel %vm2218, %v3059, %v3052
        %v3182 = vunpack.c.l.s4 1983009808
        %v3183 = vunpack.c.0.s8 %v3182
        %v3184 = vperm.slane %v3180, %v3183
        %v3185 = vrot.slane %v3060, 4
        %v3186 = vsel %vm2218, %v3185, %v3058
        %v3188 = vunpack.c.l.s4 1983009808
        %v3189 = vunpack.c.0.s8 %v3188
        %v3190 = vperm.slane %v3186, %v3189
        %v3191 = vrot.slane %v3190, 4
        %v3192 = vsel %vm2218, %v3191, %v3184
        %v3194 = vunpack.c.l.s4 1934713408
        %v3195 = vunpack.c.0.s8 %v3194
        %v3196 = vperm.slane %v3192, %v3195
        %v3199 = vpack.i.b16 %v3094, %v3077
        %v3200 = vshrl.u32 %v3077, 16
        %v3201 = vshrl.u32 %v3094, 16
        %v3202 = vpack.i.b16 %v3201, %v3200
        %v3205 = vpack.i.b16 %v3128, %v3111
        %v3206 = vshrl.u32 %v3111, 16
        %v3207 = vshrl.u32 %v3128, 16
        %v3208 = vpack.i.b16 %v3207, %v3206
        %v3211 = vpack.i.b16 %v3162, %v3145
        %v3212 = vshrl.u32 %v3145, 16
        %v3213 = vshrl.u32 %v3162, 16
        %v3214 = vpack.i.b16 %v3213, %v3212
        %v3217 = vpack.i.b16 %v3196, %v3179
        %v3218 = vshrl.u32 %v3179, 16
        %v3219 = vshrl.u32 %v3196, 16
        %v3220 = vpack.i.b16 %v3219, %v3218
        %v3221 = vunpack.c.l.b16 %v2503
        %v3222 = vunpack.c.l.b16 %v2509
        %v3223 = vunpack.c.l.b16 %v2515
        %v3224 = vunpack.c.l.b16 %v2521
        %v3225 = vpack.c.b16 %v3222, %v3221
        %v3226 = vpack.c.b16 %v3224, %v3223
        %v3229 = vunpack.c.l.b16 %v2851
        %v3230 = vunpack.c.l.b16 %v2857
        %v3231 = vunpack.c.l.b16 %v2863
        %v3232 = vunpack.c.l.b16 %v2869
        %v3233 = vpack.c.b16 %v3230, %v3229
        %v3234 = vpack.c.b16 %v3232, %v3231
        %3237 = vmatpush.bf16.xpose.msra.mxu0 0
        %3238 = vmatpush.bf16.xpose.msra.mxu0 0
        %3239 = vmatpush.bf16.xpose.msra.mxu0 0
        %3240 = vmatpush.bf16.xpose.msra.mxu0 0
        %3241 = vmatpush.bf16.xpose.msra.mxu0 0
        %3242 = vmatpush.bf16.xpose.msra.mxu0 0
        %3243 = vmatpush.bf16.xpose.msra.mxu0 %v3234
        %3244 = vmatpush.bf16.xpose.msra.mxu0 %v3233
        %3245 = vmatmul.bf16.gmra.mxu0 %v3225
        %v3246 = vpop.f32.mrf.mxu0
        %v3247 = vadd.f32 0.0, %v3246
        %v3248 = vpop.f32.mrf.mxu0
        %v3249 = vadd.f32 0.0, %v3248
        %3250 = vmatmul.bf16.gmra.mxu0 %v3226
        %v3251 = vpop.f32.mrf.mxu0
        %v3252 = vadd.f32 0.0, %v3251
        %v3253 = vpop.f32.mrf.mxu0
        %v3254 = vadd.f32 0.0, %v3253
        %3255 = vdwg.mxu0
        %v3256 = vunpack.c.l.b16 %v2506
        %v3257 = vunpack.c.l.b16 %v2512
        %v3258 = vunpack.c.l.b16 %v2518
        %v3259 = vunpack.c.l.b16 %v2524
        %v3260 = vpack.c.b16 %v3257, %v3256
        %v3261 = vpack.c.b16 %v3259, %v3258
        %v3264 = vunpack.c.l.b16 %v2854
        %v3265 = vunpack.c.l.b16 %v2860
        %v3266 = vunpack.c.l.b16 %v2866
        %v3267 = vunpack.c.l.b16 %v2872
        %v3268 = vpack.c.b16 %v3265, %v3264
        %v3269 = vpack.c.b16 %v3267, %v3266
        %3272 = vmatpush.bf16.xpose.msra.mxu0 0
        %3273 = vmatpush.bf16.xpose.msra.mxu0 0
        %3274 = vmatpush.bf16.xpose.msra.mxu0 0
        %3275 = vmatpush.bf16.xpose.msra.mxu0 0
        %3276 = vmatpush.bf16.xpose.msra.mxu0 0
        %3277 = vmatpush.bf16.xpose.msra.mxu0 0
        %3278 = vmatpush.bf16.xpose.msra.mxu0 %v3269
        %3279 = vmatpush.bf16.xpose.msra.mxu0 %v3268
        %3280 = vmatmul.bf16.gmra.mxu0 %v3260
        %v3281 = vpop.f32.mrf.mxu0
        %v3282 = vadd.f32 0.0, %v3281
        %v3283 = vpop.f32.mrf.mxu0
        %v3284 = vadd.f32 0.0, %v3283
        %3285 = vmatmul.bf16.gmra.mxu0 %v3261
        %v3286 = vpop.f32.mrf.mxu0
        %v3287 = vadd.f32 0.0, %v3286
        %v3288 = vpop.f32.mrf.mxu0
        %v3289 = vadd.f32 0.0, %v3288
        %3290 = vdwg.mxu0
        %v3291 = vlaneseq
        %v3292 = vand.u32 %v3291, 127
        %vm3293 = vcmp.lt.s32.totalorder %v3292, 17
        %v3294 = vsel %vm3293, 1, 0
        %vm3295 = vcmp.eq.s32.totalorder %v3294, 1
        %v3296 = vsel %vm3295, %v3247, -1e+30
        %v3297 = vsel %vm3295, %v3249, -1e+30
        %v3298 = vsel %vm3295, %v3252, -1e+30
        %v3299 = vsel %vm3295, %v3254, -1e+30
        %v3300 = vsel %vm3295, %v3282, -1e+30
        %v3301 = vsel %vm3295, %v3284, -1e+30
        %v3302 = vsel %vm3295, %v3287, -1e+30
        %v3303 = vsel %vm3295, %v3289, -1e+30
        %vm3304 = vcmask 261120
        %v3305 = vsel %vm3304, %v3296, -inf
        %3306 = vmax.xlane.f32.xlu0 %v3305
        %v3307 = vpop.xlane.xlu0 %3306
        %v3308 = vsel %vm3304, %v3297, -inf
        %3309 = vmax.xlane.f32.xlu0 %v3308
        %v3310 = vpop.xlane.xlu0 %3309
        %v3311 = vsel %vm3304, %v3298, -inf
        %3312 = vmax.xlane.f32.xlu0 %v3311
        %v3313 = vpop.xlane.xlu0 %3312
        %v3314 = vsel %vm3304, %v3299, -inf
        %3315 = vmax.xlane.f32.xlu0 %v3314
        %v3316 = vpop.xlane.xlu0 %3315
        %v3317 = vsel %vm3304, %v3300, -inf
        %3318 = vmax.xlane.f32.xlu0 %v3317
        %v3319 = vpop.xlane.xlu0 %3318
        %v3320 = vsel %vm3304, %v3301, -inf
        %3321 = vmax.xlane.f32.xlu0 %v3320
        %v3322 = vpop.xlane.xlu0 %3321
        %v3323 = vsel %vm3304, %v3302, -inf
        %3324 = vmax.xlane.f32.xlu0 %v3323
        %v3325 = vpop.xlane.xlu0 %3324
        %v3326 = vsel %vm3304, %v3303, -inf
        %3327 = vmax.xlane.f32.xlu0 %v3326
        %v3328 = vpop.xlane.xlu0 %3327
        %v3329 = vsub.f32 %v3296, %v3307
        %v3330 = vsub.f32 %v3297, %v3310
        %v3331 = vsub.f32 %v3298, %v3313
        %v3332 = vsub.f32 %v3299, %v3316
        %v3333 = vsub.f32 %v3300, %v3319
        %v3334 = vsub.f32 %v3301, %v3322
        %v3335 = vsub.f32 %v3302, %v3325
        %v3336 = vsub.f32 %v3303, %v3328
        %v3337 = vmul.f32 %v3329, 1.442695
        %v3338 = vpow.pop %v3337
        %v3339 = vmul.f32 %v3330, 1.442695
        %v3340 = vpow.pop %v3339
        %v3341 = vmul.f32 %v3331, 1.442695
        %v3342 = vpow.pop %v3341
        %v3343 = vmul.f32 %v3332, 1.442695
        %v3344 = vpow.pop %v3343
        %v3345 = vmul.f32 %v3333, 1.442695
        %v3346 = vpow.pop %v3345
        %v3347 = vmul.f32 %v3334, 1.442695
        %v3348 = vpow.pop %v3347
        %v3349 = vmul.f32 %v3335, 1.442695
        %v3350 = vpow.pop %v3349
        %v3351 = vmul.f32 %v3336, 1.442695
        %v3352 = vpow.pop %v3351
        %v3353 = vsel %vm3304, %v3338, 0.0
        %3354 = vadd.xlane.f32.xlu0 %v3353
        %v3355 = vpop.xlane.xlu0 %3354
        %v3356 = vsel %vm3304, %v3340, 0.0
        %3357 = vadd.xlane.f32.xlu0 %v3356
        %v3358 = vpop.xlane.xlu0 %3357
        %v3359 = vsel %vm3304, %v3342, 0.0
        %3360 = vadd.xlane.f32.xlu0 %v3359
        %v3361 = vpop.xlane.xlu0 %3360
        %v3362 = vsel %vm3304, %v3344, 0.0
        %3363 = vadd.xlane.f32.xlu0 %v3362
        %v3364 = vpop.xlane.xlu0 %3363
        %v3365 = vsel %vm3304, %v3346, 0.0
        %3366 = vadd.xlane.f32.xlu0 %v3365
        %v3367 = vpop.xlane.xlu0 %3366
        %v3368 = vsel %vm3304, %v3348, 0.0
        %3369 = vadd.xlane.f32.xlu0 %v3368
        %v3370 = vpop.xlane.xlu0 %3369
        %v3371 = vsel %vm3304, %v3350, 0.0
        %3372 = vadd.xlane.f32.xlu0 %v3371
        %v3373 = vpop.xlane.xlu0 %3372
        %v3374 = vsel %vm3304, %v3352, 0.0
        %3375 = vadd.xlane.f32.xlu0 %v3374
        %v3376 = vpop.xlane.xlu0 %3375
        %v3377 = vrcp.pop %v3355
        %v3378 = vrcp.pop %v3358
        %v3379 = vrcp.pop %v3361
        %v3380 = vrcp.pop %v3364
        %v3381 = vrcp.pop %v3367
        %v3382 = vrcp.pop %v3370
        %v3383 = vrcp.pop %v3373
        %v3384 = vrcp.pop %v3376
        %v3385 = vmul.f32 %v3338, %v3377
        %v3386 = vmul.f32 %v3340, %v3378
        %v3387 = vmul.f32 %v3342, %v3379
        %v3388 = vmul.f32 %v3344, %v3380
        %v3389 = vmul.f32 %v3346, %v3381
        %v3390 = vmul.f32 %v3348, %v3382
        %v3391 = vmul.f32 %v3350, %v3383
        %v3392 = vmul.f32 %v3352, %v3384
        %v3393 = vpack.c.bf16 %v3385, %v3385
        %v3394 = vpack.c.bf16 %v3386, %v3386
        %v3395 = vpack.c.bf16 %v3387, %v3387
        %v3396 = vpack.c.bf16 %v3388, %v3388
        %v3397 = vpack.c.bf16 %v3389, %v3389
        %v3398 = vpack.c.bf16 %v3390, %v3390
        %v3399 = vpack.c.bf16 %v3391, %v3391
        %v3400 = vpack.c.bf16 %v3392, %v3392
        %v3405 = vunpack.c.l.b16 %v3393
        %v3406 = vunpack.c.l.b16 %v3394
        %v3407 = vunpack.c.l.b16 %v3395
        %v3408 = vunpack.c.l.b16 %v3396
        %v3409 = vpack.c.b16 %v3406, %v3405
        %v3410 = vpack.c.b16 %v3408, %v3407
        %v3411 = vunpack.c.l.b16 %v3199
        %v3412 = vunpack.c.l.b16 %v3205
        %v3413 = vunpack.c.l.b16 %v3211
        %v3414 = vunpack.c.l.b16 %v3217
        %v3415 = vpack.c.b16 %v3412, %v3411
        %v3416 = vpack.c.b16 %v3414, %v3413
        %v3420 = vsel %vm3304, %v3409, 0
        %v3423 = vsel %vm3304, %v3410, 0
        %3425 = vmatpush.bf16.msra.mxu0 0
        %3426 = vmatpush.bf16.msra.mxu0 0
        %3427 = vmatpush.bf16.msra.mxu0 0
        %3428 = vmatpush.bf16.msra.mxu0 0
        %3429 = vmatpush.bf16.msra.mxu0 0
        %3430 = vmatpush.bf16.msra.mxu0 0
        %3431 = vmatpush.bf16.msra.mxu0 %v3416
        %3432 = vmatpush.bf16.msra.mxu0 %v3415
        %3433 = vmatmul.bf16.gmra.mxu0 %v3420
        %v3434 = vpop.f32.mrf.mxu0
        %v3435 = vadd.f32 0.0, %v3434
        %v3436 = vpop.f32.mrf.mxu0
        %v3437 = vadd.f32 0.0, %v3436
        %3438 = vmatmul.bf16.gmra.mxu0 %v3423
        %v3439 = vpop.f32.mrf.mxu0
        %v3440 = vadd.f32 0.0, %v3439
        %v3441 = vpop.f32.mrf.mxu0
        %v3442 = vadd.f32 0.0, %v3441
        %3443 = vdwg.mxu0
        %v3448 = vunpack.c.l.b16 %v3397
        %v3449 = vunpack.c.l.b16 %v3398
        %v3450 = vunpack.c.l.b16 %v3399
        %v3451 = vunpack.c.l.b16 %v3400
        %v3452 = vpack.c.b16 %v3449, %v3448
        %v3453 = vpack.c.b16 %v3451, %v3450
        %v3454 = vunpack.c.l.b16 %v3202
        %v3455 = vunpack.c.l.b16 %v3208
        %v3456 = vunpack.c.l.b16 %v3214
        %v3457 = vunpack.c.l.b16 %v3220
        %v3458 = vpack.c.b16 %v3455, %v3454
        %v3459 = vpack.c.b16 %v3457, %v3456
        %v3463 = vsel %vm3304, %v3452, 0
        %v3466 = vsel %vm3304, %v3453, 0
        %3468 = vmatpush.bf16.msra.mxu0 0
        %3469 = vmatpush.bf16.msra.mxu0 0
        %3470 = vmatpush.bf16.msra.mxu0 0
        %3471 = vmatpush.bf16.msra.mxu0 0
        %3472 = vmatpush.bf16.msra.mxu0 0
        %3473 = vmatpush.bf16.msra.mxu0 0
        %3474 = vmatpush.bf16.msra.mxu0 %v3459
        %3475 = vmatpush.bf16.msra.mxu0 %v3458
        %3476 = vmatmul.bf16.gmra.mxu0 %v3463
        %v3477 = vpop.f32.mrf.mxu0
        %v3478 = vadd.f32 0.0, %v3477
        %v3479 = vpop.f32.mrf.mxu0
        %v3480 = vadd.f32 0.0, %v3479
        %3481 = vmatmul.bf16.gmra.mxu0 %v3466
        %v3482 = vpop.f32.mrf.mxu0
        %v3483 = vadd.f32 0.0, %v3482
        %v3484 = vpop.f32.mrf.mxu0
        %v3485 = vadd.f32 0.0, %v3484
        %3486 = vdwg.mxu0
        %v3487 = vpack.c.bf16 %v3435, %v3435
        %v3488 = vpack.c.bf16 %v3437, %v3437
        %v3489 = vpack.c.bf16 %v3440, %v3440
        %v3490 = vpack.c.bf16 %v3442, %v3442
        %v3491 = vpack.c.bf16 %v3478, %v3478
        %v3492 = vpack.c.bf16 %v3480, %v3480
        %v3493 = vpack.c.bf16 %v3483, %v3483
        %v3494 = vpack.c.bf16 %v3485, %v3485
        %v3497 = vpack.i.b16 %v3491, %v3487
        %v3498 = vshrl.u32 %v3487, 16
        %v3499 = vshrl.u32 %v3491, 16
        %v3500 = vpack.i.b16 %v3499, %v3498
        %v3503 = vpack.i.b16 %v3492, %v3488
        %v3504 = vshrl.u32 %v3488, 16
        %v3505 = vshrl.u32 %v3492, 16
        %v3506 = vpack.i.b16 %v3505, %v3504
        %v3509 = vpack.i.b16 %v3493, %v3489
        %v3510 = vshrl.u32 %v3489, 16
        %v3511 = vshrl.u32 %v3493, 16
        %v3512 = vpack.i.b16 %v3511, %v3510
        %v3515 = vpack.i.b16 %v3494, %v3490
        %v3516 = vshrl.u32 %v3490, 16
        %v3517 = vshrl.u32 %v3494, 16
        %v3518 = vpack.i.b16 %v3517, %v3516
        %v3521 = vunpack.c.l.s4 1983009808
        %v3522 = vunpack.c.0.s8 %v3521
        %v3523 = vperm.slane %v3497, %v3522
        %v3524 = vrot.slane %v3523, 4
        %v3525 = vsel %vm2218, 0, %v3524
        %v3527 = vunpack.c.l.s4 1934713408
        %v3528 = vunpack.c.0.s8 %v3527
        %v3529 = vperm.slane %v3523, %v3528
        %v3531 = vunpack.c.l.s4 1934713408
        %v3532 = vunpack.c.0.s8 %v3531
        %v3533 = vperm.slane %v3525, %v3532
        %v3534 = vrot.slane %v3529, 4
        %v3535 = vsel %vm2218, 0, %v3534
        %v3536 = vrot.slane %v3533, 4
        %v3537 = vsel %vm2218, 0, %v3536
        %v3540 = vunpack.c.l.s4 1983009808
        %v3541 = vunpack.c.0.s8 %v3540
        %v3542 = vperm.slane %v3500, %v3541
        %v3543 = vrot.slane %v3542, 4
        %v3544 = vsel %vm2218, 0, %v3543
        %v3546 = vunpack.c.l.s4 1934713408
        %v3547 = vunpack.c.0.s8 %v3546
        %v3548 = vperm.slane %v3542, %v3547
        %v3550 = vunpack.c.l.s4 1934713408
        %v3551 = vunpack.c.0.s8 %v3550
        %v3552 = vperm.slane %v3544, %v3551
        %v3553 = vrot.slane %v3548, 4
        %v3554 = vsel %vm2218, 0, %v3553
        %v3555 = vrot.slane %v3552, 4
        %v3556 = vsel %vm2218, 0, %v3555
        %v3559 = vunpack.c.l.s4 1983009808
        %v3560 = vunpack.c.0.s8 %v3559
        %v3561 = vperm.slane %v3503, %v3560
        %v3562 = vrot.slane %v3561, 4
        %v3563 = vsel %vm2218, 0, %v3562
        %v3565 = vunpack.c.l.s4 1934713408
        %v3566 = vunpack.c.0.s8 %v3565
        %v3567 = vperm.slane %v3561, %v3566
        %v3569 = vunpack.c.l.s4 1934713408
        %v3570 = vunpack.c.0.s8 %v3569
        %v3571 = vperm.slane %v3563, %v3570
        %v3572 = vrot.slane %v3567, 4
        %v3573 = vsel %vm2218, 0, %v3572
        %v3574 = vrot.slane %v3571, 4
        %v3575 = vsel %vm2218, 0, %v3574
        %v3578 = vunpack.c.l.s4 1983009808
        %v3579 = vunpack.c.0.s8 %v3578
        %v3580 = vperm.slane %v3506, %v3579
        %v3581 = vrot.slane %v3580, 4
        %v3582 = vsel %vm2218, 0, %v3581
        %v3584 = vunpack.c.l.s4 1934713408
        %v3585 = vunpack.c.0.s8 %v3584
        %v3586 = vperm.slane %v3580, %v3585
        %v3588 = vunpack.c.l.s4 1934713408
        %v3589 = vunpack.c.0.s8 %v3588
        %v3590 = vperm.slane %v3582, %v3589
        %v3591 = vrot.slane %v3586, 4
        %v3592 = vsel %vm2218, 0, %v3591
        %v3593 = vrot.slane %v3590, 4
        %v3594 = vsel %vm2218, 0, %v3593
        %v3597 = vunpack.c.l.s4 1983009808
        %v3598 = vunpack.c.0.s8 %v3597
        %v3599 = vperm.slane %v3509, %v3598
        %v3600 = vrot.slane %v3599, 4
        %v3601 = vsel %vm2218, 0, %v3600
        %v3603 = vunpack.c.l.s4 1934713408
        %v3604 = vunpack.c.0.s8 %v3603
        %v3605 = vperm.slane %v3599, %v3604
        %v3607 = vunpack.c.l.s4 1934713408
        %v3608 = vunpack.c.0.s8 %v3607
        %v3609 = vperm.slane %v3601, %v3608
        %v3610 = vrot.slane %v3605, 4
        %v3611 = vsel %vm2218, 0, %v3610
        %v3612 = vrot.slane %v3609, 4
        %v3613 = vsel %vm2218, 0, %v3612
        %v3616 = vunpack.c.l.s4 1983009808
        %v3617 = vunpack.c.0.s8 %v3616
        %v3618 = vperm.slane %v3512, %v3617
        %v3619 = vrot.slane %v3618, 4
        %v3620 = vsel %vm2218, 0, %v3619
        %v3622 = vunpack.c.l.s4 1934713408
        %v3623 = vunpack.c.0.s8 %v3622
        %v3624 = vperm.slane %v3618, %v3623
        %v3626 = vunpack.c.l.s4 1934713408
        %v3627 = vunpack.c.0.s8 %v3626
        %v3628 = vperm.slane %v3620, %v3627
        %v3629 = vrot.slane %v3624, 4
        %v3630 = vsel %vm2218, 0, %v3629
        %v3631 = vrot.slane %v3628, 4
        %v3632 = vsel %vm2218, 0, %v3631
        %v3635 = vunpack.c.l.s4 1983009808
        %v3636 = vunpack.c.0.s8 %v3635
        %v3637 = vperm.slane %v3515, %v3636
        %v3638 = vrot.slane %v3637, 4
        %v3639 = vsel %vm2218, 0, %v3638
        %v3641 = vunpack.c.l.s4 1934713408
        %v3642 = vunpack.c.0.s8 %v3641
        %v3643 = vperm.slane %v3637, %v3642
        %v3645 = vunpack.c.l.s4 1934713408
        %v3646 = vunpack.c.0.s8 %v3645
        %v3647 = vperm.slane %v3639, %v3646
        %v3648 = vrot.slane %v3643, 4
        %v3649 = vsel %vm2218, 0, %v3648
        %v3650 = vrot.slane %v3647, 4
        %v3651 = vsel %vm2218, 0, %v3650
        %v3654 = vunpack.c.l.s4 1983009808
        %v3655 = vunpack.c.0.s8 %v3654
        %v3656 = vperm.slane %v3518, %v3655
        %v3657 = vrot.slane %v3656, 4
        %v3658 = vsel %vm2218, 0, %v3657
        %v3660 = vunpack.c.l.s4 1934713408
        %v3661 = vunpack.c.0.s8 %v3660
        %v3662 = vperm.slane %v3656, %v3661
        %v3664 = vunpack.c.l.s4 1934713408
        %v3665 = vunpack.c.0.s8 %v3664
        %v3666 = vperm.slane %v3658, %v3665
        %v3667 = vrot.slane %v3662, 4
        %v3668 = vsel %vm2218, 0, %v3667
        %v3669 = vrot.slane %v3666, 4
        %v3670 = vsel %vm2218, 0, %v3669
        %v3671 = vsel %vm2218, %v3536, %v3529
        %v3673 = vunpack.c.l.s4 1983009808
        %v3674 = vunpack.c.0.s8 %v3673
        %v3675 = vperm.slane %v3671, %v3674
        %v3676 = vrot.slane %v3537, 4
        %v3677 = vsel %vm2218, %v3676, %v3535
        %v3679 = vunpack.c.l.s4 1983009808
        %v3680 = vunpack.c.0.s8 %v3679
        %v3681 = vperm.slane %v3677, %v3680
        %v3682 = vrot.slane %v3681, 4
        %v3683 = vsel %vm2218, %v3682, %v3675
        %v3685 = vunpack.c.l.s4 1934713408
        %v3686 = vunpack.c.0.s8 %v3685
        %v3687 = vperm.slane %v3683, %v3686
        %v3688 = vsel %vm2218, %v3555, %v3548
        %v3690 = vunpack.c.l.s4 1983009808
        %v3691 = vunpack.c.0.s8 %v3690
        %v3692 = vperm.slane %v3688, %v3691
        %v3693 = vrot.slane %v3556, 4
        %v3694 = vsel %vm2218, %v3693, %v3554
        %v3696 = vunpack.c.l.s4 1983009808
        %v3697 = vunpack.c.0.s8 %v3696
        %v3698 = vperm.slane %v3694, %v3697
        %v3699 = vrot.slane %v3698, 4
        %v3700 = vsel %vm2218, %v3699, %v3692
        %v3702 = vunpack.c.l.s4 1934713408
        %v3703 = vunpack.c.0.s8 %v3702
        %v3704 = vperm.slane %v3700, %v3703
        %v3705 = vsel %vm2218, %v3574, %v3567
        %v3707 = vunpack.c.l.s4 1983009808
        %v3708 = vunpack.c.0.s8 %v3707
        %v3709 = vperm.slane %v3705, %v3708
        %v3710 = vrot.slane %v3575, 4
        %v3711 = vsel %vm2218, %v3710, %v3573
        %v3713 = vunpack.c.l.s4 1983009808
        %v3714 = vunpack.c.0.s8 %v3713
        %v3715 = vperm.slane %v3711, %v3714
        %v3716 = vrot.slane %v3715, 4
        %v3717 = vsel %vm2218, %v3716, %v3709
        %v3719 = vunpack.c.l.s4 1934713408
        %v3720 = vunpack.c.0.s8 %v3719
        %v3721 = vperm.slane %v3717, %v3720
        %v3722 = vsel %vm2218, %v3593, %v3586
        %v3724 = vunpack.c.l.s4 1983009808
        %v3725 = vunpack.c.0.s8 %v3724
        %v3726 = vperm.slane %v3722, %v3725
        %v3727 = vrot.slane %v3594, 4
        %v3728 = vsel %vm2218, %v3727, %v3592
        %v3730 = vunpack.c.l.s4 1983009808
        %v3731 = vunpack.c.0.s8 %v3730
        %v3732 = vperm.slane %v3728, %v3731
        %v3733 = vrot.slane %v3732, 4
        %v3734 = vsel %vm2218, %v3733, %v3726
        %v3736 = vunpack.c.l.s4 1934713408
        %v3737 = vunpack.c.0.s8 %v3736
        %v3738 = vperm.slane %v3734, %v3737
        %v3739 = vsel %vm2218, %v3612, %v3605
        %v3741 = vunpack.c.l.s4 1983009808
        %v3742 = vunpack.c.0.s8 %v3741
        %v3743 = vperm.slane %v3739, %v3742
        %v3744 = vrot.slane %v3613, 4
        %v3745 = vsel %vm2218, %v3744, %v3611
        %v3747 = vunpack.c.l.s4 1983009808
        %v3748 = vunpack.c.0.s8 %v3747
        %v3749 = vperm.slane %v3745, %v3748
        %v3750 = vrot.slane %v3749, 4
        %v3751 = vsel %vm2218, %v3750, %v3743
        %v3753 = vunpack.c.l.s4 1934713408
        %v3754 = vunpack.c.0.s8 %v3753
        %v3755 = vperm.slane %v3751, %v3754
        %v3756 = vsel %vm2218, %v3631, %v3624
        %v3758 = vunpack.c.l.s4 1983009808
        %v3759 = vunpack.c.0.s8 %v3758
        %v3760 = vperm.slane %v3756, %v3759
        %v3761 = vrot.slane %v3632, 4
        %v3762 = vsel %vm2218, %v3761, %v3630
        %v3764 = vunpack.c.l.s4 1983009808
        %v3765 = vunpack.c.0.s8 %v3764
        %v3766 = vperm.slane %v3762, %v3765
        %v3767 = vrot.slane %v3766, 4
        %v3768 = vsel %vm2218, %v3767, %v3760
        %v3770 = vunpack.c.l.s4 1934713408
        %v3771 = vunpack.c.0.s8 %v3770
        %v3772 = vperm.slane %v3768, %v3771
        %v3773 = vsel %vm2218, %v3650, %v3643
        %v3775 = vunpack.c.l.s4 1983009808
        %v3776 = vunpack.c.0.s8 %v3775
        %v3777 = vperm.slane %v3773, %v3776
        %v3778 = vrot.slane %v3651, 4
        %v3779 = vsel %vm2218, %v3778, %v3649
        %v3781 = vunpack.c.l.s4 1983009808
        %v3782 = vunpack.c.0.s8 %v3781
        %v3783 = vperm.slane %v3779, %v3782
        %v3784 = vrot.slane %v3783, 4
        %v3785 = vsel %vm2218, %v3784, %v3777
        %v3787 = vunpack.c.l.s4 1934713408
        %v3788 = vunpack.c.0.s8 %v3787
        %v3789 = vperm.slane %v3785, %v3788
        %v3790 = vsel %vm2218, %v3669, %v3662
        %v3792 = vunpack.c.l.s4 1983009808
        %v3793 = vunpack.c.0.s8 %v3792
        %v3794 = vperm.slane %v3790, %v3793
        %v3795 = vrot.slane %v3670, 4
        %v3796 = vsel %vm2218, %v3795, %v3668
        %v3798 = vunpack.c.l.s4 1983009808
        %v3799 = vunpack.c.0.s8 %v3798
        %v3800 = vperm.slane %v3796, %v3799
        %v3801 = vrot.slane %v3800, 4
        %v3802 = vsel %vm2218, %v3801, %v3794
        %v3804 = vunpack.c.l.s4 1934713408
        %v3805 = vunpack.c.0.s8 %v3804
        %v3806 = vperm.slane %v3802, %v3805
        %v3809 = vpack.i.b16 %v3704, %v3687
        %v3810 = vshrl.u32 %v3687, 16
        %v3811 = vshrl.u32 %v3704, 16
        %v3812 = vpack.i.b16 %v3811, %v3810
        %v3815 = vpack.i.b16 %v3738, %v3721
        %v3816 = vshrl.u32 %v3721, 16
        %v3817 = vshrl.u32 %v3738, 16
        %v3818 = vpack.i.b16 %v3817, %v3816
        %v3821 = vpack.i.b16 %v3772, %v3755
        %v3822 = vshrl.u32 %v3755, 16
        %v3823 = vshrl.u32 %v3772, 16
        %v3824 = vpack.i.b16 %v3823, %v3822
        %v3827 = vpack.i.b16 %v3806, %v3789
        %v3828 = vshrl.u32 %v3789, 16
        %v3829 = vshrl.u32 %v3806, 16
        %v3830 = vpack.i.b16 %v3829, %v3828
        %v3831 = vunpack.c.l.b16 %v3809
        %v3832 = vunpack.c.l.b16 %v3815
        %v3833 = vunpack.c.l.b16 %v3821
        %v3834 = vunpack.c.l.b16 %v3827
        %v3835 = vpack.c.b16 %v3832, %v3831
        %v3836 = vpack.c.b16 %v3834, %v3833
        %v3839 = vunpack.c.l.b16 %v3812
        %v3840 = vunpack.c.l.b16 %v3818
        %v3841 = vunpack.c.l.b16 %v3824
        %v3842 = vunpack.c.l.b16 %v3830
        %v3843 = vpack.c.b16 %v3840, %v3839
        %v3844 = vpack.c.b16 %v3842, %v3841
        %v3847 = vld [vmem:[%s924] sm:$0xff]
        %v3848 = vld [vmem:[%s924 + $0x8] sm:$0xff]
        %v3849 = vld [vmem:[%s924 + $0x10] sm:$0xff]
        %v3850 = vld [vmem:[%s924 + $0x18] sm:$0xff]
        %v3851 = vld [vmem:[%s924 + $0x20] sm:$0xff]
        %v3852 = vld [vmem:[%s924 + $0x28] sm:$0xff]
        %v3853 = vld [vmem:[%s924 + $0x30] sm:$0xff]
        %v3854 = vld [vmem:[%s924 + $0x38] sm:$0xff]
        %v3855 = vld [vmem:[%s924 + $0x40] sm:$0xff]
        %v3856 = vld [vmem:[%s924 + $0x48] sm:$0xff]
        %v3857 = vld [vmem:[%s924 + $0x50] sm:$0xff]
        %v3858 = vld [vmem:[%s924 + $0x58] sm:$0xff]
        %v3859 = vld [vmem:[%s924 + $0x60] sm:$0xff]
        %v3860 = vld [vmem:[%s924 + $0x68] sm:$0xff]
        %v3861 = vld [vmem:[%s924 + $0x70] sm:$0xff]
        %v3862 = vld [vmem:[%s924 + $0x78] sm:$0xff]
        %v3863 = vld [vmem:[%s924 + $0x80] sm:$0xff]
        %v3864 = vld [vmem:[%s924 + $0x88] sm:$0xff]
        %v3865 = vld [vmem:[%s924 + $0x90] sm:$0xff]
        %v3866 = vld [vmem:[%s924 + $0x98] sm:$0xff]
        %v3867 = vld [vmem:[%s924 + $0xa0] sm:$0xff]
        %v3868 = vld [vmem:[%s924 + $0xa8] sm:$0xff]
        %v3869 = vld [vmem:[%s924 + $0xb0] sm:$0xff]
        %v3870 = vld [vmem:[%s924 + $0xb8] sm:$0xff]
        %v3871 = vld [vmem:[%s924 + $0xc0] sm:$0xff]
        %v3872 = vld [vmem:[%s924 + $0xc8] sm:$0xff]
        %v3873 = vld [vmem:[%s924 + $0xd0] sm:$0xff]
        %v3874 = vld [vmem:[%s924 + $0xd8] sm:$0xff]
        %v3875 = vld [vmem:[%s924 + $0xe0] sm:$0xff]
        %v3876 = vld [vmem:[%s924 + $0xe8] sm:$0xff]
        %v3877 = vld [vmem:[%s924 + $0xf0] sm:$0xff]
        %v3878 = vld [vmem:[%s924 + $0xf8] sm:$0xff]
        %v3879 = vld [vmem:[%s928] sm:$0x3]
        %v3881 = vperm.slane %v3879, 0
        %v3882 = vperm.slane %v3879, 1
        %v3917 = vunpack.c.l.b16 %v3847
        %v3918 = vunpack.c.h.b16 %v3847
        %v3919 = vunpack.c.l.b16 %v3848
        %v3920 = vunpack.c.h.b16 %v3848
        %v3921 = vunpack.c.l.b16 %v3849
        %v3922 = vunpack.c.h.b16 %v3849
        %v3923 = vunpack.c.l.b16 %v3850
        %v3924 = vunpack.c.h.b16 %v3850
        %v3925 = vunpack.c.l.b16 %v3851
        %v3926 = vunpack.c.h.b16 %v3851
        %v3927 = vunpack.c.l.b16 %v3852
        %v3928 = vunpack.c.h.b16 %v3852
        %v3929 = vunpack.c.l.b16 %v3853
        %v3930 = vunpack.c.h.b16 %v3853
        %v3931 = vunpack.c.l.b16 %v3854
        %v3932 = vunpack.c.h.b16 %v3854
        %v3933 = vunpack.c.l.b16 %v3855
        %v3934 = vunpack.c.h.b16 %v3855
        %v3935 = vunpack.c.l.b16 %v3856
        %v3936 = vunpack.c.h.b16 %v3856
        %v3937 = vunpack.c.l.b16 %v3857
        %v3938 = vunpack.c.h.b16 %v3857
        %v3939 = vunpack.c.l.b16 %v3858
        %v3940 = vunpack.c.h.b16 %v3858
        %v3941 = vunpack.c.l.b16 %v3859
        %v3942 = vunpack.c.h.b16 %v3859
        %v3943 = vunpack.c.l.b16 %v3860
        %v3944 = vunpack.c.h.b16 %v3860
        %v3945 = vunpack.c.l.b16 %v3861
        %v3946 = vunpack.c.h.b16 %v3861
        %v3947 = vunpack.c.l.b16 %v3862
        %v3948 = vunpack.c.h.b16 %v3862
        %v3949 = vunpack.c.l.b16 %v3863
        %v3950 = vunpack.c.h.b16 %v3863
        %v3951 = vunpack.c.l.b16 %v3864
        %v3952 = vunpack.c.h.b16 %v3864
        %v3953 = vunpack.c.l.b16 %v3865
        %v3954 = vunpack.c.h.b16 %v3865
        %v3955 = vunpack.c.l.b16 %v3866
        %v3956 = vunpack.c.h.b16 %v3866
        %v3957 = vunpack.c.l.b16 %v3867
        %v3958 = vunpack.c.h.b16 %v3867
        %v3959 = vunpack.c.l.b16 %v3868
        %v3960 = vunpack.c.h.b16 %v3868
        %v3961 = vunpack.c.l.b16 %v3869
        %v3962 = vunpack.c.h.b16 %v3869
        %v3963 = vunpack.c.l.b16 %v3870
        %v3964 = vunpack.c.h.b16 %v3870
        %v3965 = vunpack.c.l.b16 %v3871
        %v3966 = vunpack.c.h.b16 %v3871
        %v3967 = vunpack.c.l.b16 %v3872
        %v3968 = vunpack.c.h.b16 %v3872
        %v3969 = vunpack.c.l.b16 %v3873
        %v3970 = vunpack.c.h.b16 %v3873
        %v3971 = vunpack.c.l.b16 %v3874
        %v3972 = vunpack.c.h.b16 %v3874
        %v3973 = vunpack.c.l.b16 %v3875
        %v3974 = vunpack.c.h.b16 %v3875
        %v3975 = vunpack.c.l.b16 %v3876
        %v3976 = vunpack.c.h.b16 %v3876
        %v3977 = vunpack.c.l.b16 %v3877
        %v3978 = vunpack.c.h.b16 %v3877
        %v3979 = vunpack.c.l.b16 %v3878
        %v3980 = vunpack.c.h.b16 %v3878
        %v3981 = vpack.c.b16 %v3919, %v3917
        %v3982 = vpack.c.b16 %v3920, %v3918
        %v3983 = vpack.c.b16 %v3923, %v3921
        %v3984 = vpack.c.b16 %v3924, %v3922
        %v3985 = vpack.c.b16 %v3927, %v3925
        %v3986 = vpack.c.b16 %v3928, %v3926
        %v3987 = vpack.c.b16 %v3931, %v3929
        %v3988 = vpack.c.b16 %v3932, %v3930
        %v3989 = vpack.c.b16 %v3935, %v3933
        %v3990 = vpack.c.b16 %v3936, %v3934
        %v3991 = vpack.c.b16 %v3939, %v3937
        %v3992 = vpack.c.b16 %v3940, %v3938
        %v3993 = vpack.c.b16 %v3943, %v3941
        %v3994 = vpack.c.b16 %v3944, %v3942
        %v3995 = vpack.c.b16 %v3947, %v3945
        %v3996 = vpack.c.b16 %v3948, %v3946
        %v3997 = vpack.c.b16 %v3951, %v3949
        %v3998 = vpack.c.b16 %v3952, %v3950
        %v3999 = vpack.c.b16 %v3955, %v3953
        %v4000 = vpack.c.b16 %v3956, %v3954
        %v4001 = vpack.c.b16 %v3959, %v3957
        %v4002 = vpack.c.b16 %v3960, %v3958
        %v4003 = vpack.c.b16 %v3963, %v3961
        %v4004 = vpack.c.b16 %v3964, %v3962
        %v4005 = vpack.c.b16 %v3967, %v3965
        %v4006 = vpack.c.b16 %v3968, %v3966
        %v4007 = vpack.c.b16 %v3971, %v3969
        %v4008 = vpack.c.b16 %v3972, %v3970
        %v4009 = vpack.c.b16 %v3975, %v3973
        %v4010 = vpack.c.b16 %v3976, %v3974
        %v4011 = vpack.c.b16 %v3979, %v3977
        %v4012 = vpack.c.b16 %v3980, %v3978
        %4045 = vmatpush.bf16.msra.mxu0 %v3995
        %4046 = vmatpush.bf16.msra.mxu0 %v3993
        %4047 = vmatpush.bf16.msra.mxu0 %v3991
        %4048 = vmatpush.bf16.msra.mxu0 %v3989
        %4049 = vmatpush.bf16.msra.mxu0 %v3987
        %4050 = vmatpush.bf16.msra.mxu0 %v3985
        %4051 = vmatpush.bf16.msra.mxu0 %v3983
        %4052 = vmatpush.bf16.msra.mxu0 %v3981
        %4053 = vmatmul.bf16.gmra.mxu0 %v3835
        %v4054 = vpop.f32.mrf.mxu0
        %v4055 = vadd.f32 %v3881, %v4054
        %v4056 = vpop.f32.mrf.mxu0
        %v4057 = vadd.f32 %v3881, %v4056
        %4058 = vmatmul.bf16.gmra.mxu0 %v3836
        %v4059 = vpop.f32.mrf.mxu0
        %v4060 = vadd.f32 %v3881, %v4059
        %v4061 = vpop.f32.mrf.mxu0
        %v4062 = vadd.f32 %v3881, %v4061
        %4063 = vdwg.mxu0
        %4064 = vmatpush.bf16.msra.mxu0 %v4011
        %4065 = vmatpush.bf16.msra.mxu0 %v4009
        %4066 = vmatpush.bf16.msra.mxu0 %v4007
        %4067 = vmatpush.bf16.msra.mxu0 %v4005
        %4068 = vmatpush.bf16.msra.mxu0 %v4003
        %4069 = vmatpush.bf16.msra.mxu0 %v4001
        %4070 = vmatpush.bf16.msra.mxu0 %v3999
        %4071 = vmatpush.bf16.msra.mxu0 %v3997
        %4072 = vmatmul.bf16.gmra.mxu0 %v3843
        %v4073 = vpop.f32.mrf.mxu0
        %v4074 = vadd.f32 %v4055, %v4073
        %v4075 = vpop.f32.mrf.mxu0
        %v4076 = vadd.f32 %v4057, %v4075
        %4077 = vmatmul.bf16.gmra.mxu0 %v3844
        %v4078 = vpop.f32.mrf.mxu0
        %v4079 = vadd.f32 %v4060, %v4078
        %v4080 = vpop.f32.mrf.mxu0
        %v4081 = vadd.f32 %v4062, %v4080
        %4082 = vdwg.mxu0
        %4083 = vmatpush.bf16.msra.mxu0 %v3996
        %4084 = vmatpush.bf16.msra.mxu0 %v3994
        %4085 = vmatpush.bf16.msra.mxu0 %v3992
        %4086 = vmatpush.bf16.msra.mxu0 %v3990
        %4087 = vmatpush.bf16.msra.mxu0 %v3988
        %4088 = vmatpush.bf16.msra.mxu0 %v3986
        %4089 = vmatpush.bf16.msra.mxu0 %v3984
        %4090 = vmatpush.bf16.msra.mxu0 %v3982
        %4091 = vmatmul.bf16.gmra.mxu0 %v3835
        %v4092 = vpop.f32.mrf.mxu0
        %v4093 = vadd.f32 %v3882, %v4092
        %v4094 = vpop.f32.mrf.mxu0
        %v4095 = vadd.f32 %v3882, %v4094
        %4096 = vmatmul.bf16.gmra.mxu0 %v3836
        %v4097 = vpop.f32.mrf.mxu0
        %v4098 = vadd.f32 %v3882, %v4097
        %v4099 = vpop.f32.mrf.mxu0
        %v4100 = vadd.f32 %v3882, %v4099
        %4101 = vdwg.mxu0
        %4102 = vmatpush.bf16.msra.mxu0 %v4012
        %4103 = vmatpush.bf16.msra.mxu0 %v4010
        %4104 = vmatpush.bf16.msra.mxu0 %v4008
        %4105 = vmatpush.bf16.msra.mxu0 %v4006
        %4106 = vmatpush.bf16.msra.mxu0 %v4004
        %4107 = vmatpush.bf16.msra.mxu0 %v4002
        %4108 = vmatpush.bf16.msra.mxu0 %v4000
        %4109 = vmatpush.bf16.msra.mxu0 %v3998
        %4110 = vmatmul.bf16.gmra.mxu0 %v3843
        %v4111 = vpop.f32.mrf.mxu0
        %v4112 = vadd.f32 %v4093, %v4111
        %v4113 = vpop.f32.mrf.mxu0
        %v4114 = vadd.f32 %v4095, %v4113
        %4115 = vmatmul.bf16.gmra.mxu0 %v3844
        %v4116 = vpop.f32.mrf.mxu0
        %v4117 = vadd.f32 %v4098, %v4116
        %v4118 = vpop.f32.mrf.mxu0
        %v4119 = vadd.f32 %v4100, %v4118
        %4120 = vdwg.mxu0
        %v4121 = vadd.f32 %v1211, %v4074
        %v4122 = vadd.f32 %v1212, %v4112
        %v4123 = vadd.f32 %v1213, %v4076
        %v4124 = vadd.f32 %v1214, %v4114
        %v4125 = vadd.f32 %v1215, %v4079
        %v4126 = vadd.f32 %v1216, %v4117
        %v4127 = vadd.f32 %v1217, %v4081
        %v4128 = vadd.f32 %v1218, %v4119
        %v4129 = vld [vmem:[%s932] sm:$0x3]
        %v4130 = vld [vmem:[%s936] sm:$0x3]
        %v4131 = vadd.f32 %v4121, %v4122
        %4132 = vadd.xlane.f32.xlu0 %v4131
        %v4133 = vpop.xlane.xlu0 %4132
        %v4134 = vadd.f32 %v4123, %v4124
        %4135 = vadd.xlane.f32.xlu0 %v4134
        %v4136 = vpop.xlane.xlu0 %4135
        %v4137 = vadd.f32 %v4125, %v4126
        %4138 = vadd.xlane.f32.xlu0 %v4137
        %v4139 = vpop.xlane.xlu0 %4138
        %v4140 = vadd.f32 %v4127, %v4128
        %4141 = vadd.xlane.f32.xlu0 %v4140
        %v4142 = vpop.xlane.xlu0 %4141
        %v4143 = vmul.f32 %v4133, %v1239
        %v4144 = vmul.f32 %v4136, %v1239
        %v4145 = vmul.f32 %v4139, %v1239
        %v4146 = vmul.f32 %v4142, %v1239
        %v4147 = vsub.f32 %v4121, %v4143
        %v4148 = vsub.f32 %v4122, %v4143
        %v4149 = vsub.f32 %v4123, %v4144
        %v4150 = vsub.f32 %v4124, %v4144
        %v4151 = vsub.f32 %v4125, %v4145
        %v4152 = vsub.f32 %v4126, %v4145
        %v4153 = vsub.f32 %v4127, %v4146
        %v4154 = vsub.f32 %v4128, %v4146
        %v4155 = vmul.f32 %v4147, %v4147
        %v4156 = vmul.f32 %v4148, %v4148
        %v4157 = vmul.f32 %v4149, %v4149
        %v4158 = vmul.f32 %v4150, %v4150
        %v4159 = vmul.f32 %v4151, %v4151
        %v4160 = vmul.f32 %v4152, %v4152
        %v4161 = vmul.f32 %v4153, %v4153
        %v4162 = vmul.f32 %v4154, %v4154
        %v4163 = vadd.f32 %v4155, %v4156
        %4164 = vadd.xlane.f32.xlu0 %v4163
        %v4165 = vpop.xlane.xlu0 %4164
        %v4166 = vadd.f32 %v4157, %v4158
        %4167 = vadd.xlane.f32.xlu0 %v4166
        %v4168 = vpop.xlane.xlu0 %4167
        %v4169 = vadd.f32 %v4159, %v4160
        %4170 = vadd.xlane.f32.xlu0 %v4169
        %v4171 = vpop.xlane.xlu0 %4170
        %v4172 = vadd.f32 %v4161, %v4162
        %4173 = vadd.xlane.f32.xlu0 %v4172
        %v4174 = vpop.xlane.xlu0 %4173
        %v4175 = vmul.f32 %v4165, %v1239
        %v4176 = vmul.f32 %v4168, %v1239
        %v4177 = vmul.f32 %v4171, %v1239
        %v4178 = vmul.f32 %v4174, %v1239
        %v4179 = vadd.f32 %v4175, 1e-05
        %v4180 = vadd.f32 %v4176, 1e-05
        %v4181 = vadd.f32 %v4177, 1e-05
        %v4182 = vadd.f32 %v4178, 1e-05
        %v4183 = vrsqrt.pop %v4179
        %v4184 = vmul.f32 %v4183, %v4179
        %v4185 = vmul.f32 %v4184, %v4183
        %v4186 = vmul.f32 0.5, %v4185
        %v4187 = vsub.f32 1.5, %v4186
        %v4188 = vmul.f32 %v4183, %v4187
        %vm4189 = vweird.f32 %v4179
        %vm4190 = vweird.f32 %v4183
        %vm4191 = vmor %vm4189, %vm4190
        %v4192 = vsel %vm4191, %v4183, %v4188
        %v4193 = vrsqrt.pop %v4180
        %v4194 = vmul.f32 %v4193, %v4180
        %v4195 = vmul.f32 %v4194, %v4193
        %v4196 = vmul.f32 0.5, %v4195
        %v4197 = vsub.f32 1.5, %v4196
        %v4198 = vmul.f32 %v4193, %v4197
        %vm4199 = vweird.f32 %v4180
        %vm4200 = vweird.f32 %v4193
        %vm4201 = vmor %vm4199, %vm4200
        %v4202 = vsel %vm4201, %v4193, %v4198
        %v4203 = vrsqrt.pop %v4181
        %v4204 = vmul.f32 %v4203, %v4181
        %v4205 = vmul.f32 %v4204, %v4203
        %v4206 = vmul.f32 0.5, %v4205
        %v4207 = vsub.f32 1.5, %v4206
        %v4208 = vmul.f32 %v4203, %v4207
        %vm4209 = vweird.f32 %v4181
        %vm4210 = vweird.f32 %v4203
        %vm4211 = vmor %vm4209, %vm4210
        %v4212 = vsel %vm4211, %v4203, %v4208
        %v4213 = vrsqrt.pop %v4182
        %v4214 = vmul.f32 %v4213, %v4182
        %v4215 = vmul.f32 %v4214, %v4213
        %v4216 = vmul.f32 0.5, %v4215
        %v4217 = vsub.f32 1.5, %v4216
        %v4218 = vmul.f32 %v4213, %v4217
        %vm4219 = vweird.f32 %v4182
        %vm4220 = vweird.f32 %v4213
        %vm4221 = vmor %vm4219, %vm4220
        %v4222 = vsel %vm4221, %v4213, %v4218
        %v4223 = vmul.f32 %v4147, %v4192
        %v4224 = vmul.f32 %v4148, %v4192
        %v4225 = vmul.f32 %v4149, %v4202
        %v4226 = vmul.f32 %v4150, %v4202
        %v4227 = vmul.f32 %v4151, %v4212
        %v4228 = vmul.f32 %v4152, %v4212
        %v4229 = vmul.f32 %v4153, %v4222
        %v4230 = vmul.f32 %v4154, %v4222
        %v4232 = vperm.slane %v4129, 0
        %v4233 = vperm.slane %v4129, 1
        %v4236 = vmul.f32 %v4223, %v4232
        %v4237 = vmul.f32 %v4224, %v4233
        %v4238 = vmul.f32 %v4225, %v4232
        %v4239 = vmul.f32 %v4226, %v4233
        %v4240 = vmul.f32 %v4227, %v4232
        %v4241 = vmul.f32 %v4228, %v4233
        %v4242 = vmul.f32 %v4229, %v4232
        %v4243 = vmul.f32 %v4230, %v4233
        %v4245 = vperm.slane %v4130, 0
        %v4246 = vperm.slane %v4130, 1
        %v4249 = vadd.f32 %v4236, %v4245
        %v4250 = vadd.f32 %v4237, %v4246
        %v4251 = vadd.f32 %v4238, %v4245
        %v4252 = vadd.f32 %v4239, %v4246
        %v4253 = vadd.f32 %v4240, %v4245
        %v4254 = vadd.f32 %v4241, %v4246
        %v4255 = vadd.f32 %v4242, %v4245
        %v4256 = vadd.f32 %v4243, %v4246
        %v4257 = vpack.c.bf16 %v4251, %v4249
        %v4258 = vpack.c.bf16 %v4252, %v4250
        %v4259 = vpack.c.bf16 %v4255, %v4253
        %v4260 = vpack.c.bf16 %v4256, %v4254
        %v4261 = vld [vmem:[%s944] sm:$0x3]
        %v4263 = vperm.slane %v4261, 0
        %v4264 = vperm.slane %v4261, 1
        %v4267 = vadd.f32 %v4121, %v4263
        %v4268 = vadd.f32 %v4122, %v4264
        %v4269 = vadd.f32 %v4123, %v4263
        %v4270 = vadd.f32 %v4124, %v4264
        %v4271 = vadd.f32 %v4125, %v4263
        %v4272 = vadd.f32 %v4126, %v4264
        %v4273 = vadd.f32 %v4127, %v4263
        %v4274 = vadd.f32 %v4128, %v4264
        %4275 = vst [vmem:[#allocation2] sm:$0xff] %v4267
        %4276 = vst [vmem:[#allocation2 + $0x8] sm:$0xff] %v4268
        %4277 = vst [vmem:[#allocation2 + $0x10] sm:$0xff] %v4269
        %4278 = vst [vmem:[#allocation2 + $0x18] sm:$0xff] %v4270
        %4279 = vst [vmem:[#allocation2 + $0x20] sm:$0xff] %v4271
        %4280 = vst [vmem:[#allocation2 + $0x28] sm:$0xff] %v4272
        %4281 = vst [vmem:[#allocation2 + $0x30] sm:$0xff] %v4273
        %4282 = vst [vmem:[#allocation2 + $0x38] sm:$0xff] %v4274
        %v4283 = vld [vmem:[%s782] sm:$0xff]
        %v4284 = vld [vmem:[%s782 + $0x8] sm:$0xff]
        %v4285 = vld [vmem:[%s782 + $0x10] sm:$0xff]
        %v4286 = vld [vmem:[%s782 + $0x18] sm:$0xff]
        %v4287 = vld [vmem:[%s782 + $0x20] sm:$0xff]
        %v4288 = vld [vmem:[%s782 + $0x28] sm:$0xff]
        %v4289 = vld [vmem:[%s782 + $0x30] sm:$0xff]
        %v4290 = vld [vmem:[%s782 + $0x38] sm:$0xff]
        %v4291 = vld [vmem:[%s782 + $0x40] sm:$0xff]
        %v4292 = vld [vmem:[%s782 + $0x48] sm:$0xff]
        %v4293 = vld [vmem:[%s782 + $0x50] sm:$0xff]
        %v4294 = vld [vmem:[%s782 + $0x58] sm:$0xff]
        %v4295 = vld [vmem:[%s782 + $0x60] sm:$0xff]
        %v4296 = vld [vmem:[%s782 + $0x68] sm:$0xff]
        %v4297 = vld [vmem:[%s782 + $0x70] sm:$0xff]
        %v4298 = vld [vmem:[%s782 + $0x78] sm:$0xff]
        %v4299 = vld [vmem:[%s782 + $0x80] sm:$0xff]
        %v4300 = vld [vmem:[%s782 + $0x88] sm:$0xff]
        %v4301 = vld [vmem:[%s782 + $0x90] sm:$0xff]
        %v4302 = vld [vmem:[%s782 + $0x98] sm:$0xff]
        %v4303 = vld [vmem:[%s782 + $0xa0] sm:$0xff]
        %v4304 = vld [vmem:[%s782 + $0xa8] sm:$0xff]
        %v4305 = vld [vmem:[%s782 + $0xb0] sm:$0xff]
        %v4306 = vld [vmem:[%s782 + $0xb8] sm:$0xff]
        %v4307 = vld [vmem:[%s782 + $0xc0] sm:$0xff]
        %v4308 = vld [vmem:[%s782 + $0xc8] sm:$0xff]
        %v4309 = vld [vmem:[%s782 + $0xd0] sm:$0xff]
        %v4310 = vld [vmem:[%s782 + $0xd8] sm:$0xff]
        %v4311 = vld [vmem:[%s782 + $0xe0] sm:$0xff]
        %v4312 = vld [vmem:[%s782 + $0xe8] sm:$0xff]
        %v4313 = vld [vmem:[%s782 + $0xf0] sm:$0xff]
        %v4314 = vld [vmem:[%s782 + $0xf8] sm:$0xff]
        %v4315 = vld [vmem:[%s782 + $0x100] sm:$0xff]
        %v4316 = vld [vmem:[%s782 + $0x108] sm:$0xff]
        %v4317 = vld [vmem:[%s782 + $0x110] sm:$0xff]
        %v4318 = vld [vmem:[%s782 + $0x118] sm:$0xff]
        %v4319 = vld [vmem:[%s782 + $0x120] sm:$0xff]
        %v4320 = vld [vmem:[%s782 + $0x128] sm:$0xff]
        %v4321 = vld [vmem:[%s782 + $0x130] sm:$0xff]
        %v4322 = vld [vmem:[%s782 + $0x138] sm:$0xff]
        %v4323 = vld [vmem:[%s782 + $0x140] sm:$0xff]
        %v4324 = vld [vmem:[%s782 + $0x148] sm:$0xff]
        %v4325 = vld [vmem:[%s782 + $0x150] sm:$0xff]
        %v4326 = vld [vmem:[%s782 + $0x158] sm:$0xff]
        %v4327 = vld [vmem:[%s782 + $0x160] sm:$0xff]
        %v4328 = vld [vmem:[%s782 + $0x168] sm:$0xff]
        %v4329 = vld [vmem:[%s782 + $0x170] sm:$0xff]
        %v4330 = vld [vmem:[%s782 + $0x178] sm:$0xff]
        %v4331 = vld [vmem:[%s782 + $0x180] sm:$0xff]
        %v4332 = vld [vmem:[%s782 + $0x188] sm:$0xff]
        %v4333 = vld [vmem:[%s782 + $0x190] sm:$0xff]
        %v4334 = vld [vmem:[%s782 + $0x198] sm:$0xff]
        %v4335 = vld [vmem:[%s782 + $0x1a0] sm:$0xff]
        %v4336 = vld [vmem:[%s782 + $0x1a8] sm:$0xff]
        %v4337 = vld [vmem:[%s782 + $0x1b0] sm:$0xff]
        %v4338 = vld [vmem:[%s782 + $0x1b8] sm:$0xff]
        %v4339 = vld [vmem:[%s782 + $0x1c0] sm:$0xff]
        %v4340 = vld [vmem:[%s782 + $0x1c8] sm:$0xff]
        %v4341 = vld [vmem:[%s782 + $0x1d0] sm:$0xff]
        %v4342 = vld [vmem:[%s782 + $0x1d8] sm:$0xff]
        %v4343 = vld [vmem:[%s782 + $0x1e0] sm:$0xff]
        %v4344 = vld [vmem:[%s782 + $0x1e8] sm:$0xff]
        %v4345 = vld [vmem:[%s782 + $0x1f0] sm:$0xff]
        %v4346 = vld [vmem:[%s782 + $0x1f8] sm:$0xff]
        %v4347 = vld [vmem:[%s782 + $0x200] sm:$0xff]
        %v4348 = vld [vmem:[%s782 + $0x208] sm:$0xff]
        %v4349 = vld [vmem:[%s782 + $0x210] sm:$0xff]
        %v4350 = vld [vmem:[%s782 + $0x218] sm:$0xff]
        %v4351 = vld [vmem:[%s782 + $0x220] sm:$0xff]
        %v4352 = vld [vmem:[%s782 + $0x228] sm:$0xff]
        %v4353 = vld [vmem:[%s782 + $0x230] sm:$0xff]
        %v4354 = vld [vmem:[%s782 + $0x238] sm:$0xff]
        %v4355 = vld [vmem:[%s782 + $0x240] sm:$0xff]
        %v4356 = vld [vmem:[%s782 + $0x248] sm:$0xff]
        %v4357 = vld [vmem:[%s782 + $0x250] sm:$0xff]
        %v4358 = vld [vmem:[%s782 + $0x258] sm:$0xff]
        %v4359 = vld [vmem:[%s782 + $0x260] sm:$0xff]
        %v4360 = vld [vmem:[%s782 + $0x268] sm:$0xff]
        %v4361 = vld [vmem:[%s782 + $0x270] sm:$0xff]
        %v4362 = vld [vmem:[%s782 + $0x278] sm:$0xff]
        %v4363 = vld [vmem:[%s782 + $0x280] sm:$0xff]
        %v4364 = vld [vmem:[%s782 + $0x288] sm:$0xff]
        %v4365 = vld [vmem:[%s782 + $0x290] sm:$0xff]
        %v4366 = vld [vmem:[%s782 + $0x298] sm:$0xff]
        %v4367 = vld [vmem:[%s782 + $0x2a0] sm:$0xff]
        %v4368 = vld [vmem:[%s782 + $0x2a8] sm:$0xff]
        %v4369 = vld [vmem:[%s782 + $0x2b0] sm:$0xff]
        %v4370 = vld [vmem:[%s782 + $0x2b8] sm:$0xff]
        %v4371 = vld [vmem:[%s782 + $0x2c0] sm:$0xff]
        %v4372 = vld [vmem:[%s782 + $0x2c8] sm:$0xff]
        %v4373 = vld [vmem:[%s782 + $0x2d0] sm:$0xff]
        %v4374 = vld [vmem:[%s782 + $0x2d8] sm:$0xff]
        %v4375 = vld [vmem:[%s782 + $0x2e0] sm:$0xff]
        %v4376 = vld [vmem:[%s782 + $0x2e8] sm:$0xff]
        %v4377 = vld [vmem:[%s782 + $0x2f0] sm:$0xff]
        %v4378 = vld [vmem:[%s782 + $0x2f8] sm:$0xff]
        %v4379 = vld [vmem:[%s782 + $0x300] sm:$0xff]
        %v4380 = vld [vmem:[%s782 + $0x308] sm:$0xff]
        %v4381 = vld [vmem:[%s782 + $0x310] sm:$0xff]
        %v4382 = vld [vmem:[%s782 + $0x318] sm:$0xff]
        %v4383 = vld [vmem:[%s782 + $0x320] sm:$0xff]
        %v4384 = vld [vmem:[%s782 + $0x328] sm:$0xff]
        %v4385 = vld [vmem:[%s782 + $0x330] sm:$0xff]
        %v4386 = vld [vmem:[%s782 + $0x338] sm:$0xff]
        %v4387 = vld [vmem:[%s782 + $0x340] sm:$0xff]
        %v4388 = vld [vmem:[%s782 + $0x348] sm:$0xff]
        %v4389 = vld [vmem:[%s782 + $0x350] sm:$0xff]
        %v4390 = vld [vmem:[%s782 + $0x358] sm:$0xff]
        %v4391 = vld [vmem:[%s782 + $0x360] sm:$0xff]
        %v4392 = vld [vmem:[%s782 + $0x368] sm:$0xff]
        %v4393 = vld [vmem:[%s782 + $0x370] sm:$0xff]
        %v4394 = vld [vmem:[%s782 + $0x378] sm:$0xff]
        %v4395 = vld [vmem:[%s782 + $0x380] sm:$0xff]
        %v4396 = vld [vmem:[%s782 + $0x388] sm:$0xff]
        %v4397 = vld [vmem:[%s782 + $0x390] sm:$0xff]
        %v4398 = vld [vmem:[%s782 + $0x398] sm:$0xff]
        %v4399 = vld [vmem:[%s782 + $0x3a0] sm:$0xff]
        %v4400 = vld [vmem:[%s782 + $0x3a8] sm:$0xff]
        %v4401 = vld [vmem:[%s782 + $0x3b0] sm:$0xff]
        %v4402 = vld [vmem:[%s782 + $0x3b8] sm:$0xff]
        %v4403 = vld [vmem:[%s782 + $0x3c0] sm:$0xff]
        %v4404 = vld [vmem:[%s782 + $0x3c8] sm:$0xff]
        %v4405 = vld [vmem:[%s782 + $0x3d0] sm:$0xff]
        %v4406 = vld [vmem:[%s782 + $0x3d8] sm:$0xff]
        %v4407 = vld [vmem:[%s782 + $0x3e0] sm:$0xff]
        %v4408 = vld [vmem:[%s782 + $0x3e8] sm:$0xff]
        %v4409 = vld [vmem:[%s782 + $0x3f0] sm:$0xff]
        %v4410 = vld [vmem:[%s782 + $0x3f8] sm:$0xff]
        %v4411 = vld [vmem:[%s940] sm:$0xff]
        %v4413 = vperm.slane %v4411, 0
        %v4414 = vperm.slane %v4411, 1
        %v4415 = vperm.slane %v4411, 2
        %v4416 = vperm.slane %v4411, 3
        %v4417 = vperm.slane %v4411, 4
        %v4418 = vperm.slane %v4411, 5
        %v4419 = vperm.slane %v4411, 6
        %v4420 = vperm.slane %v4411, 7
        %v4557 = vunpack.c.l.b16 %v4283
        %v4558 = vunpack.c.h.b16 %v4283
        %v4559 = vunpack.c.l.b16 %v4284
        %v4560 = vunpack.c.h.b16 %v4284
        %v4561 = vunpack.c.l.b16 %v4285
        %v4562 = vunpack.c.h.b16 %v4285
        %v4563 = vunpack.c.l.b16 %v4286
        %v4564 = vunpack.c.h.b16 %v4286
        %v4565 = vunpack.c.l.b16 %v4287
        %v4566 = vunpack.c.h.b16 %v4287
        %v4567 = vunpack.c.l.b16 %v4288
        %v4568 = vunpack.c.h.b16 %v4288
        %v4569 = vunpack.c.l.b16 %v4289
        %v4570 = vunpack.c.h.b16 %v4289
        %v4571 = vunpack.c.l.b16 %v4290
        %v4572 = vunpack.c.h.b16 %v4290
        %v4573 = vunpack.c.l.b16 %v4291
        %v4574 = vunpack.c.h.b16 %v4291
        %v4575 = vunpack.c.l.b16 %v4292
        %v4576 = vunpack.c.h.b16 %v4292
        %v4577 = vunpack.c.l.b16 %v4293
        %v4578 = vunpack.c.h.b16 %v4293
        %v4579 = vunpack.c.l.b16 %v4294
        %v4580 = vunpack.c.h.b16 %v4294
        %v4581 = vunpack.c.l.b16 %v4295
        %v4582 = vunpack.c.h.b16 %v4295
        %v4583 = vunpack.c.l.b16 %v4296
        %v4584 = vunpack.c.h.b16 %v4296
        %v4585 = vunpack.c.l.b16 %v4297
        %v4586 = vunpack.c.h.b16 %v4297
        %v4587 = vunpack.c.l.b16 %v4298
        %v4588 = vunpack.c.h.b16 %v4298
        %v4589 = vunpack.c.l.b16 %v4299
        %v4590 = vunpack.c.h.b16 %v4299
        %v4591 = vunpack.c.l.b16 %v4300
        %v4592 = vunpack.c.h.b16 %v4300
        %v4593 = vunpack.c.l.b16 %v4301
        %v4594 = vunpack.c.h.b16 %v4301
        %v4595 = vunpack.c.l.b16 %v4302
        %v4596 = vunpack.c.h.b16 %v4302
        %v4597 = vunpack.c.l.b16 %v4303
        %v4598 = vunpack.c.h.b16 %v4303
        %v4599 = vunpack.c.l.b16 %v4304
        %v4600 = vunpack.c.h.b16 %v4304
        %v4601 = vunpack.c.l.b16 %v4305
        %v4602 = vunpack.c.h.b16 %v4305
        %v4603 = vunpack.c.l.b16 %v4306
        %v4604 = vunpack.c.h.b16 %v4306
        %v4605 = vunpack.c.l.b16 %v4307
        %v4606 = vunpack.c.h.b16 %v4307
        %v4607 = vunpack.c.l.b16 %v4308
        %v4608 = vunpack.c.h.b16 %v4308
        %v4609 = vunpack.c.l.b16 %v4309
        %v4610 = vunpack.c.h.b16 %v4309
        %v4611 = vunpack.c.l.b16 %v4310
        %v4612 = vunpack.c.h.b16 %v4310
        %v4613 = vunpack.c.l.b16 %v4311
        %v4614 = vunpack.c.h.b16 %v4311
        %v4615 = vunpack.c.l.b16 %v4312
        %v4616 = vunpack.c.h.b16 %v4312
        %v4617 = vunpack.c.l.b16 %v4313
        %v4618 = vunpack.c.h.b16 %v4313
        %v4619 = vunpack.c.l.b16 %v4314
        %v4620 = vunpack.c.h.b16 %v4314
        %v4621 = vunpack.c.l.b16 %v4315
        %v4622 = vunpack.c.h.b16 %v4315
        %v4623 = vunpack.c.l.b16 %v4316
        %v4624 = vunpack.c.h.b16 %v4316
        %v4625 = vunpack.c.l.b16 %v4317
        %v4626 = vunpack.c.h.b16 %v4317
        %v4627 = vunpack.c.l.b16 %v4318
        %v4628 = vunpack.c.h.b16 %v4318
        %v4629 = vunpack.c.l.b16 %v4319
        %v4630 = vunpack.c.h.b16 %v4319
        %v4631 = vunpack.c.l.b16 %v4320
        %v4632 = vunpack.c.h.b16 %v4320
        %v4633 = vunpack.c.l.b16 %v4321
        %v4634 = vunpack.c.h.b16 %v4321
        %v4635 = vunpack.c.l.b16 %v4322
        %v4636 = vunpack.c.h.b16 %v4322
        %v4637 = vunpack.c.l.b16 %v4323
        %v4638 = vunpack.c.h.b16 %v4323
        %v4639 = vunpack.c.l.b16 %v4324
        %v4640 = vunpack.c.h.b16 %v4324
        %v4641 = vunpack.c.l.b16 %v4325
        %v4642 = vunpack.c.h.b16 %v4325
        %v4643 = vunpack.c.l.b16 %v4326
        %v4644 = vunpack.c.h.b16 %v4326
        %v4645 = vunpack.c.l.b16 %v4327
        %v4646 = vunpack.c.h.b16 %v4327
        %v4647 = vunpack.c.l.b16 %v4328
        %v4648 = vunpack.c.h.b16 %v4328
        %v4649 = vunpack.c.l.b16 %v4329
        %v4650 = vunpack.c.h.b16 %v4329
        %v4651 = vunpack.c.l.b16 %v4330
        %v4652 = vunpack.c.h.b16 %v4330
        %v4653 = vunpack.c.l.b16 %v4331
        %v4654 = vunpack.c.h.b16 %v4331
        %v4655 = vunpack.c.l.b16 %v4332
        %v4656 = vunpack.c.h.b16 %v4332
        %v4657 = vunpack.c.l.b16 %v4333
        %v4658 = vunpack.c.h.b16 %v4333
        %v4659 = vunpack.c.l.b16 %v4334
        %v4660 = vunpack.c.h.b16 %v4334
        %v4661 = vunpack.c.l.b16 %v4335
        %v4662 = vunpack.c.h.b16 %v4335
        %v4663 = vunpack.c.l.b16 %v4336
        %v4664 = vunpack.c.h.b16 %v4336
        %v4665 = vunpack.c.l.b16 %v4337
        %v4666 = vunpack.c.h.b16 %v4337
        %v4667 = vunpack.c.l.b16 %v4338
        %v4668 = vunpack.c.h.b16 %v4338
        %v4669 = vunpack.c.l.b16 %v4339
        %v4670 = vunpack.c.h.b16 %v4339
        %v4671 = vunpack.c.l.b16 %v4340
        %v4672 = vunpack.c.h.b16 %v4340
        %v4673 = vunpack.c.l.b16 %v4341
        %v4674 = vunpack.c.h.b16 %v4341
        %v4675 = vunpack.c.l.b16 %v4342
        %v4676 = vunpack.c.h.b16 %v4342
        %v4677 = vunpack.c.l.b16 %v4343
        %v4678 = vunpack.c.h.b16 %v4343
        %v4679 = vunpack.c.l.b16 %v4344
        %v4680 = vunpack.c.h.b16 %v4344
        %v4681 = vunpack.c.l.b16 %v4345
        %v4682 = vunpack.c.h.b16 %v4345
        %v4683 = vunpack.c.l.b16 %v4346
        %v4684 = vunpack.c.h.b16 %v4346
        %v4685 = vunpack.c.l.b16 %v4347
        %v4686 = vunpack.c.h.b16 %v4347
        %v4687 = vunpack.c.l.b16 %v4348
        %v4688 = vunpack.c.h.b16 %v4348
        %v4689 = vunpack.c.l.b16 %v4349
        %v4690 = vunpack.c.h.b16 %v4349
        %v4691 = vunpack.c.l.b16 %v4350
        %v4692 = vunpack.c.h.b16 %v4350
        %v4693 = vunpack.c.l.b16 %v4351
        %v4694 = vunpack.c.h.b16 %v4351
        %v4695 = vunpack.c.l.b16 %v4352
        %v4696 = vunpack.c.h.b16 %v4352
        %v4697 = vunpack.c.l.b16 %v4353
        %v4698 = vunpack.c.h.b16 %v4353
        %v4699 = vunpack.c.l.b16 %v4354
        %v4700 = vunpack.c.h.b16 %v4354
        %v4701 = vunpack.c.l.b16 %v4355
        %v4702 = vunpack.c.h.b16 %v4355
        %v4703 = vunpack.c.l.b16 %v4356
        %v4704 = vunpack.c.h.b16 %v4356
        %v4705 = vunpack.c.l.b16 %v4357
        %v4706 = vunpack.c.h.b16 %v4357
        %v4707 = vunpack.c.l.b16 %v4358
        %v4708 = vunpack.c.h.b16 %v4358
        %v4709 = vunpack.c.l.b16 %v4359
        %v4710 = vunpack.c.h.b16 %v4359
        %v4711 = vunpack.c.l.b16 %v4360
        %v4712 = vunpack.c.h.b16 %v4360
        %v4713 = vunpack.c.l.b16 %v4361
        %v4714 = vunpack.c.h.b16 %v4361
        %v4715 = vunpack.c.l.b16 %v4362
        %v4716 = vunpack.c.h.b16 %v4362
        %v4717 = vunpack.c.l.b16 %v4363
        %v4718 = vunpack.c.h.b16 %v4363
        %v4719 = vunpack.c.l.b16 %v4364
        %v4720 = vunpack.c.h.b16 %v4364
        %v4721 = vunpack.c.l.b16 %v4365
        %v4722 = vunpack.c.h.b16 %v4365
        %v4723 = vunpack.c.l.b16 %v4366
        %v4724 = vunpack.c.h.b16 %v4366
        %v4725 = vunpack.c.l.b16 %v4367
        %v4726 = vunpack.c.h.b16 %v4367
        %v4727 = vunpack.c.l.b16 %v4368
        %v4728 = vunpack.c.h.b16 %v4368
        %v4729 = vunpack.c.l.b16 %v4369
        %v4730 = vunpack.c.h.b16 %v4369
        %v4731 = vunpack.c.l.b16 %v4370
        %v4732 = vunpack.c.h.b16 %v4370
        %v4733 = vunpack.c.l.b16 %v4371
        %v4734 = vunpack.c.h.b16 %v4371
        %v4735 = vunpack.c.l.b16 %v4372
        %v4736 = vunpack.c.h.b16 %v4372
        %v4737 = vunpack.c.l.b16 %v4373
        %v4738 = vunpack.c.h.b16 %v4373
        %v4739 = vunpack.c.l.b16 %v4374
        %v4740 = vunpack.c.h.b16 %v4374
        %v4741 = vunpack.c.l.b16 %v4375
        %v4742 = vunpack.c.h.b16 %v4375
        %v4743 = vunpack.c.l.b16 %v4376
        %v4744 = vunpack.c.h.b16 %v4376
        %v4745 = vunpack.c.l.b16 %v4377
        %v4746 = vunpack.c.h.b16 %v4377
        %v4747 = vunpack.c.l.b16 %v4378
        %v4748 = vunpack.c.h.b16 %v4378
        %v4749 = vunpack.c.l.b16 %v4379
        %v4750 = vunpack.c.h.b16 %v4379
        %v4751 = vunpack.c.l.b16 %v4380
        %v4752 = vunpack.c.h.b16 %v4380
        %v4753 = vunpack.c.l.b16 %v4381
        %v4754 = vunpack.c.h.b16 %v4381
        %v4755 = vunpack.c.l.b16 %v4382
        %v4756 = vunpack.c.h.b16 %v4382
        %v4757 = vunpack.c.l.b16 %v4383
        %v4758 = vunpack.c.h.b16 %v4383
        %v4759 = vunpack.c.l.b16 %v4384
        %v4760 = vunpack.c.h.b16 %v4384
        %v4761 = vunpack.c.l.b16 %v4385
        %v4762 = vunpack.c.h.b16 %v4385
        %v4763 = vunpack.c.l.b16 %v4386
        %v4764 = vunpack.c.h.b16 %v4386
        %v4765 = vunpack.c.l.b16 %v4387
        %v4766 = vunpack.c.h.b16 %v4387
        %v4767 = vunpack.c.l.b16 %v4388
        %v4768 = vunpack.c.h.b16 %v4388
        %v4769 = vunpack.c.l.b16 %v4389
        %v4770 = vunpack.c.h.b16 %v4389
        %v4771 = vunpack.c.l.b16 %v4390
        %v4772 = vunpack.c.h.b16 %v4390
        %v4773 = vunpack.c.l.b16 %v4391
        %v4774 = vunpack.c.h.b16 %v4391
        %v4775 = vunpack.c.l.b16 %v4392
        %v4776 = vunpack.c.h.b16 %v4392
        %v4777 = vunpack.c.l.b16 %v4393
        %v4778 = vunpack.c.h.b16 %v4393
        %v4779 = vunpack.c.l.b16 %v4394
        %v4780 = vunpack.c.h.b16 %v4394
        %v4781 = vunpack.c.l.b16 %v4395
        %v4782 = vunpack.c.h.b16 %v4395
        %v4783 = vunpack.c.l.b16 %v4396
        %v4784 = vunpack.c.h.b16 %v4396
        %v4785 = vunpack.c.l.b16 %v4397
        %v4786 = vunpack.c.h.b16 %v4397
        %v4787 = vunpack.c.l.b16 %v4398
        %v4788 = vunpack.c.h.b16 %v4398
        %v4789 = vunpack.c.l.b16 %v4399
        %v4790 = vunpack.c.h.b16 %v4399
        %v4791 = vunpack.c.l.b16 %v4400
        %v4792 = vunpack.c.h.b16 %v4400
        %v4793 = vunpack.c.l.b16 %v4401
        %v4794 = vunpack.c.h.b16 %v4401
        %v4795 = vunpack.c.l.b16 %v4402
        %v4796 = vunpack.c.h.b16 %v4402
        %v4797 = vunpack.c.l.b16 %v4403
        %v4798 = vunpack.c.h.b16 %v4403
        %v4799 = vunpack.c.l.b16 %v4404
        %v4800 = vunpack.c.h.b16 %v4404
        %v4801 = vunpack.c.l.b16 %v4405
        %v4802 = vunpack.c.h.b16 %v4405
        %v4803 = vunpack.c.l.b16 %v4406
        %v4804 = vunpack.c.h.b16 %v4406
        %v4805 = vunpack.c.l.b16 %v4407
        %v4806 = vunpack.c.h.b16 %v4407
        %v4807 = vunpack.c.l.b16 %v4408
        %v4808 = vunpack.c.h.b16 %v4408
        %v4809 = vunpack.c.l.b16 %v4409
        %v4810 = vunpack.c.h.b16 %v4409
        %v4811 = vunpack.c.l.b16 %v4410
        %v4812 = vunpack.c.h.b16 %v4410
        %v4813 = vpack.c.b16 %v4565, %v4557
        %v4814 = vpack.c.b16 %v4566, %v4558
        %v4815 = vpack.c.b16 %v4567, %v4559
        %v4816 = vpack.c.b16 %v4568, %v4560
        %v4817 = vpack.c.b16 %v4569, %v4561
        %v4818 = vpack.c.b16 %v4570, %v4562
        %v4819 = vpack.c.b16 %v4571, %v4563
        %v4820 = vpack.c.b16 %v4572, %v4564
        %v4821 = vpack.c.b16 %v4581, %v4573
        %v4822 = vpack.c.b16 %v4582, %v4574
        %v4823 = vpack.c.b16 %v4583, %v4575
        %v4824 = vpack.c.b16 %v4584, %v4576
        %v4825 = vpack.c.b16 %v4585, %v4577
        %v4826 = vpack.c.b16 %v4586, %v4578
        %v4827 = vpack.c.b16 %v4587, %v4579
        %v4828 = vpack.c.b16 %v4588, %v4580
        %v4829 = vpack.c.b16 %v4597, %v4589
        %v4830 = vpack.c.b16 %v4598, %v4590
        %v4831 = vpack.c.b16 %v4599, %v4591
        %v4832 = vpack.c.b16 %v4600, %v4592
        %v4833 = vpack.c.b16 %v4601, %v4593
        %v4834 = vpack.c.b16 %v4602, %v4594
        %v4835 = vpack.c.b16 %v4603, %v4595
        %v4836 = vpack.c.b16 %v4604, %v4596
        %v4837 = vpack.c.b16 %v4613, %v4605
        %v4838 = vpack.c.b16 %v4614, %v4606
        %v4839 = vpack.c.b16 %v4615, %v4607
        %v4840 = vpack.c.b16 %v4616, %v4608
        %v4841 = vpack.c.b16 %v4617, %v4609
        %v4842 = vpack.c.b16 %v4618, %v4610
        %v4843 = vpack.c.b16 %v4619, %v4611
        %v4844 = vpack.c.b16 %v4620, %v4612
        %v4845 = vpack.c.b16 %v4629, %v4621
        %v4846 = vpack.c.b16 %v4630, %v4622
        %v4847 = vpack.c.b16 %v4631, %v4623
        %v4848 = vpack.c.b16 %v4632, %v4624
        %v4849 = vpack.c.b16 %v4633, %v4625
        %v4850 = vpack.c.b16 %v4634, %v4626
        %v4851 = vpack.c.b16 %v4635, %v4627
        %v4852 = vpack.c.b16 %v4636, %v4628
        %v4853 = vpack.c.b16 %v4645, %v4637
        %v4854 = vpack.c.b16 %v4646, %v4638
        %v4855 = vpack.c.b16 %v4647, %v4639
        %v4856 = vpack.c.b16 %v4648, %v4640
        %v4857 = vpack.c.b16 %v4649, %v4641
        %v4858 = vpack.c.b16 %v4650, %v4642
        %v4859 = vpack.c.b16 %v4651, %v4643
        %v4860 = vpack.c.b16 %v4652, %v4644
        %v4861 = vpack.c.b16 %v4661, %v4653
        %v4862 = vpack.c.b16 %v4662, %v4654
        %v4863 = vpack.c.b16 %v4663, %v4655
        %v4864 = vpack.c.b16 %v4664, %v4656
        %v4865 = vpack.c.b16 %v4665, %v4657
        %v4866 = vpack.c.b16 %v4666, %v4658
        %v4867 = vpack.c.b16 %v4667, %v4659
        %v4868 = vpack.c.b16 %v4668, %v4660
        %v4869 = vpack.c.b16 %v4677, %v4669
        %v4870 = vpack.c.b16 %v4678, %v4670
        %v4871 = vpack.c.b16 %v4679, %v4671
        %v4872 = vpack.c.b16 %v4680, %v4672
        %v4873 = vpack.c.b16 %v4681, %v4673
        %v4874 = vpack.c.b16 %v4682, %v4674
        %v4875 = vpack.c.b16 %v4683, %v4675
        %v4876 = vpack.c.b16 %v4684, %v4676
        %v4877 = vpack.c.b16 %v4693, %v4685
        %v4878 = vpack.c.b16 %v4694, %v4686
        %v4879 = vpack.c.b16 %v4695, %v4687
        %v4880 = vpack.c.b16 %v4696, %v4688
        %v4881 = vpack.c.b16 %v4697, %v4689
        %v4882 = vpack.c.b16 %v4698, %v4690
        %v4883 = vpack.c.b16 %v4699, %v4691
        %v4884 = vpack.c.b16 %v4700, %v4692
        %v4885 = vpack.c.b16 %v4709, %v4701
        %v4886 = vpack.c.b16 %v4710, %v4702
        %v4887 = vpack.c.b16 %v4711, %v4703
        %v4888 = vpack.c.b16 %v4712, %v4704
        %v4889 = vpack.c.b16 %v4713, %v4705
        %v4890 = vpack.c.b16 %v4714, %v4706
        %v4891 = vpack.c.b16 %v4715, %v4707
        %v4892 = vpack.c.b16 %v4716, %v4708
        %v4893 = vpack.c.b16 %v4725, %v4717
        %v4894 = vpack.c.b16 %v4726, %v4718
        %v4895 = vpack.c.b16 %v4727, %v4719
        %v4896 = vpack.c.b16 %v4728, %v4720
        %v4897 = vpack.c.b16 %v4729, %v4721
        %v4898 = vpack.c.b16 %v4730, %v4722
        %v4899 = vpack.c.b16 %v4731, %v4723
        %v4900 = vpack.c.b16 %v4732, %v4724
        %v4901 = vpack.c.b16 %v4741, %v4733
        %v4902 = vpack.c.b16 %v4742, %v4734
        %v4903 = vpack.c.b16 %v4743, %v4735
        %v4904 = vpack.c.b16 %v4744, %v4736
        %v4905 = vpack.c.b16 %v4745, %v4737
        %v4906 = vpack.c.b16 %v4746, %v4738
        %v4907 = vpack.c.b16 %v4747, %v4739
        %v4908 = vpack.c.b16 %v4748, %v4740
        %v4909 = vpack.c.b16 %v4757, %v4749
        %v4910 = vpack.c.b16 %v4758, %v4750
        %v4911 = vpack.c.b16 %v4759, %v4751
        %v4912 = vpack.c.b16 %v4760, %v4752
        %v4913 = vpack.c.b16 %v4761, %v4753
        %v4914 = vpack.c.b16 %v4762, %v4754
        %v4915 = vpack.c.b16 %v4763, %v4755
        %v4916 = vpack.c.b16 %v4764, %v4756
        %v4917 = vpack.c.b16 %v4773, %v4765
        %v4918 = vpack.c.b16 %v4774, %v4766
        %v4919 = vpack.c.b16 %v4775, %v4767
        %v4920 = vpack.c.b16 %v4776, %v4768
        %v4921 = vpack.c.b16 %v4777, %v4769
        %v4922 = vpack.c.b16 %v4778, %v4770
        %v4923 = vpack.c.b16 %v4779, %v4771
        %v4924 = vpack.c.b16 %v4780, %v4772
        %v4925 = vpack.c.b16 %v4789, %v4781
        %v4926 = vpack.c.b16 %v4790, %v4782
        %v4927 = vpack.c.b16 %v4791, %v4783
        %v4928 = vpack.c.b16 %v4792, %v4784
        %v4929 = vpack.c.b16 %v4793, %v4785
        %v4930 = vpack.c.b16 %v4794, %v4786
        %v4931 = vpack.c.b16 %v4795, %v4787
        %v4932 = vpack.c.b16 %v4796, %v4788
        %v4933 = vpack.c.b16 %v4805, %v4797
        %v4934 = vpack.c.b16 %v4806, %v4798
        %v4935 = vpack.c.b16 %v4807, %v4799
        %v4936 = vpack.c.b16 %v4808, %v4800
        %v4937 = vpack.c.b16 %v4809, %v4801
        %v4938 = vpack.c.b16 %v4810, %v4802
        %v4939 = vpack.c.b16 %v4811, %v4803
        %v4940 = vpack.c.b16 %v4812, %v4804
        %5069 = vmatpush.bf16.msra.mxu0 %v4869
        %5070 = vmatpush.bf16.msra.mxu0 %v4861
        %5071 = vmatpush.bf16.msra.mxu0 %v4853
        %5072 = vmatpush.bf16.msra.mxu0 %v4845
        %5073 = vmatpush.bf16.msra.mxu0 %v4837
        %5074 = vmatpush.bf16.msra.mxu0 %v4829
        %5075 = vmatpush.bf16.msra.mxu0 %v4821
        %5076 = vmatpush.bf16.msra.mxu0 %v4813
        %5077 = vmatmul.bf16.gmra.mxu0 %v4257
        %v5078 = vpop.f32.mrf.mxu0
        %v5079 = vadd.f32 %v4413, %v5078
        %v5080 = vpop.f32.mrf.mxu0
        %v5081 = vadd.f32 %v4413, %v5080
        %5082 = vmatmul.bf16.gmra.mxu0 %v4259
        %v5083 = vpop.f32.mrf.mxu0
        %v5084 = vadd.f32 %v4413, %v5083
        %v5085 = vpop.f32.mrf.mxu0
        %v5086 = vadd.f32 %v4413, %v5085
        %5087 = vdwg.mxu0
        %5088 = vmatpush.bf16.msra.mxu0 %v4933
        %5089 = vmatpush.bf16.msra.mxu0 %v4925
        %5090 = vmatpush.bf16.msra.mxu0 %v4917
        %5091 = vmatpush.bf16.msra.mxu0 %v4909
        %5092 = vmatpush.bf16.msra.mxu0 %v4901
        %5093 = vmatpush.bf16.msra.mxu0 %v4893
        %5094 = vmatpush.bf16.msra.mxu0 %v4885
        %5095 = vmatpush.bf16.msra.mxu0 %v4877
        %5096 = vmatmul.bf16.gmra.mxu0 %v4258
        %v5097 = vpop.f32.mrf.mxu0
        %v5098 = vadd.f32 %v5079, %v5097
        %v5099 = vpop.f32.mrf.mxu0
        %v5100 = vadd.f32 %v5081, %v5099
        %5101 = vmatmul.bf16.gmra.mxu0 %v4260
        %v5102 = vpop.f32.mrf.mxu0
        %v5103 = vadd.f32 %v5084, %v5102
        %v5104 = vpop.f32.mrf.mxu0
        %v5105 = vadd.f32 %v5086, %v5104
        %5106 = vdwg.mxu0
        %5107 = vmatpush.bf16.msra.mxu0 %v4870
        %5108 = vmatpush.bf16.msra.mxu0 %v4862
        %5109 = vmatpush.bf16.msra.mxu0 %v4854
        %5110 = vmatpush.bf16.msra.mxu0 %v4846
        %5111 = vmatpush.bf16.msra.mxu0 %v4838
        %5112 = vmatpush.bf16.msra.mxu0 %v4830
        %5113 = vmatpush.bf16.msra.mxu0 %v4822
        %5114 = vmatpush.bf16.msra.mxu0 %v4814
        %5115 = vmatmul.bf16.gmra.mxu0 %v4257
        %v5116 = vpop.f32.mrf.mxu0
        %v5117 = vadd.f32 %v4414, %v5116
        %v5118 = vpop.f32.mrf.mxu0
        %v5119 = vadd.f32 %v4414, %v5118
        %5120 = vmatmul.bf16.gmra.mxu0 %v4259
        %v5121 = vpop.f32.mrf.mxu0
        %v5122 = vadd.f32 %v4414, %v5121
        %v5123 = vpop.f32.mrf.mxu0
        %v5124 = vadd.f32 %v4414, %v5123
        %5125 = vdwg.mxu0
        %5126 = vmatpush.bf16.msra.mxu0 %v4934
        %5127 = vmatpush.bf16.msra.mxu0 %v4926
        %5128 = vmatpush.bf16.msra.mxu0 %v4918
        %5129 = vmatpush.bf16.msra.mxu0 %v4910
        %5130 = vmatpush.bf16.msra.mxu0 %v4902
        %5131 = vmatpush.bf16.msra.mxu0 %v4894
        %5132 = vmatpush.bf16.msra.mxu0 %v4886
        %5133 = vmatpush.bf16.msra.mxu0 %v4878
        %5134 = vmatmul.bf16.gmra.mxu0 %v4258
        %v5135 = vpop.f32.mrf.mxu0
        %v5136 = vadd.f32 %v5117, %v5135
        %v5137 = vpop.f32.mrf.mxu0
        %v5138 = vadd.f32 %v5119, %v5137
        %5139 = vmatmul.bf16.gmra.mxu0 %v4260
        %v5140 = vpop.f32.mrf.mxu0
        %v5141 = vadd.f32 %v5122, %v5140
        %v5142 = vpop.f32.mrf.mxu0
        %v5143 = vadd.f32 %v5124, %v5142
        %5144 = vdwg.mxu0
        %5145 = vmatpush.bf16.msra.mxu0 %v4871
        %5146 = vmatpush.bf16.msra.mxu0 %v4863
        %5147 = vmatpush.bf16.msra.mxu0 %v4855
        %5148 = vmatpush.bf16.msra.mxu0 %v4847
        %5149 = vmatpush.bf16.msra.mxu0 %v4839
        %5150 = vmatpush.bf16.msra.mxu0 %v4831
        %5151 = vmatpush.bf16.msra.mxu0 %v4823
        %5152 = vmatpush.bf16.msra.mxu0 %v4815
        %5153 = vmatmul.bf16.gmra.mxu0 %v4257
        %v5154 = vpop.f32.mrf.mxu0
        %v5155 = vadd.f32 %v4415, %v5154
        %v5156 = vpop.f32.mrf.mxu0
        %v5157 = vadd.f32 %v4415, %v5156
        %5158 = vmatmul.bf16.gmra.mxu0 %v4259
        %v5159 = vpop.f32.mrf.mxu0
        %v5160 = vadd.f32 %v4415, %v5159
        %v5161 = vpop.f32.mrf.mxu0
        %v5162 = vadd.f32 %v4415, %v5161
        %5163 = vdwg.mxu0
        %5164 = vmatpush.bf16.msra.mxu0 %v4935
        %5165 = vmatpush.bf16.msra.mxu0 %v4927
        %5166 = vmatpush.bf16.msra.mxu0 %v4919
        %5167 = vmatpush.bf16.msra.mxu0 %v4911
        %5168 = vmatpush.bf16.msra.mxu0 %v4903
        %5169 = vmatpush.bf16.msra.mxu0 %v4895
        %5170 = vmatpush.bf16.msra.mxu0 %v4887
        %5171 = vmatpush.bf16.msra.mxu0 %v4879
        %5172 = vmatmul.bf16.gmra.mxu0 %v4258
        %v5173 = vpop.f32.mrf.mxu0
        %v5174 = vadd.f32 %v5155, %v5173
        %v5175 = vpop.f32.mrf.mxu0
        %v5176 = vadd.f32 %v5157, %v5175
        %5177 = vmatmul.bf16.gmra.mxu0 %v4260
        %v5178 = vpop.f32.mrf.mxu0
        %v5179 = vadd.f32 %v5160, %v5178
        %v5180 = vpop.f32.mrf.mxu0
        %v5181 = vadd.f32 %v5162, %v5180
        %5182 = vdwg.mxu0
        %5183 = vmatpush.bf16.msra.mxu0 %v4872
        %5184 = vmatpush.bf16.msra.mxu0 %v4864
        %5185 = vmatpush.bf16.msra.mxu0 %v4856
        %5186 = vmatpush.bf16.msra.mxu0 %v4848
        %5187 = vmatpush.bf16.msra.mxu0 %v4840
        %5188 = vmatpush.bf16.msra.mxu0 %v4832
        %5189 = vmatpush.bf16.msra.mxu0 %v4824
        %5190 = vmatpush.bf16.msra.mxu0 %v4816
        %5191 = vmatmul.bf16.gmra.mxu0 %v4257
        %v5192 = vpop.f32.mrf.mxu0
        %v5193 = vadd.f32 %v4416, %v5192
        %v5194 = vpop.f32.mrf.mxu0
        %v5195 = vadd.f32 %v4416, %v5194
        %5196 = vmatmul.bf16.gmra.mxu0 %v4259
        %v5197 = vpop.f32.mrf.mxu0
        %v5198 = vadd.f32 %v4416, %v5197
        %v5199 = vpop.f32.mrf.mxu0
        %v5200 = vadd.f32 %v4416, %v5199
        %5201 = vdwg.mxu0
        %5202 = vmatpush.bf16.msra.mxu0 %v4936
        %5203 = vmatpush.bf16.msra.mxu0 %v4928
        %5204 = vmatpush.bf16.msra.mxu0 %v4920
        %5205 = vmatpush.bf16.msra.mxu0 %v4912
        %5206 = vmatpush.bf16.msra.mxu0 %v4904
        %5207 = vmatpush.bf16.msra.mxu0 %v4896
        %5208 = vmatpush.bf16.msra.mxu0 %v4888
        %5209 = vmatpush.bf16.msra.mxu0 %v4880
        %5210 = vmatmul.bf16.gmra.mxu0 %v4258
        %v5211 = vpop.f32.mrf.mxu0
        %v5212 = vadd.f32 %v5193, %v5211
        %v5213 = vpop.f32.mrf.mxu0
        %v5214 = vadd.f32 %v5195, %v5213
        %5215 = vmatmul.bf16.gmra.mxu0 %v4260
        %v5216 = vpop.f32.mrf.mxu0
        %v5217 = vadd.f32 %v5198, %v5216
        %v5218 = vpop.f32.mrf.mxu0
        %v5219 = vadd.f32 %v5200, %v5218
        %5220 = vdwg.mxu0
        %5221 = vmatpush.bf16.msra.mxu0 %v4873
        %5222 = vmatpush.bf16.msra.mxu0 %v4865
        %5223 = vmatpush.bf16.msra.mxu0 %v4857
        %5224 = vmatpush.bf16.msra.mxu0 %v4849
        %5225 = vmatpush.bf16.msra.mxu0 %v4841
        %5226 = vmatpush.bf16.msra.mxu0 %v4833
        %5227 = vmatpush.bf16.msra.mxu0 %v4825
        %5228 = vmatpush.bf16.msra.mxu0 %v4817
        %5229 = vmatmul.bf16.gmra.mxu0 %v4257
        %v5230 = vpop.f32.mrf.mxu0
        %v5231 = vadd.f32 %v4417, %v5230
        %v5232 = vpop.f32.mrf.mxu0
        %v5233 = vadd.f32 %v4417, %v5232
        %5234 = vmatmul.bf16.gmra.mxu0 %v4259
        %v5235 = vpop.f32.mrf.mxu0
        %v5236 = vadd.f32 %v4417, %v5235
        %v5237 = vpop.f32.mrf.mxu0
        %v5238 = vadd.f32 %v4417, %v5237
        %5239 = vdwg.mxu0
        %5240 = vmatpush.bf16.msra.mxu0 %v4937
        %5241 = vmatpush.bf16.msra.mxu0 %v4929
        %5242 = vmatpush.bf16.msra.mxu0 %v4921
        %5243 = vmatpush.bf16.msra.mxu0 %v4913
        %5244 = vmatpush.bf16.msra.mxu0 %v4905
        %5245 = vmatpush.bf16.msra.mxu0 %v4897
        %5246 = vmatpush.bf16.msra.mxu0 %v4889
        %5247 = vmatpush.bf16.msra.mxu0 %v4881
        %5248 = vmatmul.bf16.gmra.mxu0 %v4258
        %v5249 = vpop.f32.mrf.mxu0
        %v5250 = vadd.f32 %v5231, %v5249
        %v5251 = vpop.f32.mrf.mxu0
        %v5252 = vadd.f32 %v5233, %v5251
        %5253 = vmatmul.bf16.gmra.mxu0 %v4260
        %v5254 = vpop.f32.mrf.mxu0
        %v5255 = vadd.f32 %v5236, %v5254
        %v5256 = vpop.f32.mrf.mxu0
        %v5257 = vadd.f32 %v5238, %v5256
        %5258 = vdwg.mxu0
        %5259 = vmatpush.bf16.msra.mxu0 %v4874
        %5260 = vmatpush.bf16.msra.mxu0 %v4866
        %5261 = vmatpush.bf16.msra.mxu0 %v4858
        %5262 = vmatpush.bf16.msra.mxu0 %v4850
        %5263 = vmatpush.bf16.msra.mxu0 %v4842
        %5264 = vmatpush.bf16.msra.mxu0 %v4834
        %5265 = vmatpush.bf16.msra.mxu0 %v4826
        %5266 = vmatpush.bf16.msra.mxu0 %v4818
        %5267 = vmatmul.bf16.gmra.mxu0 %v4257
        %v5268 = vpop.f32.mrf.mxu0
        %v5269 = vadd.f32 %v4418, %v5268
        %v5270 = vpop.f32.mrf.mxu0
        %v5271 = vadd.f32 %v4418, %v5270
        %5272 = vmatmul.bf16.gmra.mxu0 %v4259
        %v5273 = vpop.f32.mrf.mxu0
        %v5274 = vadd.f32 %v4418, %v5273
        %v5275 = vpop.f32.mrf.mxu0
        %v5276 = vadd.f32 %v4418, %v5275
        %5277 = vdwg.mxu0
        %5278 = vmatpush.bf16.msra.mxu0 %v4938
        %5279 = vmatpush.bf16.msra.mxu0 %v4930
        %5280 = vmatpush.bf16.msra.mxu0 %v4922
        %5281 = vmatpush.bf16.msra.mxu0 %v4914
        %5282 = vmatpush.bf16.msra.mxu0 %v4906
        %5283 = vmatpush.bf16.msra.mxu0 %v4898
        %5284 = vmatpush.bf16.msra.mxu0 %v4890
        %5285 = vmatpush.bf16.msra.mxu0 %v4882
        %5286 = vmatmul.bf16.gmra.mxu0 %v4258
        %v5287 = vpop.f32.mrf.mxu0
        %v5288 = vadd.f32 %v5269, %v5287
        %v5289 = vpop.f32.mrf.mxu0
        %v5290 = vadd.f32 %v5271, %v5289
        %5291 = vmatmul.bf16.gmra.mxu0 %v4260
        %v5292 = vpop.f32.mrf.mxu0
        %v5293 = vadd.f32 %v5274, %v5292
        %v5294 = vpop.f32.mrf.mxu0
        %v5295 = vadd.f32 %v5276, %v5294
        %5296 = vdwg.mxu0
        %5297 = vmatpush.bf16.msra.mxu0 %v4875
        %5298 = vmatpush.bf16.msra.mxu0 %v4867
        %5299 = vmatpush.bf16.msra.mxu0 %v4859
        %5300 = vmatpush.bf16.msra.mxu0 %v4851
        %5301 = vmatpush.bf16.msra.mxu0 %v4843
        %5302 = vmatpush.bf16.msra.mxu0 %v4835
        %5303 = vmatpush.bf16.msra.mxu0 %v4827
        %5304 = vmatpush.bf16.msra.mxu0 %v4819
        %5305 = vmatmul.bf16.gmra.mxu0 %v4257
        %v5306 = vpop.f32.mrf.mxu0
        %v5307 = vadd.f32 %v4419, %v5306
        %v5308 = vpop.f32.mrf.mxu0
        %v5309 = vadd.f32 %v4419, %v5308
        %5310 = vmatmul.bf16.gmra.mxu0 %v4259
        %v5311 = vpop.f32.mrf.mxu0
        %v5312 = vadd.f32 %v4419, %v5311
        %v5313 = vpop.f32.mrf.mxu0
        %v5314 = vadd.f32 %v4419, %v5313
        %5315 = vdwg.mxu0
        %5316 = vmatpush.bf16.msra.mxu0 %v4939
        %5317 = vmatpush.bf16.msra.mxu0 %v4931
        %5318 = vmatpush.bf16.msra.mxu0 %v4923
        %5319 = vmatpush.bf16.msra.mxu0 %v4915
        %5320 = vmatpush.bf16.msra.mxu0 %v4907
        %5321 = vmatpush.bf16.msra.mxu0 %v4899
        %5322 = vmatpush.bf16.msra.mxu0 %v4891
        %5323 = vmatpush.bf16.msra.mxu0 %v4883
        %5324 = vmatmul.bf16.gmra.mxu0 %v4258
        %v5325 = vpop.f32.mrf.mxu0
        %v5326 = vadd.f32 %v5307, %v5325
        %v5327 = vpop.f32.mrf.mxu0
        %v5328 = vadd.f32 %v5309, %v5327
        %5329 = vmatmul.bf16.gmra.mxu0 %v4260
        %v5330 = vpop.f32.mrf.mxu0
        %v5331 = vadd.f32 %v5312, %v5330
        %v5332 = vpop.f32.mrf.mxu0
        %v5333 = vadd.f32 %v5314, %v5332
        %5334 = vdwg.mxu0
        %5335 = vmatpush.bf16.msra.mxu0 %v4876
        %5336 = vmatpush.bf16.msra.mxu0 %v4868
        %5337 = vmatpush.bf16.msra.mxu0 %v4860
        %5338 = vmatpush.bf16.msra.mxu0 %v4852
        %5339 = vmatpush.bf16.msra.mxu0 %v4844
        %5340 = vmatpush.bf16.msra.mxu0 %v4836
        %5341 = vmatpush.bf16.msra.mxu0 %v4828
        %5342 = vmatpush.bf16.msra.mxu0 %v4820
        %5343 = vmatmul.bf16.gmra.mxu0 %v4257
        %v5344 = vpop.f32.mrf.mxu0
        %v5345 = vadd.f32 %v4420, %v5344
        %v5346 = vpop.f32.mrf.mxu0
        %v5347 = vadd.f32 %v4420, %v5346
        %5348 = vmatmul.bf16.gmra.mxu0 %v4259
        %v5349 = vpop.f32.mrf.mxu0
        %v5350 = vadd.f32 %v4420, %v5349
        %v5351 = vpop.f32.mrf.mxu0
        %v5352 = vadd.f32 %v4420, %v5351
        %5353 = vdwg.mxu0
        %5354 = vmatpush.bf16.msra.mxu0 %v4940
        %5355 = vmatpush.bf16.msra.mxu0 %v4932
        %5356 = vmatpush.bf16.msra.mxu0 %v4924
        %5357 = vmatpush.bf16.msra.mxu0 %v4916
        %5358 = vmatpush.bf16.msra.mxu0 %v4908
        %5359 = vmatpush.bf16.msra.mxu0 %v4900
        %5360 = vmatpush.bf16.msra.mxu0 %v4892
        %5361 = vmatpush.bf16.msra.mxu0 %v4884
        %5362 = vmatmul.bf16.gmra.mxu0 %v4258
        %v5363 = vpop.f32.mrf.mxu0
        %v5364 = vadd.f32 %v5345, %v5363
        %v5365 = vpop.f32.mrf.mxu0
        %v5366 = vadd.f32 %v5347, %v5365
        %5367 = vmatmul.bf16.gmra.mxu0 %v4260
        %v5368 = vpop.f32.mrf.mxu0
        %v5369 = vadd.f32 %v5350, %v5368
        %v5370 = vpop.f32.mrf.mxu0
        %v5371 = vadd.f32 %v5352, %v5370
        %5372 = vdwg.mxu0
        %v5373 = vmul.f32 %v5098, 1.702
        %v5374 = vmul.f32 %v5136, 1.702
        %v5375 = vmul.f32 %v5174, 1.702
        %v5376 = vmul.f32 %v5212, 1.702
        %v5377 = vmul.f32 %v5250, 1.702
        %v5378 = vmul.f32 %v5288, 1.702
        %v5379 = vmul.f32 %v5326, 1.702
        %v5380 = vmul.f32 %v5364, 1.702
        %v5381 = vmul.f32 %v5100, 1.702
        %v5382 = vmul.f32 %v5138, 1.702
        %v5383 = vmul.f32 %v5176, 1.702
        %v5384 = vmul.f32 %v5214, 1.702
        %v5385 = vmul.f32 %v5252, 1.702
        %v5386 = vmul.f32 %v5290, 1.702
        %v5387 = vmul.f32 %v5328, 1.702
        %v5388 = vmul.f32 %v5366, 1.702
        %v5389 = vmul.f32 %v5103, 1.702
        %v5390 = vmul.f32 %v5141, 1.702
        %v5391 = vmul.f32 %v5179, 1.702
        %v5392 = vmul.f32 %v5217, 1.702
        %v5393 = vmul.f32 %v5255, 1.702
        %v5394 = vmul.f32 %v5293, 1.702
        %v5395 = vmul.f32 %v5331, 1.702
        %v5396 = vmul.f32 %v5369, 1.702
        %v5397 = vmul.f32 %v5105, 1.702
        %v5398 = vmul.f32 %v5143, 1.702
        %v5399 = vmul.f32 %v5181, 1.702
        %v5400 = vmul.f32 %v5219, 1.702
        %v5401 = vmul.f32 %v5257, 1.702
        %v5402 = vmul.f32 %v5295, 1.702
        %v5403 = vmul.f32 %v5333, 1.702
        %v5404 = vmul.f32 %v5371, 1.702
        %v5405 = vxor.u32 %v5373, 2147483648
        %v5406 = vxor.u32 %v5374, 2147483648
        %v5407 = vxor.u32 %v5375, 2147483648
        %v5408 = vxor.u32 %v5376, 2147483648
        %v5409 = vxor.u32 %v5377, 2147483648
        %v5410 = vxor.u32 %v5378, 2147483648
        %v5411 = vxor.u32 %v5379, 2147483648
        %v5412 = vxor.u32 %v5380, 2147483648
        %v5413 = vxor.u32 %v5381, 2147483648
        %v5414 = vxor.u32 %v5382, 2147483648
        %v5415 = vxor.u32 %v5383, 2147483648
        %v5416 = vxor.u32 %v5384, 2147483648
        %v5417 = vxor.u32 %v5385, 2147483648
        %v5418 = vxor.u32 %v5386, 2147483648
        %v5419 = vxor.u32 %v5387, 2147483648
        %v5420 = vxor.u32 %v5388, 2147483648
        %v5421 = vxor.u32 %v5389, 2147483648
        %v5422 = vxor.u32 %v5390, 2147483648
        %v5423 = vxor.u32 %v5391, 2147483648
        %v5424 = vxor.u32 %v5392, 2147483648
        %v5425 = vxor.u32 %v5393, 2147483648
        %v5426 = vxor.u32 %v5394, 2147483648
        %v5427 = vxor.u32 %v5395, 2147483648
        %v5428 = vxor.u32 %v5396, 2147483648
        %v5429 = vxor.u32 %v5397, 2147483648
        %v5430 = vxor.u32 %v5398, 2147483648
        %v5431 = vxor.u32 %v5399, 2147483648
        %v5432 = vxor.u32 %v5400, 2147483648
        %v5433 = vxor.u32 %v5401, 2147483648
        %v5434 = vxor.u32 %v5402, 2147483648
        %v5435 = vxor.u32 %v5403, 2147483648
        %v5436 = vxor.u32 %v5404, 2147483648
        %v5437 = vmul.f32 %v5405, 1.442695
        %v5438 = vpow.pop %v5437
        %v5439 = vmul.f32 %v5406, 1.442695
        %v5440 = vpow.pop %v5439
        %v5441 = vmul.f32 %v5407, 1.442695
        %v5442 = vpow.pop %v5441
        %v5443 = vmul.f32 %v5408, 1.442695
        %v5444 = vpow.pop %v5443
        %v5445 = vmul.f32 %v5409, 1.442695
        %v5446 = vpow.pop %v5445
        %v5447 = vmul.f32 %v5410, 1.442695
        %v5448 = vpow.pop %v5447
        %v5449 = vmul.f32 %v5411, 1.442695
        %v5450 = vpow.pop %v5449
        %v5451 = vmul.f32 %v5412, 1.442695
        %v5452 = vpow.pop %v5451
        %v5453 = vmul.f32 %v5413, 1.442695
        %v5454 = vpow.pop %v5453
        %v5455 = vmul.f32 %v5414, 1.442695
        %v5456 = vpow.pop %v5455
        %v5457 = vmul.f32 %v5415, 1.442695
        %v5458 = vpow.pop %v5457
        %v5459 = vmul.f32 %v5416, 1.442695
        %v5460 = vpow.pop %v5459
        %v5461 = vmul.f32 %v5417, 1.442695
        %v5462 = vpow.pop %v5461
        %v5463 = vmul.f32 %v5418, 1.442695
        %v5464 = vpow.pop %v5463
        %v5465 = vmul.f32 %v5419, 1.442695
        %v5466 = vpow.pop %v5465
        %v5467 = vmul.f32 %v5420, 1.442695
        %v5468 = vpow.pop %v5467
        %v5469 = vmul.f32 %v5421, 1.442695
        %v5470 = vpow.pop %v5469
        %v5471 = vmul.f32 %v5422, 1.442695
        %v5472 = vpow.pop %v5471
        %v5473 = vmul.f32 %v5423, 1.442695
        %v5474 = vpow.pop %v5473
        %v5475 = vmul.f32 %v5424, 1.442695
        %v5476 = vpow.pop %v5475
        %v5477 = vmul.f32 %v5425, 1.442695
        %v5478 = vpow.pop %v5477
        %v5479 = vmul.f32 %v5426, 1.442695
        %v5480 = vpow.pop %v5479
        %v5481 = vmul.f32 %v5427, 1.442695
        %v5482 = vpow.pop %v5481
        %v5483 = vmul.f32 %v5428, 1.442695
        %v5484 = vpow.pop %v5483
        %v5485 = vmul.f32 %v5429, 1.442695
        %v5486 = vpow.pop %v5485
        %v5487 = vmul.f32 %v5430, 1.442695
        %v5488 = vpow.pop %v5487
        %v5489 = vmul.f32 %v5431, 1.442695
        %v5490 = vpow.pop %v5489
        %v5491 = vmul.f32 %v5432, 1.442695
        %v5492 = vpow.pop %v5491
        %v5493 = vmul.f32 %v5433, 1.442695
        %v5494 = vpow.pop %v5493
        %v5495 = vmul.f32 %v5434, 1.442695
        %v5496 = vpow.pop %v5495
        %v5497 = vmul.f32 %v5435, 1.442695
        %v5498 = vpow.pop %v5497
        %v5499 = vmul.f32 %v5436, 1.442695
        %v5500 = vpow.pop %v5499
        %v5501 = vadd.f32 %v5438, 1.0
        %v5502 = vadd.f32 %v5440, 1.0
        %v5503 = vadd.f32 %v5442, 1.0
        %v5504 = vadd.f32 %v5444, 1.0
        %v5505 = vadd.f32 %v5446, 1.0
        %v5506 = vadd.f32 %v5448, 1.0
        %v5507 = vadd.f32 %v5450, 1.0
        %v5508 = vadd.f32 %v5452, 1.0
        %v5509 = vadd.f32 %v5454, 1.0
        %v5510 = vadd.f32 %v5456, 1.0
        %v5511 = vadd.f32 %v5458, 1.0
        %v5512 = vadd.f32 %v5460, 1.0
        %v5513 = vadd.f32 %v5462, 1.0
        %v5514 = vadd.f32 %v5464, 1.0
        %v5515 = vadd.f32 %v5466, 1.0
        %v5516 = vadd.f32 %v5468, 1.0
        %v5517 = vadd.f32 %v5470, 1.0
        %v5518 = vadd.f32 %v5472, 1.0
        %v5519 = vadd.f32 %v5474, 1.0
        %v5520 = vadd.f32 %v5476, 1.0
        %v5521 = vadd.f32 %v5478, 1.0
        %v5522 = vadd.f32 %v5480, 1.0
        %v5523 = vadd.f32 %v5482, 1.0
        %v5524 = vadd.f32 %v5484, 1.0
        %v5525 = vadd.f32 %v5486, 1.0
        %v5526 = vadd.f32 %v5488, 1.0
        %v5527 = vadd.f32 %v5490, 1.0
        %v5528 = vadd.f32 %v5492, 1.0
        %v5529 = vadd.f32 %v5494, 1.0
        %v5530 = vadd.f32 %v5496, 1.0
        %v5531 = vadd.f32 %v5498, 1.0
        %v5532 = vadd.f32 %v5500, 1.0
        %v5533 = vrcp.pop %v5501
        %v5534 = vmul.f32 %v5501, %v5533
        %v5535 = vsub.f32 1.0, %v5534
        %v5536 = vmul.f32 %v5533, %v5535
        %v5537 = vadd.f32 %v5533, %v5536
        %vm5538 = vweird.f32 %v5501
        %vm5539 = vweird.f32 %v5533
        %vm5540 = vmor %vm5538, %vm5539
        %v5541 = vsel %vm5540, %v5533, %v5537
        %v5542 = vand.u32 2147483647, %v5501
        %vm5543 = vcmp.eq.f32.partialorder %v5542, 8.507059e+37
        %v5544 = vand.u32 %v5501, 2147483648
        %v5545 = vor.u32 1.1754944e-38, %v5544
        %v5546 = vsel %vm5543, %v5545, %v5541
        %v5547 = vmul.f32 1.0, %v5546
        %v5548 = vrcp.pop %v5502
        %v5549 = vmul.f32 %v5502, %v5548
        %v5550 = vsub.f32 1.0, %v5549
        %v5551 = vmul.f32 %v5548, %v5550
        %v5552 = vadd.f32 %v5548, %v5551
        %vm5553 = vweird.f32 %v5502
        %vm5554 = vweird.f32 %v5548
        %vm5555 = vmor %vm5553, %vm5554
        %v5556 = vsel %vm5555, %v5548, %v5552
        %v5557 = vand.u32 2147483647, %v5502
        %vm5558 = vcmp.eq.f32.partialorder %v5557, 8.507059e+37
        %v5559 = vand.u32 %v5502, 2147483648
        %v5560 = vor.u32 1.1754944e-38, %v5559
        %v5561 = vsel %vm5558, %v5560, %v5556
        %v5562 = vmul.f32 1.0, %v5561
        %v5563 = vrcp.pop %v5503
        %v5564 = vmul.f32 %v5503, %v5563
        %v5565 = vsub.f32 1.0, %v5564
        %v5566 = vmul.f32 %v5563, %v5565
        %v5567 = vadd.f32 %v5563, %v5566
        %vm5568 = vweird.f32 %v5503
        %vm5569 = vweird.f32 %v5563
        %vm5570 = vmor %vm5568, %vm5569
        %v5571 = vsel %vm5570, %v5563, %v5567
        %v5572 = vand.u32 2147483647, %v5503
        %vm5573 = vcmp.eq.f32.partialorder %v5572, 8.507059e+37
        %v5574 = vand.u32 %v5503, 2147483648
        %v5575 = vor.u32 1.1754944e-38, %v5574
        %v5576 = vsel %vm5573, %v5575, %v5571
        %v5577 = vmul.f32 1.0, %v5576
        %v5578 = vrcp.pop %v5504
        %v5579 = vmul.f32 %v5504, %v5578
        %v5580 = vsub.f32 1.0, %v5579
        %v5581 = vmul.f32 %v5578, %v5580
        %v5582 = vadd.f32 %v5578, %v5581
        %vm5583 = vweird.f32 %v5504
        %vm5584 = vweird.f32 %v5578
        %vm5585 = vmor %vm5583, %vm5584
        %v5586 = vsel %vm5585, %v5578, %v5582
        %v5587 = vand.u32 2147483647, %v5504
        %vm5588 = vcmp.eq.f32.partialorder %v5587, 8.507059e+37
        %v5589 = vand.u32 %v5504, 2147483648
        %v5590 = vor.u32 1.1754944e-38, %v5589
        %v5591 = vsel %vm5588, %v5590, %v5586
        %v5592 = vmul.f32 1.0, %v5591
        %v5593 = vrcp.pop %v5505
        %v5594 = vmul.f32 %v5505, %v5593
        %v5595 = vsub.f32 1.0, %v5594
        %v5596 = vmul.f32 %v5593, %v5595
        %v5597 = vadd.f32 %v5593, %v5596
        %vm5598 = vweird.f32 %v5505
        %vm5599 = vweird.f32 %v5593
        %vm5600 = vmor %vm5598, %vm5599
        %v5601 = vsel %vm5600, %v5593, %v5597
        %v5602 = vand.u32 2147483647, %v5505
        %vm5603 = vcmp.eq.f32.partialorder %v5602, 8.507059e+37
        %v5604 = vand.u32 %v5505, 2147483648
        %v5605 = vor.u32 1.1754944e-38, %v5604
        %v5606 = vsel %vm5603, %v5605, %v5601
        %v5607 = vmul.f32 1.0, %v5606
        %v5608 = vrcp.pop %v5506
        %v5609 = vmul.f32 %v5506, %v5608
        %v5610 = vsub.f32 1.0, %v5609
        %v5611 = vmul.f32 %v5608, %v5610
        %v5612 = vadd.f32 %v5608, %v5611
        %vm5613 = vweird.f32 %v5506
        %vm5614 = vweird.f32 %v5608
        %vm5615 = vmor %vm5613, %vm5614
        %v5616 = vsel %vm5615, %v5608, %v5612
        %v5617 = vand.u32 2147483647, %v5506
        %vm5618 = vcmp.eq.f32.partialorder %v5617, 8.507059e+37
        %v5619 = vand.u32 %v5506, 2147483648
        %v5620 = vor.u32 1.1754944e-38, %v5619
        %v5621 = vsel %vm5618, %v5620, %v5616
        %v5622 = vmul.f32 1.0, %v5621
        %v5623 = vrcp.pop %v5507
        %v5624 = vmul.f32 %v5507, %v5623
        %v5625 = vsub.f32 1.0, %v5624
        %v5626 = vmul.f32 %v5623, %v5625
        %v5627 = vadd.f32 %v5623, %v5626
        %vm5628 = vweird.f32 %v5507
        %vm5629 = vweird.f32 %v5623
        %vm5630 = vmor %vm5628, %vm5629
        %v5631 = vsel %vm5630, %v5623, %v5627
        %v5632 = vand.u32 2147483647, %v5507
        %vm5633 = vcmp.eq.f32.partialorder %v5632, 8.507059e+37
        %v5634 = vand.u32 %v5507, 2147483648
        %v5635 = vor.u32 1.1754944e-38, %v5634
        %v5636 = vsel %vm5633, %v5635, %v5631
        %v5637 = vmul.f32 1.0, %v5636
        %v5638 = vrcp.pop %v5508
        %v5639 = vmul.f32 %v5508, %v5638
        %v5640 = vsub.f32 1.0, %v5639
        %v5641 = vmul.f32 %v5638, %v5640
        %v5642 = vadd.f32 %v5638, %v5641
        %vm5643 = vweird.f32 %v5508
        %vm5644 = vweird.f32 %v5638
        %vm5645 = vmor %vm5643, %vm5644
        %v5646 = vsel %vm5645, %v5638, %v5642
        %v5647 = vand.u32 2147483647, %v5508
        %vm5648 = vcmp.eq.f32.partialorder %v5647, 8.507059e+37
        %v5649 = vand.u32 %v5508, 2147483648
        %v5650 = vor.u32 1.1754944e-38, %v5649
        %v5651 = vsel %vm5648, %v5650, %v5646
        %v5652 = vmul.f32 1.0, %v5651
        %v5653 = vrcp.pop %v5509
        %v5654 = vmul.f32 %v5509, %v5653
        %v5655 = vsub.f32 1.0, %v5654
        %v5656 = vmul.f32 %v5653, %v5655
        %v5657 = vadd.f32 %v5653, %v5656
        %vm5658 = vweird.f32 %v5509
        %vm5659 = vweird.f32 %v5653
        %vm5660 = vmor %vm5658, %vm5659
        %v5661 = vsel %vm5660, %v5653, %v5657
        %v5662 = vand.u32 2147483647, %v5509
        %vm5663 = vcmp.eq.f32.partialorder %v5662, 8.507059e+37
        %v5664 = vand.u32 %v5509, 2147483648
        %v5665 = vor.u32 1.1754944e-38, %v5664
        %v5666 = vsel %vm5663, %v5665, %v5661
        %v5667 = vmul.f32 1.0, %v5666
        %v5668 = vrcp.pop %v5510
        %v5669 = vmul.f32 %v5510, %v5668
        %v5670 = vsub.f32 1.0, %v5669
        %v5671 = vmul.f32 %v5668, %v5670
        %v5672 = vadd.f32 %v5668, %v5671
        %vm5673 = vweird.f32 %v5510
        %vm5674 = vweird.f32 %v5668
        %vm5675 = vmor %vm5673, %vm5674
        %v5676 = vsel %vm5675, %v5668, %v5672
        %v5677 = vand.u32 2147483647, %v5510
        %vm5678 = vcmp.eq.f32.partialorder %v5677, 8.507059e+37
        %v5679 = vand.u32 %v5510, 2147483648
        %v5680 = vor.u32 1.1754944e-38, %v5679
        %v5681 = vsel %vm5678, %v5680, %v5676
        %v5682 = vmul.f32 1.0, %v5681
        %v5683 = vrcp.pop %v5511
        %v5684 = vmul.f32 %v5511, %v5683
        %v5685 = vsub.f32 1.0, %v5684
        %v5686 = vmul.f32 %v5683, %v5685
        %v5687 = vadd.f32 %v5683, %v5686
        %vm5688 = vweird.f32 %v5511
        %vm5689 = vweird.f32 %v5683
        %vm5690 = vmor %vm5688, %vm5689
        %v5691 = vsel %vm5690, %v5683, %v5687
        %v5692 = vand.u32 2147483647, %v5511
        %vm5693 = vcmp.eq.f32.partialorder %v5692, 8.507059e+37
        %v5694 = vand.u32 %v5511, 2147483648
        %v5695 = vor.u32 1.1754944e-38, %v5694
        %v5696 = vsel %vm5693, %v5695, %v5691
        %v5697 = vmul.f32 1.0, %v5696
        %v5698 = vrcp.pop %v5512
        %v5699 = vmul.f32 %v5512, %v5698
        %v5700 = vsub.f32 1.0, %v5699
        %v5701 = vmul.f32 %v5698, %v5700
        %v5702 = vadd.f32 %v5698, %v5701
        %vm5703 = vweird.f32 %v5512
        %vm5704 = vweird.f32 %v5698
        %vm5705 = vmor %vm5703, %vm5704
        %v5706 = vsel %vm5705, %v5698, %v5702
        %v5707 = vand.u32 2147483647, %v5512
        %vm5708 = vcmp.eq.f32.partialorder %v5707, 8.507059e+37
        %v5709 = vand.u32 %v5512, 2147483648
        %v5710 = vor.u32 1.1754944e-38, %v5709
        %v5711 = vsel %vm5708, %v5710, %v5706
        %v5712 = vmul.f32 1.0, %v5711
        %v5713 = vrcp.pop %v5513
        %v5714 = vmul.f32 %v5513, %v5713
        %v5715 = vsub.f32 1.0, %v5714
        %v5716 = vmul.f32 %v5713, %v5715
        %v5717 = vadd.f32 %v5713, %v5716
        %vm5718 = vweird.f32 %v5513
        %vm5719 = vweird.f32 %v5713
        %vm5720 = vmor %vm5718, %vm5719
        %v5721 = vsel %vm5720, %v5713, %v5717
        %v5722 = vand.u32 2147483647, %v5513
        %vm5723 = vcmp.eq.f32.partialorder %v5722, 8.507059e+37
        %v5724 = vand.u32 %v5513, 2147483648
        %v5725 = vor.u32 1.1754944e-38, %v5724
        %v5726 = vsel %vm5723, %v5725, %v5721
        %v5727 = vmul.f32 1.0, %v5726
        %v5728 = vrcp.pop %v5514
        %v5729 = vmul.f32 %v5514, %v5728
        %v5730 = vsub.f32 1.0, %v5729
        %v5731 = vmul.f32 %v5728, %v5730
        %v5732 = vadd.f32 %v5728, %v5731
        %vm5733 = vweird.f32 %v5514
        %vm5734 = vweird.f32 %v5728
        %vm5735 = vmor %vm5733, %vm5734
        %v5736 = vsel %vm5735, %v5728, %v5732
        %v5737 = vand.u32 2147483647, %v5514
        %vm5738 = vcmp.eq.f32.partialorder %v5737, 8.507059e+37
        %v5739 = vand.u32 %v5514, 2147483648
        %v5740 = vor.u32 1.1754944e-38, %v5739
        %v5741 = vsel %vm5738, %v5740, %v5736
        %v5742 = vmul.f32 1.0, %v5741
        %v5743 = vrcp.pop %v5515
        %v5744 = vmul.f32 %v5515, %v5743
        %v5745 = vsub.f32 1.0, %v5744
        %v5746 = vmul.f32 %v5743, %v5745
        %v5747 = vadd.f32 %v5743, %v5746
        %vm5748 = vweird.f32 %v5515
        %vm5749 = vweird.f32 %v5743
        %vm5750 = vmor %vm5748, %vm5749
        %v5751 = vsel %vm5750, %v5743, %v5747
        %v5752 = vand.u32 2147483647, %v5515
        %vm5753 = vcmp.eq.f32.partialorder %v5752, 8.507059e+37
        %v5754 = vand.u32 %v5515, 2147483648
        %v5755 = vor.u32 1.1754944e-38, %v5754
        %v5756 = vsel %vm5753, %v5755, %v5751
        %v5757 = vmul.f32 1.0, %v5756
        %v5758 = vrcp.pop %v5516
        %v5759 = vmul.f32 %v5516, %v5758
        %v5760 = vsub.f32 1.0, %v5759
        %v5761 = vmul.f32 %v5758, %v5760
        %v5762 = vadd.f32 %v5758, %v5761
        %vm5763 = vweird.f32 %v5516
        %vm5764 = vweird.f32 %v5758
        %vm5765 = vmor %vm5763, %vm5764
        %v5766 = vsel %vm5765, %v5758, %v5762
        %v5767 = vand.u32 2147483647, %v5516
        %vm5768 = vcmp.eq.f32.partialorder %v5767, 8.507059e+37
        %v5769 = vand.u32 %v5516, 2147483648
        %v5770 = vor.u32 1.1754944e-38, %v5769
        %v5771 = vsel %vm5768, %v5770, %v5766
        %v5772 = vmul.f32 1.0, %v5771
        %v5773 = vrcp.pop %v5517
        %v5774 = vmul.f32 %v5517, %v5773
        %v5775 = vsub.f32 1.0, %v5774
        %v5776 = vmul.f32 %v5773, %v5775
        %v5777 = vadd.f32 %v5773, %v5776
        %vm5778 = vweird.f32 %v5517
        %vm5779 = vweird.f32 %v5773
        %vm5780 = vmor %vm5778, %vm5779
        %v5781 = vsel %vm5780, %v5773, %v5777
        %v5782 = vand.u32 2147483647, %v5517
        %vm5783 = vcmp.eq.f32.partialorder %v5782, 8.507059e+37
        %v5784 = vand.u32 %v5517, 2147483648
        %v5785 = vor.u32 1.1754944e-38, %v5784
        %v5786 = vsel %vm5783, %v5785, %v5781
        %v5787 = vmul.f32 1.0, %v5786
        %v5788 = vrcp.pop %v5518
        %v5789 = vmul.f32 %v5518, %v5788
        %v5790 = vsub.f32 1.0, %v5789
        %v5791 = vmul.f32 %v5788, %v5790
        %v5792 = vadd.f32 %v5788, %v5791
        %vm5793 = vweird.f32 %v5518
        %vm5794 = vweird.f32 %v5788
        %vm5795 = vmor %vm5793, %vm5794
        %v5796 = vsel %vm5795, %v5788, %v5792
        %v5797 = vand.u32 2147483647, %v5518
        %vm5798 = vcmp.eq.f32.partialorder %v5797, 8.507059e+37
        %v5799 = vand.u32 %v5518, 2147483648
        %v5800 = vor.u32 1.1754944e-38, %v5799
        %v5801 = vsel %vm5798, %v5800, %v5796
        %v5802 = vmul.f32 1.0, %v5801
        %v5803 = vrcp.pop %v5519
        %v5804 = vmul.f32 %v5519, %v5803
        %v5805 = vsub.f32 1.0, %v5804
        %v5806 = vmul.f32 %v5803, %v5805
        %v5807 = vadd.f32 %v5803, %v5806
        %vm5808 = vweird.f32 %v5519
        %vm5809 = vweird.f32 %v5803
        %vm5810 = vmor %vm5808, %vm5809
        %v5811 = vsel %vm5810, %v5803, %v5807
        %v5812 = vand.u32 2147483647, %v5519
        %vm5813 = vcmp.eq.f32.partialorder %v5812, 8.507059e+37
        %v5814 = vand.u32 %v5519, 2147483648
        %v5815 = vor.u32 1.1754944e-38, %v5814
        %v5816 = vsel %vm5813, %v5815, %v5811
        %v5817 = vmul.f32 1.0, %v5816
        %v5818 = vrcp.pop %v5520
        %v5819 = vmul.f32 %v5520, %v5818
        %v5820 = vsub.f32 1.0, %v5819
        %v5821 = vmul.f32 %v5818, %v5820
        %v5822 = vadd.f32 %v5818, %v5821
        %vm5823 = vweird.f32 %v5520
        %vm5824 = vweird.f32 %v5818
        %vm5825 = vmor %vm5823, %vm5824
        %v5826 = vsel %vm5825, %v5818, %v5822
        %v5827 = vand.u32 2147483647, %v5520
        %vm5828 = vcmp.eq.f32.partialorder %v5827, 8.507059e+37
        %v5829 = vand.u32 %v5520, 2147483648
        %v5830 = vor.u32 1.1754944e-38, %v5829
        %v5831 = vsel %vm5828, %v5830, %v5826
        %v5832 = vmul.f32 1.0, %v5831
        %v5833 = vrcp.pop %v5521
        %v5834 = vmul.f32 %v5521, %v5833
        %v5835 = vsub.f32 1.0, %v5834
        %v5836 = vmul.f32 %v5833, %v5835
        %v5837 = vadd.f32 %v5833, %v5836
        %vm5838 = vweird.f32 %v5521
        %vm5839 = vweird.f32 %v5833
        %vm5840 = vmor %vm5838, %vm5839
        %v5841 = vsel %vm5840, %v5833, %v5837
        %v5842 = vand.u32 2147483647, %v5521
        %vm5843 = vcmp.eq.f32.partialorder %v5842, 8.507059e+37
        %v5844 = vand.u32 %v5521, 2147483648
        %v5845 = vor.u32 1.1754944e-38, %v5844
        %v5846 = vsel %vm5843, %v5845, %v5841
        %v5847 = vmul.f32 1.0, %v5846
        %v5848 = vrcp.pop %v5522
        %v5849 = vmul.f32 %v5522, %v5848
        %v5850 = vsub.f32 1.0, %v5849
        %v5851 = vmul.f32 %v5848, %v5850
        %v5852 = vadd.f32 %v5848, %v5851
        %vm5853 = vweird.f32 %v5522
        %vm5854 = vweird.f32 %v5848
        %vm5855 = vmor %vm5853, %vm5854
        %v5856 = vsel %vm5855, %v5848, %v5852
        %v5857 = vand.u32 2147483647, %v5522
        %vm5858 = vcmp.eq.f32.partialorder %v5857, 8.507059e+37
        %v5859 = vand.u32 %v5522, 2147483648
        %v5860 = vor.u32 1.1754944e-38, %v5859
        %v5861 = vsel %vm5858, %v5860, %v5856
        %v5862 = vmul.f32 1.0, %v5861
        %v5863 = vrcp.pop %v5523
        %v5864 = vmul.f32 %v5523, %v5863
        %v5865 = vsub.f32 1.0, %v5864
        %v5866 = vmul.f32 %v5863, %v5865
        %v5867 = vadd.f32 %v5863, %v5866
        %vm5868 = vweird.f32 %v5523
        %vm5869 = vweird.f32 %v5863
        %vm5870 = vmor %vm5868, %vm5869
        %v5871 = vsel %vm5870, %v5863, %v5867
        %v5872 = vand.u32 2147483647, %v5523
        %vm5873 = vcmp.eq.f32.partialorder %v5872, 8.507059e+37
        %v5874 = vand.u32 %v5523, 2147483648
        %v5875 = vor.u32 1.1754944e-38, %v5874
        %v5876 = vsel %vm5873, %v5875, %v5871
        %v5877 = vmul.f32 1.0, %v5876
        %v5878 = vrcp.pop %v5524
        %v5879 = vmul.f32 %v5524, %v5878
        %v5880 = vsub.f32 1.0, %v5879
        %v5881 = vmul.f32 %v5878, %v5880
        %v5882 = vadd.f32 %v5878, %v5881
        %vm5883 = vweird.f32 %v5524
        %vm5884 = vweird.f32 %v5878
        %vm5885 = vmor %vm5883, %vm5884
        %v5886 = vsel %vm5885, %v5878, %v5882
        %v5887 = vand.u32 2147483647, %v5524
        %vm5888 = vcmp.eq.f32.partialorder %v5887, 8.507059e+37
        %v5889 = vand.u32 %v5524, 2147483648
        %v5890 = vor.u32 1.1754944e-38, %v5889
        %v5891 = vsel %vm5888, %v5890, %v5886
        %v5892 = vmul.f32 1.0, %v5891
        %v5893 = vrcp.pop %v5525
        %v5894 = vmul.f32 %v5525, %v5893
        %v5895 = vsub.f32 1.0, %v5894
        %v5896 = vmul.f32 %v5893, %v5895
        %v5897 = vadd.f32 %v5893, %v5896
        %vm5898 = vweird.f32 %v5525
        %vm5899 = vweird.f32 %v5893
        %vm5900 = vmor %vm5898, %vm5899
        %v5901 = vsel %vm5900, %v5893, %v5897
        %v5902 = vand.u32 2147483647, %v5525
        %vm5903 = vcmp.eq.f32.partialorder %v5902, 8.507059e+37
        %v5904 = vand.u32 %v5525, 2147483648
        %v5905 = vor.u32 1.1754944e-38, %v5904
        %v5906 = vsel %vm5903, %v5905, %v5901
        %v5907 = vmul.f32 1.0, %v5906
        %v5908 = vrcp.pop %v5526
        %v5909 = vmul.f32 %v5526, %v5908
        %v5910 = vsub.f32 1.0, %v5909
        %v5911 = vmul.f32 %v5908, %v5910
        %v5912 = vadd.f32 %v5908, %v5911
        %vm5913 = vweird.f32 %v5526
        %vm5914 = vweird.f32 %v5908
        %vm5915 = vmor %vm5913, %vm5914
        %v5916 = vsel %vm5915, %v5908, %v5912
        %v5917 = vand.u32 2147483647, %v5526
        %vm5918 = vcmp.eq.f32.partialorder %v5917, 8.507059e+37
        %v5919 = vand.u32 %v5526, 2147483648
        %v5920 = vor.u32 1.1754944e-38, %v5919
        %v5921 = vsel %vm5918, %v5920, %v5916
        %v5922 = vmul.f32 1.0, %v5921
        %v5923 = vrcp.pop %v5527
        %v5924 = vmul.f32 %v5527, %v5923
        %v5925 = vsub.f32 1.0, %v5924
        %v5926 = vmul.f32 %v5923, %v5925
        %v5927 = vadd.f32 %v5923, %v5926
        %vm5928 = vweird.f32 %v5527
        %vm5929 = vweird.f32 %v5923
        %vm5930 = vmor %vm5928, %vm5929
        %v5931 = vsel %vm5930, %v5923, %v5927
        %v5932 = vand.u32 2147483647, %v5527
        %vm5933 = vcmp.eq.f32.partialorder %v5932, 8.507059e+37
        %v5934 = vand.u32 %v5527, 2147483648
        %v5935 = vor.u32 1.1754944e-38, %v5934
        %v5936 = vsel %vm5933, %v5935, %v5931
        %v5937 = vmul.f32 1.0, %v5936
        %v5938 = vrcp.pop %v5528
        %v5939 = vmul.f32 %v5528, %v5938
        %v5940 = vsub.f32 1.0, %v5939
        %v5941 = vmul.f32 %v5938, %v5940
        %v5942 = vadd.f32 %v5938, %v5941
        %vm5943 = vweird.f32 %v5528
        %vm5944 = vweird.f32 %v5938
        %vm5945 = vmor %vm5943, %vm5944
        %v5946 = vsel %vm5945, %v5938, %v5942
        %v5947 = vand.u32 2147483647, %v5528
        %vm5948 = vcmp.eq.f32.partialorder %v5947, 8.507059e+37
        %v5949 = vand.u32 %v5528, 2147483648
        %v5950 = vor.u32 1.1754944e-38, %v5949
        %v5951 = vsel %vm5948, %v5950, %v5946
        %v5952 = vmul.f32 1.0, %v5951
        %v5953 = vrcp.pop %v5529
        %v5954 = vmul.f32 %v5529, %v5953
        %v5955 = vsub.f32 1.0, %v5954
        %v5956 = vmul.f32 %v5953, %v5955
        %v5957 = vadd.f32 %v5953, %v5956
        %vm5958 = vweird.f32 %v5529
        %vm5959 = vweird.f32 %v5953
        %vm5960 = vmor %vm5958, %vm5959
        %v5961 = vsel %vm5960, %v5953, %v5957
        %v5962 = vand.u32 2147483647, %v5529
        %vm5963 = vcmp.eq.f32.partialorder %v5962, 8.507059e+37
        %v5964 = vand.u32 %v5529, 2147483648
        %v5965 = vor.u32 1.1754944e-38, %v5964
        %v5966 = vsel %vm5963, %v5965, %v5961
        %v5967 = vmul.f32 1.0, %v5966
        %v5968 = vrcp.pop %v5530
        %v5969 = vmul.f32 %v5530, %v5968
        %v5970 = vsub.f32 1.0, %v5969
        %v5971 = vmul.f32 %v5968, %v5970
        %v5972 = vadd.f32 %v5968, %v5971
        %vm5973 = vweird.f32 %v5530
        %vm5974 = vweird.f32 %v5968
        %vm5975 = vmor %vm5973, %vm5974
        %v5976 = vsel %vm5975, %v5968, %v5972
        %v5977 = vand.u32 2147483647, %v5530
        %vm5978 = vcmp.eq.f32.partialorder %v5977, 8.507059e+37
        %v5979 = vand.u32 %v5530, 2147483648
        %v5980 = vor.u32 1.1754944e-38, %v5979
        %v5981 = vsel %vm5978, %v5980, %v5976
        %v5982 = vmul.f32 1.0, %v5981
        %v5983 = vrcp.pop %v5531
        %v5984 = vmul.f32 %v5531, %v5983
        %v5985 = vsub.f32 1.0, %v5984
        %v5986 = vmul.f32 %v5983, %v5985
        %v5987 = vadd.f32 %v5983, %v5986
        %vm5988 = vweird.f32 %v5531
        %vm5989 = vweird.f32 %v5983
        %vm5990 = vmor %vm5988, %vm5989
        %v5991 = vsel %vm5990, %v5983, %v5987
        %v5992 = vand.u32 2147483647, %v5531
        %vm5993 = vcmp.eq.f32.partialorder %v5992, 8.507059e+37
        %v5994 = vand.u32 %v5531, 2147483648
        %v5995 = vor.u32 1.1754944e-38, %v5994
        %v5996 = vsel %vm5993, %v5995, %v5991
        %v5997 = vmul.f32 1.0, %v5996
        %v5998 = vrcp.pop %v5532
        %v5999 = vmul.f32 %v5532, %v5998
        %v6000 = vsub.f32 1.0, %v5999
        %v6001 = vmul.f32 %v5998, %v6000
        %v6002 = vadd.f32 %v5998, %v6001
        %vm6003 = vweird.f32 %v5532
        %vm6004 = vweird.f32 %v5998
        %vm6005 = vmor %vm6003, %vm6004
        %v6006 = vsel %vm6005, %v5998, %v6002
        %v6007 = vand.u32 2147483647, %v5532
        %vm6008 = vcmp.eq.f32.partialorder %v6007, 8.507059e+37
        %v6009 = vand.u32 %v5532, 2147483648
        %v6010 = vor.u32 1.1754944e-38, %v6009
        %v6011 = vsel %vm6008, %v6010, %v6006
        %v6012 = vmul.f32 1.0, %v6011
        %v6013 = vmul.f32 %v5098, %v5547
        %v6014 = vmul.f32 %v5136, %v5562
        %v6015 = vmul.f32 %v5174, %v5577
        %v6016 = vmul.f32 %v5212, %v5592
        %v6017 = vmul.f32 %v5250, %v5607
        %v6018 = vmul.f32 %v5288, %v5622
        %v6019 = vmul.f32 %v5326, %v5637
        %v6020 = vmul.f32 %v5364, %v5652
        %v6021 = vmul.f32 %v5100, %v5667
        %v6022 = vmul.f32 %v5138, %v5682
        %v6023 = vmul.f32 %v5176, %v5697
        %v6024 = vmul.f32 %v5214, %v5712
        %v6025 = vmul.f32 %v5252, %v5727
        %v6026 = vmul.f32 %v5290, %v5742
        %v6027 = vmul.f32 %v5328, %v5757
        %v6028 = vmul.f32 %v5366, %v5772
        %v6029 = vmul.f32 %v5103, %v5787
        %v6030 = vmul.f32 %v5141, %v5802
        %v6031 = vmul.f32 %v5179, %v5817
        %v6032 = vmul.f32 %v5217, %v5832
        %v6033 = vmul.f32 %v5255, %v5847
        %v6034 = vmul.f32 %v5293, %v5862
        %v6035 = vmul.f32 %v5331, %v5877
        %v6036 = vmul.f32 %v5369, %v5892
        %v6037 = vmul.f32 %v5105, %v5907
        %v6038 = vmul.f32 %v5143, %v5922
        %v6039 = vmul.f32 %v5181, %v5937
        %v6040 = vmul.f32 %v5219, %v5952
        %v6041 = vmul.f32 %v5257, %v5967
        %v6042 = vmul.f32 %v5295, %v5982
        %v6043 = vmul.f32 %v5333, %v5997
        %v6044 = vmul.f32 %v5371, %v6012
        %v6045 = vld [vmem:[#allocation2] sm:$0xff]
        %v6046 = vld [vmem:[#allocation2 + $0x8] sm:$0xff]
        %v6047 = vld [vmem:[#allocation2 + $0x10] sm:$0xff]
        %v6048 = vld [vmem:[#allocation2 + $0x18] sm:$0xff]
        %v6049 = vld [vmem:[#allocation2 + $0x20] sm:$0xff]
        %v6050 = vld [vmem:[#allocation2 + $0x28] sm:$0xff]
        %v6051 = vld [vmem:[#allocation2 + $0x30] sm:$0xff]
        %v6052 = vld [vmem:[#allocation2 + $0x38] sm:$0xff]
        %v6053 = vpack.c.bf16 %v6021, %v6013
        %v6054 = vpack.c.bf16 %v6022, %v6014
        %v6055 = vpack.c.bf16 %v6023, %v6015
        %v6056 = vpack.c.bf16 %v6024, %v6016
        %v6057 = vpack.c.bf16 %v6025, %v6017
        %v6058 = vpack.c.bf16 %v6026, %v6018
        %v6059 = vpack.c.bf16 %v6027, %v6019
        %v6060 = vpack.c.bf16 %v6028, %v6020
        %v6061 = vpack.c.bf16 %v6037, %v6029
        %v6062 = vpack.c.bf16 %v6038, %v6030
        %v6063 = vpack.c.bf16 %v6039, %v6031
        %v6064 = vpack.c.bf16 %v6040, %v6032
        %v6065 = vpack.c.bf16 %v6041, %v6033
        %v6066 = vpack.c.bf16 %v6042, %v6034
        %v6067 = vpack.c.bf16 %v6043, %v6035
        %v6068 = vpack.c.bf16 %v6044, %v6036
        %v6069 = vld [vmem:[%s792] sm:$0xff]
        %v6070 = vld [vmem:[%s792 + $0x8] sm:$0xff]
        %v6071 = vld [vmem:[%s792 + $0x10] sm:$0xff]
        %v6072 = vld [vmem:[%s792 + $0x18] sm:$0xff]
        %v6073 = vld [vmem:[%s792 + $0x20] sm:$0xff]
        %v6074 = vld [vmem:[%s792 + $0x28] sm:$0xff]
        %v6075 = vld [vmem:[%s792 + $0x30] sm:$0xff]
        %v6076 = vld [vmem:[%s792 + $0x38] sm:$0xff]
        %v6077 = vld [vmem:[%s792 + $0x40] sm:$0xff]
        %v6078 = vld [vmem:[%s792 + $0x48] sm:$0xff]
        %v6079 = vld [vmem:[%s792 + $0x50] sm:$0xff]
        %v6080 = vld [vmem:[%s792 + $0x58] sm:$0xff]
        %v6081 = vld [vmem:[%s792 + $0x60] sm:$0xff]
        %v6082 = vld [vmem:[%s792 + $0x68] sm:$0xff]
        %v6083 = vld [vmem:[%s792 + $0x70] sm:$0xff]
        %v6084 = vld [vmem:[%s792 + $0x78] sm:$0xff]
        %v6085 = vld [vmem:[%s792 + $0x80] sm:$0xff]
        %v6086 = vld [vmem:[%s792 + $0x88] sm:$0xff]
        %v6087 = vld [vmem:[%s792 + $0x90] sm:$0xff]
        %v6088 = vld [vmem:[%s792 + $0x98] sm:$0xff]
        %v6089 = vld [vmem:[%s792 + $0xa0] sm:$0xff]
        %v6090 = vld [vmem:[%s792 + $0xa8] sm:$0xff]
        %v6091 = vld [vmem:[%s792 + $0xb0] sm:$0xff]
        %v6092 = vld [vmem:[%s792 + $0xb8] sm:$0xff]
        %v6093 = vld [vmem:[%s792 + $0xc0] sm:$0xff]
        %v6094 = vld [vmem:[%s792 + $0xc8] sm:$0xff]
        %v6095 = vld [vmem:[%s792 + $0xd0] sm:$0xff]
        %v6096 = vld [vmem:[%s792 + $0xd8] sm:$0xff]
        %v6097 = vld [vmem:[%s792 + $0xe0] sm:$0xff]
        %v6098 = vld [vmem:[%s792 + $0xe8] sm:$0xff]
        %v6099 = vld [vmem:[%s792 + $0xf0] sm:$0xff]
        %v6100 = vld [vmem:[%s792 + $0xf8] sm:$0xff]
        %v6101 = vld [vmem:[%s792 + $0x100] sm:$0xff]
        %v6102 = vld [vmem:[%s792 + $0x108] sm:$0xff]
        %v6103 = vld [vmem:[%s792 + $0x110] sm:$0xff]
        %v6104 = vld [vmem:[%s792 + $0x118] sm:$0xff]
        %v6105 = vld [vmem:[%s792 + $0x120] sm:$0xff]
        %v6106 = vld [vmem:[%s792 + $0x128] sm:$0xff]
        %v6107 = vld [vmem:[%s792 + $0x130] sm:$0xff]
        %v6108 = vld [vmem:[%s792 + $0x138] sm:$0xff]
        %v6109 = vld [vmem:[%s792 + $0x140] sm:$0xff]
        %v6110 = vld [vmem:[%s792 + $0x148] sm:$0xff]
        %v6111 = vld [vmem:[%s792 + $0x150] sm:$0xff]
        %v6112 = vld [vmem:[%s792 + $0x158] sm:$0xff]
        %v6113 = vld [vmem:[%s792 + $0x160] sm:$0xff]
        %v6114 = vld [vmem:[%s792 + $0x168] sm:$0xff]
        %v6115 = vld [vmem:[%s792 + $0x170] sm:$0xff]
        %v6116 = vld [vmem:[%s792 + $0x178] sm:$0xff]
        %v6117 = vld [vmem:[%s792 + $0x180] sm:$0xff]
        %v6118 = vld [vmem:[%s792 + $0x188] sm:$0xff]
        %v6119 = vld [vmem:[%s792 + $0x190] sm:$0xff]
        %v6120 = vld [vmem:[%s792 + $0x198] sm:$0xff]
        %v6121 = vld [vmem:[%s792 + $0x1a0] sm:$0xff]
        %v6122 = vld [vmem:[%s792 + $0x1a8] sm:$0xff]
        %v6123 = vld [vmem:[%s792 + $0x1b0] sm:$0xff]
        %v6124 = vld [vmem:[%s792 + $0x1b8] sm:$0xff]
        %v6125 = vld [vmem:[%s792 + $0x1c0] sm:$0xff]
        %v6126 = vld [vmem:[%s792 + $0x1c8] sm:$0xff]
        %v6127 = vld [vmem:[%s792 + $0x1d0] sm:$0xff]
        %v6128 = vld [vmem:[%s792 + $0x1d8] sm:$0xff]
        %v6129 = vld [vmem:[%s792 + $0x1e0] sm:$0xff]
        %v6130 = vld [vmem:[%s792 + $0x1e8] sm:$0xff]
        %v6131 = vld [vmem:[%s792 + $0x1f0] sm:$0xff]
        %v6132 = vld [vmem:[%s792 + $0x1f8] sm:$0xff]
        %v6133 = vld [vmem:[%s792 + $0x200] sm:$0xff]
        %v6134 = vld [vmem:[%s792 + $0x208] sm:$0xff]
        %v6135 = vld [vmem:[%s792 + $0x210] sm:$0xff]
        %v6136 = vld [vmem:[%s792 + $0x218] sm:$0xff]
        %v6137 = vld [vmem:[%s792 + $0x220] sm:$0xff]
        %v6138 = vld [vmem:[%s792 + $0x228] sm:$0xff]
        %v6139 = vld [vmem:[%s792 + $0x230] sm:$0xff]
        %v6140 = vld [vmem:[%s792 + $0x238] sm:$0xff]
        %v6141 = vld [vmem:[%s792 + $0x240] sm:$0xff]
        %v6142 = vld [vmem:[%s792 + $0x248] sm:$0xff]
        %v6143 = vld [vmem:[%s792 + $0x250] sm:$0xff]
        %v6144 = vld [vmem:[%s792 + $0x258] sm:$0xff]
        %v6145 = vld [vmem:[%s792 + $0x260] sm:$0xff]
        %v6146 = vld [vmem:[%s792 + $0x268] sm:$0xff]
        %v6147 = vld [vmem:[%s792 + $0x270] sm:$0xff]
        %v6148 = vld [vmem:[%s792 + $0x278] sm:$0xff]
        %v6149 = vld [vmem:[%s792 + $0x280] sm:$0xff]
        %v6150 = vld [vmem:[%s792 + $0x288] sm:$0xff]
        %v6151 = vld [vmem:[%s792 + $0x290] sm:$0xff]
        %v6152 = vld [vmem:[%s792 + $0x298] sm:$0xff]
        %v6153 = vld [vmem:[%s792 + $0x2a0] sm:$0xff]
        %v6154 = vld [vmem:[%s792 + $0x2a8] sm:$0xff]
        %v6155 = vld [vmem:[%s792 + $0x2b0] sm:$0xff]
        %v6156 = vld [vmem:[%s792 + $0x2b8] sm:$0xff]
        %v6157 = vld [vmem:[%s792 + $0x2c0] sm:$0xff]
        %v6158 = vld [vmem:[%s792 + $0x2c8] sm:$0xff]
        %v6159 = vld [vmem:[%s792 + $0x2d0] sm:$0xff]
        %v6160 = vld [vmem:[%s792 + $0x2d8] sm:$0xff]
        %v6161 = vld [vmem:[%s792 + $0x2e0] sm:$0xff]
        %v6162 = vld [vmem:[%s792 + $0x2e8] sm:$0xff]
        %v6163 = vld [vmem:[%s792 + $0x2f0] sm:$0xff]
        %v6164 = vld [vmem:[%s792 + $0x2f8] sm:$0xff]
        %v6165 = vld [vmem:[%s792 + $0x300] sm:$0xff]
        %v6166 = vld [vmem:[%s792 + $0x308] sm:$0xff]
        %v6167 = vld [vmem:[%s792 + $0x310] sm:$0xff]
        %v6168 = vld [vmem:[%s792 + $0x318] sm:$0xff]
        %v6169 = vld [vmem:[%s792 + $0x320] sm:$0xff]
        %v6170 = vld [vmem:[%s792 + $0x328] sm:$0xff]
        %v6171 = vld [vmem:[%s792 + $0x330] sm:$0xff]
        %v6172 = vld [vmem:[%s792 + $0x338] sm:$0xff]
        %v6173 = vld [vmem:[%s792 + $0x340] sm:$0xff]
        %v6174 = vld [vmem:[%s792 + $0x348] sm:$0xff]
        %v6175 = vld [vmem:[%s792 + $0x350] sm:$0xff]
        %v6176 = vld [vmem:[%s792 + $0x358] sm:$0xff]
        %v6177 = vld [vmem:[%s792 + $0x360] sm:$0xff]
        %v6178 = vld [vmem:[%s792 + $0x368] sm:$0xff]
        %v6179 = vld [vmem:[%s792 + $0x370] sm:$0xff]
        %v6180 = vld [vmem:[%s792 + $0x378] sm:$0xff]
        %v6181 = vld [vmem:[%s792 + $0x380] sm:$0xff]
        %v6182 = vld [vmem:[%s792 + $0x388] sm:$0xff]
        %v6183 = vld [vmem:[%s792 + $0x390] sm:$0xff]
        %v6184 = vld [vmem:[%s792 + $0x398] sm:$0xff]
        %v6185 = vld [vmem:[%s792 + $0x3a0] sm:$0xff]
        %v6186 = vld [vmem:[%s792 + $0x3a8] sm:$0xff]
        %v6187 = vld [vmem:[%s792 + $0x3b0] sm:$0xff]
        %v6188 = vld [vmem:[%s792 + $0x3b8] sm:$0xff]
        %v6189 = vld [vmem:[%s792 + $0x3c0] sm:$0xff]
        %v6190 = vld [vmem:[%s792 + $0x3c8] sm:$0xff]
        %v6191 = vld [vmem:[%s792 + $0x3d0] sm:$0xff]
        %v6192 = vld [vmem:[%s792 + $0x3d8] sm:$0xff]
        %v6193 = vld [vmem:[%s792 + $0x3e0] sm:$0xff]
        %v6194 = vld [vmem:[%s792 + $0x3e8] sm:$0xff]
        %v6195 = vld [vmem:[%s792 + $0x3f0] sm:$0xff]
        %v6196 = vld [vmem:[%s792 + $0x3f8] sm:$0xff]
        %v6325 = vunpack.c.l.b16 %v6069
        %v6326 = vunpack.c.h.b16 %v6069
        %v6327 = vunpack.c.l.b16 %v6070
        %v6328 = vunpack.c.h.b16 %v6070
        %v6329 = vunpack.c.l.b16 %v6071
        %v6330 = vunpack.c.h.b16 %v6071
        %v6331 = vunpack.c.l.b16 %v6072
        %v6332 = vunpack.c.h.b16 %v6072
        %v6333 = vunpack.c.l.b16 %v6073
        %v6334 = vunpack.c.h.b16 %v6073
        %v6335 = vunpack.c.l.b16 %v6074
        %v6336 = vunpack.c.h.b16 %v6074
        %v6337 = vunpack.c.l.b16 %v6075
        %v6338 = vunpack.c.h.b16 %v6075
        %v6339 = vunpack.c.l.b16 %v6076
        %v6340 = vunpack.c.h.b16 %v6076
        %v6341 = vunpack.c.l.b16 %v6077
        %v6342 = vunpack.c.h.b16 %v6077
        %v6343 = vunpack.c.l.b16 %v6078
        %v6344 = vunpack.c.h.b16 %v6078
        %v6345 = vunpack.c.l.b16 %v6079
        %v6346 = vunpack.c.h.b16 %v6079
        %v6347 = vunpack.c.l.b16 %v6080
        %v6348 = vunpack.c.h.b16 %v6080
        %v6349 = vunpack.c.l.b16 %v6081
        %v6350 = vunpack.c.h.b16 %v6081
        %v6351 = vunpack.c.l.b16 %v6082
        %v6352 = vunpack.c.h.b16 %v6082
        %v6353 = vunpack.c.l.b16 %v6083
        %v6354 = vunpack.c.h.b16 %v6083
        %v6355 = vunpack.c.l.b16 %v6084
        %v6356 = vunpack.c.h.b16 %v6084
        %v6357 = vunpack.c.l.b16 %v6085
        %v6358 = vunpack.c.h.b16 %v6085
        %v6359 = vunpack.c.l.b16 %v6086
        %v6360 = vunpack.c.h.b16 %v6086
        %v6361 = vunpack.c.l.b16 %v6087
        %v6362 = vunpack.c.h.b16 %v6087
        %v6363 = vunpack.c.l.b16 %v6088
        %v6364 = vunpack.c.h.b16 %v6088
        %v6365 = vunpack.c.l.b16 %v6089
        %v6366 = vunpack.c.h.b16 %v6089
        %v6367 = vunpack.c.l.b16 %v6090
        %v6368 = vunpack.c.h.b16 %v6090
        %v6369 = vunpack.c.l.b16 %v6091
        %v6370 = vunpack.c.h.b16 %v6091
        %v6371 = vunpack.c.l.b16 %v6092
        %v6372 = vunpack.c.h.b16 %v6092
        %v6373 = vunpack.c.l.b16 %v6093
        %v6374 = vunpack.c.h.b16 %v6093
        %v6375 = vunpack.c.l.b16 %v6094
        %v6376 = vunpack.c.h.b16 %v6094
        %v6377 = vunpack.c.l.b16 %v6095
        %v6378 = vunpack.c.h.b16 %v6095
        %v6379 = vunpack.c.l.b16 %v6096
        %v6380 = vunpack.c.h.b16 %v6096
        %v6381 = vunpack.c.l.b16 %v6097
        %v6382 = vunpack.c.h.b16 %v6097
        %v6383 = vunpack.c.l.b16 %v6098
        %v6384 = vunpack.c.h.b16 %v6098
        %v6385 = vunpack.c.l.b16 %v6099
        %v6386 = vunpack.c.h.b16 %v6099
        %v6387 = vunpack.c.l.b16 %v6100
        %v6388 = vunpack.c.h.b16 %v6100
        %v6389 = vunpack.c.l.b16 %v6101
        %v6390 = vunpack.c.h.b16 %v6101
        %v6391 = vunpack.c.l.b16 %v6102
        %v6392 = vunpack.c.h.b16 %v6102
        %v6393 = vunpack.c.l.b16 %v6103
        %v6394 = vunpack.c.h.b16 %v6103
        %v6395 = vunpack.c.l.b16 %v6104
        %v6396 = vunpack.c.h.b16 %v6104
        %v6397 = vunpack.c.l.b16 %v6105
        %v6398 = vunpack.c.h.b16 %v6105
        %v6399 = vunpack.c.l.b16 %v6106
        %v6400 = vunpack.c.h.b16 %v6106
        %v6401 = vunpack.c.l.b16 %v6107
        %v6402 = vunpack.c.h.b16 %v6107
        %v6403 = vunpack.c.l.b16 %v6108
        %v6404 = vunpack.c.h.b16 %v6108
        %v6405 = vunpack.c.l.b16 %v6109
        %v6406 = vunpack.c.h.b16 %v6109
        %v6407 = vunpack.c.l.b16 %v6110
        %v6408 = vunpack.c.h.b16 %v6110
        %v6409 = vunpack.c.l.b16 %v6111
        %v6410 = vunpack.c.h.b16 %v6111
        %v6411 = vunpack.c.l.b16 %v6112
        %v6412 = vunpack.c.h.b16 %v6112
        %v6413 = vunpack.c.l.b16 %v6113
        %v6414 = vunpack.c.h.b16 %v6113
        %v6415 = vunpack.c.l.b16 %v6114
        %v6416 = vunpack.c.h.b16 %v6114
        %v6417 = vunpack.c.l.b16 %v6115
        %v6418 = vunpack.c.h.b16 %v6115
        %v6419 = vunpack.c.l.b16 %v6116
        %v6420 = vunpack.c.h.b16 %v6116
        %v6421 = vunpack.c.l.b16 %v6117
        %v6422 = vunpack.c.h.b16 %v6117
        %v6423 = vunpack.c.l.b16 %v6118
        %v6424 = vunpack.c.h.b16 %v6118
        %v6425 = vunpack.c.l.b16 %v6119
        %v6426 = vunpack.c.h.b16 %v6119
        %v6427 = vunpack.c.l.b16 %v6120
        %v6428 = vunpack.c.h.b16 %v6120
        %v6429 = vunpack.c.l.b16 %v6121
        %v6430 = vunpack.c.h.b16 %v6121
        %v6431 = vunpack.c.l.b16 %v6122
        %v6432 = vunpack.c.h.b16 %v6122
        %v6433 = vunpack.c.l.b16 %v6123
        %v6434 = vunpack.c.h.b16 %v6123
        %v6435 = vunpack.c.l.b16 %v6124
        %v6436 = vunpack.c.h.b16 %v6124
        %v6437 = vunpack.c.l.b16 %v6125
        %v6438 = vunpack.c.h.b16 %v6125
        %v6439 = vunpack.c.l.b16 %v6126
        %v6440 = vunpack.c.h.b16 %v6126
        %v6441 = vunpack.c.l.b16 %v6127
        %v6442 = vunpack.c.h.b16 %v6127
        %v6443 = vunpack.c.l.b16 %v6128
        %v6444 = vunpack.c.h.b16 %v6128
        %v6445 = vunpack.c.l.b16 %v6129
        %v6446 = vunpack.c.h.b16 %v6129
        %v6447 = vunpack.c.l.b16 %v6130
        %v6448 = vunpack.c.h.b16 %v6130
        %v6449 = vunpack.c.l.b16 %v6131
        %v6450 = vunpack.c.h.b16 %v6131
        %v6451 = vunpack.c.l.b16 %v6132
        %v6452 = vunpack.c.h.b16 %v6132
        %v6453 = vunpack.c.l.b16 %v6133
        %v6454 = vunpack.c.h.b16 %v6133
        %v6455 = vunpack.c.l.b16 %v6134
        %v6456 = vunpack.c.h.b16 %v6134
        %v6457 = vunpack.c.l.b16 %v6135
        %v6458 = vunpack.c.h.b16 %v6135
        %v6459 = vunpack.c.l.b16 %v6136
        %v6460 = vunpack.c.h.b16 %v6136
        %v6461 = vunpack.c.l.b16 %v6137
        %v6462 = vunpack.c.h.b16 %v6137
        %v6463 = vunpack.c.l.b16 %v6138
        %v6464 = vunpack.c.h.b16 %v6138
        %v6465 = vunpack.c.l.b16 %v6139
        %v6466 = vunpack.c.h.b16 %v6139
        %v6467 = vunpack.c.l.b16 %v6140
        %v6468 = vunpack.c.h.b16 %v6140
        %v6469 = vunpack.c.l.b16 %v6141
        %v6470 = vunpack.c.h.b16 %v6141
        %v6471 = vunpack.c.l.b16 %v6142
        %v6472 = vunpack.c.h.b16 %v6142
        %v6473 = vunpack.c.l.b16 %v6143
        %v6474 = vunpack.c.h.b16 %v6143
        %v6475 = vunpack.c.l.b16 %v6144
        %v6476 = vunpack.c.h.b16 %v6144
        %v6477 = vunpack.c.l.b16 %v6145
        %v6478 = vunpack.c.h.b16 %v6145
        %v6479 = vunpack.c.l.b16 %v6146
        %v6480 = vunpack.c.h.b16 %v6146
        %v6481 = vunpack.c.l.b16 %v6147
        %v6482 = vunpack.c.h.b16 %v6147
        %v6483 = vunpack.c.l.b16 %v6148
        %v6484 = vunpack.c.h.b16 %v6148
        %v6485 = vunpack.c.l.b16 %v6149
        %v6486 = vunpack.c.h.b16 %v6149
        %v6487 = vunpack.c.l.b16 %v6150
        %v6488 = vunpack.c.h.b16 %v6150
        %v6489 = vunpack.c.l.b16 %v6151
        %v6490 = vunpack.c.h.b16 %v6151
        %v6491 = vunpack.c.l.b16 %v6152
        %v6492 = vunpack.c.h.b16 %v6152
        %v6493 = vunpack.c.l.b16 %v6153
        %v6494 = vunpack.c.h.b16 %v6153
        %v6495 = vunpack.c.l.b16 %v6154
        %v6496 = vunpack.c.h.b16 %v6154
        %v6497 = vunpack.c.l.b16 %v6155
        %v6498 = vunpack.c.h.b16 %v6155
        %v6499 = vunpack.c.l.b16 %v6156
        %v6500 = vunpack.c.h.b16 %v6156
        %v6501 = vunpack.c.l.b16 %v6157
        %v6502 = vunpack.c.h.b16 %v6157
        %v6503 = vunpack.c.l.b16 %v6158
        %v6504 = vunpack.c.h.b16 %v6158
        %v6505 = vunpack.c.l.b16 %v6159
        %v6506 = vunpack.c.h.b16 %v6159
        %v6507 = vunpack.c.l.b16 %v6160
        %v6508 = vunpack.c.h.b16 %v6160
        %v6509 = vunpack.c.l.b16 %v6161
        %v6510 = vunpack.c.h.b16 %v6161
        %v6511 = vunpack.c.l.b16 %v6162
        %v6512 = vunpack.c.h.b16 %v6162
        %v6513 = vunpack.c.l.b16 %v6163
        %v6514 = vunpack.c.h.b16 %v6163
        %v6515 = vunpack.c.l.b16 %v6164
        %v6516 = vunpack.c.h.b16 %v6164
        %v6517 = vunpack.c.l.b16 %v6165
        %v6518 = vunpack.c.h.b16 %v6165
        %v6519 = vunpack.c.l.b16 %v6166
        %v6520 = vunpack.c.h.b16 %v6166
        %v6521 = vunpack.c.l.b16 %v6167
        %v6522 = vunpack.c.h.b16 %v6167
        %v6523 = vunpack.c.l.b16 %v6168
        %v6524 = vunpack.c.h.b16 %v6168
        %v6525 = vunpack.c.l.b16 %v6169
        %v6526 = vunpack.c.h.b16 %v6169
        %v6527 = vunpack.c.l.b16 %v6170
        %v6528 = vunpack.c.h.b16 %v6170
        %v6529 = vunpack.c.l.b16 %v6171
        %v6530 = vunpack.c.h.b16 %v6171
        %v6531 = vunpack.c.l.b16 %v6172
        %v6532 = vunpack.c.h.b16 %v6172
        %v6533 = vunpack.c.l.b16 %v6173
        %v6534 = vunpack.c.h.b16 %v6173
        %v6535 = vunpack.c.l.b16 %v6174
        %v6536 = vunpack.c.h.b16 %v6174
        %v6537 = vunpack.c.l.b16 %v6175
        %v6538 = vunpack.c.h.b16 %v6175
        %v6539 = vunpack.c.l.b16 %v6176
        %v6540 = vunpack.c.h.b16 %v6176
        %v6541 = vunpack.c.l.b16 %v6177
        %v6542 = vunpack.c.h.b16 %v6177
        %v6543 = vunpack.c.l.b16 %v6178
        %v6544 = vunpack.c.h.b16 %v6178
        %v6545 = vunpack.c.l.b16 %v6179
        %v6546 = vunpack.c.h.b16 %v6179
        %v6547 = vunpack.c.l.b16 %v6180
        %v6548 = vunpack.c.h.b16 %v6180
        %v6549 = vunpack.c.l.b16 %v6181
        %v6550 = vunpack.c.h.b16 %v6181
        %v6551 = vunpack.c.l.b16 %v6182
        %v6552 = vunpack.c.h.b16 %v6182
        %v6553 = vunpack.c.l.b16 %v6183
        %v6554 = vunpack.c.h.b16 %v6183
        %v6555 = vunpack.c.l.b16 %v6184
        %v6556 = vunpack.c.h.b16 %v6184
        %v6557 = vunpack.c.l.b16 %v6185
        %v6558 = vunpack.c.h.b16 %v6185
        %v6559 = vunpack.c.l.b16 %v6186
        %v6560 = vunpack.c.h.b16 %v6186
        %v6561 = vunpack.c.l.b16 %v6187
        %v6562 = vunpack.c.h.b16 %v6187
        %v6563 = vunpack.c.l.b16 %v6188
        %v6564 = vunpack.c.h.b16 %v6188
        %v6565 = vunpack.c.l.b16 %v6189
        %v6566 = vunpack.c.h.b16 %v6189
        %v6567 = vunpack.c.l.b16 %v6190
        %v6568 = vunpack.c.h.b16 %v6190
        %v6569 = vunpack.c.l.b16 %v6191
        %v6570 = vunpack.c.h.b16 %v6191
        %v6571 = vunpack.c.l.b16 %v6192
        %v6572 = vunpack.c.h.b16 %v6192
        %v6573 = vunpack.c.l.b16 %v6193
        %v6574 = vunpack.c.h.b16 %v6193
        %v6575 = vunpack.c.l.b16 %v6194
        %v6576 = vunpack.c.h.b16 %v6194
        %v6577 = vunpack.c.l.b16 %v6195
        %v6578 = vunpack.c.h.b16 %v6195
        %v6579 = vunpack.c.l.b16 %v6196
        %v6580 = vunpack.c.h.b16 %v6196
        %v6581 = vpack.c.b16 %v6327, %v6325
        %v6582 = vpack.c.b16 %v6328, %v6326
        %v6583 = vpack.c.b16 %v6331, %v6329
        %v6584 = vpack.c.b16 %v6332, %v6330
        %v6585 = vpack.c.b16 %v6335, %v6333
        %v6586 = vpack.c.b16 %v6336, %v6334
        %v6587 = vpack.c.b16 %v6339, %v6337
        %v6588 = vpack.c.b16 %v6340, %v6338
        %v6589 = vpack.c.b16 %v6343, %v6341
        %v6590 = vpack.c.b16 %v6344, %v6342
        %v6591 = vpack.c.b16 %v6347, %v6345
        %v6592 = vpack.c.b16 %v6348, %v6346
        %v6593 = vpack.c.b16 %v6351, %v6349
        %v6594 = vpack.c.b16 %v6352, %v6350
        %v6595 = vpack.c.b16 %v6355, %v6353
        %v6596 = vpack.c.b16 %v6356, %v6354
        %v6597 = vpack.c.b16 %v6359, %v6357
        %v6598 = vpack.c.b16 %v6360, %v6358
        %v6599 = vpack.c.b16 %v6363, %v6361
        %v6600 = vpack.c.b16 %v6364, %v6362
        %v6601 = vpack.c.b16 %v6367, %v6365
        %v6602 = vpack.c.b16 %v6368, %v6366
        %v6603 = vpack.c.b16 %v6371, %v6369
        %v6604 = vpack.c.b16 %v6372, %v6370
        %v6605 = vpack.c.b16 %v6375, %v6373
        %v6606 = vpack.c.b16 %v6376, %v6374
        %v6607 = vpack.c.b16 %v6379, %v6377
        %v6608 = vpack.c.b16 %v6380, %v6378
        %v6609 = vpack.c.b16 %v6383, %v6381
        %v6610 = vpack.c.b16 %v6384, %v6382
        %v6611 = vpack.c.b16 %v6387, %v6385
        %v6612 = vpack.c.b16 %v6388, %v6386
        %v6613 = vpack.c.b16 %v6391, %v6389
        %v6614 = vpack.c.b16 %v6392, %v6390
        %v6615 = vpack.c.b16 %v6395, %v6393
        %v6616 = vpack.c.b16 %v6396, %v6394
        %v6617 = vpack.c.b16 %v6399, %v6397
        %v6618 = vpack.c.b16 %v6400, %v6398
        %v6619 = vpack.c.b16 %v6403, %v6401
        %v6620 = vpack.c.b16 %v6404, %v6402
        %v6621 = vpack.c.b16 %v6407, %v6405
        %v6622 = vpack.c.b16 %v6408, %v6406
        %v6623 = vpack.c.b16 %v6411, %v6409
        %v6624 = vpack.c.b16 %v6412, %v6410
        %v6625 = vpack.c.b16 %v6415, %v6413
        %v6626 = vpack.c.b16 %v6416, %v6414
        %v6627 = vpack.c.b16 %v6419, %v6417
        %v6628 = vpack.c.b16 %v6420, %v6418
        %v6629 = vpack.c.b16 %v6423, %v6421
        %v6630 = vpack.c.b16 %v6424, %v6422
        %v6631 = vpack.c.b16 %v6427, %v6425
        %v6632 = vpack.c.b16 %v6428, %v6426
        %v6633 = vpack.c.b16 %v6431, %v6429
        %v6634 = vpack.c.b16 %v6432, %v6430
        %v6635 = vpack.c.b16 %v6435, %v6433
        %v6636 = vpack.c.b16 %v6436, %v6434
        %v6637 = vpack.c.b16 %v6439, %v6437
        %v6638 = vpack.c.b16 %v6440, %v6438
        %v6639 = vpack.c.b16 %v6443, %v6441
        %v6640 = vpack.c.b16 %v6444, %v6442
        %v6641 = vpack.c.b16 %v6447, %v6445
        %v6642 = vpack.c.b16 %v6448, %v6446
        %v6643 = vpack.c.b16 %v6451, %v6449
        %v6644 = vpack.c.b16 %v6452, %v6450
        %v6645 = vpack.c.b16 %v6455, %v6453
        %v6646 = vpack.c.b16 %v6456, %v6454
        %v6647 = vpack.c.b16 %v6459, %v6457
        %v6648 = vpack.c.b16 %v6460, %v6458
        %v6649 = vpack.c.b16 %v6463, %v6461
        %v6650 = vpack.c.b16 %v6464, %v6462
        %v6651 = vpack.c.b16 %v6467, %v6465
        %v6652 = vpack.c.b16 %v6468, %v6466
        %v6653 = vpack.c.b16 %v6471, %v6469
        %v6654 = vpack.c.b16 %v6472, %v6470
        %v6655 = vpack.c.b16 %v6475, %v6473
        %v6656 = vpack.c.b16 %v6476, %v6474
        %v6657 = vpack.c.b16 %v6479, %v6477
        %v6658 = vpack.c.b16 %v6480, %v6478
        %v6659 = vpack.c.b16 %v6483, %v6481
        %v6660 = vpack.c.b16 %v6484, %v6482
        %v6661 = vpack.c.b16 %v6487, %v6485
        %v6662 = vpack.c.b16 %v6488, %v6486
        %v6663 = vpack.c.b16 %v6491, %v6489
        %v6664 = vpack.c.b16 %v6492, %v6490
        %v6665 = vpack.c.b16 %v6495, %v6493
        %v6666 = vpack.c.b16 %v6496, %v6494
        %v6667 = vpack.c.b16 %v6499, %v6497
        %v6668 = vpack.c.b16 %v6500, %v6498
        %v6669 = vpack.c.b16 %v6503, %v6501
        %v6670 = vpack.c.b16 %v6504, %v6502
        %v6671 = vpack.c.b16 %v6507, %v6505
        %v6672 = vpack.c.b16 %v6508, %v6506
        %v6673 = vpack.c.b16 %v6511, %v6509
        %v6674 = vpack.c.b16 %v6512, %v6510
        %v6675 = vpack.c.b16 %v6515, %v6513
        %v6676 = vpack.c.b16 %v6516, %v6514
        %v6677 = vpack.c.b16 %v6519, %v6517
        %v6678 = vpack.c.b16 %v6520, %v6518
        %v6679 = vpack.c.b16 %v6523, %v6521
        %v6680 = vpack.c.b16 %v6524, %v6522
        %v6681 = vpack.c.b16 %v6527, %v6525
        %v6682 = vpack.c.b16 %v6528, %v6526
        %v6683 = vpack.c.b16 %v6531, %v6529
        %v6684 = vpack.c.b16 %v6532, %v6530
        %v6685 = vpack.c.b16 %v6535, %v6533
        %v6686 = vpack.c.b16 %v6536, %v6534
        %v6687 = vpack.c.b16 %v6539, %v6537
        %v6688 = vpack.c.b16 %v6540, %v6538
        %v6689 = vpack.c.b16 %v6543, %v6541
        %v6690 = vpack.c.b16 %v6544, %v6542
        %v6691 = vpack.c.b16 %v6547, %v6545
        %v6692 = vpack.c.b16 %v6548, %v6546
        %v6693 = vpack.c.b16 %v6551, %v6549
        %v6694 = vpack.c.b16 %v6552, %v6550
        %v6695 = vpack.c.b16 %v6555, %v6553
        %v6696 = vpack.c.b16 %v6556, %v6554
        %v6697 = vpack.c.b16 %v6559, %v6557
        %v6698 = vpack.c.b16 %v6560, %v6558
        %v6699 = vpack.c.b16 %v6563, %v6561
        %v6700 = vpack.c.b16 %v6564, %v6562
        %v6701 = vpack.c.b16 %v6567, %v6565
        %v6702 = vpack.c.b16 %v6568, %v6566
        %v6703 = vpack.c.b16 %v6571, %v6569
        %v6704 = vpack.c.b16 %v6572, %v6570
        %v6705 = vpack.c.b16 %v6575, %v6573
        %v6706 = vpack.c.b16 %v6576, %v6574
        %v6707 = vpack.c.b16 %v6579, %v6577
        %v6708 = vpack.c.b16 %v6580, %v6578
        %6837 = vmatpush.bf16.msra.mxu0 %v6595
        %6838 = vmatpush.bf16.msra.mxu0 %v6593
        %6839 = vmatpush.bf16.msra.mxu0 %v6591
        %6840 = vmatpush.bf16.msra.mxu0 %v6589
        %6841 = vmatpush.bf16.msra.mxu0 %v6587
        %6842 = vmatpush.bf16.msra.mxu0 %v6585
        %6843 = vmatpush.bf16.msra.mxu0 %v6583
        %6844 = vmatpush.bf16.msra.mxu0 %v6581
        %6845 = vmatmul.bf16.gmra.mxu0 %v6053
        %v6846 = vpop.f32.mrf.mxu0
        %v6847 = vadd.f32 0.0, %v6846
        %v6848 = vpop.f32.mrf.mxu0
        %v6849 = vadd.f32 0.0, %v6848
        %6850 = vmatmul.bf16.gmra.mxu0 %v6061
        %v6851 = vpop.f32.mrf.mxu0
        %v6852 = vadd.f32 0.0, %v6851
        %v6853 = vpop.f32.mrf.mxu0
        %v6854 = vadd.f32 0.0, %v6853
        %6855 = vdwg.mxu0
        %6856 = vmatpush.bf16.msra.mxu0 %v6611
        %6857 = vmatpush.bf16.msra.mxu0 %v6609
        %6858 = vmatpush.bf16.msra.mxu0 %v6607
        %6859 = vmatpush.bf16.msra.mxu0 %v6605
        %6860 = vmatpush.bf16.msra.mxu0 %v6603
        %6861 = vmatpush.bf16.msra.mxu0 %v6601
        %6862 = vmatpush.bf16.msra.mxu0 %v6599
        %6863 = vmatpush.bf16.msra.mxu0 %v6597
        %6864 = vmatmul.bf16.gmra.mxu0 %v6054
        %v6865 = vpop.f32.mrf.mxu0
        %v6866 = vadd.f32 %v6847, %v6865
        %v6867 = vpop.f32.mrf.mxu0
        %v6868 = vadd.f32 %v6849, %v6867
        %6869 = vmatmul.bf16.gmra.mxu0 %v6062
        %v6870 = vpop.f32.mrf.mxu0
        %v6871 = vadd.f32 %v6852, %v6870
        %v6872 = vpop.f32.mrf.mxu0
        %v6873 = vadd.f32 %v6854, %v6872
        %6874 = vdwg.mxu0
        %6875 = vmatpush.bf16.msra.mxu0 %v6627
        %6876 = vmatpush.bf16.msra.mxu0 %v6625
        %6877 = vmatpush.bf16.msra.mxu0 %v6623
        %6878 = vmatpush.bf16.msra.mxu0 %v6621
        %6879 = vmatpush.bf16.msra.mxu0 %v6619
        %6880 = vmatpush.bf16.msra.mxu0 %v6617
        %6881 = vmatpush.bf16.msra.mxu0 %v6615
        %6882 = vmatpush.bf16.msra.mxu0 %v6613
        %6883 = vmatmul.bf16.gmra.mxu0 %v6055
        %v6884 = vpop.f32.mrf.mxu0
        %v6885 = vadd.f32 %v6866, %v6884
        %v6886 = vpop.f32.mrf.mxu0
        %v6887 = vadd.f32 %v6868, %v6886
        %6888 = vmatmul.bf16.gmra.mxu0 %v6063
        %v6889 = vpop.f32.mrf.mxu0
        %v6890 = vadd.f32 %v6871, %v6889
        %v6891 = vpop.f32.mrf.mxu0
        %v6892 = vadd.f32 %v6873, %v6891
        %6893 = vdwg.mxu0
        %6894 = vmatpush.bf16.msra.mxu0 %v6643
        %6895 = vmatpush.bf16.msra.mxu0 %v6641
        %6896 = vmatpush.bf16.msra.mxu0 %v6639
        %6897 = vmatpush.bf16.msra.mxu0 %v6637
        %6898 = vmatpush.bf16.msra.mxu0 %v6635
        %6899 = vmatpush.bf16.msra.mxu0 %v6633
        %6900 = vmatpush.bf16.msra.mxu0 %v6631
        %6901 = vmatpush.bf16.msra.mxu0 %v6629
        %6902 = vmatmul.bf16.gmra.mxu0 %v6056
        %v6903 = vpop.f32.mrf.mxu0
        %v6904 = vadd.f32 %v6885, %v6903
        %v6905 = vpop.f32.mrf.mxu0
        %v6906 = vadd.f32 %v6887, %v6905
        %6907 = vmatmul.bf16.gmra.mxu0 %v6064
        %v6908 = vpop.f32.mrf.mxu0
        %v6909 = vadd.f32 %v6890, %v6908
        %v6910 = vpop.f32.mrf.mxu0
        %v6911 = vadd.f32 %v6892, %v6910
        %6912 = vdwg.mxu0
        %6913 = vmatpush.bf16.msra.mxu0 %v6659
        %6914 = vmatpush.bf16.msra.mxu0 %v6657
        %6915 = vmatpush.bf16.msra.mxu0 %v6655
        %6916 = vmatpush.bf16.msra.mxu0 %v6653
        %6917 = vmatpush.bf16.msra.mxu0 %v6651
        %6918 = vmatpush.bf16.msra.mxu0 %v6649
        %6919 = vmatpush.bf16.msra.mxu0 %v6647
        %6920 = vmatpush.bf16.msra.mxu0 %v6645
        %6921 = vmatmul.bf16.gmra.mxu0 %v6057
        %v6922 = vpop.f32.mrf.mxu0
        %v6923 = vadd.f32 %v6904, %v6922
        %v6924 = vpop.f32.mrf.mxu0
        %v6925 = vadd.f32 %v6906, %v6924
        %6926 = vmatmul.bf16.gmra.mxu0 %v6065
        %v6927 = vpop.f32.mrf.mxu0
        %v6928 = vadd.f32 %v6909, %v6927
        %v6929 = vpop.f32.mrf.mxu0
        %v6930 = vadd.f32 %v6911, %v6929
        %6931 = vdwg.mxu0
        %6932 = vmatpush.bf16.msra.mxu0 %v6675
        %6933 = vmatpush.bf16.msra.mxu0 %v6673
        %6934 = vmatpush.bf16.msra.mxu0 %v6671
        %6935 = vmatpush.bf16.msra.mxu0 %v6669
        %6936 = vmatpush.bf16.msra.mxu0 %v6667
        %6937 = vmatpush.bf16.msra.mxu0 %v6665
        %6938 = vmatpush.bf16.msra.mxu0 %v6663
        %6939 = vmatpush.bf16.msra.mxu0 %v6661
        %6940 = vmatmul.bf16.gmra.mxu0 %v6058
        %v6941 = vpop.f32.mrf.mxu0
        %v6942 = vadd.f32 %v6923, %v6941
        %v6943 = vpop.f32.mrf.mxu0
        %v6944 = vadd.f32 %v6925, %v6943
        %6945 = vmatmul.bf16.gmra.mxu0 %v6066
        %v6946 = vpop.f32.mrf.mxu0
        %v6947 = vadd.f32 %v6928, %v6946
        %v6948 = vpop.f32.mrf.mxu0
        %v6949 = vadd.f32 %v6930, %v6948
        %6950 = vdwg.mxu0
        %6951 = vmatpush.bf16.msra.mxu0 %v6691
        %6952 = vmatpush.bf16.msra.mxu0 %v6689
        %6953 = vmatpush.bf16.msra.mxu0 %v6687
        %6954 = vmatpush.bf16.msra.mxu0 %v6685
        %6955 = vmatpush.bf16.msra.mxu0 %v6683
        %6956 = vmatpush.bf16.msra.mxu0 %v6681
        %6957 = vmatpush.bf16.msra.mxu0 %v6679
        %6958 = vmatpush.bf16.msra.mxu0 %v6677
        %6959 = vmatmul.bf16.gmra.mxu0 %v6059
        %v6960 = vpop.f32.mrf.mxu0
        %v6961 = vadd.f32 %v6942, %v6960
        %v6962 = vpop.f32.mrf.mxu0
        %v6963 = vadd.f32 %v6944, %v6962
        %6964 = vmatmul.bf16.gmra.mxu0 %v6067
        %v6965 = vpop.f32.mrf.mxu0
        %v6966 = vadd.f32 %v6947, %v6965
        %v6967 = vpop.f32.mrf.mxu0
        %v6968 = vadd.f32 %v6949, %v6967
        %6969 = vdwg.mxu0
        %6970 = vmatpush.bf16.msra.mxu0 %v6707
        %6971 = vmatpush.bf16.msra.mxu0 %v6705
        %6972 = vmatpush.bf16.msra.mxu0 %v6703
        %6973 = vmatpush.bf16.msra.mxu0 %v6701
        %6974 = vmatpush.bf16.msra.mxu0 %v6699
        %6975 = vmatpush.bf16.msra.mxu0 %v6697
        %6976 = vmatpush.bf16.msra.mxu0 %v6695
        %6977 = vmatpush.bf16.msra.mxu0 %v6693
        %6978 = vmatmul.bf16.gmra.mxu0 %v6060
        %v6979 = vpop.f32.mrf.mxu0
        %v6980 = vadd.f32 %v6961, %v6979
        %v6981 = vpop.f32.mrf.mxu0
        %v6982 = vadd.f32 %v6963, %v6981
        %6983 = vmatmul.bf16.gmra.mxu0 %v6068
        %v6984 = vpop.f32.mrf.mxu0
        %v6985 = vadd.f32 %v6966, %v6984
        %v6986 = vpop.f32.mrf.mxu0
        %v6987 = vadd.f32 %v6968, %v6986
        %6988 = vdwg.mxu0
        %6989 = vmatpush.bf16.msra.mxu0 %v6596
        %6990 = vmatpush.bf16.msra.mxu0 %v6594
        %6991 = vmatpush.bf16.msra.mxu0 %v6592
        %6992 = vmatpush.bf16.msra.mxu0 %v6590
        %6993 = vmatpush.bf16.msra.mxu0 %v6588
        %6994 = vmatpush.bf16.msra.mxu0 %v6586
        %6995 = vmatpush.bf16.msra.mxu0 %v6584
        %6996 = vmatpush.bf16.msra.mxu0 %v6582
        %6997 = vmatmul.bf16.gmra.mxu0 %v6053
        %v6998 = vpop.f32.mrf.mxu0
        %v6999 = vadd.f32 0.0, %v6998
        %v7000 = vpop.f32.mrf.mxu0
        %v7001 = vadd.f32 0.0, %v7000
        %7002 = vmatmul.bf16.gmra.mxu0 %v6061
        %v7003 = vpop.f32.mrf.mxu0
        %v7004 = vadd.f32 0.0, %v7003
        %v7005 = vpop.f32.mrf.mxu0
        %v7006 = vadd.f32 0.0, %v7005
        %7007 = vdwg.mxu0
        %7008 = vmatpush.bf16.msra.mxu0 %v6612
        %7009 = vmatpush.bf16.msra.mxu0 %v6610
        %7010 = vmatpush.bf16.msra.mxu0 %v6608
        %7011 = vmatpush.bf16.msra.mxu0 %v6606
        %7012 = vmatpush.bf16.msra.mxu0 %v6604
        %7013 = vmatpush.bf16.msra.mxu0 %v6602
        %7014 = vmatpush.bf16.msra.mxu0 %v6600
        %7015 = vmatpush.bf16.msra.mxu0 %v6598
        %7016 = vmatmul.bf16.gmra.mxu0 %v6054
        %v7017 = vpop.f32.mrf.mxu0
        %v7018 = vadd.f32 %v6999, %v7017
        %v7019 = vpop.f32.mrf.mxu0
        %v7020 = vadd.f32 %v7001, %v7019
        %7021 = vmatmul.bf16.gmra.mxu0 %v6062
        %v7022 = vpop.f32.mrf.mxu0
        %v7023 = vadd.f32 %v7004, %v7022
        %v7024 = vpop.f32.mrf.mxu0
        %v7025 = vadd.f32 %v7006, %v7024
        %7026 = vdwg.mxu0
        %7027 = vmatpush.bf16.msra.mxu0 %v6628
        %7028 = vmatpush.bf16.msra.mxu0 %v6626
        %7029 = vmatpush.bf16.msra.mxu0 %v6624
        %7030 = vmatpush.bf16.msra.mxu0 %v6622
        %7031 = vmatpush.bf16.msra.mxu0 %v6620
        %7032 = vmatpush.bf16.msra.mxu0 %v6618
        %7033 = vmatpush.bf16.msra.mxu0 %v6616
        %7034 = vmatpush.bf16.msra.mxu0 %v6614
        %7035 = vmatmul.bf16.gmra.mxu0 %v6055
        %v7036 = vpop.f32.mrf.mxu0
        %v7037 = vadd.f32 %v7018, %v7036
        %v7038 = vpop.f32.mrf.mxu0
        %v7039 = vadd.f32 %v7020, %v7038
        %7040 = vmatmul.bf16.gmra.mxu0 %v6063
        %v7041 = vpop.f32.mrf.mxu0
        %v7042 = vadd.f32 %v7023, %v7041
        %v7043 = vpop.f32.mrf.mxu0
        %v7044 = vadd.f32 %v7025, %v7043
        %7045 = vdwg.mxu0
        %7046 = vmatpush.bf16.msra.mxu0 %v6644
        %7047 = vmatpush.bf16.msra.mxu0 %v6642
        %7048 = vmatpush.bf16.msra.mxu0 %v6640
        %7049 = vmatpush.bf16.msra.mxu0 %v6638
        %7050 = vmatpush.bf16.msra.mxu0 %v6636
        %7051 = vmatpush.bf16.msra.mxu0 %v6634
        %7052 = vmatpush.bf16.msra.mxu0 %v6632
        %7053 = vmatpush.bf16.msra.mxu0 %v6630
        %7054 = vmatmul.bf16.gmra.mxu0 %v6056
        %v7055 = vpop.f32.mrf.mxu0
        %v7056 = vadd.f32 %v7037, %v7055
        %v7057 = vpop.f32.mrf.mxu0
        %v7058 = vadd.f32 %v7039, %v7057
        %7059 = vmatmul.bf16.gmra.mxu0 %v6064
        %v7060 = vpop.f32.mrf.mxu0
        %v7061 = vadd.f32 %v7042, %v7060
        %v7062 = vpop.f32.mrf.mxu0
        %v7063 = vadd.f32 %v7044, %v7062
        %7064 = vdwg.mxu0
        %7065 = vmatpush.bf16.msra.mxu0 %v6660
        %7066 = vmatpush.bf16.msra.mxu0 %v6658
        %7067 = vmatpush.bf16.msra.mxu0 %v6656
        %7068 = vmatpush.bf16.msra.mxu0 %v6654
        %7069 = vmatpush.bf16.msra.mxu0 %v6652
        %7070 = vmatpush.bf16.msra.mxu0 %v6650
        %7071 = vmatpush.bf16.msra.mxu0 %v6648
        %7072 = vmatpush.bf16.msra.mxu0 %v6646
        %7073 = vmatmul.bf16.gmra.mxu0 %v6057
        %v7074 = vpop.f32.mrf.mxu0
        %v7075 = vadd.f32 %v7056, %v7074
        %v7076 = vpop.f32.mrf.mxu0
        %v7077 = vadd.f32 %v7058, %v7076
        %7078 = vmatmul.bf16.gmra.mxu0 %v6065
        %v7079 = vpop.f32.mrf.mxu0
        %v7080 = vadd.f32 %v7061, %v7079
        %v7081 = vpop.f32.mrf.mxu0
        %v7082 = vadd.f32 %v7063, %v7081
        %7083 = vdwg.mxu0
        %7084 = vmatpush.bf16.msra.mxu0 %v6676
        %7085 = vmatpush.bf16.msra.mxu0 %v6674
        %7086 = vmatpush.bf16.msra.mxu0 %v6672
        %7087 = vmatpush.bf16.msra.mxu0 %v6670
        %7088 = vmatpush.bf16.msra.mxu0 %v6668
        %7089 = vmatpush.bf16.msra.mxu0 %v6666
        %7090 = vmatpush.bf16.msra.mxu0 %v6664
        %7091 = vmatpush.bf16.msra.mxu0 %v6662
        %7092 = vmatmul.bf16.gmra.mxu0 %v6058
        %v7093 = vpop.f32.mrf.mxu0
        %v7094 = vadd.f32 %v7075, %v7093
        %v7095 = vpop.f32.mrf.mxu0
        %v7096 = vadd.f32 %v7077, %v7095
        %7097 = vmatmul.bf16.gmra.mxu0 %v6066
        %v7098 = vpop.f32.mrf.mxu0
        %v7099 = vadd.f32 %v7080, %v7098
        %v7100 = vpop.f32.mrf.mxu0
        %v7101 = vadd.f32 %v7082, %v7100
        %7102 = vdwg.mxu0
        %7103 = vmatpush.bf16.msra.mxu0 %v6692
        %7104 = vmatpush.bf16.msra.mxu0 %v6690
        %7105 = vmatpush.bf16.msra.mxu0 %v6688
        %7106 = vmatpush.bf16.msra.mxu0 %v6686
        %7107 = vmatpush.bf16.msra.mxu0 %v6684
        %7108 = vmatpush.bf16.msra.mxu0 %v6682
        %7109 = vmatpush.bf16.msra.mxu0 %v6680
        %7110 = vmatpush.bf16.msra.mxu0 %v6678
        %7111 = vmatmul.bf16.gmra.mxu0 %v6059
        %v7112 = vpop.f32.mrf.mxu0
        %v7113 = vadd.f32 %v7094, %v7112
        %v7114 = vpop.f32.mrf.mxu0
        %v7115 = vadd.f32 %v7096, %v7114
        %7116 = vmatmul.bf16.gmra.mxu0 %v6067
        %v7117 = vpop.f32.mrf.mxu0
        %v7118 = vadd.f32 %v7099, %v7117
        %v7119 = vpop.f32.mrf.mxu0
        %v7120 = vadd.f32 %v7101, %v7119
        %7121 = vdwg.mxu0
        %7122 = vmatpush.bf16.msra.mxu0 %v6708
        %7123 = vmatpush.bf16.msra.mxu0 %v6706
        %7124 = vmatpush.bf16.msra.mxu0 %v6704
        %7125 = vmatpush.bf16.msra.mxu0 %v6702
        %7126 = vmatpush.bf16.msra.mxu0 %v6700
        %7127 = vmatpush.bf16.msra.mxu0 %v6698
        %7128 = vmatpush.bf16.msra.mxu0 %v6696
        %7129 = vmatpush.bf16.msra.mxu0 %v6694
        %7130 = vmatmul.bf16.gmra.mxu0 %v6060
        %v7131 = vpop.f32.mrf.mxu0
        %v7132 = vadd.f32 %v7113, %v7131
        %v7133 = vpop.f32.mrf.mxu0
        %v7134 = vadd.f32 %v7115, %v7133
        %7135 = vmatmul.bf16.gmra.mxu0 %v6068
        %v7136 = vpop.f32.mrf.mxu0
        %v7137 = vadd.f32 %v7118, %v7136
        %v7138 = vpop.f32.mrf.mxu0
        %v7139 = vadd.f32 %v7120, %v7138
        %7140 = vdwg.mxu0
        %v7141 = vadd.f32 %v6045, %v6980
        %v7142 = vadd.f32 %v6046, %v7132
        %v7143 = vadd.f32 %v6047, %v6982
        %v7144 = vadd.f32 %v6048, %v7134
        %v7145 = vadd.f32 %v6049, %v6985
        %v7146 = vadd.f32 %v6050, %v7137
        %v7147 = vadd.f32 %v6051, %v6987
        %v7148 = vadd.f32 %v6052, %v7139
        %7149 = vst [vmem:[#allocation2] sm:$0xff] %v7141
        %7150 = vst [vmem:[#allocation2 + $0x8] sm:$0xff] %v7142
        %7151 = vst [vmem:[#allocation2 + $0x10] sm:$0xff] %v7143
        %7152 = vst [vmem:[#allocation2 + $0x18] sm:$0xff] %v7144
        %7153 = vst [vmem:[#allocation2 + $0x20] sm:$0xff] %v7145
        %7154 = vst [vmem:[#allocation2 + $0x28] sm:$0xff] %v7146
        %7155 = vst [vmem:[#allocation2 + $0x30] sm:$0xff] %v7147
        %7156 = vst [vmem:[#allocation2 + $0x38] sm:$0xff] %v7148
        %p7157 = scmp.eq.s32.totalorder %s46, 1
        // Predicated region
        $region121: #{vision_transformer_forward.1} parent=103 // pred_check
          %p7158 = pneg %p7157
        $region122: #{vision_transformer_forward.1} parent=103 // pred_check_branch
          %7160 = sbr.rel (%p7158) target = $region124
        $region123: #{vision_transformer_forward.1} parent=103 // pred_region
          %v7161 = vld [vmem:[#allocation2] sm:$0xff]
          %v7162 = vld [vmem:[#allocation2 + $0x8] sm:$0xff]
          %v7163 = vld [vmem:[%s18] sm:$0x3]
          %v7164 = vld [vmem:[%s19] sm:$0x3]
          %vm7165 = vcmask 1040384
          %v7166 = vsel %vm7165, %v7161, 0.0
          %v7167 = vsel %vm7165, %v7162, 0.0
          %v7168 = vadd.f32 %v7166, %v7167
          %7169 = vadd.xlane.f32.xlu0 %v7168
          %v7170 = vpop.xlane.xlu0 %7169
          %v7171 = vmul.f32 %v7170, %v1239
          %v7172 = vsub.f32 %v7161, %v7171
          %v7173 = vsub.f32 %v7162, %v7171
          %v7174 = vmul.f32 %v7172, %v7172
          %v7175 = vmul.f32 %v7173, %v7173
          %v7176 = vsel %vm7165, %v7174, 0.0
          %v7177 = vsel %vm7165, %v7175, 0.0
          %v7178 = vadd.f32 %v7176, %v7177
          %7179 = vadd.xlane.f32.xlu0 %v7178
          %v7180 = vpop.xlane.xlu0 %7179
          %v7181 = vmul.f32 %v7180, %v1239
          %v7182 = vadd.f32 %v7181, 1e-05
          %v7183 = vrsqrt.pop %v7182
          %v7184 = vmul.f32 %v7183, %v7182
          %v7185 = vmul.f32 %v7184, %v7183
          %v7186 = vmul.f32 0.5, %v7185
          %v7187 = vsub.f32 1.5, %v7186
          %v7188 = vmul.f32 %v7183, %v7187
          %vm7189 = vweird.f32 %v7182
          %vm7190 = vweird.f32 %v7183
          %vm7191 = vmor %vm7189, %vm7190
          %v7192 = vsel %vm7191, %v7183, %v7188
          %v7193 = vmul.f32 %v7172, %v7192
          %v7194 = vmul.f32 %v7173, %v7192
          %v7196 = vperm.slane %v7163, 0
          %v7197 = vperm.slane %v7163, 1
          %v7200 = vmul.f32 %v7193, %v7196
          %v7201 = vmul.f32 %v7194, %v7197
          %v7203 = vperm.slane %v7164, 0
          %v7204 = vperm.slane %v7164, 1
          %v7207 = vadd.f32 %v7200, %v7203
          %v7208 = vadd.f32 %v7201, %v7204
          %v7209 = vpack.c.bf16 %v7207, %v7207
          %v7210 = vpack.c.bf16 %v7208, %v7208
          %v7211 = vld [vmem:[%s20] sm:$0xf]
          %v7212 = vld [vmem:[%s20 + $0x4] sm:$0xf]
          %v7213 = vld [vmem:[%s20 + $0x8] sm:$0xf]
          %v7214 = vld [vmem:[%s20 + $0xc] sm:$0xf]
          %v7215 = vld [vmem:[%s20 + $0x10] sm:$0xf]
          %v7216 = vld [vmem:[%s20 + $0x14] sm:$0xf]
          %v7217 = vld [vmem:[%s20 + $0x18] sm:$0xf]
          %v7218 = vld [vmem:[%s20 + $0x1c] sm:$0xf]
          %v7219 = vld [vmem:[%s20 + $0x20] sm:$0xf]
          %v7220 = vld [vmem:[%s20 + $0x24] sm:$0xf]
          %v7221 = vld [vmem:[%s20 + $0x28] sm:$0xf]
          %v7222 = vld [vmem:[%s20 + $0x2c] sm:$0xf]
          %v7223 = vld [vmem:[%s20 + $0x30] sm:$0xf]
          %v7224 = vld [vmem:[%s20 + $0x34] sm:$0xf]
          %v7225 = vld [vmem:[%s20 + $0x38] sm:$0xf]
          %v7226 = vld [vmem:[%s20 + $0x3c] sm:$0xf]
          %v7227 = vld [vmem:[%s20 + $0x40] sm:$0xf]
          %v7228 = vld [vmem:[%s20 + $0x44] sm:$0xf]
          %v7229 = vld [vmem:[%s20 + $0x48] sm:$0xf]
          %v7230 = vld [vmem:[%s20 + $0x4c] sm:$0xf]
          %v7231 = vld [vmem:[%s20 + $0x50] sm:$0xf]
          %v7232 = vld [vmem:[%s20 + $0x54] sm:$0xf]
          %v7233 = vld [vmem:[%s20 + $0x58] sm:$0xf]
          %v7234 = vld [vmem:[%s20 + $0x5c] sm:$0xf]
          %v7235 = vld [vmem:[%s20 + $0x60] sm:$0xf]
          %v7236 = vld [vmem:[%s20 + $0x64] sm:$0xf]
          %v7237 = vld [vmem:[%s20 + $0x68] sm:$0xf]
          %v7238 = vld [vmem:[%s20 + $0x6c] sm:$0xf]
          %v7239 = vld [vmem:[%s20 + $0x70] sm:$0xf]
          %v7240 = vld [vmem:[%s20 + $0x74] sm:$0xf]
          %v7241 = vld [vmem:[%s20 + $0x78] sm:$0xf]
          %v7242 = vld [vmem:[%s20 + $0x7c] sm:$0xf]
          %v7275 = vunpack.c.l.b16 %v7211
          %v7276 = vunpack.c.l.b16 %v7212
          %v7277 = vunpack.c.l.b16 %v7213
          %v7278 = vunpack.c.l.b16 %v7214
          %v7279 = vunpack.c.l.b16 %v7215
          %v7280 = vunpack.c.l.b16 %v7216
          %v7281 = vunpack.c.l.b16 %v7217
          %v7282 = vunpack.c.l.b16 %v7218
          %v7283 = vunpack.c.l.b16 %v7219
          %v7284 = vunpack.c.l.b16 %v7220
          %v7285 = vunpack.c.l.b16 %v7221
          %v7286 = vunpack.c.l.b16 %v7222
          %v7287 = vunpack.c.l.b16 %v7223
          %v7288 = vunpack.c.l.b16 %v7224
          %v7289 = vunpack.c.l.b16 %v7225
          %v7290 = vunpack.c.l.b16 %v7226
          %v7291 = vunpack.c.l.b16 %v7227
          %v7292 = vunpack.c.l.b16 %v7228
          %v7293 = vunpack.c.l.b16 %v7229
          %v7294 = vunpack.c.l.b16 %v7230
          %v7295 = vunpack.c.l.b16 %v7231
          %v7296 = vunpack.c.l.b16 %v7232
          %v7297 = vunpack.c.l.b16 %v7233
          %v7298 = vunpack.c.l.b16 %v7234
          %v7299 = vunpack.c.l.b16 %v7235
          %v7300 = vunpack.c.l.b16 %v7236
          %v7301 = vunpack.c.l.b16 %v7237
          %v7302 = vunpack.c.l.b16 %v7238
          %v7303 = vunpack.c.l.b16 %v7239
          %v7304 = vunpack.c.l.b16 %v7240
          %v7305 = vunpack.c.l.b16 %v7241
          %v7306 = vunpack.c.l.b16 %v7242
          %v7307 = vpack.c.b16 %v7276, %v7275
          %v7308 = vpack.c.b16 %v7278, %v7277
          %v7309 = vpack.c.b16 %v7280, %v7279
          %v7310 = vpack.c.b16 %v7282, %v7281
          %v7311 = vpack.c.b16 %v7284, %v7283
          %v7312 = vpack.c.b16 %v7286, %v7285
          %v7313 = vpack.c.b16 %v7288, %v7287
          %v7314 = vpack.c.b16 %v7290, %v7289
          %v7315 = vpack.c.b16 %v7292, %v7291
          %v7316 = vpack.c.b16 %v7294, %v7293
          %v7317 = vpack.c.b16 %v7296, %v7295
          %v7318 = vpack.c.b16 %v7298, %v7297
          %v7319 = vpack.c.b16 %v7300, %v7299
          %v7320 = vpack.c.b16 %v7302, %v7301
          %v7321 = vpack.c.b16 %v7304, %v7303
          %v7322 = vpack.c.b16 %v7306, %v7305
          %7339 = vmatpush.bf16.msra.mxu0 %v7314
          %7340 = vmatpush.bf16.msra.mxu0 %v7313
          %7341 = vmatpush.bf16.msra.mxu0 %v7312
          %7342 = vmatpush.bf16.msra.mxu0 %v7311
          %7343 = vmatpush.bf16.msra.mxu0 %v7310
          %7344 = vmatpush.bf16.msra.mxu0 %v7309
          %7345 = vmatpush.bf16.msra.mxu0 %v7308
          %7346 = vmatpush.bf16.msra.mxu0 %v7307
          %7347 = vmatmul.bf16.gmra.mxu0 %v7209
          %v7348 = vpop.f32.mrf.mxu0
          %v7349 = vadd.f32 0.0, %v7348
          %v7350 = vpop.f32.mrf.mxu0
          %7351 = vdwg.mxu0
          %7352 = vmatpush.bf16.msra.mxu0 %v7322
          %7353 = vmatpush.bf16.msra.mxu0 %v7321
          %7354 = vmatpush.bf16.msra.mxu0 %v7320
          %7355 = vmatpush.bf16.msra.mxu0 %v7319
          %7356 = vmatpush.bf16.msra.mxu0 %v7318
          %7357 = vmatpush.bf16.msra.mxu0 %v7317
          %7358 = vmatpush.bf16.msra.mxu0 %v7316
          %7359 = vmatpush.bf16.msra.mxu0 %v7315
          %7360 = vmatmul.bf16.gmra.mxu0 %v7210
          %v7361 = vpop.f32.mrf.mxu0
          %v7362 = vadd.f32 %v7349, %v7361
          %v7363 = vpop.f32.mrf.mxu0
          %7364 = vdwg.mxu0
          %7365 = vst [vmem:[%s902] sm:$0x1] %v7362
        $region124: #{vision_transformer_forward.1} parent=103 // pred_fallthru
          _
        %s7366 = sand.u32 %s567, 1
        %s7367 = scalar_lea.sflag [#allocation5], %s7366
        %s7368 = sand.u32 %s567, 1
        %s7369 = scalar_lea.vmem [#allocation9], %s7368
        // Predicated region
        $region125: #{vision_transformer_forward.1} parent=103 // pred_check
          %p7370 = pneg %p577
        $region126: #{vision_transformer_forward.1} parent=103 // pred_check_branch
          %7372 = sbr.rel (%p7370) target = $region128
        $region127: #{vision_transformer_forward.1} parent=103 // pred_region
          %7374 = vsyncadd %s7367, 0
          %s7375 = scalar_lea.hbm %s21, %s45
          %s7377 = sshll.u32 %s7369, 4
          %s7378 = int_to_ptr.vmem [resolvable:$true] %s7377
          %s7379 = sshll.u32 %s7375, 4
          %s7380 = int_to_ptr.hbm [resolvable:$true] %s7379
          %7382 = dma.vmem_to_hbm [thread:$0]  %s7378, 16, %s7380, %s7367
        $region128: #{vision_transformer_forward.1} parent=103 // pred_fallthru
          _
      $region104: #{vision_transformer_forward.1} parent=5 // pred_fallthru
        _
      %p7383 = scmp.le.s32.totalorder 2, %s36
      // Predicated region
      $region129: #{vision_transformer_forward.1} parent=5 // pred_check
        %p7384 = pneg %p7383
      $region130: #{vision_transformer_forward.1} parent=5 // pred_check_branch
        %7386 = sbr.rel (%p7384) target = $region132
      $region131: #{vision_transformer_forward.1} parent=5 // pred_region
        %s7387 = ssub.s32 %s36, 2
        // Predicated region
        $region133: #{vision_transformer_forward.1} parent=131 // pred_check
          %p7388 = pneg %p583
        $region134: #{vision_transformer_forward.1} parent=131 // pred_check_branch
          %7390 = sbr.rel (%p7388) target = $region136
        $region135: #{vision_transformer_forward.1} parent=131 // pred_region
          %s7391 = sand.u32 %s568, 1
          %s7392 = scalar_lea.sflag [#allocation5], %s7391
          %s7393 = sand.u32 %s568, 1
          %s7394 = scalar_lea.vmem [#allocation9], %s7393
          %7396 = dma.done %s7392, 16
        $region136: #{vision_transformer_forward.1} parent=131 // pred_fallthru
          _
      $region132: #{vision_transformer_forward.1} parent=5 // pred_fallthru
        _
    $region6: #{vision_transformer_forward.1} parent=1 // loop_footer
      %s40 = sadd.s32 1, %s36
    $region7: #{vision_transformer_forward.1} parent=1 // loop_footer_branch
      %35 = sbr.rel target = $region3
    $region8: #{vision_transformer_forward.1} parent=1 // loop_exit
      _
    %7397 = vsyncpa [#allocation4], 1
    %s7398 = scalar_lea.sflag [#allocation4], 1
    %7399 = vsyncpa %s7398, 1
    %7400 = vsyncpa [#allocation7], 1
    %s7401 = scalar_lea.sflag [#allocation7], 1
    %7402 = vsyncpa %s7401, 1
    %7403 = vsyncpa [#allocation5], 1
    %s7404 = scalar_lea.sflag [#allocation5], 1
    %7405 = vsyncpa %s7404, 1

</llo_original>
